<compile_context>
chip_gen: v7x
topology: tpu7x:2x2x1
jax: 0.10.0
libtpu: 0.0.40
codegen_flags: <defaults>
</compile_context>

<pallas_src>
import functools
import math

import jax
import jax.numpy as jnp
from jax.experimental import pallas as pl
from jax.experimental.pallas import tpu as pltpu


_VMEM_LIMIT = 48 * 1024 * 1024     # explicit scoped-VMEM budget; safe on v5e/v6e/v7x


# ----------------------------------------------------------------------------
# helpers
# ----------------------------------------------------------------------------

def _ln(x, g, b, eps=1e-5):
    """LayerNorm over the last dim; x f32 (rows, D), g/b (1, D)."""
    mu = jnp.mean(x, axis=-1, keepdims=True)
    var = jnp.mean(jnp.square(x - mu), axis=-1, keepdims=True)
    return (x - mu) * jax.lax.rsqrt(var + eps) * g + b


def _row_tile(n, target=256):
    """Return (tile, padded_n): tile is a multiple of 8, padded_n a multiple of tile."""
    t = min(n, target)
    for cand in range(t, 7, -1):
        if n % cand == 0 and cand % 8 == 0:
            return cand, n
    n_tiles = max(1, math.ceil(n / max(t, 8)))
    tile = math.ceil(n / n_tiles / 8) * 8
    return tile, tile * n_tiles


_SINGLE_BUFFER_OK = None


def _single_buffer_ok():
    """Probe once whether pipeline_mode=pl.Buffered(1) lowers on this backend."""
    global _SINGLE_BUFFER_OK
    if _SINGLE_BUFFER_OK is None:
        try:
            def _copy(x_ref, o_ref):
                o_ref[...] = x_ref[...]

            x = jnp.arange(8 * 128, dtype=jnp.float32).reshape(8, 128)
            out = pl.pallas_call(
                _copy,
                out_shape=jax.ShapeDtypeStruct((8, 128), jnp.float32),
                grid=(1,),
                in_specs=[pl.BlockSpec((8, 128), lambda i: (0, 0),
                                       pipeline_mode=pl.Buffered(1))],
                out_specs=pl.BlockSpec((8, 128), lambda i: (0, 0)),
            )(x)
            _SINGLE_BUFFER_OK = bool(jnp.all(out == x))
        except Exception:
            _SINGLE_BUFFER_OK = False
    return _SINGLE_BUFFER_OK


def _const_spec(shape):
    """BlockSpec for a grid-invariant operand (weights/biases); single-buffered if possible."""
    imap = lambda *_: (0,) * len(shape)
    if _single_buffer_ok():
        return pl.BlockSpec(shape, imap, pipeline_mode=pl.Buffered(1))
    return pl.BlockSpec(shape, imap)


def _to_heads(x, nhead):
    """(B, L, D) -> (B, H, L, dh) head-major layout (done once, in XLA, on bf16 data)."""
    B, L, D = x.shape
    dh = D // nhead
    return jnp.transpose(x.reshape(B, L, nhead, dh), (0, 2, 1, 3))


# ----------------------------------------------------------------------------
# fused kernels
# ----------------------------------------------------------------------------

def _ln_qkv_kernel(x_ref, pos_ref, g_ref, b_ref, wqk_ref, bqk_ref, wv_ref, bv_ref,
                   q_ref, k_ref, v_ref):
    """q||k = (LN(x)+pos) @ [Wq||Wk] (one fused matmul) ; v = LN(x) @ Wv."""
    x = x_ref[0].astype(jnp.float32)                         # (TL, D)
    xn = _ln(x, g_ref[...], b_ref[...])
    qk_in = (xn + pos_ref[...]).astype(jnp.bfloat16)
    v_in = xn.astype(jnp.bfloat16)
    D = wv_ref.shape[0]
    qk = jnp.dot(qk_in, wqk_ref[...], preferred_element_type=jnp.float32) + bqk_ref[...]
    q_ref[0] = qk[:, :D].astype(q_ref.dtype)                 # lane-aligned (D % 128 == 0)
    k_ref[0] = qk[:, D:].astype(k_ref.dtype)
    v_ref[0] = (jnp.dot(v_in, wv_ref[...], preferred_element_type=jnp.float32)
                + bv_ref[...]).astype(v_ref.dtype)


def _ln_q_kernel(x_ref, pos_ref, g_ref, b_ref, wq_ref, bq_ref, q_ref):
    """q = (LN(x) + pos) @ Wq  (cross-attention query proj)."""
    x = x_ref[0].astype(jnp.float32)
    xn = _ln(x, g_ref[...], b_ref[...])
    q_in = (xn + pos_ref[...]).astype(jnp.bfloat16)
    q_ref[0] = (jnp.dot(q_in, wq_ref[...], preferred_element_type=jnp.float32)
                + bq_ref[...]).astype(q_ref.dtype)


def _kv_kernel(x_ref, pos_ref, wk_ref, wv_ref, bk_ref, bv_ref, k_ref, v_ref):
    """k = (x + pos) @ Wk ; v = x @ Wv  (cross-attention key/value proj, no LN)."""
    x = x_ref[0].astype(jnp.float32)
    k_in = (x + pos_ref[...]).astype(jnp.bfloat16)
    v_in = x.astype(jnp.bfloat16)
    k_ref[0] = (jnp.dot(k_in, wk_ref[...], preferred_element_type=jnp.float32)
                + bk_ref[...]).astype(k_ref.dtype)
    v_ref[0] = (jnp.dot(v_in, wv_ref[...], preferred_element_type=jnp.float32)
                + bv_ref[...]).astype(v_ref.dtype)


def _mha_body(q_ref, k_ref, v_ref, res_ref, wo_ref, bo_ref, g_ref, b_ref, o_ref, mask_add):
    """Fused MHA + out-proj + LayerNorm + residual for one (batch, q-tile).

    q_ref (1, H, TQ, dh); k_ref/v_ref (1, H, Lk, dh); res_ref/o_ref (1, TQ, D);
    wo_ref (H, dh, D).  Heads are indexed on the untiled leading axis (no lane slicing);
    each head's output is streamed through its Wo slice into a (TQ, D) f32 accumulator.
    """
    H, dh, D = wo_ref.shape
    TQ = q_ref.shape[2]
    acc = jnp.zeros((TQ, D), jnp.float32)
    for h in range(H):                                       # static loop, leading-dim index
        qh = q_ref[0, h]                                     # (TQ, dh)
        kh = k_ref[0, h]                                     # (Lk, dh)
        vh = v_ref[0, h]
        # 1/sqrt(dh) already folded into the Q projection weights at init
        s = jax.lax.dot_general(qh, kh, (((1,), (1,)), ((), ())),
                                preferred_element_type=jnp.float32)   # (TQ, Lk)
        if mask_add is not None:
            s = s - mask_add
        s = s - jnp.max(s, axis=-1, keepdims=True)
        p = jnp.exp(s)
        p = p * pl.reciprocal(jnp.sum(p, axis=-1, keepdims=True), approx=True)
        oh = jnp.dot(p.astype(vh.dtype), vh, preferred_element_type=jnp.float32)  # (TQ, dh)
        acc = acc + jnp.dot(oh.astype(jnp.bfloat16), wo_ref[h],
                            preferred_element_type=jnp.float32)                   # (TQ, D)
    y = _ln(acc + bo_ref[...], g_ref[...], b_ref[...])
    o_ref[0] = (res_ref[0].astype(jnp.float32) + y).astype(o_ref.dtype)


def _mha_kernel(q_ref, k_ref, v_ref, res_ref, wo_ref, bo_ref, g_ref, b_ref, o_ref):
    _mha_body(q_ref, k_ref, v_ref, res_ref, wo_ref, bo_ref, g_ref, b_ref, o_ref, None)


def _mha_masked_kernel(q_ref, k_ref, v_ref, m_ref, res_ref, wo_ref, bo_ref, g_ref, b_ref,
                       o_ref):
    mask_add = m_ref[0] * 1e30                               # (1, Lk); 1.0 where padded
    _mha_body(q_ref, k_ref, v_ref, res_ref, wo_ref, bo_ref, g_ref, b_ref, o_ref, mask_add)


def _ffn_kernel(x_ref, g3_ref, b3_ref, w1_ref, b1_ref, gf_ref, bf_ref,
                w2_ref, b2_ref, o_ref):
    """out = x + Linear2(LN_F(ReLU(Linear1(LN3(x)))))."""
    x = x_ref[...].astype(jnp.float32)                       # (TN, D)
    xn = _ln(x, g3_ref[...], b3_ref[...])
    h = jnp.dot(xn.astype(jnp.bfloat16), w1_ref[...],
                preferred_element_type=jnp.float32) + b1_ref[...]
    h = jnp.maximum(h, 0.0)
    hn = _ln(h, gf_ref[...], bf_ref[...])
    y = jnp.dot(hn.astype(jnp.bfloat16), w2_ref[...],
                preferred_element_type=jnp.float32) + b2_ref[...]
    o_ref[...] = (x + y).astype(o_ref.dtype)


# ----------------------------------------------------------------------------
# pallas_call wrappers
# ----------------------------------------------------------------------------

def ln_qkv_proj(x, pos, g, b, wqk, bqk, wv, bv, row_tile=256):
    """x: (B, L, D) f32; pos: (L, D) f32; wqk: (D, 2D) bf16; wv: (D, D) bf16."""
    B, L, D = x.shape
    TL, Lp = _row_tile(L, row_tile)
    if Lp != L:
        x = jnp.pad(x, ((0, 0), (0, Lp - L), (0, 0)))
        pos = jnp.pad(pos, ((0, Lp - L), (0, 0)))
    x_spec = pl.BlockSpec((1, TL, D), lambda gb, gi: (gb, gi, 0))
    pos_spec = pl.BlockSpec((TL, D), lambda gb, gi: (gi, 0))
    out_spec = pl.BlockSpec((1, TL, D), lambda gb, gi: (gb, gi, 0))
    q, k, v = pl.pallas_call(
        _ln_qkv_kernel,
        out_shape=tuple(jax.ShapeDtypeStruct((B, Lp, D), jnp.bfloat16) for _ in range(3)),
        grid=(B, Lp // TL),
        in_specs=[x_spec, pos_spec, _const_spec((1, D)), _const_spec((1, D)),
                  _const_spec((D, 2 * D)), _const_spec((1, 2 * D)),
                  _const_spec((D, D)), _const_spec((1, D))],
        out_specs=[out_spec, out_spec, out_spec],
        compiler_params=pltpu.CompilerParams(
            dimension_semantics=("parallel", "parallel"),
            vmem_limit_bytes=_VMEM_LIMIT),
    )(x, pos, g.reshape(1, D), b.reshape(1, D), wqk, bqk.reshape(1, 2 * D),
      wv, bv.reshape(1, D))
    if Lp != L:
        q, k, v = q[:, :L], k[:, :L], v[:, :L]
    return q, k, v


def ln_q_proj(x, pos, g, b, wq, bq, row_tile=256):
    B, L, D = x.shape
    TL, Lp = _row_tile(L, row_tile)
    if Lp != L:
        x = jnp.pad(x, ((0, 0), (0, Lp - L), (0, 0)))
        pos = jnp.pad(pos, ((0, Lp - L), (0, 0)))
    x_spec = pl.BlockSpec((1, TL, D), lambda gb, gi: (gb, gi, 0))
    pos_spec = pl.BlockSpec((TL, D), lambda gb, gi: (gi, 0))
    out_spec = pl.BlockSpec((1, TL, D), lambda gb, gi: (gb, gi, 0))
    q = pl.pallas_call(
        _ln_q_kernel,
        out_shape=jax.ShapeDtypeStruct((B, Lp, D), jnp.bfloat16),
        grid=(B, Lp // TL),
        in_specs=[x_spec, pos_spec, _const_spec((1, D)), _const_spec((1, D)),
                  _const_spec((D, D)), _const_spec((1, D))],
        out_specs=out_spec,
        compiler_params=pltpu.CompilerParams(
            dimension_semantics=("parallel", "parallel"),
            vmem_limit_bytes=_VMEM_LIMIT),
    )(x, pos, g.reshape(1, D), b.reshape(1, D), wq, bq.reshape(1, D))
    return q[:, :L] if Lp != L else q


def kv_proj(x, pos, wk, wv, bk, bv, row_tile=256):
    B, L, D = x.shape
    TL, Lp = _row_tile(L, row_tile)
    if Lp != L:
        x = jnp.pad(x, ((0, 0), (0, Lp - L), (0, 0)))
        pos = jnp.pad(pos, ((0, Lp - L), (0, 0)))
    x_spec = pl.BlockSpec((1, TL, D), lambda gb, gi: (gb, gi, 0))
    pos_spec = pl.BlockSpec((TL, D), lambda gb, gi: (gi, 0))
    out_spec = pl.BlockSpec((1, TL, D), lambda gb, gi: (gb, gi, 0))
    k, v = pl.pallas_call(
        _kv_kernel,
        out_shape=tuple(jax.ShapeDtypeStruct((B, Lp, D), jnp.bfloat16) for _ in range(2)),
        grid=(B, Lp // TL),
        in_specs=[x_spec, pos_spec, _const_spec((D, D)), _const_spec((D, D)),
                  _const_spec((1, D)), _const_spec((1, D))],
        out_specs=[out_spec, out_spec],
        compiler_params=pltpu.CompilerParams(
            dimension_semantics=("parallel", "parallel"),
            vmem_limit_bytes=_VMEM_LIMIT),
    )(x, pos, wk, wv, bk.reshape(1, D), bv.reshape(1, D))
    if Lp != L:
        k, v = k[:, :L], v[:, :L]
    return k, v


def mha_block(qh, kh, vh, resid, wo, bo, g, b, mask=None, q_tile=256):
    """Fused multi-head attention + out-projection + LayerNorm + residual add.

    qh: (B, H, Lq, dh) bf16; kh/vh: (B, H, Lk, dh) bf16; resid: (B, Lq, D) f32;
    wo: (H, dh, D) bf16; mask: (B, 1, Lk) f32 (1.0 = padded key) or None.
    Returns (B, Lq, D) f32 = resid + LN(attn @ Wo + bo).
    """
    B, H, Lq, dh = qh.shape
    Lk = kh.shape[2]
    D = H * dh
    TQ, Lqp = _row_tile(Lq, q_tile)
    if Lqp != Lq:
        qh = jnp.pad(qh, ((0, 0), (0, 0), (0, Lqp - Lq), (0, 0)))
        resid = jnp.pad(resid, ((0, 0), (0, Lqp - Lq), (0, 0)))
    q_spec = pl.BlockSpec((1, H, TQ, dh), lambda gb, qi: (gb, 0, qi, 0))
    kv_spec = pl.BlockSpec((1, H, Lk, dh), lambda gb, qi: (gb, 0, 0, 0))
    r_spec = pl.BlockSpec((1, TQ, D), lambda gb, qi: (gb, qi, 0))
    out_spec = pl.BlockSpec((1, TQ, D), lambda gb, qi: (gb, qi, 0))
    wo_spec = _const_spec((H, dh, D))
    vd_spec = _const_spec((1, D))
    if mask is None:
        kernel = _mha_kernel
        in_specs = [q_spec, kv_spec, kv_spec, r_spec, wo_spec, vd_spec, vd_spec, vd_spec]
        args = (qh, kh, vh, resid, wo, bo.reshape(1, D), g.reshape(1, D), b.reshape(1, D))
    else:
        kernel = _mha_masked_kernel
        m_spec = pl.BlockSpec((1, 1, Lk), lambda gb, qi: (gb, 0, 0))
        in_specs = [q_spec, kv_spec, kv_spec, m_spec, r_spec, wo_spec, vd_spec, vd_spec,
                    vd_spec]
        args = (qh, kh, vh, mask, resid, wo, bo.reshape(1, D), g.reshape(1, D),
                b.reshape(1, D))
    out = pl.pallas_call(
        kernel,
        out_shape=jax.ShapeDtypeStruct((B, Lqp, D), jnp.float32),
        grid=(B, Lqp // TQ),
        in_specs=in_specs,
        out_specs=out_spec,
        compiler_params=pltpu.CompilerParams(
            dimension_semantics=("parallel", "parallel"),
            vmem_limit_bytes=_VMEM_LIMIT),
    )(*args)
    return out[:, :Lq] if Lqp != Lq else out


def ffn_residual(x, g3, b3, w1, b1, gf, bfv, w2, b2, row_tile=256):
    """x + FFN(LN3(x)); x (B, L, D) f32; w1 (D, F) bf16; w2 (F, D) bf16."""
    B, L, D = x.shape
    F = w1.shape[1]
    N = B * L
    TN, Np = _row_tile(N, row_tile)
    x2 = x.reshape(N, D)
    if Np != N:
        x2 = jnp.pad(x2, ((0, Np - N), (0, 0)))
    row_spec = pl.BlockSpec((TN, D), lambda gi: (gi, 0))
    out = pl.pallas_call(
        _ffn_kernel,
        out_shape=jax.ShapeDtypeStruct((Np, D), x.dtype),
        grid=(Np // TN,),
        in_specs=[row_spec, _const_spec((1, D)), _const_spec((1, D)),
                  _const_spec((D, F)), _const_spec((1, F)),
                  _const_spec((1, F)), _const_spec((1, F)),
                  _const_spec((F, D)), _const_spec((1, D))],
        out_specs=row_spec,
        compiler_params=pltpu.CompilerParams(
            dimension_semantics=("parallel",),
            vmem_limit_bytes=_VMEM_LIMIT),
    )(x2, g3.reshape(1, D), b3.reshape(1, D), w1, b1.reshape(1, F),
      gf.reshape(1, F), bfv.reshape(1, F), w2, b2.reshape(1, D))
    if Np != N:
        out = out[:N]
    return out.reshape(B, L, D)


# ----------------------------------------------------------------------------
# TransformerDecoderLayer forward (eval-mode semantics)
# ----------------------------------------------------------------------------

def decoder_layer_forward(p, vis, txt, vis_pos, txt_pos, pad_mask, nhead):
    """vis: (Lv, B, D); txt: (Lt, B, D); *_pos: (L, 1, D); pad_mask: (B, Lt) bool."""
    # TODO(synk): fold this (L,B,D)<->(B,L,D) permutation into the BlockSpec index maps.
    visb = jnp.transpose(vis, (1, 0, 2))                     # (B, Lv, D) batch-first
    txtb = jnp.transpose(txt, (1, 0, 2))                     # (B, Lt, D)
    vpos = vis_pos[:, 0, :]                                  # (Lv, D)
    tpos = txt_pos[:, 0, :]                                  # (Lt, D)

    # --- self attention: LN1 -> fused QK/V proj -> fused attn+Wo+sa_norm+residual ---
    q, k, v = ln_qkv_proj(visb, vpos, p["norm1_g"], p["norm1_b"],
                          p["sa_wqk"], p["sa_bqk"], p["sa_wv"], p["sa_bv"])
    visb = mha_block(_to_heads(q, nhead), _to_heads(k, nhead), _to_heads(v, nhead),
                     visb, p["sa_wo"], p["sa_bo"], p["sa_norm_g"], p["sa_norm_b"])

    # --- cross attention: LN2 -> Q proj / KV proj -> fused attn+Wo+ca_norm+residual ---
    q = ln_q_proj(visb, vpos, p["norm2_g"], p["norm2_b"], p["ca_wq"], p["ca_bq"])
    k, v = kv_proj(txtb, tpos, p["ca_wk"], p["ca_wv"], p["ca_bk"], p["ca_bv"])
    pad_f = pad_mask.astype(jnp.float32)[:, None, :]         # (B, 1, Lt); 1.0 = padded
    visb = mha_block(_to_heads(q, nhead), _to_heads(k, nhead), _to_heads(v, nhead),
                     visb, p["ca_wo"], p["ca_bo"], p["ca_norm_g"], p["ca_norm_b"],
                     mask=pad_f)

    # --- feed-forward: LN3 -> Linear+ReLU -> LN(F) -> Linear -> residual ---
    visb = ffn_residual(visb, p["norm3_g"], p["norm3_b"],
                        p["ffn_w1"], p["ffn_b1"], p["ffn_ln_g"], p["ffn_ln_b"],
                        p["ffn_w2"], p["ffn_b2"])

    return jnp.transpose(visb, (1, 0, 2))                    # back to (Lv, B, D)


# ----------------------------------------------------------------------------
# parameters (torch-style shapes -> kernel-friendly layout/dtype, done once)
# ----------------------------------------------------------------------------

def init_params(key, d_model, dim_feedforward):
    ks = jax.random.split(key, 6)
    n = lambda k, shape: jax.random.normal(k, shape, jnp.float32) * 0.02
    D, F = d_model, dim_feedforward
    return {
        "norm1_g": jnp.ones((D,), jnp.float32), "norm1_b": jnp.zeros((D,), jnp.float32),
        "norm2_g": jnp.ones((D,), jnp.float32), "norm2_b": jnp.zeros((D,), jnp.float32),
        "norm3_g": jnp.ones((D,), jnp.float32), "norm3_b": jnp.zeros((D,), jnp.float32),
        "sa_norm_g": jnp.ones((D,), jnp.float32), "sa_norm_b": jnp.zeros((D,), jnp.float32),
        "ca_norm_g": jnp.ones((D,), jnp.float32), "ca_norm_b": jnp.zeros((D,), jnp.float32),
        "ffn_ln_g": jnp.ones((F,), jnp.float32), "ffn_ln_b": jnp.zeros((F,), jnp.float32),
        "sa_in_w": n(ks[0], (3 * D, D)), "sa_in_b": jnp.zeros((3 * D,), jnp.float32),
        "sa_out_w": n(ks[1], (D, D)), "sa_out_b": jnp.zeros((D,), jnp.float32),
        "ca_in_w": n(ks[2], (3 * D, D)), "ca_in_b": jnp.zeros((3 * D,), jnp.float32),
        "ca_out_w": n(ks[3], (D, D)), "ca_out_b": jnp.zeros((D,), jnp.float32),
        "ffn_w1": n(ks[4], (F, D)), "ffn_b1": jnp.zeros((F,), jnp.float32),
        "ffn_w2": n(ks[5], (D, F)), "ffn_b2": jnp.zeros((D,), jnp.float32),
    }


def prepare_params(raw, nhead):
    """Pre-transpose weights to (Din, Dout), fuse Wq||Wk for self-attn, fold 1/sqrt(dh)
    into the Q projections, reshape Wo head-major, cast MXU weights to bf16 once."""
    D = raw["norm1_g"].shape[0]
    dh = D // nhead
    scale = 1.0 / math.sqrt(dh)
    bf16 = jnp.bfloat16

    def split(in_w, in_b):
        return (in_w[:D], in_w[D:2 * D], in_w[2 * D:],
                in_b[:D], in_b[D:2 * D], in_b[2 * D:])

    sa_wq, sa_wk, sa_wv, sa_bq, sa_bk, sa_bv = split(raw["sa_in_w"], raw["sa_in_b"])
    ca_wq, ca_wk, ca_wv, ca_bq, ca_bk, ca_bv = split(raw["ca_in_w"], raw["ca_in_b"])

    p = {k: raw[k] for k in [
        "norm1_g", "norm1_b", "norm2_g", "norm2_b", "norm3_g", "norm3_b",
        "sa_norm_g", "sa_norm_b", "ca_norm_g", "ca_norm_b", "ffn_ln_g", "ffn_ln_b"]}
    p.update(
        # self-attention: fused [Wq||Wk] (scale folded into Q half), separate Wv
        sa_wqk=jnp.concatenate([sa_wq.T * scale, sa_wk.T], axis=1).astype(bf16),
        sa_bqk=jnp.concatenate([sa_bq * scale, sa_bk], axis=0),
        sa_wv=sa_wv.T.astype(bf16), sa_bv=sa_bv,
        sa_wo=raw["sa_out_w"].T.reshape(nhead, dh, D).astype(bf16), sa_bo=raw["sa_out_b"],
        # cross-attention
        ca_wq=(ca_wq.T * scale).astype(bf16), ca_bq=ca_bq * scale,
        ca_wk=ca_wk.T.astype(bf16), ca_bk=ca_bk,
        ca_wv=ca_wv.T.astype(bf16), ca_bv=ca_bv,
        ca_wo=raw["ca_out_w"].T.reshape(nhead, dh, D).astype(bf16), ca_bo=raw["ca_out_b"],
        # FFN
        ffn_w1=raw["ffn_w1"].T.astype(bf16), ffn_b1=raw["ffn_b1"],
        ffn_w2=raw["ffn_w2"].T.astype(bf16), ffn_b2=raw["ffn_b2"],
    )
    return p


# ----------------------------------------------------------------------------
# Demo
# ----------------------------------------------------------------------------

if __name__ == "__main__":
    # Small but tile-friendly config (the module default d_model=512, nhead=9 is not
    # divisible, so we pick a valid configuration; D and F multiples of 128).
    d_model, nhead, dim_feedforward = 128, 4, 256
    Lv, Lt, B = 64, 16, 2

    _single_buffer_ok()                    # resolve the pl.Buffered(1) probe up front

    key = jax.random.PRNGKey(0)
    kp, kv_, kt, kvp, ktp = jax.random.split(key, 5)

    params = prepare_params(init_params(kp, d_model, dim_feedforward), nhead)

    vis = jax.random.normal(kv_, (Lv, B, d_model), jnp.float32)      # 26*26, b, 512 analogue
    txt = jax.random.normal(kt, (Lt, B, d_model), jnp.float32)       # L, b, 512 analogue
    vis_pos = jax.random.normal(kvp, (Lv, 1, d_model), jnp.float32)
    txt_pos = jax.random.normal(ktp, (Lt, 1, d_model), jnp.float32)
    # key_padding_mask: True = padded position (ignored by cross attention)
    pad_mask = jnp.zeros((B, Lt), jnp.bool_).at[0, 12:].set(True).at[1, 10:].set(True)

    fwd = jax.jit(functools.partial(decoder_layer_forward, nhead=nhead))
    out = fwd(params, vis, txt, vis_pos, txt_pos, pad_mask)
    jax.block_until_ready(out)
    assert out.shape == (Lv, B, d_model)
    assert bool(jnp.all(jnp.isfinite(out)))
    print("KERNEL_OK")
</pallas_src>

<mosaic_0001>
module attributes {stable_mosaic.version = 11 : i64} {
  func.func @_copy(%arg0: i32, %arg1: memref<8x128xf32, #tpu.memory_space<vmem>>, %arg2: memref<8x128xf32, #tpu.memory_space<vmem>>) attributes {dimension_semantics = [#tpu.dimension_semantics<arbitrary>], iteration_bounds = array<i64: 1>, scalar_prefetch = 0 : i64, scratch_operands = 0 : i64, tpu.core_type = #tpu.core_type<tc>, window_params = [{pipeline_mode = #tpu.pipeline_mode<synchronous>, transform_indices = @transform_0, window_bounds = array<i64: 8, 128>}, {pipeline_mode = #tpu.pipeline_mode<synchronous>, transform_indices = @transform_1, window_bounds = array<i64: 8, 128>}]} {
    %c0 = arith.constant 0 : index
    %c0_0 = arith.constant 0 : index
    %0 = vector.load %arg1[%c0, %c0_0] : memref<8x128xf32, #tpu.memory_space<vmem>>, vector<8x128xf32>
    %c0_1 = arith.constant 0 : index
    %c0_2 = arith.constant 0 : index
    %1 = vector.load %arg2[%c0_1, %c0_2] : memref<8x128xf32, #tpu.memory_space<vmem>>, vector<8x128xf32>
    tpu.vector_store %arg2[%c0_1, %c0_2], %0 {strides = array<i32>} : memref<8x128xf32, #tpu.memory_space<vmem>>, vector<8x128xf32>,
    return
  }
  func.func @transform_0(%arg0: i32) -> (i32, i32) {
    %c0_i32 = arith.constant 0 : i32
    %c0_i32_0 = arith.constant 0 : i32
    %c0_i32_1 = arith.constant 0 : i32
    return %c0_i32, %c0_i32_0 : i32, i32
  }
  func.func @transform_1(%arg0: i32) -> (i32, i32) {
    %c0_i32 = arith.constant 0 : i32
    %c0_i32_0 = arith.constant 0 : i32
    %c0_i32_1 = arith.constant 0 : i32
    return %c0_i32, %c0_i32_0 : i32, i32
  }
}

module attributes {stable_mosaic.version = 11 : i64} {
  func.func @_kv_kernel(%arg0: i32, %arg1: i32, %arg2: memref<1x16x128xf32, #tpu.memory_space<vmem>>, %arg3: memref<16x128xf32, #tpu.memory_space<vmem>>, %arg4: memref<128x128xbf16, #tpu.memory_space<vmem>>, %arg5: memref<128x128xbf16, #tpu.memory_space<vmem>>, %arg6: memref<1x128xf32, #tpu.memory_space<vmem>>, %arg7: memref<1x128xf32, #tpu.memory_space<vmem>>, %arg8: memref<1x16x128xbf16, #tpu.memory_space<vmem>>, %arg9: memref<1x16x128xbf16, #tpu.memory_space<vmem>>) attributes {dimension_semantics = [#tpu.dimension_semantics<parallel>, #tpu.dimension_semantics<parallel>], iteration_bounds = array<i64: 2, 1>, scalar_prefetch = 0 : i64, scratch_operands = 0 : i64, tpu.core_type = #tpu.core_type<tc>, window_params = [{transform_indices = @transform_0, window_bounds = array<i64: 1, 16, 128>}, {transform_indices = @transform_1, window_bounds = array<i64: 16, 128>}, {pipeline_mode = #tpu.pipeline_mode<synchronous>, transform_indices = @transform_2, window_bounds = array<i64: 128, 128>}, {pipeline_mode = #tpu.pipeline_mode<synchronous>, transform_indices = @transform_3, window_bounds = array<i64: 128, 128>}, {pipeline_mode = #tpu.pipeline_mode<synchronous>, transform_indices = @transform_4, window_bounds = array<i64: 1, 128>}, {pipeline_mode = #tpu.pipeline_mode<synchronous>, transform_indices = @transform_5, window_bounds = array<i64: 1, 128>}, {transform_indices = @transform_6, window_bounds = array<i64: 1, 16, 128>}, {transform_indices = @transform_7, window_bounds = array<i64: 1, 16, 128>}]} {
    %c0 = arith.constant 0 : index
    %c0_0 = arith.constant 0 : index
    %c0_1 = arith.constant 0 : index
    %0 = vector.load %arg2[%c0, %c0_0, %c0_1] : memref<1x16x128xf32, #tpu.memory_space<vmem>>, vector<1x16x128xf32>
    %1 = vector.shape_cast %0 : vector<1x16x128xf32> to vector<16x128xf32>
    %c0_2 = arith.constant 0 : index
    %c0_3 = arith.constant 0 : index
    %2 = vector.load %arg3[%c0_2, %c0_3] : memref<16x128xf32, #tpu.memory_space<vmem>>, vector<16x128xf32>
    %3 = arith.addf %1, %2 : vector<16x128xf32>
    %4 = arith.truncf %3 : vector<16x128xf32> to vector<16x128xbf16>
    %5 = arith.truncf %1 : vector<16x128xf32> to vector<16x128xbf16>
    %c0_4 = arith.constant 0 : index
    %c0_5 = arith.constant 0 : index
    %6 = vector.load %arg4[%c0_4, %c0_5] : memref<128x128xbf16, #tpu.memory_space<vmem>>, vector<128x128xbf16>
    %cst = arith.constant dense<0.000000e+00> : vector<16x128xf32>
    %7 = tpu.matmul %4, %6, %cst {dimension_numbers = #tpu.dot_dimension_numbers<[1], [0], [0], [1], [0, 0, 1, 1], [], []>} : vector<16x128xbf16>, vector<128x128xbf16>, vector<16x128xf32> -> vector<16x128xf32>
    %c0_6 = arith.constant 0 : index
    %c0_7 = arith.constant 0 : index
    %8 = vector.load %arg6[%c0_6, %c0_7] : memref<1x128xf32, #tpu.memory_space<vmem>>, vector<1x128xf32>
    %9 = vector.broadcast %8 : vector<1x128xf32> to vector<16x128xf32>
    %10 = arith.addf %7, %9 : vector<16x128xf32>
    %11 = arith.truncf %10 : vector<16x128xf32> to vector<16x128xbf16>
    %c0_8 = arith.constant 0 : index
    %c0_9 = arith.constant 0 : index
    %c0_10 = arith.constant 0 : index
    %12 = vector.load %arg8[%c0_8, %c0_9, %c0_10] : memref<1x16x128xbf16, #tpu.memory_space<vmem>>, vector<1x16x128xbf16>
    %13 = vector.shape_cast %12 : vector<1x16x128xbf16> to vector<16x128xbf16>
    %14 = vector.shape_cast %11 : vector<16x128xbf16> to vector<1x16x128xbf16>
    tpu.vector_store %arg8[%c0_8, %c0_9, %c0_10], %14 {strides = array<i32>} : memref<1x16x128xbf16, #tpu.memory_space<vmem>>, vector<1x16x128xbf16>,
    %c0_11 = arith.constant 0 : index
    %c0_12 = arith.constant 0 : index
    %15 = vector.load %arg5[%c0_11, %c0_12] : memref<128x128xbf16, #tpu.memory_space<vmem>>, vector<128x128xbf16>
    %cst_13 = arith.constant dense<0.000000e+00> : vector<16x128xf32>
    %16 = tpu.matmul %5, %15, %cst_13 {dimension_numbers = #tpu.dot_dimension_numbers<[1], [0], [0], [1], [0, 0, 1, 1], [], []>} : vector<16x128xbf16>, vector<128x128xbf16>, vector<16x128xf32> -> vector<16x128xf32>
    %c0_14 = arith.constant 0 : index
    %c0_15 = arith.constant 0 : index
    %17 = vector.load %arg7[%c0_14, %c0_15] : memref<1x128xf32, #tpu.memory_space<vmem>>, vector<1x128xf32>
    %18 = vector.broadcast %17 : vector<1x128xf32> to vector<16x128xf32>
    %19 = arith.addf %16, %18 : vector<16x128xf32>
    %20 = arith.truncf %19 : vector<16x128xf32> to vector<16x128xbf16>
    %c0_16 = arith.constant 0 : index
    %c0_17 = arith.constant 0 : index
    %c0_18 = arith.constant 0 : index
    %21 = vector.load %arg9[%c0_16, %c0_17, %c0_18] : memref<1x16x128xbf16, #tpu.memory_space<vmem>>, vector<1x16x128xbf16>
    %22 = vector.shape_cast %21 : vector<1x16x128xbf16> to vector<16x128xbf16>
    %23 = vector.shape_cast %20 : vector<16x128xbf16> to vector<1x16x128xbf16>
    tpu.vector_store %arg9[%c0_16, %c0_17, %c0_18], %23 {strides = array<i32>} : memref<1x16x128xbf16, #tpu.memory_space<vmem>>, vector<1x16x128xbf16>,
    return
  }
  func.func @transform_0(%arg0: i32, %arg1: i32) -> (i32, i32, i32) {
    %c0_i32 = arith.constant 0 : i32
    %c0_i32_0 = arith.constant 0 : i32
    return %arg0, %arg1, %c0_i32 : i32, i32, i32
  }
  func.func @transform_1(%arg0: i32, %arg1: i32) -> (i32, i32) {
    %c0_i32 = arith.constant 0 : i32
    %c0_i32_0 = arith.constant 0 : i32
    return %arg1, %c0_i32 : i32, i32
  }
  func.func @transform_2(%arg0: i32, %arg1: i32) -> (i32, i32) {
    %c0_i32 = arith.constant 0 : i32
    %c0_i32_0 = arith.constant 0 : i32
    %c0_i32_1 = arith.constant 0 : i32
    return %c0_i32, %c0_i32_0 : i32, i32
  }
  func.func @transform_3(%arg0: i32, %arg1: i32) -> (i32, i32) {
    %c0_i32 = arith.constant 0 : i32
    %c0_i32_0 = arith.constant 0 : i32
    %c0_i32_1 = arith.constant 0 : i32
    return %c0_i32, %c0_i32_0 : i32, i32
  }
  func.func @transform_4(%arg0: i32, %arg1: i32) -> (i32, i32) {
    %c0_i32 = arith.constant 0 : i32
    %c0_i32_0 = arith.constant 0 : i32
    %c0_i32_1 = arith.constant 0 : i32
    return %c0_i32, %c0_i32_0 : i32, i32
  }
  func.func @transform_5(%arg0: i32, %arg1: i32) -> (i32, i32) {
    %c0_i32 = arith.constant 0 : i32
    %c0_i32_0 = arith.constant 0 : i32
    %c0_i32_1 = arith.constant 0 : i32
    return %c0_i32, %c0_i32_0 : i32, i32
  }
  func.func @transform_6(%arg0: i32, %arg1: i32) -> (i32, i32, i32) {
    %c0_i32 = arith.constant 0 : i32
    %c0_i32_0 = arith.constant 0 : i32
    return %arg0, %arg1, %c0_i32 : i32, i32, i32
  }
  func.func @transform_7(%arg0: i32, %arg1: i32) -> (i32, i32, i32) {
    %c0_i32 = arith.constant 0 : i32
    %c0_i32_0 = arith.constant 0 : i32
    return %arg0, %arg1, %c0_i32 : i32, i32, i32
  }
}

module attributes {stable_mosaic.version = 11 : i64} {
  func.func @_ln_qkv_kernel(%arg0: i32, %arg1: i32, %arg2: memref<1x64x128xf32, #tpu.memory_space<vmem>>, %arg3: memref<64x128xf32, #tpu.memory_space<vmem>>, %arg4: memref<1x128xf32, #tpu.memory_space<vmem>>, %arg5: memref<1x128xf32, #tpu.memory_space<vmem>>, %arg6: memref<128x256xbf16, #tpu.memory_space<vmem>>, %arg7: memref<1x256xf32, #tpu.memory_space<vmem>>, %arg8: memref<128x128xbf16, #tpu.memory_space<vmem>>, %arg9: memref<1x128xf32, #tpu.memory_space<vmem>>, %arg10: memref<1x64x128xbf16, #tpu.memory_space<vmem>>, %arg11: memref<1x64x128xbf16, #tpu.memory_space<vmem>>, %arg12: memref<1x64x128xbf16, #tpu.memory_space<vmem>>) attributes {dimension_semantics = [#tpu.dimension_semantics<parallel>, #tpu.dimension_semantics<parallel>], iteration_bounds = array<i64: 2, 1>, scalar_prefetch = 0 : i64, scratch_operands = 0 : i64, tpu.core_type = #tpu.core_type<tc>, window_params = [{transform_indices = @transform_0, window_bounds = array<i64: 1, 64, 128>}, {transform_indices = @transform_1, window_bounds = array<i64: 64, 128>}, {pipeline_mode = #tpu.pipeline_mode<synchronous>, transform_indices = @transform_2, window_bounds = array<i64: 1, 128>}, {pipeline_mode = #tpu.pipeline_mode<synchronous>, transform_indices = @transform_3, window_bounds = array<i64: 1, 128>}, {pipeline_mode = #tpu.pipeline_mode<synchronous>, transform_indices = @transform_4, window_bounds = array<i64: 128, 256>}, {pipeline_mode = #tpu.pipeline_mode<synchronous>, transform_indices = @transform_5, window_bounds = array<i64: 1, 256>}, {pipeline_mode = #tpu.pipeline_mode<synchronous>, transform_indices = @transform_6, window_bounds = array<i64: 128, 128>}, {pipeline_mode = #tpu.pipeline_mode<synchronous>, transform_indices = @transform_7, window_bounds = array<i64: 1, 128>}, {transform_indices = @transform_8, window_bounds = array<i64: 1, 64, 128>}, {transform_indices = @transform_9, window_bounds = array<i64: 1, 64, 128>}, {transform_indices = @transform_10, window_bounds = array<i64: 1, 64, 128>}]} {
    %c0 = arith.constant 0 : index
    %c0_0 = arith.constant 0 : index
    %c0_1 = arith.constant 0 : index
    %0 = vector.load %arg2[%c0, %c0_0, %c0_1] : memref<1x64x128xf32, #tpu.memory_space<vmem>>, vector<1x64x128xf32>
    %1 = vector.shape_cast %0 : vector<1x64x128xf32> to vector<64x128xf32>
    %c0_2 = arith.constant 0 : index
    %c0_3 = arith.constant 0 : index
    %2 = vector.load %arg4[%c0_2, %c0_3] : memref<1x128xf32, #tpu.memory_space<vmem>>, vector<1x128xf32>
    %c0_4 = arith.constant 0 : index
    %c0_5 = arith.constant 0 : index
    %3 = vector.load %arg5[%c0_4, %c0_5] : memref<1x128xf32, #tpu.memory_space<vmem>>, vector<1x128xf32>
    %cst = arith.constant dense<0.000000e+00> : vector<64xf32>
    %4 = vector.multi_reduction <add>, %1, %cst [1] : vector<64x128xf32> to vector<64xf32>
    %5 = vector.shape_cast %4 : vector<64xf32> to vector<64x1xf32>
    %cst_6 = arith.constant 1.280000e+02 : f32
    %6 = vector.broadcast %cst_6 : f32 to vector<64x1xf32>
    %7 = arith.divf %5, %6 : vector<64x1xf32>
    %8 = vector.broadcast %7 : vector<64x1xf32> to vector<64x128xf32>
    %9 = arith.subf %1, %8 : vector<64x128xf32>
    %10 = arith.mulf %9, %9 : vector<64x128xf32>
    %cst_7 = arith.constant dense<0.000000e+00> : vector<64xf32>
    %11 = vector.multi_reduction <add>, %10, %cst_7 [1] : vector<64x128xf32> to vector<64xf32>
    %12 = vector.shape_cast %11 : vector<64xf32> to vector<64x1xf32>
    %cst_8 = arith.constant 1.280000e+02 : f32
    %13 = vector.broadcast %cst_8 : f32 to vector<64x1xf32>
    %14 = arith.divf %12, %13 : vector<64x1xf32>
    %15 = vector.broadcast %7 : vector<64x1xf32> to vector<64x128xf32>
    %16 = arith.subf %1, %15 : vector<64x128xf32>
    %cst_9 = arith.constant 9.99999974E-6 : f32
    %17 = vector.broadcast %cst_9 : f32 to vector<64x1xf32>
    %18 = arith.addf %14, %17 : vector<64x1xf32>
    %19 = math.rsqrt %18 : vector<64x1xf32>
    %20 = vector.broadcast %19 : vector<64x1xf32> to vector<64x128xf32>
    %21 = arith.mulf %16, %20 : vector<64x128xf32>
    %22 = vector.broadcast %2 : vector<1x128xf32> to vector<64x128xf32>
    %23 = arith.mulf %21, %22 : vector<64x128xf32>
    %24 = vector.broadcast %3 : vector<1x128xf32> to vector<64x128xf32>
    %25 = arith.addf %23, %24 : vector<64x128xf32>
    %c0_10 = arith.constant 0 : index
    %c0_11 = arith.constant 0 : index
    %26 = vector.load %arg3[%c0_10, %c0_11] : memref<64x128xf32, #tpu.memory_space<vmem>>, vector<64x128xf32>
    %27 = arith.addf %25, %26 : vector<64x128xf32>
    %28 = arith.truncf %27 : vector<64x128xf32> to vector<64x128xbf16>
    %29 = arith.truncf %25 : vector<64x128xf32> to vector<64x128xbf16>
    %c0_12 = arith.constant 0 : index
    %c0_13 = arith.constant 0 : index
    %30 = vector.load %arg6[%c0_12, %c0_13] : memref<128x256xbf16, #tpu.memory_space<vmem>>, vector<128x256xbf16>
    %cst_14 = arith.constant dense<0.000000e+00> : vector<64x256xf32>
    %31 = tpu.matmul %28, %30, %cst_14 {dimension_numbers = #tpu.dot_dimension_numbers<[1], [0], [0], [1], [0, 0, 1, 1], [], []>} : vector<64x128xbf16>, vector<128x256xbf16>, vector<64x256xf32> -> vector<64x256xf32>
    %c0_15 = arith.constant 0 : index
    %c0_16 = arith.constant 0 : index
    %32 = vector.load %arg7[%c0_15, %c0_16] : memref<1x256xf32, #tpu.memory_space<vmem>>, vector<1x256xf32>
    %33 = vector.broadcast %32 : vector<1x256xf32> to vector<64x256xf32>
    %34 = arith.addf %31, %33 : vector<64x256xf32>
    %35 = vector.extract_strided_slice %34 {offsets = [0, 0], sizes = [64, 128], strides = [1, 1]} : vector<64x256xf32> to vector<64x128xf32>
    %36 = arith.truncf %35 : vector<64x128xf32> to vector<64x128xbf16>
    %c0_17 = arith.constant 0 : index
    %c0_18 = arith.constant 0 : index
    %c0_19 = arith.constant 0 : index
    %37 = vector.load %arg10[%c0_17, %c0_18, %c0_19] : memref<1x64x128xbf16, #tpu.memory_space<vmem>>, vector<1x64x128xbf16>
    %38 = vector.shape_cast %37 : vector<1x64x128xbf16> to vector<64x128xbf16>
    %39 = vector.shape_cast %36 : vector<64x128xbf16> to vector<1x64x128xbf16>
    tpu.vector_store %arg10[%c0_17, %c0_18, %c0_19], %39 {strides = array<i32>} : memref<1x64x128xbf16, #tpu.memory_space<vmem>>, vector<1x64x128xbf16>,
    %40 = vector.extract_strided_slice %34 {offsets = [0, 128], sizes = [64, 128], strides = [1, 1]} : vector<64x256xf32> to vector<64x128xf32>
    %41 = arith.truncf %40 : vector<64x128xf32> to vector<64x128xbf16>
    %c0_20 = arith.constant 0 : index
    %c0_21 = arith.constant 0 : index
    %c0_22 = arith.constant 0 : index
    %42 = vector.load %arg11[%c0_20, %c0_21, %c0_22] : memref<1x64x128xbf16, #tpu.memory_space<vmem>>, vector<1x64x128xbf16>
    %43 = vector.shape_cast %42 : vector<1x64x128xbf16> to vector<64x128xbf16>
    %44 = vector.shape_cast %41 : vector<64x128xbf16> to vector<1x64x128xbf16>
    tpu.vector_store %arg11[%c0_20, %c0_21, %c0_22], %44 {strides = array<i32>} : memref<1x64x128xbf16, #tpu.memory_space<vmem>>, vector<1x64x128xbf16>,
    %c0_23 = arith.constant 0 : index
    %c0_24 = arith.constant 0 : index
    %45 = vector.load %arg8[%c0_23, %c0_24] : memref<128x128xbf16, #tpu.memory_space<vmem>>, vector<128x128xbf16>
    %cst_25 = arith.constant dense<0.000000e+00> : vector<64x128xf32>
    %46 = tpu.matmul %29, %45, %cst_25 {dimension_numbers = #tpu.dot_dimension_numbers<[1], [0], [0], [1], [0, 0, 1, 1], [], []>} : vector<64x128xbf16>, vector<128x128xbf16>, vector<64x128xf32> -> vector<64x128xf32>
    %c0_26 = arith.constant 0 : index
    %c0_27 = arith.constant 0 : index
    %47 = vector.load %arg9[%c0_26, %c0_27] : memref<1x128xf32, #tpu.memory_space<vmem>>, vector<1x128xf32>
    %48 = vector.broadcast %47 : vector<1x128xf32> to vector<64x128xf32>
    %49 = arith.addf %46, %48 : vector<64x128xf32>
    %50 = arith.truncf %49 : vector<64x128xf32> to vector<64x128xbf16>
    %c0_28 = arith.constant 0 : index
    %c0_29 = arith.constant 0 : index
    %c0_30 = arith.constant 0 : index
    %51 = vector.load %arg12[%c0_28, %c0_29, %c0_30] : memref<1x64x128xbf16, #tpu.memory_space<vmem>>, vector<1x64x128xbf16>
    %52 = vector.shape_cast %51 : vector<1x64x128xbf16> to vector<64x128xbf16>
    %53 = vector.shape_cast %50 : vector<64x128xbf16> to vector<1x64x128xbf16>
    tpu.vector_store %arg12[%c0_28, %c0_29, %c0_30], %53 {strides = array<i32>} : memref<1x64x128xbf16, #tpu.memory_space<vmem>>, vector<1x64x128xbf16>,
    return
  }
  func.func @transform_0(%arg0: i32, %arg1: i32) -> (i32, i32, i32) {
    %c0_i32 = arith.constant 0 : i32
    %c0_i32_0 = arith.constant 0 : i32
    return %arg0, %arg1, %c0_i32 : i32, i32, i32
  }
  func.func @transform_1(%arg0: i32, %arg1: i32) -> (i32, i32) {
    %c0_i32 = arith.constant 0 : i32
    %c0_i32_0 = arith.constant 0 : i32
    return %arg1, %c0_i32 : i32, i32
  }
  func.func @transform_2(%arg0: i32, %arg1: i32) -> (i32, i32) {
    %c0_i32 = arith.constant 0 : i32
    %c0_i32_0 = arith.constant 0 : i32
    %c0_i32_1 = arith.constant 0 : i32
    return %c0_i32, %c0_i32_0 : i32, i32
  }
  func.func @transform_3(%arg0: i32, %arg1: i32) -> (i32, i32) {
    %c0_i32 = arith.constant 0 : i32
    %c0_i32_0 = arith.constant 0 : i32
    %c0_i32_1 = arith.constant 0 : i32
    return %c0_i32, %c0_i32_0 : i32, i32
  }
  func.func @transform_4(%arg0: i32, %arg1: i32) -> (i32, i32) {
    %c0_i32 = arith.constant 0 : i32
    %c0_i32_0 = arith.constant 0 : i32
    %c0_i32_1 = arith.constant 0 : i32
    return %c0_i32, %c0_i32_0 : i32, i32
  }
  func.func @transform_5(%arg0: i32, %arg1: i32) -> (i32, i32) {
    %c0_i32 = arith.constant 0 : i32
    %c0_i32_0 = arith.constant 0 : i32
    %c0_i32_1 = arith.constant 0 : i32
    return %c0_i32, %c0_i32_0 : i32, i32
  }
  func.func @transform_6(%arg0: i32, %arg1: i32) -> (i32, i32) {
    %c0_i32 = arith.constant 0 : i32
    %c0_i32_0 = arith.constant 0 : i32
    %c0_i32_1 = arith.constant 0 : i32
    return %c0_i32, %c0_i32_0 : i32, i32
  }
  func.func @transform_7(%arg0: i32, %arg1: i32) -> (i32, i32) {
    %c0_i32 = arith.constant 0 : i32
    %c0_i32_0 = arith.constant 0 : i32
    %c0_i32_1 = arith.constant 0 : i32
    return %c0_i32, %c0_i32_0 : i32, i32
  }
  func.func @transform_8(%arg0: i32, %arg1: i32) -> (i32, i32, i32) {
    %c0_i32 = arith.constant 0 : i32
    %c0_i32_0 = arith.constant 0 : i32
    return %arg0, %arg1, %c0_i32 : i32, i32, i32
  }
  func.func @transform_9(%arg0: i32, %arg1: i32) -> (i32, i32, i32) {
    %c0_i32 = arith.constant 0 : i32
    %c0_i32_0 = arith.constant 0 : i32
    return %arg0, %arg1, %c0_i32 : i32, i32, i32
  }
  func.func @transform_10(%arg0: i32, %arg1: i32) -> (i32, i32, i32) {
    %c0_i32 = arith.constant 0 : i32
    %c0_i32_0 = arith.constant 0 : i32
    return %arg0, %arg1, %c0_i32 : i32, i32, i32
  }
}

module attributes {stable_mosaic.version = 11 : i64} {
  func.func @_ln_q_kernel(%arg0: i32, %arg1: i32, %arg2: memref<1x64x128xf32, #tpu.memory_space<vmem>>, %arg3: memref<64x128xf32, #tpu.memory_space<vmem>>, %arg4: memref<1x128xf32, #tpu.memory_space<vmem>>, %arg5: memref<1x128xf32, #tpu.memory_space<vmem>>, %arg6: memref<128x128xbf16, #tpu.memory_space<vmem>>, %arg7: memref<1x128xf32, #tpu.memory_space<vmem>>, %arg8: memref<1x64x128xbf16, #tpu.memory_space<vmem>>) attributes {dimension_semantics = [#tpu.dimension_semantics<parallel>, #tpu.dimension_semantics<parallel>], iteration_bounds = array<i64: 2, 1>, scalar_prefetch = 0 : i64, scratch_operands = 0 : i64, tpu.core_type = #tpu.core_type<tc>, window_params = [{transform_indices = @transform_0, window_bounds = array<i64: 1, 64, 128>}, {transform_indices = @transform_1, window_bounds = array<i64: 64, 128>}, {pipeline_mode = #tpu.pipeline_mode<synchronous>, transform_indices = @transform_2, window_bounds = array<i64: 1, 128>}, {pipeline_mode = #tpu.pipeline_mode<synchronous>, transform_indices = @transform_3, window_bounds = array<i64: 1, 128>}, {pipeline_mode = #tpu.pipeline_mode<synchronous>, transform_indices = @transform_4, window_bounds = array<i64: 128, 128>}, {pipeline_mode = #tpu.pipeline_mode<synchronous>, transform_indices = @transform_5, window_bounds = array<i64: 1, 128>}, {transform_indices = @transform_6, window_bounds = array<i64: 1, 64, 128>}]} {
    %c0 = arith.constant 0 : index
    %c0_0 = arith.constant 0 : index
    %c0_1 = arith.constant 0 : index
    %0 = vector.load %arg2[%c0, %c0_0, %c0_1] : memref<1x64x128xf32, #tpu.memory_space<vmem>>, vector<1x64x128xf32>
    %1 = vector.shape_cast %0 : vector<1x64x128xf32> to vector<64x128xf32>
    %c0_2 = arith.constant 0 : index
    %c0_3 = arith.constant 0 : index
    %2 = vector.load %arg4[%c0_2, %c0_3] : memref<1x128xf32, #tpu.memory_space<vmem>>, vector<1x128xf32>
    %c0_4 = arith.constant 0 : index
    %c0_5 = arith.constant 0 : index
    %3 = vector.load %arg5[%c0_4, %c0_5] : memref<1x128xf32, #tpu.memory_space<vmem>>, vector<1x128xf32>
    %cst = arith.constant dense<0.000000e+00> : vector<64xf32>
    %4 = vector.multi_reduction <add>, %1, %cst [1] : vector<64x128xf32> to vector<64xf32>
    %5 = vector.shape_cast %4 : vector<64xf32> to vector<64x1xf32>
    %cst_6 = arith.constant 1.280000e+02 : f32
    %6 = vector.broadcast %cst_6 : f32 to vector<64x1xf32>
    %7 = arith.divf %5, %6 : vector<64x1xf32>
    %8 = vector.broadcast %7 : vector<64x1xf32> to vector<64x128xf32>
    %9 = arith.subf %1, %8 : vector<64x128xf32>
    %10 = arith.mulf %9, %9 : vector<64x128xf32>
    %cst_7 = arith.constant dense<0.000000e+00> : vector<64xf32>
    %11 = vector.multi_reduction <add>, %10, %cst_7 [1] : vector<64x128xf32> to vector<64xf32>
    %12 = vector.shape_cast %11 : vector<64xf32> to vector<64x1xf32>
    %cst_8 = arith.constant 1.280000e+02 : f32
    %13 = vector.broadcast %cst_8 : f32 to vector<64x1xf32>
    %14 = arith.divf %12, %13 : vector<64x1xf32>
    %15 = vector.broadcast %7 : vector<64x1xf32> to vector<64x128xf32>
    %16 = arith.subf %1, %15 : vector<64x128xf32>
    %cst_9 = arith.constant 9.99999974E-6 : f32
    %17 = vector.broadcast %cst_9 : f32 to vector<64x1xf32>
    %18 = arith.addf %14, %17 : vector<64x1xf32>
    %19 = math.rsqrt %18 : vector<64x1xf32>
    %20 = vector.broadcast %19 : vector<64x1xf32> to vector<64x128xf32>
    %21 = arith.mulf %16, %20 : vector<64x128xf32>
    %22 = vector.broadcast %2 : vector<1x128xf32> to vector<64x128xf32>
    %23 = arith.mulf %21, %22 : vector<64x128xf32>
    %24 = vector.broadcast %3 : vector<1x128xf32> to vector<64x128xf32>
    %25 = arith.addf %23, %24 : vector<64x128xf32>
    %c0_10 = arith.constant 0 : index
    %c0_11 = arith.constant 0 : index
    %26 = vector.load %arg3[%c0_10, %c0_11] : memref<64x128xf32, #tpu.memory_space<vmem>>, vector<64x128xf32>
    %27 = arith.addf %25, %26 : vector<64x128xf32>
    %28 = arith.truncf %27 : vector<64x128xf32> to vector<64x128xbf16>
    %c0_12 = arith.constant 0 : index
    %c0_13 = arith.constant 0 : index
    %29 = vector.load %arg6[%c0_12, %c0_13] : memref<128x128xbf16, #tpu.memory_space<vmem>>, vector<128x128xbf16>
    %cst_14 = arith.constant dense<0.000000e+00> : vector<64x128xf32>
    %30 = tpu.matmul %28, %29, %cst_14 {dimension_numbers = #tpu.dot_dimension_numbers<[1], [0], [0], [1], [0, 0, 1, 1], [], []>} : vector<64x128xbf16>, vector<128x128xbf16>, vector<64x128xf32> -> vector<64x128xf32>
    %c0_15 = arith.constant 0 : index
    %c0_16 = arith.constant 0 : index
    %31 = vector.load %arg7[%c0_15, %c0_16] : memref<1x128xf32, #tpu.memory_space<vmem>>, vector<1x128xf32>
    %32 = vector.broadcast %31 : vector<1x128xf32> to vector<64x128xf32>
    %33 = arith.addf %30, %32 : vector<64x128xf32>
    %34 = arith.truncf %33 : vector<64x128xf32> to vector<64x128xbf16>
    %c0_17 = arith.constant 0 : index
    %c0_18 = arith.constant 0 : index
    %c0_19 = arith.constant 0 : index
    %35 = vector.load %arg8[%c0_17, %c0_18, %c0_19] : memref<1x64x128xbf16, #tpu.memory_space<vmem>>, vector<1x64x128xbf16>
    %36 = vector.shape_cast %35 : vector<1x64x128xbf16> to vector<64x128xbf16>
    %37 = vector.shape_cast %34 : vector<64x128xbf16> to vector<1x64x128xbf16>
    tpu.vector_store %arg8[%c0_17, %c0_18, %c0_19], %37 {strides = array<i32>} : memref<1x64x128xbf16, #tpu.memory_space<vmem>>, vector<1x64x128xbf16>,
    return
  }
  func.func @transform_0(%arg0: i32, %arg1: i32) -> (i32, i32, i32) {
    %c0_i32 = arith.constant 0 : i32
    %c0_i32_0 = arith.constant 0 : i32
    return %arg0, %arg1, %c0_i32 : i32, i32, i32
  }
  func.func @transform_1(%arg0: i32, %arg1: i32) -> (i32, i32) {
    %c0_i32 = arith.constant 0 : i32
    %c0_i32_0 = arith.constant 0 : i32
    return %arg1, %c0_i32 : i32, i32
  }
  func.func @transform_2(%arg0: i32, %arg1: i32) -> (i32, i32) {
    %c0_i32 = arith.constant 0 : i32
    %c0_i32_0 = arith.constant 0 : i32
    %c0_i32_1 = arith.constant 0 : i32
    return %c0_i32, %c0_i32_0 : i32, i32
  }
  func.func @transform_3(%arg0: i32, %arg1: i32) -> (i32, i32) {
    %c0_i32 = arith.constant 0 : i32
    %c0_i32_0 = arith.constant 0 : i32
    %c0_i32_1 = arith.constant 0 : i32
    return %c0_i32, %c0_i32_0 : i32, i32
  }
  func.func @transform_4(%arg0: i32, %arg1: i32) -> (i32, i32) {
    %c0_i32 = arith.constant 0 : i32
    %c0_i32_0 = arith.constant 0 : i32
    %c0_i32_1 = arith.constant 0 : i32
    return %c0_i32, %c0_i32_0 : i32, i32
  }
  func.func @transform_5(%arg0: i32, %arg1: i32) -> (i32, i32) {
    %c0_i32 = arith.constant 0 : i32
    %c0_i32_0 = arith.constant 0 : i32
    %c0_i32_1 = arith.constant 0 : i32
    return %c0_i32, %c0_i32_0 : i32, i32
  }
  func.func @transform_6(%arg0: i32, %arg1: i32) -> (i32, i32, i32) {
    %c0_i32 = arith.constant 0 : i32
    %c0_i32_0 = arith.constant 0 : i32
    return %arg0, %arg1, %c0_i32 : i32, i32, i32
  }
}

module attributes {stable_mosaic.version = 11 : i64} {
  func.func @_mha_kernel(%arg0: i32, %arg1: i32, %arg2: memref<1x4x64x32xbf16, #tpu.memory_space<vmem>>, %arg3: memref<1x4x64x32xbf16, #tpu.memory_space<vmem>>, %arg4: memref<1x4x64x32xbf16, #tpu.memory_space<vmem>>, %arg5: memref<1x64x128xf32, #tpu.memory_space<vmem>>, %arg6: memref<4x32x128xbf16, #tpu.memory_space<vmem>>, %arg7: memref<1x128xf32, #tpu.memory_space<vmem>>, %arg8: memref<1x128xf32, #tpu.memory_space<vmem>>, %arg9: memref<1x128xf32, #tpu.memory_space<vmem>>, %arg10: memref<1x64x128xf32, #tpu.memory_space<vmem>>) attributes {dimension_semantics = [#tpu.dimension_semantics<parallel>, #tpu.dimension_semantics<parallel>], iteration_bounds = array<i64: 2, 1>, scalar_prefetch = 0 : i64, scratch_operands = 0 : i64, tpu.core_type = #tpu.core_type<tc>, window_params = [{transform_indices = @transform_0, window_bounds = array<i64: 1, 4, 64, 32>}, {transform_indices = @transform_1, window_bounds = array<i64: 1, 4, 64, 32>}, {transform_indices = @transform_2, window_bounds = array<i64: 1, 4, 64, 32>}, {transform_indices = @transform_3, window_bounds = array<i64: 1, 64, 128>}, {pipeline_mode = #tpu.pipeline_mode<synchronous>, transform_indices = @transform_4, window_bounds = array<i64: 4, 32, 128>}, {pipeline_mode = #tpu.pipeline_mode<synchronous>, transform_indices = @transform_5, window_bounds = array<i64: 1, 128>}, {pipeline_mode = #tpu.pipeline_mode<synchronous>, transform_indices = @transform_6, window_bounds = array<i64: 1, 128>}, {pipeline_mode = #tpu.pipeline_mode<synchronous>, transform_indices = @transform_7, window_bounds = array<i64: 1, 128>}, {transform_indices = @transform_8, window_bounds = array<i64: 1, 64, 128>}]} {
    %cst = arith.constant 0.000000e+00 : f32
    %0 = vector.broadcast %cst : f32 to vector<64x128xf32>
    %c0 = arith.constant 0 : index
    %c0_0 = arith.constant 0 : index
    %c0_1 = arith.constant 0 : index
    %c0_2 = arith.constant 0 : index
    %1 = vector.load %arg2[%c0, %c0_0, %c0_1, %c0_2] : memref<1x4x64x32xbf16, #tpu.memory_space<vmem>>, vector<1x1x64x32xbf16>
    %2 = vector.shape_cast %1 : vector<1x1x64x32xbf16> to vector<64x32xbf16>
    %c0_3 = arith.constant 0 : index
    %c0_4 = arith.constant 0 : index
    %c0_5 = arith.constant 0 : index
    %c0_6 = arith.constant 0 : index
    %3 = vector.load %arg3[%c0_3, %c0_4, %c0_5, %c0_6] : memref<1x4x64x32xbf16, #tpu.memory_space<vmem>>, vector<1x1x64x32xbf16>
    %4 = vector.shape_cast %3 : vector<1x1x64x32xbf16> to vector<64x32xbf16>
    %c0_7 = arith.constant 0 : index
    %c0_8 = arith.constant 0 : index
    %c0_9 = arith.constant 0 : index
    %c0_10 = arith.constant 0 : index
    %5 = vector.load %arg4[%c0_7, %c0_8, %c0_9, %c0_10] : memref<1x4x64x32xbf16, #tpu.memory_space<vmem>>, vector<1x1x64x32xbf16>
    %6 = vector.shape_cast %5 : vector<1x1x64x32xbf16> to vector<64x32xbf16>
    %cst_11 = arith.constant dense<0.000000e+00> : vector<64x64xf32>
    %7 = tpu.matmul %2, %4, %cst_11 {dimension_numbers = #tpu.dot_dimension_numbers<[1], [1], [0], [0], [0, 0, 1, 0], [], []>} : vector<64x32xbf16>, vector<64x32xbf16>, vector<64x64xf32> -> vector<64x64xf32>
    %cst_12 = arith.constant dense<0xFF800000> : vector<64xf32>
    %8 = vector.multi_reduction <maximumf>, %7, %cst_12 [1] : vector<64x64xf32> to vector<64xf32>
    %9 = vector.shape_cast %8 : vector<64xf32> to vector<64x1xf32>
    %10 = vector.broadcast %9 : vector<64x1xf32> to vector<64x64xf32>
    %11 = arith.subf %7, %10 : vector<64x64xf32>
    %12 = math.exp %11 : vector<64x64xf32>
    %cst_13 = arith.constant dense<0.000000e+00> : vector<64xf32>
    %13 = vector.multi_reduction <add>, %12, %cst_13 [1] : vector<64x64xf32> to vector<64xf32>
    %14 = vector.shape_cast %13 : vector<64xf32> to vector<64x1xf32>
    %15 = tpu.reciprocal %14 {approx = true} : vector<64x1xf32> -> vector<64x1xf32>
    %16 = vector.broadcast %15 : vector<64x1xf32> to vector<64x64xf32>
    %17 = arith.mulf %12, %16 : vector<64x64xf32>
    %18 = arith.truncf %17 : vector<64x64xf32> to vector<64x64xbf16>
    %cst_14 = arith.constant dense<0.000000e+00> : vector<64x32xf32>
    %19 = tpu.matmul %18, %6, %cst_14 {dimension_numbers = #tpu.dot_dimension_numbers<[1], [0], [0], [1], [0, 0, 1, 1], [], []>} : vector<64x64xbf16>, vector<64x32xbf16>, vector<64x32xf32> -> vector<64x32xf32>
    %20 = arith.truncf %19 : vector<64x32xf32> to vector<64x32xbf16>
    %c0_15 = arith.constant 0 : index
    %c0_16 = arith.constant 0 : index
    %c0_17 = arith.constant 0 : index
    %21 = vector.load %arg6[%c0_15, %c0_16, %c0_17] : memref<4x32x128xbf16, #tpu.memory_space<vmem>>, vector<1x32x128xbf16>
    %22 = vector.shape_cast %21 : vector<1x32x128xbf16> to vector<32x128xbf16>
    %cst_18 = arith.constant dense<0.000000e+00> : vector<64x128xf32>
    %23 = tpu.matmul %20, %22, %cst_18 {dimension_numbers = #tpu.dot_dimension_numbers<[1], [0], [0], [1], [0, 0, 1, 1], [], []>} : vector<64x32xbf16>, vector<32x128xbf16>, vector<64x128xf32> -> vector<64x128xf32>
    %24 = arith.addf %0, %23 : vector<64x128xf32>
    %c0_19 = arith.constant 0 : index
    %c1 = arith.constant 1 : index
    %c0_20 = arith.constant 0 : index
    %c0_21 = arith.constant 0 : index
    %25 = vector.load %arg2[%c0_19, %c1, %c0_20, %c0_21] : memref<1x4x64x32xbf16, #tpu.memory_space<vmem>>, vector<1x1x64x32xbf16>
    %26 = vector.shape_cast %25 : vector<1x1x64x32xbf16> to vector<64x32xbf16>
    %c0_22 = arith.constant 0 : index
    %c1_23 = arith.constant 1 : index
    %c0_24 = arith.constant 0 : index
    %c0_25 = arith.constant 0 : index
    %27 = vector.load %arg3[%c0_22, %c1_23, %c0_24, %c0_25] : memref<1x4x64x32xbf16, #tpu.memory_space<vmem>>, vector<1x1x64x32xbf16>
    %28 = vector.shape_cast %27 : vector<1x1x64x32xbf16> to vector<64x32xbf16>
    %c0_26 = arith.constant 0 : index
    %c1_27 = arith.constant 1 : index
    %c0_28 = arith.constant 0 : index
    %c0_29 = arith.constant 0 : index
    %29 = vector.load %arg4[%c0_26, %c1_27, %c0_28, %c0_29] : memref<1x4x64x32xbf16, #tpu.memory_space<vmem>>, vector<1x1x64x32xbf16>
    %30 = vector.shape_cast %29 : vector<1x1x64x32xbf16> to vector<64x32xbf16>
    %cst_30 = arith.constant dense<0.000000e+00> : vector<64x64xf32>
    %31 = tpu.matmul %26, %28, %cst_30 {dimension_numbers = #tpu.dot_dimension_numbers<[1], [1], [0], [0], [0, 0, 1, 0], [], []>} : vector<64x32xbf16>, vector<64x32xbf16>, vector<64x64xf32> -> vector<64x64xf32>
    %cst_31 = arith.constant dense<0xFF800000> : vector<64xf32>
    %32 = vector.multi_reduction <maximumf>, %31, %cst_31 [1] : vector<64x64xf32> to vector<64xf32>
    %33 = vector.shape_cast %32 : vector<64xf32> to vector<64x1xf32>
    %34 = vector.broadcast %33 : vector<64x1xf32> to vector<64x64xf32>
    %35 = arith.subf %31, %34 : vector<64x64xf32>
    %36 = math.exp %35 : vector<64x64xf32>
    %cst_32 = arith.constant dense<0.000000e+00> : vector<64xf32>
    %37 = vector.multi_reduction <add>, %36, %cst_32 [1] : vector<64x64xf32> to vector<64xf32>
    %38 = vector.shape_cast %37 : vector<64xf32> to vector<64x1xf32>
    %39 = tpu.reciprocal %38 {approx = true} : vector<64x1xf32> -> vector<64x1xf32>
    %40 = vector.broadcast %39 : vector<64x1xf32> to vector<64x64xf32>
    %41 = arith.mulf %36, %40 : vector<64x64xf32>
    %42 = arith.truncf %41 : vector<64x64xf32> to vector<64x64xbf16>
    %cst_33 = arith.constant dense<0.000000e+00> : vector<64x32xf32>
    %43 = tpu.matmul %42, %30, %cst_33 {dimension_numbers = #tpu.dot_dimension_numbers<[1], [0], [0], [1], [0, 0, 1, 1], [], []>} : vector<64x64xbf16>, vector<64x32xbf16>, vector<64x32xf32> -> vector<64x32xf32>
    %44 = arith.truncf %43 : vector<64x32xf32> to vector<64x32xbf16>
    %c1_34 = arith.constant 1 : index
    %c0_35 = arith.constant 0 : index
    %c0_36 = arith.constant 0 : index
    %45 = vector.load %arg6[%c1_34, %c0_35, %c0_36] : memref<4x32x128xbf16, #tpu.memory_space<vmem>>, vector<1x32x128xbf16>
    %46 = vector.shape_cast %45 : vector<1x32x128xbf16> to vector<32x128xbf16>
    %cst_37 = arith.constant dense<0.000000e+00> : vector<64x128xf32>
    %47 = tpu.matmul %44, %46, %cst_37 {dimension_numbers = #tpu.dot_dimension_numbers<[1], [0], [0], [1], [0, 0, 1, 1], [], []>} : vector<64x32xbf16>, vector<32x128xbf16>, vector<64x128xf32> -> vector<64x128xf32>
    %48 = arith.addf %24, %47 : vector<64x128xf32>
    %c0_38 = arith.constant 0 : index
    %c2 = arith.constant 2 : index
    %c0_39 = arith.constant 0 : index
    %c0_40 = arith.constant 0 : index
    %49 = vector.load %arg2[%c0_38, %c2, %c0_39, %c0_40] : memref<1x4x64x32xbf16, #tpu.memory_space<vmem>>, vector<1x1x64x32xbf16>
    %50 = vector.shape_cast %49 : vector<1x1x64x32xbf16> to vector<64x32xbf16>
    %c0_41 = arith.constant 0 : index
    %c2_42 = arith.constant 2 : index
    %c0_43 = arith.constant 0 : index
    %c0_44 = arith.constant 0 : index
    %51 = vector.load %arg3[%c0_41, %c2_42, %c0_43, %c0_44] : memref<1x4x64x32xbf16, #tpu.memory_space<vmem>>, vector<1x1x64x32xbf16>
    %52 = vector.shape_cast %51 : vector<1x1x64x32xbf16> to vector<64x32xbf16>
    %c0_45 = arith.constant 0 : index
    %c2_46 = arith.constant 2 : index
    %c0_47 = arith.constant 0 : index
    %c0_48 = arith.constant 0 : index
    %53 = vector.load %arg4[%c0_45, %c2_46, %c0_47, %c0_48] : memref<1x4x64x32xbf16, #tpu.memory_space<vmem>>, vector<1x1x64x32xbf16>
    %54 = vector.shape_cast %53 : vector<1x1x64x32xbf16> to vector<64x32xbf16>
    %cst_49 = arith.constant dense<0.000000e+00> : vector<64x64xf32>
    %55 = tpu.matmul %50, %52, %cst_49 {dimension_numbers = #tpu.dot_dimension_numbers<[1], [1], [0], [0], [0, 0, 1, 0], [], []>} : vector<64x32xbf16>, vector<64x32xbf16>, vector<64x64xf32> -> vector<64x64xf32>
    %cst_50 = arith.constant dense<0xFF800000> : vector<64xf32>
    %56 = vector.multi_reduction <maximumf>, %55, %cst_50 [1] : vector<64x64xf32> to vector<64xf32>
    %57 = vector.shape_cast %56 : vector<64xf32> to vector<64x1xf32>
    %58 = vector.broadcast %57 : vector<64x1xf32> to vector<64x64xf32>
    %59 = arith.subf %55, %58 : vector<64x64xf32>
    %60 = math.exp %59 : vector<64x64xf32>
    %cst_51 = arith.constant dense<0.000000e+00> : vector<64xf32>
    %61 = vector.multi_reduction <add>, %60, %cst_51 [1] : vector<64x64xf32> to vector<64xf32>
    %62 = vector.shape_cast %61 : vector<64xf32> to vector<64x1xf32>
    %63 = tpu.reciprocal %62 {approx = true} : vector<64x1xf32> -> vector<64x1xf32>
    %64 = vector.broadcast %63 : vector<64x1xf32> to vector<64x64xf32>
    %65 = arith.mulf %60, %64 : vector<64x64xf32>
    %66 = arith.truncf %65 : vector<64x64xf32> to vector<64x64xbf16>
    %cst_52 = arith.constant dense<0.000000e+00> : vector<64x32xf32>
    %67 = tpu.matmul %66, %54, %cst_52 {dimension_numbers = #tpu.dot_dimension_numbers<[1], [0], [0], [1], [0, 0, 1, 1], [], []>} : vector<64x64xbf16>, vector<64x32xbf16>, vector<64x32xf32> -> vector<64x32xf32>
    %68 = arith.truncf %67 : vector<64x32xf32> to vector<64x32xbf16>
    %c2_53 = arith.constant 2 : index
    %c0_54 = arith.constant 0 : index
    %c0_55 = arith.constant 0 : index
    %69 = vector.load %arg6[%c2_53, %c0_54, %c0_55] : memref<4x32x128xbf16, #tpu.memory_space<vmem>>, vector<1x32x128xbf16>
    %70 = vector.shape_cast %69 : vector<1x32x128xbf16> to vector<32x128xbf16>
    %cst_56 = arith.constant dense<0.000000e+00> : vector<64x128xf32>
    %71 = tpu.matmul %68, %70, %cst_56 {dimension_numbers = #tpu.dot_dimension_numbers<[1], [0], [0], [1], [0, 0, 1, 1], [], []>} : vector<64x32xbf16>, vector<32x128xbf16>, vector<64x128xf32> -> vector<64x128xf32>
    %72 = arith.addf %48, %71 : vector<64x128xf32>
    %c0_57 = arith.constant 0 : index
    %c3 = arith.constant 3 : index
    %c0_58 = arith.constant 0 : index
    %c0_59 = arith.constant 0 : index
    %73 = vector.load %arg2[%c0_57, %c3, %c0_58, %c0_59] : memref<1x4x64x32xbf16, #tpu.memory_space<vmem>>, vector<1x1x64x32xbf16>
    %74 = vector.shape_cast %73 : vector<1x1x64x32xbf16> to vector<64x32xbf16>
    %c0_60 = arith.constant 0 : index
    %c3_61 = arith.constant 3 : index
    %c0_62 = arith.constant 0 : index
    %c0_63 = arith.constant 0 : index
    %75 = vector.load %arg3[%c0_60, %c3_61, %c0_62, %c0_63] : memref<1x4x64x32xbf16, #tpu.memory_space<vmem>>, vector<1x1x64x32xbf16>
    %76 = vector.shape_cast %75 : vector<1x1x64x32xbf16> to vector<64x32xbf16>
    %c0_64 = arith.constant 0 : index
    %c3_65 = arith.constant 3 : index
    %c0_66 = arith.constant 0 : index
    %c0_67 = arith.constant 0 : index
    %77 = vector.load %arg4[%c0_64, %c3_65, %c0_66, %c0_67] : memref<1x4x64x32xbf16, #tpu.memory_space<vmem>>, vector<1x1x64x32xbf16>
    %78 = vector.shape_cast %77 : vector<1x1x64x32xbf16> to vector<64x32xbf16>
    %cst_68 = arith.constant dense<0.000000e+00> : vector<64x64xf32>
    %79 = tpu.matmul %74, %76, %cst_68 {dimension_numbers = #tpu.dot_dimension_numbers<[1], [1], [0], [0], [0, 0, 1, 0], [], []>} : vector<64x32xbf16>, vector<64x32xbf16>, vector<64x64xf32> -> vector<64x64xf32>
    %cst_69 = arith.constant dense<0xFF800000> : vector<64xf32>
    %80 = vector.multi_reduction <maximumf>, %79, %cst_69 [1] : vector<64x64xf32> to vector<64xf32>
    %81 = vector.shape_cast %80 : vector<64xf32> to vector<64x1xf32>
    %82 = vector.broadcast %81 : vector<64x1xf32> to vector<64x64xf32>
    %83 = arith.subf %79, %82 : vector<64x64xf32>
    %84 = math.exp %83 : vector<64x64xf32>
    %cst_70 = arith.constant dense<0.000000e+00> : vector<64xf32>
    %85 = vector.multi_reduction <add>, %84, %cst_70 [1] : vector<64x64xf32> to vector<64xf32>
    %86 = vector.shape_cast %85 : vector<64xf32> to vector<64x1xf32>
    %87 = tpu.reciprocal %86 {approx = true} : vector<64x1xf32> -> vector<64x1xf32>
    %88 = vector.broadcast %87 : vector<64x1xf32> to vector<64x64xf32>
    %89 = arith.mulf %84, %88 : vector<64x64xf32>
    %90 = arith.truncf %89 : vector<64x64xf32> to vector<64x64xbf16>
    %cst_71 = arith.constant dense<0.000000e+00> : vector<64x32xf32>
    %91 = tpu.matmul %90, %78, %cst_71 {dimension_numbers = #tpu.dot_dimension_numbers<[1], [0], [0], [1], [0, 0, 1, 1], [], []>} : vector<64x64xbf16>, vector<64x32xbf16>, vector<64x32xf32> -> vector<64x32xf32>
    %92 = arith.truncf %91 : vector<64x32xf32> to vector<64x32xbf16>
    %c3_72 = arith.constant 3 : index
    %c0_73 = arith.constant 0 : index
    %c0_74 = arith.constant 0 : index
    %93 = vector.load %arg6[%c3_72, %c0_73, %c0_74] : memref<4x32x128xbf16, #tpu.memory_space<vmem>>, vector<1x32x128xbf16>
    %94 = vector.shape_cast %93 : vector<1x32x128xbf16> to vector<32x128xbf16>
    %cst_75 = arith.constant dense<0.000000e+00> : vector<64x128xf32>
    %95 = tpu.matmul %92, %94, %cst_75 {dimension_numbers = #tpu.dot_dimension_numbers<[1], [0], [0], [1], [0, 0, 1, 1], [], []>} : vector<64x32xbf16>, vector<32x128xbf16>, vector<64x128xf32> -> vector<64x128xf32>
    %96 = arith.addf %72, %95 : vector<64x128xf32>
    %c0_76 = arith.constant 0 : index
    %c0_77 = arith.constant 0 : index
    %97 = vector.load %arg7[%c0_76, %c0_77] : memref<1x128xf32, #tpu.memory_space<vmem>>, vector<1x128xf32>
    %98 = vector.broadcast %97 : vector<1x128xf32> to vector<64x128xf32>
    %99 = arith.addf %96, %98 : vector<64x128xf32>
    %c0_78 = arith.constant 0 : index
    %c0_79 = arith.constant 0 : index
    %100 = vector.load %arg8[%c0_78, %c0_79] : memref<1x128xf32, #tpu.memory_space<vmem>>, vector<1x128xf32>
    %c0_80 = arith.constant 0 : index
    %c0_81 = arith.constant 0 : index
    %101 = vector.load %arg9[%c0_80, %c0_81] : memref<1x128xf32, #tpu.memory_space<vmem>>, vector<1x128xf32>
    %cst_82 = arith.constant dense<0.000000e+00> : vector<64xf32>
    %102 = vector.multi_reduction <add>, %99, %cst_82 [1] : vector<64x128xf32> to vector<64xf32>
    %103 = vector.shape_cast %102 : vector<64xf32> to vector<64x1xf32>
    %cst_83 = arith.constant 1.280000e+02 : f32
    %104 = vector.broadcast %cst_83 : f32 to vector<64x1xf32>
    %105 = arith.divf %103, %104 : vector<64x1xf32>
    %106 = vector.broadcast %105 : vector<64x1xf32> to vector<64x128xf32>
    %107 = arith.subf %99, %106 : vector<64x128xf32>
    %108 = arith.mulf %107, %107 : vector<64x128xf32>
    %cst_84 = arith.constant dense<0.000000e+00> : vector<64xf32>
    %109 = vector.multi_reduction <add>, %108, %cst_84 [1] : vector<64x128xf32> to vector<64xf32>
    %110 = vector.shape_cast %109 : vector<64xf32> to vector<64x1xf32>
    %cst_85 = arith.constant 1.280000e+02 : f32
    %111 = vector.broadcast %cst_85 : f32 to vector<64x1xf32>
    %112 = arith.divf %110, %111 : vector<64x1xf32>
    %113 = vector.broadcast %105 : vector<64x1xf32> to vector<64x128xf32>
    %114 = arith.subf %99, %113 : vector<64x128xf32>
    %cst_86 = arith.constant 9.99999974E-6 : f32
    %115 = vector.broadcast %cst_86 : f32 to vector<64x1xf32>
    %116 = arith.addf %112, %115 : vector<64x1xf32>
    %117 = math.rsqrt %116 : vector<64x1xf32>
    %118 = vector.broadcast %117 : vector<64x1xf32> to vector<64x128xf32>
    %119 = arith.mulf %114, %118 : vector<64x128xf32>
    %120 = vector.broadcast %100 : vector<1x128xf32> to vector<64x128xf32>
    %121 = arith.mulf %119, %120 : vector<64x128xf32>
    %122 = vector.broadcast %101 : vector<1x128xf32> to vector<64x128xf32>
    %123 = arith.addf %121, %122 : vector<64x128xf32>
    %c0_87 = arith.constant 0 : index
    %c0_88 = arith.constant 0 : index
    %c0_89 = arith.constant 0 : index
    %124 = vector.load %arg5[%c0_87, %c0_88, %c0_89] : memref<1x64x128xf32, #tpu.memory_space<vmem>>, vector<1x64x128xf32>
    %125 = vector.shape_cast %124 : vector<1x64x128xf32> to vector<64x128xf32>
    %126 = arith.addf %125, %123 : vector<64x128xf32>
    %c0_90 = arith.constant 0 : index
    %c0_91 = arith.constant 0 : index
    %c0_92 = arith.constant 0 : index
    %127 = vector.load %arg10[%c0_90, %c0_91, %c0_92] : memref<1x64x128xf32, #tpu.memory_space<vmem>>, vector<1x64x128xf32>
    %128 = vector.shape_cast %127 : vector<1x64x128xf32> to vector<64x128xf32>
    %129 = vector.shape_cast %126 : vector<64x128xf32> to vector<1x64x128xf32>
    tpu.vector_store %arg10[%c0_90, %c0_91, %c0_92], %129 {strides = array<i32>} : memref<1x64x128xf32, #tpu.memory_space<vmem>>, vector<1x64x128xf32>,
    return
  }
  func.func @transform_0(%arg0: i32, %arg1: i32) -> (i32, i32, i32, i32) {
    %c0_i32 = arith.constant 0 : i32
    %c0_i32_0 = arith.constant 0 : i32
    %c0_i32_1 = arith.constant 0 : i32
    return %arg0, %c0_i32, %arg1, %c0_i32_0 : i32, i32, i32, i32
  }
  func.func @transform_1(%arg0: i32, %arg1: i32) -> (i32, i32, i32, i32) {
    %c0_i32 = arith.constant 0 : i32
    %c0_i32_0 = arith.constant 0 : i32
    %c0_i32_1 = arith.constant 0 : i32
    %c0_i32_2 = arith.constant 0 : i32
    return %arg0, %c0_i32, %c0_i32_0, %c0_i32_1 : i32, i32, i32, i32
  }
  func.func @transform_2(%arg0: i32, %arg1: i32) -> (i32, i32, i32, i32) {
    %c0_i32 = arith.constant 0 : i32
    %c0_i32_0 = arith.constant 0 : i32
    %c0_i32_1 = arith.constant 0 : i32
    %c0_i32_2 = arith.constant 0 : i32
    return %arg0, %c0_i32, %c0_i32_0, %c0_i32_1 : i32, i32, i32, i32
  }
  func.func @transform_3(%arg0: i32, %arg1: i32) -> (i32, i32, i32) {
    %c0_i32 = arith.constant 0 : i32
    %c0_i32_0 = arith.constant 0 : i32
    return %arg0, %arg1, %c0_i32 : i32, i32, i32
  }
  func.func @transform_4(%arg0: i32, %arg1: i32) -> (i32, i32, i32) {
    %c0_i32 = arith.constant 0 : i32
    %c0_i32_0 = arith.constant 0 : i32
    %c0_i32_1 = arith.constant 0 : i32
    %c0_i32_2 = arith.constant 0 : i32
    return %c0_i32, %c0_i32_0, %c0_i32_1 : i32, i32, i32
  }
  func.func @transform_5(%arg0: i32, %arg1: i32) -> (i32, i32) {
    %c0_i32 = arith.constant 0 : i32
    %c0_i32_0 = arith.constant 0 : i32
    %c0_i32_1 = arith.constant 0 : i32
    return %c0_i32, %c0_i32_0 : i32, i32
  }
  func.func @transform_6(%arg0: i32, %arg1: i32) -> (i32, i32) {
    %c0_i32 = arith.constant 0 : i32
    %c0_i32_0 = arith.constant 0 : i32
    %c0_i32_1 = arith.constant 0 : i32
    return %c0_i32, %c0_i32_0 : i32, i32
  }
  func.func @transform_7(%arg0: i32, %arg1: i32) -> (i32, i32) {
    %c0_i32 = arith.constant 0 : i32
    %c0_i32_0 = arith.constant 0 : i32
    %c0_i32_1 = arith.constant 0 : i32
    return %c0_i32, %c0_i32_0 : i32, i32
  }
  func.func @transform_8(%arg0: i32, %arg1: i32) -> (i32, i32, i32) {
    %c0_i32 = arith.constant 0 : i32
    %c0_i32_0 = arith.constant 0 : i32
    return %arg0, %arg1, %c0_i32 : i32, i32, i32
  }
}

module attributes {stable_mosaic.version = 11 : i64} {
  func.func @_ffn_kernel(%arg0: i32, %arg1: memref<128x128xf32, #tpu.memory_space<vmem>>, %arg2: memref<1x128xf32, #tpu.memory_space<vmem>>, %arg3: memref<1x128xf32, #tpu.memory_space<vmem>>, %arg4: memref<128x256xbf16, #tpu.memory_space<vmem>>, %arg5: memref<1x256xf32, #tpu.memory_space<vmem>>, %arg6: memref<1x256xf32, #tpu.memory_space<vmem>>, %arg7: memref<1x256xf32, #tpu.memory_space<vmem>>, %arg8: memref<256x128xbf16, #tpu.memory_space<vmem>>, %arg9: memref<1x128xf32, #tpu.memory_space<vmem>>, %arg10: memref<128x128xf32, #tpu.memory_space<vmem>>) attributes {dimension_semantics = [#tpu.dimension_semantics<parallel>], iteration_bounds = array<i64: 1>, scalar_prefetch = 0 : i64, scratch_operands = 0 : i64, tpu.core_type = #tpu.core_type<tc>, window_params = [{transform_indices = @transform_0, window_bounds = array<i64: 128, 128>}, {pipeline_mode = #tpu.pipeline_mode<synchronous>, transform_indices = @transform_1, window_bounds = array<i64: 1, 128>}, {pipeline_mode = #tpu.pipeline_mode<synchronous>, transform_indices = @transform_2, window_bounds = array<i64: 1, 128>}, {pipeline_mode = #tpu.pipeline_mode<synchronous>, transform_indices = @transform_3, window_bounds = array<i64: 128, 256>}, {pipeline_mode = #tpu.pipeline_mode<synchronous>, transform_indices = @transform_4, window_bounds = array<i64: 1, 256>}, {pipeline_mode = #tpu.pipeline_mode<synchronous>, transform_indices = @transform_5, window_bounds = array<i64: 1, 256>}, {pipeline_mode = #tpu.pipeline_mode<synchronous>, transform_indices = @transform_6, window_bounds = array<i64: 1, 256>}, {pipeline_mode = #tpu.pipeline_mode<synchronous>, transform_indices = @transform_7, window_bounds = array<i64: 256, 128>}, {pipeline_mode = #tpu.pipeline_mode<synchronous>, transform_indices = @transform_8, window_bounds = array<i64: 1, 128>}, {transform_indices = @transform_9, window_bounds = array<i64: 128, 128>}]} {
    %c0 = arith.constant 0 : index
    %c0_0 = arith.constant 0 : index
    %0 = vector.load %arg1[%c0, %c0_0] : memref<128x128xf32, #tpu.memory_space<vmem>>, vector<128x128xf32>
    %c0_1 = arith.constant 0 : index
    %c0_2 = arith.constant 0 : index
    %1 = vector.load %arg2[%c0_1, %c0_2] : memref<1x128xf32, #tpu.memory_space<vmem>>, vector<1x128xf32>
    %c0_3 = arith.constant 0 : index
    %c0_4 = arith.constant 0 : index
    %2 = vector.load %arg3[%c0_3, %c0_4] : memref<1x128xf32, #tpu.memory_space<vmem>>, vector<1x128xf32>
    %cst = arith.constant dense<0.000000e+00> : vector<128xf32>
    %3 = vector.multi_reduction <add>, %0, %cst [1] : vector<128x128xf32> to vector<128xf32>
    %4 = vector.shape_cast %3 : vector<128xf32> to vector<128x1xf32>
    %cst_5 = arith.constant 1.280000e+02 : f32
    %5 = vector.broadcast %cst_5 : f32 to vector<128x1xf32>
    %6 = arith.divf %4, %5 : vector<128x1xf32>
    %7 = vector.broadcast %6 : vector<128x1xf32> to vector<128x128xf32>
    %8 = arith.subf %0, %7 : vector<128x128xf32>
    %9 = arith.mulf %8, %8 : vector<128x128xf32>
    %cst_6 = arith.constant dense<0.000000e+00> : vector<128xf32>
    %10 = vector.multi_reduction <add>, %9, %cst_6 [1] : vector<128x128xf32> to vector<128xf32>
    %11 = vector.shape_cast %10 : vector<128xf32> to vector<128x1xf32>
    %cst_7 = arith.constant 1.280000e+02 : f32
    %12 = vector.broadcast %cst_7 : f32 to vector<128x1xf32>
    %13 = arith.divf %11, %12 : vector<128x1xf32>
    %14 = vector.broadcast %6 : vector<128x1xf32> to vector<128x128xf32>
    %15 = arith.subf %0, %14 : vector<128x128xf32>
    %cst_8 = arith.constant 9.99999974E-6 : f32
    %16 = vector.broadcast %cst_8 : f32 to vector<128x1xf32>
    %17 = arith.addf %13, %16 : vector<128x1xf32>
    %18 = math.rsqrt %17 : vector<128x1xf32>
    %19 = vector.broadcast %18 : vector<128x1xf32> to vector<128x128xf32>
    %20 = arith.mulf %15, %19 : vector<128x128xf32>
    %21 = vector.broadcast %1 : vector<1x128xf32> to vector<128x128xf32>
    %22 = arith.mulf %20, %21 : vector<128x128xf32>
    %23 = vector.broadcast %2 : vector<1x128xf32> to vector<128x128xf32>
    %24 = arith.addf %22, %23 : vector<128x128xf32>
    %25 = arith.truncf %24 : vector<128x128xf32> to vector<128x128xbf16>
    %c0_9 = arith.constant 0 : index
    %c0_10 = arith.constant 0 : index
    %26 = vector.load %arg4[%c0_9, %c0_10] : memref<128x256xbf16, #tpu.memory_space<vmem>>, vector<128x256xbf16>
    %cst_11 = arith.constant dense<0.000000e+00> : vector<128x256xf32>
    %27 = tpu.matmul %25, %26, %cst_11 {dimension_numbers = #tpu.dot_dimension_numbers<[1], [0], [0], [1], [0, 0, 1, 1], [], []>} : vector<128x128xbf16>, vector<128x256xbf16>, vector<128x256xf32> -> vector<128x256xf32>
    %c0_12 = arith.constant 0 : index
    %c0_13 = arith.constant 0 : index
    %28 = vector.load %arg5[%c0_12, %c0_13] : memref<1x256xf32, #tpu.memory_space<vmem>>, vector<1x256xf32>
    %29 = vector.broadcast %28 : vector<1x256xf32> to vector<128x256xf32>
    %30 = arith.addf %27, %29 : vector<128x256xf32>
    %cst_14 = arith.constant 0.000000e+00 : f32
    %31 = vector.broadcast %cst_14 : f32 to vector<128x256xf32>
    %32 = arith.maximumf %30, %31 : vector<128x256xf32>
    %c0_15 = arith.constant 0 : index
    %c0_16 = arith.constant 0 : index
    %33 = vector.load %arg6[%c0_15, %c0_16] : memref<1x256xf32, #tpu.memory_space<vmem>>, vector<1x256xf32>
    %c0_17 = arith.constant 0 : index
    %c0_18 = arith.constant 0 : index
    %34 = vector.load %arg7[%c0_17, %c0_18] : memref<1x256xf32, #tpu.memory_space<vmem>>, vector<1x256xf32>
    %cst_19 = arith.constant dense<0.000000e+00> : vector<128xf32>
    %35 = vector.multi_reduction <add>, %32, %cst_19 [1] : vector<128x256xf32> to vector<128xf32>
    %36 = vector.shape_cast %35 : vector<128xf32> to vector<128x1xf32>
    %cst_20 = arith.constant 2.560000e+02 : f32
    %37 = vector.broadcast %cst_20 : f32 to vector<128x1xf32>
    %38 = arith.divf %36, %37 : vector<128x1xf32>
    %39 = vector.broadcast %38 : vector<128x1xf32> to vector<128x256xf32>
    %40 = arith.subf %32, %39 : vector<128x256xf32>
    %41 = arith.mulf %40, %40 : vector<128x256xf32>
    %cst_21 = arith.constant dense<0.000000e+00> : vector<128xf32>
    %42 = vector.multi_reduction <add>, %41, %cst_21 [1] : vector<128x256xf32> to vector<128xf32>
    %43 = vector.shape_cast %42 : vector<128xf32> to vector<128x1xf32>
    %cst_22 = arith.constant 2.560000e+02 : f32
    %44 = vector.broadcast %cst_22 : f32 to vector<128x1xf32>
    %45 = arith.divf %43, %44 : vector<128x1xf32>
    %46 = vector.broadcast %38 : vector<128x1xf32> to vector<128x256xf32>
    %47 = arith.subf %32, %46 : vector<128x256xf32>
    %cst_23 = arith.constant 9.99999974E-6 : f32
    %48 = vector.broadcast %cst_23 : f32 to vector<128x1xf32>
    %49 = arith.addf %45, %48 : vector<128x1xf32>
    %50 = math.rsqrt %49 : vector<128x1xf32>
    %51 = vector.broadcast %50 : vector<128x1xf32> to vector<128x256xf32>
    %52 = arith.mulf %47, %51 : vector<128x256xf32>
    %53 = vector.broadcast %33 : vector<1x256xf32> to vector<128x256xf32>
    %54 = arith.mulf %52, %53 : vector<128x256xf32>
    %55 = vector.broadcast %34 : vector<1x256xf32> to vector<128x256xf32>
    %56 = arith.addf %54, %55 : vector<128x256xf32>
    %57 = arith.truncf %56 : vector<128x256xf32> to vector<128x256xbf16>
    %c0_24 = arith.constant 0 : index
    %c0_25 = arith.constant 0 : index
    %58 = vector.load %arg8[%c0_24, %c0_25] : memref<256x128xbf16, #tpu.memory_space<vmem>>, vector<256x128xbf16>
    %cst_26 = arith.constant dense<0.000000e+00> : vector<128x128xf32>
    %59 = tpu.matmul %57, %58, %cst_26 {dimension_numbers = #tpu.dot_dimension_numbers<[1], [0], [0], [1], [0, 0, 1, 1], [], []>} : vector<128x256xbf16>, vector<256x128xbf16>, vector<128x128xf32> -> vector<128x128xf32>
    %c0_27 = arith.constant 0 : index
    %c0_28 = arith.constant 0 : index
    %60 = vector.load %arg9[%c0_27, %c0_28] : memref<1x128xf32, #tpu.memory_space<vmem>>, vector<1x128xf32>
    %61 = vector.broadcast %60 : vector<1x128xf32> to vector<128x128xf32>
    %62 = arith.addf %59, %61 : vector<128x128xf32>
    %63 = arith.addf %0, %62 : vector<128x128xf32>
    %c0_29 = arith.constant 0 : index
    %c0_30 = arith.constant 0 : index
    %64 = vector.load %arg10[%c0_29, %c0_30] : memref<128x128xf32, #tpu.memory_space<vmem>>, vector<128x128xf32>
    tpu.vector_store %arg10[%c0_29, %c0_30], %63 {strides = array<i32>} : memref<128x128xf32, #tpu.memory_space<vmem>>, vector<128x128xf32>,
    return
  }
  func.func @transform_0(%arg0: i32) -> (i32, i32) {
    %c0_i32 = arith.constant 0 : i32
    %c0_i32_0 = arith.constant 0 : i32
    return %arg0, %c0_i32 : i32, i32
  }
  func.func @transform_1(%arg0: i32) -> (i32, i32) {
    %c0_i32 = arith.constant 0 : i32
    %c0_i32_0 = arith.constant 0 : i32
    %c0_i32_1 = arith.constant 0 : i32
    return %c0_i32, %c0_i32_0 : i32, i32
  }
  func.func @transform_2(%arg0: i32) -> (i32, i32) {
    %c0_i32 = arith.constant 0 : i32
    %c0_i32_0 = arith.constant 0 : i32
    %c0_i32_1 = arith.constant 0 : i32
    return %c0_i32, %c0_i32_0 : i32, i32
  }
  func.func @transform_3(%arg0: i32) -> (i32, i32) {
    %c0_i32 = arith.constant 0 : i32
    %c0_i32_0 = arith.constant 0 : i32
    %c0_i32_1 = arith.constant 0 : i32
    return %c0_i32, %c0_i32_0 : i32, i32
  }
  func.func @transform_4(%arg0: i32) -> (i32, i32) {
    %c0_i32 = arith.constant 0 : i32
    %c0_i32_0 = arith.constant 0 : i32
    %c0_i32_1 = arith.constant 0 : i32
    return %c0_i32, %c0_i32_0 : i32, i32
  }
  func.func @transform_5(%arg0: i32) -> (i32, i32) {
    %c0_i32 = arith.constant 0 : i32
    %c0_i32_0 = arith.constant 0 : i32
    %c0_i32_1 = arith.constant 0 : i32
    return %c0_i32, %c0_i32_0 : i32, i32
  }
  func.func @transform_6(%arg0: i32) -> (i32, i32) {
    %c0_i32 = arith.constant 0 : i32
    %c0_i32_0 = arith.constant 0 : i32
    %c0_i32_1 = arith.constant 0 : i32
    return %c0_i32, %c0_i32_0 : i32, i32
  }
  func.func @transform_7(%arg0: i32) -> (i32, i32) {
    %c0_i32 = arith.constant 0 : i32
    %c0_i32_0 = arith.constant 0 : i32
    %c0_i32_1 = arith.constant 0 : i32
    return %c0_i32, %c0_i32_0 : i32, i32
  }
  func.func @transform_8(%arg0: i32) -> (i32, i32) {
    %c0_i32 = arith.constant 0 : i32
    %c0_i32_0 = arith.constant 0 : i32
    %c0_i32_1 = arith.constant 0 : i32
    return %c0_i32, %c0_i32_0 : i32, i32
  }
  func.func @transform_9(%arg0: i32) -> (i32, i32) {
    %c0_i32 = arith.constant 0 : i32
    %c0_i32_0 = arith.constant 0 : i32
    return %arg0, %c0_i32 : i32, i32
  }
}

module attributes {stable_mosaic.version = 11 : i64} {
  func.func @_mha_masked_kernel(%arg0: i32, %arg1: i32, %arg2: memref<1x4x64x32xbf16, #tpu.memory_space<vmem>>, %arg3: memref<1x4x16x32xbf16, #tpu.memory_space<vmem>>, %arg4: memref<1x4x16x32xbf16, #tpu.memory_space<vmem>>, %arg5: memref<1x1x16xf32, #tpu.memory_space<vmem>>, %arg6: memref<1x64x128xf32, #tpu.memory_space<vmem>>, %arg7: memref<4x32x128xbf16, #tpu.memory_space<vmem>>, %arg8: memref<1x128xf32, #tpu.memory_space<vmem>>, %arg9: memref<1x128xf32, #tpu.memory_space<vmem>>, %arg10: memref<1x128xf32, #tpu.memory_space<vmem>>, %arg11: memref<1x64x128xf32, #tpu.memory_space<vmem>>) attributes {dimension_semantics = [#tpu.dimension_semantics<parallel>, #tpu.dimension_semantics<parallel>], iteration_bounds = array<i64: 2, 1>, scalar_prefetch = 0 : i64, scratch_operands = 0 : i64, tpu.core_type = #tpu.core_type<tc>, window_params = [{transform_indices = @transform_0, window_bounds = array<i64: 1, 4, 64, 32>}, {transform_indices = @transform_1, window_bounds = array<i64: 1, 4, 16, 32>}, {transform_indices = @transform_2, window_bounds = array<i64: 1, 4, 16, 32>}, {transform_indices = @transform_3, window_bounds = array<i64: 1, 1, 16>}, {transform_indices = @transform_4, window_bounds = array<i64: 1, 64, 128>}, {pipeline_mode = #tpu.pipeline_mode<synchronous>, transform_indices = @transform_5, window_bounds = array<i64: 4, 32, 128>}, {pipeline_mode = #tpu.pipeline_mode<synchronous>, transform_indices = @transform_6, window_bounds = array<i64: 1, 128>}, {pipeline_mode = #tpu.pipeline_mode<synchronous>, transform_indices = @transform_7, window_bounds = array<i64: 1, 128>}, {pipeline_mode = #tpu.pipeline_mode<synchronous>, transform_indices = @transform_8, window_bounds = array<i64: 1, 128>}, {transform_indices = @transform_9, window_bounds = array<i64: 1, 64, 128>}]} {
    %c0 = arith.constant 0 : index
    %c0_0 = arith.constant 0 : index
    %c0_1 = arith.constant 0 : index
    %0 = vector.load %arg5[%c0, %c0_0, %c0_1] : memref<1x1x16xf32, #tpu.memory_space<vmem>>, vector<1x1x16xf32>
    %1 = vector.shape_cast %0 : vector<1x1x16xf32> to vector<1x16xf32>
    %cst = arith.constant 1.000000e+30 : f32
    %2 = vector.broadcast %cst : f32 to vector<1x16xf32>
    %3 = arith.mulf %1, %2 : vector<1x16xf32>
    %cst_2 = arith.constant 0.000000e+00 : f32
    %4 = vector.broadcast %cst_2 : f32 to vector<64x128xf32>
    %c0_3 = arith.constant 0 : index
    %c0_4 = arith.constant 0 : index
    %c0_5 = arith.constant 0 : index
    %c0_6 = arith.constant 0 : index
    %5 = vector.load %arg2[%c0_3, %c0_4, %c0_5, %c0_6] : memref<1x4x64x32xbf16, #tpu.memory_space<vmem>>, vector<1x1x64x32xbf16>
    %6 = vector.shape_cast %5 : vector<1x1x64x32xbf16> to vector<64x32xbf16>
    %c0_7 = arith.constant 0 : index
    %c0_8 = arith.constant 0 : index
    %c0_9 = arith.constant 0 : index
    %c0_10 = arith.constant 0 : index
    %7 = vector.load %arg3[%c0_7, %c0_8, %c0_9, %c0_10] : memref<1x4x16x32xbf16, #tpu.memory_space<vmem>>, vector<1x1x16x32xbf16>
    %8 = vector.shape_cast %7 : vector<1x1x16x32xbf16> to vector<16x32xbf16>
    %c0_11 = arith.constant 0 : index
    %c0_12 = arith.constant 0 : index
    %c0_13 = arith.constant 0 : index
    %c0_14 = arith.constant 0 : index
    %9 = vector.load %arg4[%c0_11, %c0_12, %c0_13, %c0_14] : memref<1x4x16x32xbf16, #tpu.memory_space<vmem>>, vector<1x1x16x32xbf16>
    %10 = vector.shape_cast %9 : vector<1x1x16x32xbf16> to vector<16x32xbf16>
    %cst_15 = arith.constant dense<0.000000e+00> : vector<64x16xf32>
    %11 = tpu.matmul %6, %8, %cst_15 {dimension_numbers = #tpu.dot_dimension_numbers<[1], [1], [0], [0], [0, 0, 1, 0], [], []>} : vector<64x32xbf16>, vector<16x32xbf16>, vector<64x16xf32> -> vector<64x16xf32>
    %12 = vector.broadcast %3 : vector<1x16xf32> to vector<64x16xf32>
    %13 = arith.subf %11, %12 : vector<64x16xf32>
    %cst_16 = arith.constant dense<0xFF800000> : vector<64xf32>
    %14 = vector.multi_reduction <maximumf>, %13, %cst_16 [1] : vector<64x16xf32> to vector<64xf32>
    %15 = vector.shape_cast %14 : vector<64xf32> to vector<64x1xf32>
    %16 = vector.broadcast %15 : vector<64x1xf32> to vector<64x16xf32>
    %17 = arith.subf %13, %16 : vector<64x16xf32>
    %18 = math.exp %17 : vector<64x16xf32>
    %cst_17 = arith.constant dense<0.000000e+00> : vector<64xf32>
    %19 = vector.multi_reduction <add>, %18, %cst_17 [1] : vector<64x16xf32> to vector<64xf32>
    %20 = vector.shape_cast %19 : vector<64xf32> to vector<64x1xf32>
    %21 = tpu.reciprocal %20 {approx = true} : vector<64x1xf32> -> vector<64x1xf32>
    %22 = vector.broadcast %21 : vector<64x1xf32> to vector<64x16xf32>
    %23 = arith.mulf %18, %22 : vector<64x16xf32>
    %24 = arith.truncf %23 : vector<64x16xf32> to vector<64x16xbf16>
    %cst_18 = arith.constant dense<0.000000e+00> : vector<64x32xf32>
    %25 = tpu.matmul %24, %10, %cst_18 {dimension_numbers = #tpu.dot_dimension_numbers<[1], [0], [0], [1], [0, 0, 1, 1], [], []>} : vector<64x16xbf16>, vector<16x32xbf16>, vector<64x32xf32> -> vector<64x32xf32>
    %26 = arith.truncf %25 : vector<64x32xf32> to vector<64x32xbf16>
    %c0_19 = arith.constant 0 : index
    %c0_20 = arith.constant 0 : index
    %c0_21 = arith.constant 0 : index
    %27 = vector.load %arg7[%c0_19, %c0_20, %c0_21] : memref<4x32x128xbf16, #tpu.memory_space<vmem>>, vector<1x32x128xbf16>
    %28 = vector.shape_cast %27 : vector<1x32x128xbf16> to vector<32x128xbf16>
    %cst_22 = arith.constant dense<0.000000e+00> : vector<64x128xf32>
    %29 = tpu.matmul %26, %28, %cst_22 {dimension_numbers = #tpu.dot_dimension_numbers<[1], [0], [0], [1], [0, 0, 1, 1], [], []>} : vector<64x32xbf16>, vector<32x128xbf16>, vector<64x128xf32> -> vector<64x128xf32>
    %30 = arith.addf %4, %29 : vector<64x128xf32>
    %c0_23 = arith.constant 0 : index
    %c1 = arith.constant 1 : index
    %c0_24 = arith.constant 0 : index
    %c0_25 = arith.constant 0 : index
    %31 = vector.load %arg2[%c0_23, %c1, %c0_24, %c0_25] : memref<1x4x64x32xbf16, #tpu.memory_space<vmem>>, vector<1x1x64x32xbf16>
    %32 = vector.shape_cast %31 : vector<1x1x64x32xbf16> to vector<64x32xbf16>
    %c0_26 = arith.constant 0 : index
    %c1_27 = arith.constant 1 : index
    %c0_28 = arith.constant 0 : index
    %c0_29 = arith.constant 0 : index
    %33 = vector.load %arg3[%c0_26, %c1_27, %c0_28, %c0_29] : memref<1x4x16x32xbf16, #tpu.memory_space<vmem>>, vector<1x1x16x32xbf16>
    %34 = vector.shape_cast %33 : vector<1x1x16x32xbf16> to vector<16x32xbf16>
    %c0_30 = arith.constant 0 : index
    %c1_31 = arith.constant 1 : index
    %c0_32 = arith.constant 0 : index
    %c0_33 = arith.constant 0 : index
    %35 = vector.load %arg4[%c0_30, %c1_31, %c0_32, %c0_33] : memref<1x4x16x32xbf16, #tpu.memory_space<vmem>>, vector<1x1x16x32xbf16>
    %36 = vector.shape_cast %35 : vector<1x1x16x32xbf16> to vector<16x32xbf16>
    %cst_34 = arith.constant dense<0.000000e+00> : vector<64x16xf32>
    %37 = tpu.matmul %32, %34, %cst_34 {dimension_numbers = #tpu.dot_dimension_numbers<[1], [1], [0], [0], [0, 0, 1, 0], [], []>} : vector<64x32xbf16>, vector<16x32xbf16>, vector<64x16xf32> -> vector<64x16xf32>
    %38 = vector.broadcast %3 : vector<1x16xf32> to vector<64x16xf32>
    %39 = arith.subf %37, %38 : vector<64x16xf32>
    %cst_35 = arith.constant dense<0xFF800000> : vector<64xf32>
    %40 = vector.multi_reduction <maximumf>, %39, %cst_35 [1] : vector<64x16xf32> to vector<64xf32>
    %41 = vector.shape_cast %40 : vector<64xf32> to vector<64x1xf32>
    %42 = vector.broadcast %41 : vector<64x1xf32> to vector<64x16xf32>
    %43 = arith.subf %39, %42 : vector<64x16xf32>
    %44 = math.exp %43 : vector<64x16xf32>
    %cst_36 = arith.constant dense<0.000000e+00> : vector<64xf32>
    %45 = vector.multi_reduction <add>, %44, %cst_36 [1] : vector<64x16xf32> to vector<64xf32>
    %46 = vector.shape_cast %45 : vector<64xf32> to vector<64x1xf32>
    %47 = tpu.reciprocal %46 {approx = true} : vector<64x1xf32> -> vector<64x1xf32>
    %48 = vector.broadcast %47 : vector<64x1xf32> to vector<64x16xf32>
    %49 = arith.mulf %44, %48 : vector<64x16xf32>
    %50 = arith.truncf %49 : vector<64x16xf32> to vector<64x16xbf16>
    %cst_37 = arith.constant dense<0.000000e+00> : vector<64x32xf32>
    %51 = tpu.matmul %50, %36, %cst_37 {dimension_numbers = #tpu.dot_dimension_numbers<[1], [0], [0], [1], [0, 0, 1, 1], [], []>} : vector<64x16xbf16>, vector<16x32xbf16>, vector<64x32xf32> -> vector<64x32xf32>
    %52 = arith.truncf %51 : vector<64x32xf32> to vector<64x32xbf16>
    %c1_38 = arith.constant 1 : index
    %c0_39 = arith.constant 0 : index
    %c0_40 = arith.constant 0 : index
    %53 = vector.load %arg7[%c1_38, %c0_39, %c0_40] : memref<4x32x128xbf16, #tpu.memory_space<vmem>>, vector<1x32x128xbf16>
    %54 = vector.shape_cast %53 : vector<1x32x128xbf16> to vector<32x128xbf16>
    %cst_41 = arith.constant dense<0.000000e+00> : vector<64x128xf32>
    %55 = tpu.matmul %52, %54, %cst_41 {dimension_numbers = #tpu.dot_dimension_numbers<[1], [0], [0], [1], [0, 0, 1, 1], [], []>} : vector<64x32xbf16>, vector<32x128xbf16>, vector<64x128xf32> -> vector<64x128xf32>
    %56 = arith.addf %30, %55 : vector<64x128xf32>
    %c0_42 = arith.constant 0 : index
    %c2 = arith.constant 2 : index
    %c0_43 = arith.constant 0 : index
    %c0_44 = arith.constant 0 : index
    %57 = vector.load %arg2[%c0_42, %c2, %c0_43, %c0_44] : memref<1x4x64x32xbf16, #tpu.memory_space<vmem>>, vector<1x1x64x32xbf16>
    %58 = vector.shape_cast %57 : vector<1x1x64x32xbf16> to vector<64x32xbf16>
    %c0_45 = arith.constant 0 : index
    %c2_46 = arith.constant 2 : index
    %c0_47 = arith.constant 0 : index
    %c0_48 = arith.constant 0 : index
    %59 = vector.load %arg3[%c0_45, %c2_46, %c0_47, %c0_48] : memref<1x4x16x32xbf16, #tpu.memory_space<vmem>>, vector<1x1x16x32xbf16>
    %60 = vector.shape_cast %59 : vector<1x1x16x32xbf16> to vector<16x32xbf16>
    %c0_49 = arith.constant 0 : index
    %c2_50 = arith.constant 2 : index
    %c0_51 = arith.constant 0 : index
    %c0_52 = arith.constant 0 : index
    %61 = vector.load %arg4[%c0_49, %c2_50, %c0_51, %c0_52] : memref<1x4x16x32xbf16, #tpu.memory_space<vmem>>, vector<1x1x16x32xbf16>
    %62 = vector.shape_cast %61 : vector<1x1x16x32xbf16> to vector<16x32xbf16>
    %cst_53 = arith.constant dense<0.000000e+00> : vector<64x16xf32>
    %63 = tpu.matmul %58, %60, %cst_53 {dimension_numbers = #tpu.dot_dimension_numbers<[1], [1], [0], [0], [0, 0, 1, 0], [], []>} : vector<64x32xbf16>, vector<16x32xbf16>, vector<64x16xf32> -> vector<64x16xf32>
    %64 = vector.broadcast %3 : vector<1x16xf32> to vector<64x16xf32>
    %65 = arith.subf %63, %64 : vector<64x16xf32>
    %cst_54 = arith.constant dense<0xFF800000> : vector<64xf32>
    %66 = vector.multi_reduction <maximumf>, %65, %cst_54 [1] : vector<64x16xf32> to vector<64xf32>
    %67 = vector.shape_cast %66 : vector<64xf32> to vector<64x1xf32>
    %68 = vector.broadcast %67 : vector<64x1xf32> to vector<64x16xf32>
    %69 = arith.subf %65, %68 : vector<64x16xf32>
    %70 = math.exp %69 : vector<64x16xf32>
    %cst_55 = arith.constant dense<0.000000e+00> : vector<64xf32>
    %71 = vector.multi_reduction <add>, %70, %cst_55 [1] : vector<64x16xf32> to vector<64xf32>
    %72 = vector.shape_cast %71 : vector<64xf32> to vector<64x1xf32>
    %73 = tpu.reciprocal %72 {approx = true} : vector<64x1xf32> -> vector<64x1xf32>
    %74 = vector.broadcast %73 : vector<64x1xf32> to vector<64x16xf32>
    %75 = arith.mulf %70, %74 : vector<64x16xf32>
    %76 = arith.truncf %75 : vector<64x16xf32> to vector<64x16xbf16>
    %cst_56 = arith.constant dense<0.000000e+00> : vector<64x32xf32>
    %77 = tpu.matmul %76, %62, %cst_56 {dimension_numbers = #tpu.dot_dimension_numbers<[1], [0], [0], [1], [0, 0, 1, 1], [], []>} : vector<64x16xbf16>, vector<16x32xbf16>, vector<64x32xf32> -> vector<64x32xf32>
    %78 = arith.truncf %77 : vector<64x32xf32> to vector<64x32xbf16>
    %c2_57 = arith.constant 2 : index
    %c0_58 = arith.constant 0 : index
    %c0_59 = arith.constant 0 : index
    %79 = vector.load %arg7[%c2_57, %c0_58, %c0_59] : memref<4x32x128xbf16, #tpu.memory_space<vmem>>, vector<1x32x128xbf16>
    %80 = vector.shape_cast %79 : vector<1x32x128xbf16> to vector<32x128xbf16>
    %cst_60 = arith.constant dense<0.000000e+00> : vector<64x128xf32>
    %81 = tpu.matmul %78, %80, %cst_60 {dimension_numbers = #tpu.dot_dimension_numbers<[1], [0], [0], [1], [0, 0, 1, 1], [], []>} : vector<64x32xbf16>, vector<32x128xbf16>, vector<64x128xf32> -> vector<64x128xf32>
    %82 = arith.addf %56, %81 : vector<64x128xf32>
    %c0_61 = arith.constant 0 : index
    %c3 = arith.constant 3 : index
    %c0_62 = arith.constant 0 : index
    %c0_63 = arith.constant 0 : index
    %83 = vector.load %arg2[%c0_61, %c3, %c0_62, %c0_63] : memref<1x4x64x32xbf16, #tpu.memory_space<vmem>>, vector<1x1x64x32xbf16>
    %84 = vector.shape_cast %83 : vector<1x1x64x32xbf16> to vector<64x32xbf16>
    %c0_64 = arith.constant 0 : index
    %c3_65 = arith.constant 3 : index
    %c0_66 = arith.constant 0 : index
    %c0_67 = arith.constant 0 : index
    %85 = vector.load %arg3[%c0_64, %c3_65, %c0_66, %c0_67] : memref<1x4x16x32xbf16, #tpu.memory_space<vmem>>, vector<1x1x16x32xbf16>
    %86 = vector.shape_cast %85 : vector<1x1x16x32xbf16> to vector<16x32xbf16>
    %c0_68 = arith.constant 0 : index
    %c3_69 = arith.constant 3 : index
    %c0_70 = arith.constant 0 : index
    %c0_71 = arith.constant 0 : index
    %87 = vector.load %arg4[%c0_68, %c3_69, %c0_70, %c0_71] : memref<1x4x16x32xbf16, #tpu.memory_space<vmem>>, vector<1x1x16x32xbf16>
    %88 = vector.shape_cast %87 : vector<1x1x16x32xbf16> to vector<16x32xbf16>
    %cst_72 = arith.constant dense<0.000000e+00> : vector<64x16xf32>
    %89 = tpu.matmul %84, %86, %cst_72 {dimension_numbers = #tpu.dot_dimension_numbers<[1], [1], [0], [0], [0, 0, 1, 0], [], []>} : vector<64x32xbf16>, vector<16x32xbf16>, vector<64x16xf32> -> vector<64x16xf32>
    %90 = vector.broadcast %3 : vector<1x16xf32> to vector<64x16xf32>
    %91 = arith.subf %89, %90 : vector<64x16xf32>
    %cst_73 = arith.constant dense<0xFF800000> : vector<64xf32>
    %92 = vector.multi_reduction <maximumf>, %91, %cst_73 [1] : vector<64x16xf32> to vector<64xf32>
    %93 = vector.shape_cast %92 : vector<64xf32> to vector<64x1xf32>
    %94 = vector.broadcast %93 : vector<64x1xf32> to vector<64x16xf32>
    %95 = arith.subf %91, %94 : vector<64x16xf32>
    %96 = math.exp %95 : vector<64x16xf32>
    %cst_74 = arith.constant dense<0.000000e+00> : vector<64xf32>
    %97 = vector.multi_reduction <add>, %96, %cst_74 [1] : vector<64x16xf32> to vector<64xf32>
    %98 = vector.shape_cast %97 : vector<64xf32> to vector<64x1xf32>
    %99 = tpu.reciprocal %98 {approx = true} : vector<64x1xf32> -> vector<64x1xf32>
    %100 = vector.broadcast %99 : vector<64x1xf32> to vector<64x16xf32>
    %101 = arith.mulf %96, %100 : vector<64x16xf32>
    %102 = arith.truncf %101 : vector<64x16xf32> to vector<64x16xbf16>
    %cst_75 = arith.constant dense<0.000000e+00> : vector<64x32xf32>
    %103 = tpu.matmul %102, %88, %cst_75 {dimension_numbers = #tpu.dot_dimension_numbers<[1], [0], [0], [1], [0, 0, 1, 1], [], []>} : vector<64x16xbf16>, vector<16x32xbf16>, vector<64x32xf32> -> vector<64x32xf32>
    %104 = arith.truncf %103 : vector<64x32xf32> to vector<64x32xbf16>
    %c3_76 = arith.constant 3 : index
    %c0_77 = arith.constant 0 : index
    %c0_78 = arith.constant 0 : index
    %105 = vector.load %arg7[%c3_76, %c0_77, %c0_78] : memref<4x32x128xbf16, #tpu.memory_space<vmem>>, vector<1x32x128xbf16>
    %106 = vector.shape_cast %105 : vector<1x32x128xbf16> to vector<32x128xbf16>
    %cst_79 = arith.constant dense<0.000000e+00> : vector<64x128xf32>
    %107 = tpu.matmul %104, %106, %cst_79 {dimension_numbers = #tpu.dot_dimension_numbers<[1], [0], [0], [1], [0, 0, 1, 1], [], []>} : vector<64x32xbf16>, vector<32x128xbf16>, vector<64x128xf32> -> vector<64x128xf32>
    %108 = arith.addf %82, %107 : vector<64x128xf32>
    %c0_80 = arith.constant 0 : index
    %c0_81 = arith.constant 0 : index
    %109 = vector.load %arg8[%c0_80, %c0_81] : memref<1x128xf32, #tpu.memory_space<vmem>>, vector<1x128xf32>
    %110 = vector.broadcast %109 : vector<1x128xf32> to vector<64x128xf32>
    %111 = arith.addf %108, %110 : vector<64x128xf32>
    %c0_82 = arith.constant 0 : index
    %c0_83 = arith.constant 0 : index
    %112 = vector.load %arg9[%c0_82, %c0_83] : memref<1x128xf32, #tpu.memory_space<vmem>>, vector<1x128xf32>
    %c0_84 = arith.constant 0 : index
    %c0_85 = arith.constant 0 : index
    %113 = vector.load %arg10[%c0_84, %c0_85] : memref<1x128xf32, #tpu.memory_space<vmem>>, vector<1x128xf32>
    %cst_86 = arith.constant dense<0.000000e+00> : vector<64xf32>
    %114 = vector.multi_reduction <add>, %111, %cst_86 [1] : vector<64x128xf32> to vector<64xf32>
    %115 = vector.shape_cast %114 : vector<64xf32> to vector<64x1xf32>
    %cst_87 = arith.constant 1.280000e+02 : f32
    %116 = vector.broadcast %cst_87 : f32 to vector<64x1xf32>
    %117 = arith.divf %115, %116 : vector<64x1xf32>
    %118 = vector.broadcast %117 : vector<64x1xf32> to vector<64x128xf32>
    %119 = arith.subf %111, %118 : vector<64x128xf32>
    %120 = arith.mulf %119, %119 : vector<64x128xf32>
    %cst_88 = arith.constant dense<0.000000e+00> : vector<64xf32>
    %121 = vector.multi_reduction <add>, %120, %cst_88 [1] : vector<64x128xf32> to vector<64xf32>
    %122 = vector.shape_cast %121 : vector<64xf32> to vector<64x1xf32>
    %cst_89 = arith.constant 1.280000e+02 : f32
    %123 = vector.broadcast %cst_89 : f32 to vector<64x1xf32>
    %124 = arith.divf %122, %123 : vector<64x1xf32>
    %125 = vector.broadcast %117 : vector<64x1xf32> to vector<64x128xf32>
    %126 = arith.subf %111, %125 : vector<64x128xf32>
    %cst_90 = arith.constant 9.99999974E-6 : f32
    %127 = vector.broadcast %cst_90 : f32 to vector<64x1xf32>
    %128 = arith.addf %124, %127 : vector<64x1xf32>
    %129 = math.rsqrt %128 : vector<64x1xf32>
    %130 = vector.broadcast %129 : vector<64x1xf32> to vector<64x128xf32>
    %131 = arith.mulf %126, %130 : vector<64x128xf32>
    %132 = vector.broadcast %112 : vector<1x128xf32> to vector<64x128xf32>
    %133 = arith.mulf %131, %132 : vector<64x128xf32>
    %134 = vector.broadcast %113 : vector<1x128xf32> to vector<64x128xf32>
    %135 = arith.addf %133, %134 : vector<64x128xf32>
    %c0_91 = arith.constant 0 : index
    %c0_92 = arith.constant 0 : index
    %c0_93 = arith.constant 0 : index
    %136 = vector.load %arg6[%c0_91, %c0_92, %c0_93] : memref<1x64x128xf32, #tpu.memory_space<vmem>>, vector<1x64x128xf32>
    %137 = vector.shape_cast %136 : vector<1x64x128xf32> to vector<64x128xf32>
    %138 = arith.addf %137, %135 : vector<64x128xf32>
    %c0_94 = arith.constant 0 : index
    %c0_95 = arith.constant 0 : index
    %c0_96 = arith.constant 0 : index
    %139 = vector.load %arg11[%c0_94, %c0_95, %c0_96] : memref<1x64x128xf32, #tpu.memory_space<vmem>>, vector<1x64x128xf32>
    %140 = vector.shape_cast %139 : vector<1x64x128xf32> to vector<64x128xf32>
    %141 = vector.shape_cast %138 : vector<64x128xf32> to vector<1x64x128xf32>
    tpu.vector_store %arg11[%c0_94, %c0_95, %c0_96], %141 {strides = array<i32>} : memref<1x64x128xf32, #tpu.memory_space<vmem>>, vector<1x64x128xf32>,
    return
  }
  func.func @transform_0(%arg0: i32, %arg1: i32) -> (i32, i32, i32, i32) {
    %c0_i32 = arith.constant 0 : i32
    %c0_i32_0 = arith.constant 0 : i32
    %c0_i32_1 = arith.constant 0 : i32
    return %arg0, %c0_i32, %arg1, %c0_i32_0 : i32, i32, i32, i32
  }
  func.func @transform_1(%arg0: i32, %arg1: i32) -> (i32, i32, i32, i32) {
    %c0_i32 = arith.constant 0 : i32
    %c0_i32_0 = arith.constant 0 : i32
    %c0_i32_1 = arith.constant 0 : i32
    %c0_i32_2 = arith.constant 0 : i32
    return %arg0, %c0_i32, %c0_i32_0, %c0_i32_1 : i32, i32, i32, i32
  }
  func.func @transform_2(%arg0: i32, %arg1: i32) -> (i32, i32, i32, i32) {
    %c0_i32 = arith.constant 0 : i32
    %c0_i32_0 = arith.constant 0 : i32
    %c0_i32_1 = arith.constant 0 : i32
    %c0_i32_2 = arith.constant 0 : i32
    return %arg0, %c0_i32, %c0_i32_0, %c0_i32_1 : i32, i32, i32, i32
  }
  func.func @transform_3(%arg0: i32, %arg1: i32) -> (i32, i32, i32) {
    %c0_i32 = arith.constant 0 : i32
    %c0_i32_0 = arith.constant 0 : i32
    %c0_i32_1 = arith.constant 0 : i32
    return %arg0, %c0_i32, %c0_i32_0 : i32, i32, i32
  }
  func.func @transform_4(%arg0: i32, %arg1: i32) -> (i32, i32, i32) {
    %c0_i32 = arith.constant 0 : i32
    %c0_i32_0 = arith.constant 0 : i32
    return %arg0, %arg1, %c0_i32 : i32, i32, i32
  }
  func.func @transform_5(%arg0: i32, %arg1: i32) -> (i32, i32, i32) {
    %c0_i32 = arith.constant 0 : i32
    %c0_i32_0 = arith.constant 0 : i32
    %c0_i32_1 = arith.constant 0 : i32
    %c0_i32_2 = arith.constant 0 : i32
    return %c0_i32, %c0_i32_0, %c0_i32_1 : i32, i32, i32
  }
  func.func @transform_6(%arg0: i32, %arg1: i32) -> (i32, i32) {
    %c0_i32 = arith.constant 0 : i32
    %c0_i32_0 = arith.constant 0 : i32
    %c0_i32_1 = arith.constant 0 : i32
    return %c0_i32, %c0_i32_0 : i32, i32
  }
  func.func @transform_7(%arg0: i32, %arg1: i32) -> (i32, i32) {
    %c0_i32 = arith.constant 0 : i32
    %c0_i32_0 = arith.constant 0 : i32
    %c0_i32_1 = arith.constant 0 : i32
    return %c0_i32, %c0_i32_0 : i32, i32
  }
  func.func @transform_8(%arg0: i32, %arg1: i32) -> (i32, i32) {
    %c0_i32 = arith.constant 0 : i32
    %c0_i32_0 = arith.constant 0 : i32
    %c0_i32_1 = arith.constant 0 : i32
    return %c0_i32, %c0_i32_0 : i32, i32
  }
  func.func @transform_9(%arg0: i32, %arg1: i32) -> (i32, i32, i32) {
    %c0_i32 = arith.constant 0 : i32
    %c0_i32_0 = arith.constant 0 : i32
    return %arg0, %arg1, %c0_i32 : i32, i32, i32
  }
}

</mosaic_0001>

<llo_original>
// kernel: tpu_custom_call.1
$region0: #{tpu_custom_call.1}
  #allocation0 [shape = 'u32[]', space=smem, size = 0x4, offset = 0x4, fixed_abs, tag = 'smem constant byte address 0x4 - core index']
  #allocation1 [shape = 'u32[144,128]{1,0:T(1,128)}', space=vmem, size = 0x12000, scoped, tag = 'internal scratch']
  %s0 = inlined_call_operand.hbm [shape: f32[8,128], index: 0, kind: input, shape index: {}]
  %s1 = inlined_call_operand.hbm [shape: f32[8,128], index: 1, kind: output, shape index: {}]
  %s2 = sld [smem:[#allocation0]]
  $region18: #{tpu_custom_call.1} parent=0
    _
  %s4 = ssub.s32 1, %s2
  %s5 = scalar_select 0, %s4, %s2
  $region1: #{tpu_custom_call.1} parent=0
    #allocation2 [shape = 'u8[4096]{0}', space=vmem, size = 0x1000, scoped, tag = 'input window, operand 0, single buffered']
    #allocation3 [shape = 's32[1]{0}', space=sflag, size = 0x4, scoped, tag = 'scoped memory for tpu_custom_call.1']
    #allocation4 [shape = 's32[1]{0}', space=sflag, size = 0x4, scoped, tag = 'scoped memory for tpu_custom_call.1']
    #allocation5 [shape = 'u8[4096]{0}', space=vmem, size = 0x1000, scoped, tag = 'output window, operand 0, single buffered']
    %6 = vsyncpa [#allocation3], 0
    %7 = vsyncpa [#allocation4], 0
    // Predicated region
    $region2: #{tpu_custom_call.1} parent=1 // pred_check
      _
    $region3: #{tpu_custom_call.1} parent=1 // pred_check_branch
      %9 = sbr.rel (0) target = $region5
    $region4: #{tpu_custom_call.1} parent=1 // pred_region
      %s11 = ssub.s32 128, 128
      %12 = vsyncadd [#allocation3], %s11
      %s14 = sshll.u32 [#allocation2], 4
      %s15 = int_to_ptr.vmem [resolvable:$true] %s14
      %17 = dma.hbm_to_vmem [thread:$0]  %s0, 128, %s15, [#allocation3]
    $region5: #{tpu_custom_call.1} parent=1 // pred_fallthru
      _
    // Predicated region
    $region6: #{tpu_custom_call.1} parent=1 // pred_check
      _
    $region7: #{tpu_custom_call.1} parent=1 // pred_check_branch
      %19 = sbr.rel (0) target = $region9
    $region8: #{tpu_custom_call.1} parent=1 // pred_region
      %20 = dma.done [#allocation3], 128
    $region9: #{tpu_custom_call.1} parent=1 // pred_fallthru
      _
    %v21 = vld [vmem:[#allocation2] sm:$0xff]
    %22 = vst [vmem:[#allocation5] sm:$0xff] %v21
    // Predicated region
    $region10: #{tpu_custom_call.1} parent=1 // pred_check
      _
    $region11: #{tpu_custom_call.1} parent=1 // pred_check_branch
      %24 = sbr.rel (0) target = $region13
    $region12: #{tpu_custom_call.1} parent=1 // pred_region
      %s26 = ssub.s32 128, 128
      %27 = vsyncadd [#allocation4], %s26
      %s29 = sshll.u32 [#allocation5], 4
      %s30 = int_to_ptr.vmem [resolvable:$true] %s29
      %32 = dma.vmem_to_hbm [thread:$0]  %s30, 128, %s1, [#allocation4]
    $region13: #{tpu_custom_call.1} parent=1 // pred_fallthru
      _
    // Predicated region
    $region14: #{tpu_custom_call.1} parent=1 // pred_check
      _
    $region15: #{tpu_custom_call.1} parent=1 // pred_check_branch
      %34 = sbr.rel (0) target = $region17
    $region16: #{tpu_custom_call.1} parent=1 // pred_region
      %35 = dma.done [#allocation4], 128
    $region17: #{tpu_custom_call.1} parent=1 // pred_fallthru
      _
    %36 = vsyncpa [#allocation3], 1
    %37 = vsyncpa [#allocation4], 1

// kernel: decoder_layer_forward.9
$region0: #{decoder_layer_forward.9}
  #allocation0 [shape = 'u32[]', space=smem, size = 0x4, offset = 0x4, fixed_abs, tag = 'smem constant byte address 0x4 - core index']
  #allocation1 [shape = 'u32[144,128]{1,0:T(1,128)}', space=vmem, size = 0x12000, scoped, tag = 'internal scratch']
  %s0 = inlined_call_operand.vmem [shape: f32[2,16,128], index: 0, kind: input, shape index: {}]
  %s1 = inlined_call_operand.vmem [shape: f32[16,128], index: 1, kind: input, shape index: {}]
  %s2 = inlined_call_operand.vmem [shape: bf16[128,128], index: 2, kind: input, shape index: {}]
  %s3 = inlined_call_operand.vmem [shape: bf16[128,128], index: 3, kind: input, shape index: {}]
  %s4 = inlined_call_operand.vmem [shape: f32[1,128], index: 4, kind: input, shape index: {}]
  %s5 = inlined_call_operand.vmem [shape: f32[1,128], index: 5, kind: input, shape index: {}]
  %s6 = inlined_call_operand.vmem [shape: bf16[2,16,128], index: 6, kind: output, shape index: {0}]
  %s7 = inlined_call_operand.vmem [shape: bf16[2,16,128], index: 7, kind: output, shape index: {1}]
  %8 = xla_tuple %s6, %s7
  %s9 = sld [smem:[#allocation0]]
  $region65: #{decoder_layer_forward.9} parent=0
    _
  %s11 = ssub.s32 1, %s9
  %s12 = scalar_select 0, %s11, %s9
  loop: start=0, step=1, limit=4
  $region2: #{decoder_layer_forward.9} parent=0 // loop_pre_header
    _
  $region3: #{decoder_layer_forward.9} parent=0 // loop_header
    %s14 = sphi 0, %s18
    %p15 = scmp.ge.s32.totalorder %s14, 4
    %s21 = sphi 0, %s33
    %s22 = sphi 0, %s29
    %s23 = sphi 0, %s21
    %s24 = sphi 0, %s22
    %s25 = sphi 0, %s23
    %s26 = sphi 0, %s24
    %s38 = sphi 0, %s40
    %s41 = sphi 0, %s38
    %s42 = sphi 0, %s41
    %s58 = sphi 0, %s42
    %s64 = sphi 0, %s66
    %s67 = sphi 0, %s64
    %s68 = sphi 0, %s67
    %s84 = sphi 0, %s68
    %s88 = sphi 0, %s88
    %s90 = sphi 0, %s88
    %s91 = sphi 0, %s90
    %s105 = sphi 0, %s91
    %s109 = sphi 0, %s109
    %s111 = sphi 0, %s109
    %s112 = sphi 0, %s111
    %s126 = sphi 0, %s112
    %s130 = sphi 0, %s130
    %s132 = sphi 0, %s130
    %s133 = sphi 0, %s132
    %s147 = sphi 0, %s133
    %s151 = sphi 0, %s151
    %s153 = sphi 0, %s151
    %s154 = sphi 0, %s153
    %s168 = sphi 0, %s154
    %s176 = sphi 0, %s178
    %s179 = sphi 0, %s176
    %s180 = sphi 0, %s179
    %s196 = sphi 0, %s180
    %s204 = sphi 0, %s206
    %s207 = sphi 0, %s204
    %s208 = sphi 0, %s207
    %s224 = sphi 0, %s208
  $region4: #{decoder_layer_forward.9} parent=0 // loop_header_branch
    %17 = sbr.rel (%p15) target = $region8
  $region5: #{decoder_layer_forward.9} parent=0 // loop_body
    %s19 = ssub.s32 %s14, 1
    %s20 = ssub.s32 %s14, 2
    %s27 = sadd.s32 1, %s22
    %p28 = scmp.ge.s32.totalorder %s27, 1
    %s29 = scalar_select %p28, 0, %s27
    %s30 = sadd.s32 1, %s21
    %s31 = scalar_select %p28, %s30, %s21
    %p32 = scmp.ge.s32.totalorder %s31, 2
    %s33 = scalar_select %p32, 0, %s31
    %s34 = ssub.s32 %s21, %s33
    %s35 = ssub.s32 %s22, %s29
    %s36 = sor.u32 %s34, %s35
    %p37 = scmp.eq.s32.totalorder %s36, 0
    %s39 = sadd.s32 %s38, 1
    %s40 = scalar_select %p37, %s38, %s39
    %p43 = pneg %p37
    %p44 = scmp.eq.s32.totalorder %s14, 1
    %p45 = por %p43, %p44
    %p46 = scmp.ne.s32.totalorder %s38, %s41
    %p47 = scmp.eq.s32.totalorder %s14, 0
    %p48 = por %p46, %p47
    %p49 = scmp.ne.s32.totalorder %s38, %s41
    %p50 = scmp.eq.s32.totalorder %s19, 1
    %p51 = por %p49, %p50
    %p52 = scmp.ne.s32.totalorder %s41, %s42
    %p53 = scmp.eq.s32.totalorder %s19, 0
    %p54 = por %p52, %p53
    %p55 = scmp.ne.s32.totalorder %s41, %s42
    %p56 = scmp.eq.s32.totalorder %s20, 1
    %p57 = por %p55, %p56
    %p59 = scmp.ne.s32.totalorder %s42, %s58
    %p60 = scmp.eq.s32.totalorder %s20, 0
    %p61 = por %p59, %p60
    %s62 = ssub.s32 %s22, %s29
    %p63 = scmp.eq.s32.totalorder %s62, 0
    %s65 = sadd.s32 %s64, 1
    %s66 = scalar_select %p63, %s64, %s65
    %p69 = pneg %p63
    %p70 = scmp.eq.s32.totalorder %s14, 1
    %p71 = por %p69, %p70
    %p72 = scmp.ne.s32.totalorder %s64, %s67
    %p73 = scmp.eq.s32.totalorder %s14, 0
    %p74 = por %p72, %p73
    %p75 = scmp.ne.s32.totalorder %s64, %s67
    %p76 = scmp.eq.s32.totalorder %s19, 1
    %p77 = por %p75, %p76
    %p78 = scmp.ne.s32.totalorder %s67, %s68
    %p79 = scmp.eq.s32.totalorder %s19, 0
    %p80 = por %p78, %p79
    %p81 = scmp.ne.s32.totalorder %s67, %s68
    %p82 = scmp.eq.s32.totalorder %s20, 1
    %p83 = por %p81, %p82
    %p85 = scmp.ne.s32.totalorder %s68, %s84
    %p86 = scmp.eq.s32.totalorder %s20, 0
    %p87 = por %p85, %p86
    %s89 = sadd.s32 %s88, 1
    %p92 = scmp.eq.s32.totalorder %s14, 1
    %p93 = scmp.ne.s32.totalorder %s88, %s90
    %p94 = scmp.eq.s32.totalorder %s14, 0
    %p95 = por %p93, %p94
    %p96 = scmp.ne.s32.totalorder %s88, %s90
    %p97 = scmp.eq.s32.totalorder %s19, 1
    %p98 = por %p96, %p97
    %p99 = scmp.ne.s32.totalorder %s90, %s91
    %p100 = scmp.eq.s32.totalorder %s19, 0
    %p101 = por %p99, %p100
    %p102 = scmp.ne.s32.totalorder %s90, %s91
    %p103 = scmp.eq.s32.totalorder %s20, 1
    %p104 = por %p102, %p103
    %p106 = scmp.ne.s32.totalorder %s91, %s105
    %p107 = scmp.eq.s32.totalorder %s20, 0
    %p108 = por %p106, %p107
    %s110 = sadd.s32 %s109, 1
    %p113 = scmp.eq.s32.totalorder %s14, 1
    %p114 = scmp.ne.s32.totalorder %s109, %s111
    %p115 = scmp.eq.s32.totalorder %s14, 0
    %p116 = por %p114, %p115
    %p117 = scmp.ne.s32.totalorder %s109, %s111
    %p118 = scmp.eq.s32.totalorder %s19, 1
    %p119 = por %p117, %p118
    %p120 = scmp.ne.s32.totalorder %s111, %s112
    %p121 = scmp.eq.s32.totalorder %s19, 0
    %p122 = por %p120, %p121
    %p123 = scmp.ne.s32.totalorder %s111, %s112
    %p124 = scmp.eq.s32.totalorder %s20, 1
    %p125 = por %p123, %p124
    %p127 = scmp.ne.s32.totalorder %s112, %s126
    %p128 = scmp.eq.s32.totalorder %s20, 0
    %p129 = por %p127, %p128
    %s131 = sadd.s32 %s130, 1
    %p134 = scmp.eq.s32.totalorder %s14, 1
    %p135 = scmp.ne.s32.totalorder %s130, %s132
    %p136 = scmp.eq.s32.totalorder %s14, 0
    %p137 = por %p135, %p136
    %p138 = scmp.ne.s32.totalorder %s130, %s132
    %p139 = scmp.eq.s32.totalorder %s19, 1
    %p140 = por %p138, %p139
    %p141 = scmp.ne.s32.totalorder %s132, %s133
    %p142 = scmp.eq.s32.totalorder %s19, 0
    %p143 = por %p141, %p142
    %p144 = scmp.ne.s32.totalorder %s132, %s133
    %p145 = scmp.eq.s32.totalorder %s20, 1
    %p146 = por %p144, %p145
    %p148 = scmp.ne.s32.totalorder %s133, %s147
    %p149 = scmp.eq.s32.totalorder %s20, 0
    %p150 = por %p148, %p149
    %s152 = sadd.s32 %s151, 1
    %p155 = scmp.eq.s32.totalorder %s14, 1
    %p156 = scmp.ne.s32.totalorder %s151, %s153
    %p157 = scmp.eq.s32.totalorder %s14, 0
    %p158 = por %p156, %p157
    %p159 = scmp.ne.s32.totalorder %s151, %s153
    %p160 = scmp.eq.s32.totalorder %s19, 1
    %p161 = por %p159, %p160
    %p162 = scmp.ne.s32.totalorder %s153, %s154
    %p163 = scmp.eq.s32.totalorder %s19, 0
    %p164 = por %p162, %p163
    %p165 = scmp.ne.s32.totalorder %s153, %s154
    %p166 = scmp.eq.s32.totalorder %s20, 1
    %p167 = por %p165, %p166
    %p169 = scmp.ne.s32.totalorder %s154, %s168
    %p170 = scmp.eq.s32.totalorder %s20, 0
    %p171 = por %p169, %p170
    %s172 = ssub.s32 %s21, %s33
    %s173 = ssub.s32 %s22, %s29
    %s174 = sor.u32 %s172, %s173
    %p175 = scmp.eq.s32.totalorder %s174, 0
    %s177 = sadd.s32 %s176, 1
    %s178 = scalar_select %p175, %s176, %s177
    %p181 = pneg %p175
    %p182 = scmp.eq.s32.totalorder %s14, 1
    %p183 = por %p181, %p182
    %p184 = scmp.ne.s32.totalorder %s176, %s179
    %p185 = scmp.eq.s32.totalorder %s14, 0
    %p186 = por %p184, %p185
    %p187 = scmp.ne.s32.totalorder %s176, %s179
    %p188 = scmp.eq.s32.totalorder %s19, 1
    %p189 = por %p187, %p188
    %p190 = scmp.ne.s32.totalorder %s179, %s180
    %p191 = scmp.eq.s32.totalorder %s19, 0
    %p192 = por %p190, %p191
    %p193 = scmp.ne.s32.totalorder %s179, %s180
    %p194 = scmp.eq.s32.totalorder %s20, 1
    %p195 = por %p193, %p194
    %p197 = scmp.ne.s32.totalorder %s180, %s196
    %p198 = scmp.eq.s32.totalorder %s20, 0
    %p199 = por %p197, %p198
    %s200 = ssub.s32 %s21, %s33
    %s201 = ssub.s32 %s22, %s29
    %s202 = sor.u32 %s200, %s201
    %p203 = scmp.eq.s32.totalorder %s202, 0
    %s205 = sadd.s32 %s204, 1
    %s206 = scalar_select %p203, %s204, %s205
    %p209 = pneg %p203
    %p210 = scmp.eq.s32.totalorder %s14, 1
    %p211 = por %p209, %p210
    %p212 = scmp.ne.s32.totalorder %s204, %s207
    %p213 = scmp.eq.s32.totalorder %s14, 0
    %p214 = por %p212, %p213
    %p215 = scmp.ne.s32.totalorder %s204, %s207
    %p216 = scmp.eq.s32.totalorder %s19, 1
    %p217 = por %p215, %p216
    %p218 = scmp.ne.s32.totalorder %s207, %s208
    %p219 = scmp.eq.s32.totalorder %s19, 0
    %p220 = por %p218, %p219
    %p221 = scmp.ne.s32.totalorder %s207, %s208
    %p222 = scmp.eq.s32.totalorder %s20, 1
    %p223 = por %p221, %p222
    %p225 = scmp.ne.s32.totalorder %s208, %s224
    %p226 = scmp.eq.s32.totalorder %s20, 0
    %p227 = por %p225, %p226
    %p228 = scmp.le.s32.totalorder 1, %s14
    %p229 = scmp.lt.s32.totalorder %s14, 3
    %p230 = pnand %p228, %p229
    %p231 = pneg %p230
    // Predicated region
    $region9: #{decoder_layer_forward.9} parent=5 // pred_check
      _
    $region10: #{decoder_layer_forward.9} parent=5 // pred_check_branch
      %233 = sbr.rel (%p230) target = $region12
    $region11: #{decoder_layer_forward.9} parent=5 // pred_region
      %s234 = ssub.s32 %s14, 1
      // Predicated region
      $region13: #{decoder_layer_forward.9} parent=11 // pred_check
        %p235 = pneg %p80
      $region14: #{decoder_layer_forward.9} parent=11 // pred_check_branch
        %237 = sbr.rel (%p235) target = $region16
      $region15: #{decoder_layer_forward.9} parent=11 // pred_region
        %s238 = smul.u32 2, %s24
        %p239 = scmp.lt.s32.totalorder %s238, 1
        %s240 = scalar_select %p239, %s238, 1
        %s241 = smul.addr %s240, 8
        %s242 = scalar_lea.vmem %s1, %s241
        %s243 = smul.u32 2, %s24
      $region16: #{decoder_layer_forward.9} parent=11 // pred_fallthru
        _
      // Predicated region
      $region17: #{decoder_layer_forward.9} parent=11 // pred_check
        %p244 = pneg %p101
      $region18: #{decoder_layer_forward.9} parent=11 // pred_check_branch
        %246 = sbr.rel (%p244) target = $region20
      $region19: #{decoder_layer_forward.9} parent=11 // pred_region
        _
      $region20: #{decoder_layer_forward.9} parent=11 // pred_fallthru
        _
      // Predicated region
      $region21: #{decoder_layer_forward.9} parent=11 // pred_check
        %p247 = pneg %p122
      $region22: #{decoder_layer_forward.9} parent=11 // pred_check_branch
        %249 = sbr.rel (%p247) target = $region24
      $region23: #{decoder_layer_forward.9} parent=11 // pred_region
        _
      $region24: #{decoder_layer_forward.9} parent=11 // pred_fallthru
        _
      // Predicated region
      $region25: #{decoder_layer_forward.9} parent=11 // pred_check
        %p250 = pneg %p143
      $region26: #{decoder_layer_forward.9} parent=11 // pred_check_branch
        %252 = sbr.rel (%p250) target = $region28
      $region27: #{decoder_layer_forward.9} parent=11 // pred_region
        _
      $region28: #{decoder_layer_forward.9} parent=11 // pred_fallthru
        _
      // Predicated region
      $region29: #{decoder_layer_forward.9} parent=11 // pred_check
        %p253 = pneg %p164
      $region30: #{decoder_layer_forward.9} parent=11 // pred_check_branch
        %255 = sbr.rel (%p253) target = $region32
      $region31: #{decoder_layer_forward.9} parent=11 // pred_region
        _
      $region32: #{decoder_layer_forward.9} parent=11 // pred_fallthru
        _
    $region12: #{decoder_layer_forward.9} parent=5 // pred_fallthru
      _
    %p256 = scmp.lt.s32.totalorder %s14, 2
    // Predicated region
    $region33: #{decoder_layer_forward.9} parent=5 // pred_check
      %p257 = pneg %p256
    $region34: #{decoder_layer_forward.9} parent=5 // pred_check_branch
      %259 = sbr.rel (%p257) target = $region36
    $region35: #{decoder_layer_forward.9} parent=5 // pred_region
      // Predicated region
      $region37: #{decoder_layer_forward.9} parent=35 // pred_check
        %p260 = pneg %p48
      $region38: #{decoder_layer_forward.9} parent=35 // pred_check_branch
        %262 = sbr.rel (%p260) target = $region40
      $region39: #{decoder_layer_forward.9} parent=35 // pred_region
        %s263 = smul.u32 2, %s22
        %p264 = scmp.lt.s32.totalorder %s21, 1
        %s265 = scalar_select %p264, %s21, 1
        %p266 = scmp.lt.s32.totalorder %s263, 1
        %s267 = scalar_select %p266, %s263, 1
        %s268 = smul.addr %s265, 2
        %s269 = sadd.s32 %s267, %s268
        %s270 = smul.addr %s269, 8
        %s271 = scalar_lea.vmem %s0, %s270
        %s272 = smul.u32 2, %s22
      $region40: #{decoder_layer_forward.9} parent=35 // pred_fallthru
        _
    $region36: #{decoder_layer_forward.9} parent=5 // pred_fallthru
      _
    %p273 = scmp.le.s32.totalorder 1, %s14
    %p274 = scmp.lt.s32.totalorder %s14, 3
    %p275 = pnand %p273, %p274
    %p276 = pneg %p275
    // Predicated region
    $region41: #{decoder_layer_forward.9} parent=5 // pred_check
      _
    $region42: #{decoder_layer_forward.9} parent=5 // pred_check_branch
      %278 = sbr.rel (%p275) target = $region44
    $region43: #{decoder_layer_forward.9} parent=5 // pred_region
      %s279 = ssub.s32 %s14, 1
      %s280 = smul.u32 2, %s24
      %p281 = scmp.lt.s32.totalorder %s23, 1
      %s282 = scalar_select %p281, %s23, 1
      %p283 = scmp.lt.s32.totalorder %s280, 1
      %s284 = scalar_select %p283, %s280, 1
      %s285 = smul.addr %s282, 2
      %s286 = sadd.s32 %s284, %s285
      %s287 = smul.addr %s286, 8
      %s288 = scalar_lea.vmem %s0, %s287
      %p289 = pneg %p54
      %p290 = pneg %p51
      %s291 = smul.u32 2, %s24
      %p292 = scmp.lt.s32.totalorder %s291, 1
      %s293 = scalar_select %p292, %s291, 1
      %s294 = smul.addr %s293, 8
      %s295 = scalar_lea.vmem %s1, %s294
      %p296 = pneg %p80
      %p297 = pneg %p77
      %p298 = pneg %p101
      %p299 = pneg %p98
      %p300 = pneg %p122
      %p301 = pneg %p119
      %p302 = pneg %p143
      %p303 = pneg %p140
      %p304 = pneg %p164
      %p305 = pneg %p161
      %p306 = pneg %p192
      %p307 = pneg %p189
      %s308 = smul.u32 2, %s24
      %p309 = scmp.lt.s32.totalorder %s23, 1
      %s310 = scalar_select %p309, %s23, 1
      %p311 = scmp.lt.s32.totalorder %s308, 1
      %s312 = scalar_select %p311, %s308, 1
      %s313 = smul.addr %s310, 2
      %s314 = sadd.s32 %s312, %s313
      %s315 = smul.addr %s314, 4
      %s316 = scalar_lea.vmem %s6, %s315
      %p317 = pneg %p220
      %p318 = pneg %p217
      %s319 = smul.u32 2, %s24
      %p320 = scmp.lt.s32.totalorder %s23, 1
      %s321 = scalar_select %p320, %s23, 1
      %p322 = scmp.lt.s32.totalorder %s319, 1
      %s323 = scalar_select %p322, %s319, 1
      %s324 = smul.addr %s321, 2
      %s325 = sadd.s32 %s323, %s324
      %s326 = smul.addr %s325, 4
      %s327 = scalar_lea.vmem %s7, %s326
      %s328 = smul.u32 2, %s24
      %p329 = scmp.lt.s32.totalorder %s23, 1
      %s330 = scalar_select %p329, %s23, 1
      %p331 = scmp.lt.s32.totalorder %s328, 1
      %s332 = scalar_select %p331, %s328, 1
      %s333 = smul.addr %s330, 2
      %s334 = sadd.s32 %s332, %s333
      %s335 = smul.addr %s334, 8
      %s336 = scalar_lea.vmem %s0, %s335
      %s337 = smul.u32 2, %s24
      %s338 = smul.u32 2, %s24
      %p339 = scmp.lt.s32.totalorder %s338, 1
      %s340 = scalar_select %p339, %s338, 1
      %s341 = smul.addr %s340, 8
      %s342 = scalar_lea.vmem %s1, %s341
      %s343 = smul.u32 2, %s24
      %s344 = smul.u32 2, %s24
      %p345 = scmp.lt.s32.totalorder %s23, 1
      %s346 = scalar_select %p345, %s23, 1
      %p347 = scmp.lt.s32.totalorder %s344, 1
      %s348 = scalar_select %p347, %s344, 1
      %s349 = smul.addr %s346, 2
      %s350 = sadd.s32 %s348, %s349
      %s351 = smul.addr %s350, 4
      %s352 = scalar_lea.vmem %s6, %s351
      %s353 = smul.u32 2, %s24
      %s354 = smul.u32 2, %s24
      %p355 = scmp.lt.s32.totalorder %s23, 1
      %s356 = scalar_select %p355, %s23, 1
      %p357 = scmp.lt.s32.totalorder %s354, 1
      %s358 = scalar_select %p357, %s354, 1
      %s359 = smul.addr %s356, 2
      %s360 = sadd.s32 %s358, %s359
      %s361 = smul.addr %s360, 4
      %s362 = scalar_lea.vmem %s7, %s361
      %s363 = smul.u32 2, %s24
      %v365 = vld [vmem:[%s336] sm:$0xff]
      %v366 = vld [vmem:[%s336 + $0x8] sm:$0xff]
      %v367 = vld [vmem:[%s342] sm:$0xff]
      %v368 = vld [vmem:[%s342 + $0x8] sm:$0xff]
      %v369 = vadd.f32 %v365, %v367
      %v370 = vadd.f32 %v366, %v368
      %v371 = vpack.c.bf16 %v370, %v369
      %v372 = vpack.c.bf16 %v366, %v365
      %v373 = vld [vmem:[%s2] sm:$0xf]
      %v374 = vld [vmem:[%s2 + $0x4] sm:$0xf]
      %v375 = vld [vmem:[%s2 + $0x8] sm:$0xf]
      %v376 = vld [vmem:[%s2 + $0xc] sm:$0xf]
      %v377 = vld [vmem:[%s2 + $0x10] sm:$0xf]
      %v378 = vld [vmem:[%s2 + $0x14] sm:$0xf]
      %v379 = vld [vmem:[%s2 + $0x18] sm:$0xf]
      %v380 = vld [vmem:[%s2 + $0x1c] sm:$0xf]
      %v381 = vld [vmem:[%s2 + $0x20] sm:$0xf]
      %v382 = vld [vmem:[%s2 + $0x24] sm:$0xf]
      %v383 = vld [vmem:[%s2 + $0x28] sm:$0xf]
      %v384 = vld [vmem:[%s2 + $0x2c] sm:$0xf]
      %v385 = vld [vmem:[%s2 + $0x30] sm:$0xf]
      %v386 = vld [vmem:[%s2 + $0x34] sm:$0xf]
      %v387 = vld [vmem:[%s2 + $0x38] sm:$0xf]
      %v388 = vld [vmem:[%s2 + $0x3c] sm:$0xf]
      %v389 = vld [vmem:[%s4] sm:$0x1]
      %v391 = vlaneseq
      %v392 = vshrl.u32 %v391, 7
      %v393 = vsub.s32 0, %v392
      %v394 = vrot.slane %v389, %v393
      %v412 = vunpack.c.l.b16 %v373
      %v413 = vunpack.c.l.b16 %v374
      %v414 = vunpack.c.l.b16 %v375
      %v415 = vunpack.c.l.b16 %v376
      %v416 = vunpack.c.l.b16 %v377
      %v417 = vunpack.c.l.b16 %v378
      %v418 = vunpack.c.l.b16 %v379
      %v419 = vunpack.c.l.b16 %v380
      %v420 = vunpack.c.l.b16 %v381
      %v421 = vunpack.c.l.b16 %v382
      %v422 = vunpack.c.l.b16 %v383
      %v423 = vunpack.c.l.b16 %v384
      %v424 = vunpack.c.l.b16 %v385
      %v425 = vunpack.c.l.b16 %v386
      %v426 = vunpack.c.l.b16 %v387
      %v427 = vunpack.c.l.b16 %v388
      %v428 = vpack.c.b16 %v413, %v412
      %v429 = vpack.c.b16 %v415, %v414
      %v430 = vpack.c.b16 %v417, %v416
      %v431 = vpack.c.b16 %v419, %v418
      %v432 = vpack.c.b16 %v421, %v420
      %v433 = vpack.c.b16 %v423, %v422
      %v434 = vpack.c.b16 %v425, %v424
      %v435 = vpack.c.b16 %v427, %v426
      %444 = vmatprep.subr.bf16.mxu0 0
      %445 = vmatpush1.bf16.msra.mxu0 %v428
      %446 = vmatprep.subr.bf16.mxu0 0
      %447 = vmatpush1.bf16.msra.mxu0 %v429
      %448 = vmatprep.subr.bf16.mxu0 0
      %449 = vmatpush1.bf16.msra.mxu0 %v430
      %450 = vmatprep.subr.bf16.mxu0 0
      %451 = vmatpush1.bf16.msra.mxu0 %v431
      %452 = vmatprep.subr.bf16.mxu0 0
      %453 = vmatpush1.bf16.msra.mxu0 %v432
      %454 = vmatprep.subr.bf16.mxu0 0
      %455 = vmatpush1.bf16.msra.mxu0 %v433
      %456 = vmatprep.subr.bf16.mxu0 0
      %457 = vmatpush1.bf16.msra.mxu0 %v434
      %458 = vmatprep.subr.bf16.mxu0 0
      %459 = vmatpush1.bf16.msra.mxu0 %v435
      %460 = vmatprep.subr.bf16.mxu0 0
      %461 = vmatpush1.bf16.msra.mxu0 0
      %462 = vmatprep.subr.bf16.mxu0 0
      %463 = vmatpush1.bf16.msra.mxu0 0
      %464 = vmatprep.subr.bf16.mxu0 0
      %465 = vmatpush1.bf16.msra.mxu0 0
      %466 = vmatprep.subr.bf16.mxu0 0
      %467 = vmatpush1.bf16.msra.mxu0 0
      %468 = vmatprep.subr.bf16.mxu0 0
      %469 = vmatpush1.bf16.msra.mxu0 0
      %470 = vmatprep.subr.bf16.mxu0 0
      %471 = vmatpush1.bf16.msra.mxu0 0
      %472 = vmatprep.subr.bf16.mxu0 0
      %473 = vmatpush1.bf16.msra.mxu0 0
      %474 = vmatprep.subr.bf16.mxu0 0
      %475 = vmatpush1.bf16.msra.mxu0 0
      %476 = vmatprep.mubr.bf16.mxu0 0
      %477 = vmatmul.mubr.bf16.gmra.mrb[0].mxu0 %v371
      %v478 = vpop.f32.mrb[0].mxu0
      %v479 = vadd.f32 %v394, %v478
      %v480 = vpop.f32.mrb[0].mxu0
      %v481 = vpop.f32.mrb[0].mxu0
      %v482 = vadd.f32 %v394, %v481
      %v483 = vpop.f32.mrb[0].mxu0
      %484 = vdwg.mxu0
      %v485 = vpack.c.bf16 %v482, %v479
      %v487 = vunpack.c.l.b16 %v485
      %v488 = vunpack.c.h.b16 %v485
      %v489 = vpack.c.b16 %v487, %v487
      %v490 = vpack.c.b16 %v488, %v488
      %493 = vst [vmem:[%s352] sm:$0xf] %v489
      %494 = vst [vmem:[%s352 + $0x4] sm:$0xf] %v490
      %v495 = vld [vmem:[%s3] sm:$0xf]
      %v496 = vld [vmem:[%s3 + $0x4] sm:$0xf]
      %v497 = vld [vmem:[%s3 + $0x8] sm:$0xf]
      %v498 = vld [vmem:[%s3 + $0xc] sm:$0xf]
      %v499 = vld [vmem:[%s3 + $0x10] sm:$0xf]
      %v500 = vld [vmem:[%s3 + $0x14] sm:$0xf]
      %v501 = vld [vmem:[%s3 + $0x18] sm:$0xf]
      %v502 = vld [vmem:[%s3 + $0x1c] sm:$0xf]
      %v503 = vld [vmem:[%s3 + $0x20] sm:$0xf]
      %v504 = vld [vmem:[%s3 + $0x24] sm:$0xf]
      %v505 = vld [vmem:[%s3 + $0x28] sm:$0xf]
      %v506 = vld [vmem:[%s3 + $0x2c] sm:$0xf]
      %v507 = vld [vmem:[%s3 + $0x30] sm:$0xf]
      %v508 = vld [vmem:[%s3 + $0x34] sm:$0xf]
      %v509 = vld [vmem:[%s3 + $0x38] sm:$0xf]
      %v510 = vld [vmem:[%s3 + $0x3c] sm:$0xf]
      %v511 = vld [vmem:[%s5] sm:$0x1]
      %v513 = vlaneseq
      %v514 = vshrl.u32 %v513, 7
      %v515 = vsub.s32 0, %v514
      %v516 = vrot.slane %v511, %v515
      %v534 = vunpack.c.l.b16 %v495
      %v535 = vunpack.c.l.b16 %v496
      %v536 = vunpack.c.l.b16 %v497
      %v537 = vunpack.c.l.b16 %v498
      %v538 = vunpack.c.l.b16 %v499
      %v539 = vunpack.c.l.b16 %v500
      %v540 = vunpack.c.l.b16 %v501
      %v541 = vunpack.c.l.b16 %v502
      %v542 = vunpack.c.l.b16 %v503
      %v543 = vunpack.c.l.b16 %v504
      %v544 = vunpack.c.l.b16 %v505
      %v545 = vunpack.c.l.b16 %v506
      %v546 = vunpack.c.l.b16 %v507
      %v547 = vunpack.c.l.b16 %v508
      %v548 = vunpack.c.l.b16 %v509
      %v549 = vunpack.c.l.b16 %v510
      %v550 = vpack.c.b16 %v535, %v534
      %v551 = vpack.c.b16 %v537, %v536
      %v552 = vpack.c.b16 %v539, %v538
      %v553 = vpack.c.b16 %v541, %v540
      %v554 = vpack.c.b16 %v543, %v542
      %v555 = vpack.c.b16 %v545, %v544
      %v556 = vpack.c.b16 %v547, %v546
      %v557 = vpack.c.b16 %v549, %v548
      %566 = vmatprep.subr.bf16.mxu0 0
      %567 = vmatpush1.bf16.msra.mxu0 %v550
      %568 = vmatprep.subr.bf16.mxu0 0
      %569 = vmatpush1.bf16.msra.mxu0 %v551
      %570 = vmatprep.subr.bf16.mxu0 0
      %571 = vmatpush1.bf16.msra.mxu0 %v552
      %572 = vmatprep.subr.bf16.mxu0 0
      %573 = vmatpush1.bf16.msra.mxu0 %v553
      %574 = vmatprep.subr.bf16.mxu0 0
      %575 = vmatpush1.bf16.msra.mxu0 %v554
      %576 = vmatprep.subr.bf16.mxu0 0
      %577 = vmatpush1.bf16.msra.mxu0 %v555
      %578 = vmatprep.subr.bf16.mxu0 0
      %579 = vmatpush1.bf16.msra.mxu0 %v556
      %580 = vmatprep.subr.bf16.mxu0 0
      %581 = vmatpush1.bf16.msra.mxu0 %v557
      %582 = vmatprep.subr.bf16.mxu0 0
      %583 = vmatpush1.bf16.msra.mxu0 0
      %584 = vmatprep.subr.bf16.mxu0 0
      %585 = vmatpush1.bf16.msra.mxu0 0
      %586 = vmatprep.subr.bf16.mxu0 0
      %587 = vmatpush1.bf16.msra.mxu0 0
      %588 = vmatprep.subr.bf16.mxu0 0
      %589 = vmatpush1.bf16.msra.mxu0 0
      %590 = vmatprep.subr.bf16.mxu0 0
      %591 = vmatpush1.bf16.msra.mxu0 0
      %592 = vmatprep.subr.bf16.mxu0 0
      %593 = vmatpush1.bf16.msra.mxu0 0
      %594 = vmatprep.subr.bf16.mxu0 0
      %595 = vmatpush1.bf16.msra.mxu0 0
      %596 = vmatprep.subr.bf16.mxu0 0
      %597 = vmatpush1.bf16.msra.mxu0 0
      %598 = vmatprep.mubr.bf16.mxu0 0
      %599 = vmatmul.mubr.bf16.gmra.mrb[0].mxu0 %v372
      %v600 = vpop.f32.mrb[0].mxu0
      %v601 = vadd.f32 %v516, %v600
      %v602 = vpop.f32.mrb[0].mxu0
      %v603 = vpop.f32.mrb[0].mxu0
      %v604 = vadd.f32 %v516, %v603
      %v605 = vpop.f32.mrb[0].mxu0
      %606 = vdwg.mxu0
      %v607 = vpack.c.bf16 %v604, %v601
      %v609 = vunpack.c.l.b16 %v607
      %v610 = vunpack.c.h.b16 %v607
      %v611 = vpack.c.b16 %v609, %v609
      %v612 = vpack.c.b16 %v610, %v610
      %615 = vst [vmem:[%s362] sm:$0xf] %v611
      %616 = vst [vmem:[%s362 + $0x4] sm:$0xf] %v612
      %s617 = smul.u32 2, %s24
      %p618 = scmp.lt.s32.totalorder %s23, 1
      %s619 = scalar_select %p618, %s23, 1
      %p620 = scmp.lt.s32.totalorder %s617, 1
      %s621 = scalar_select %p620, %s617, 1
      %s622 = smul.addr %s619, 2
      %s623 = sadd.s32 %s621, %s622
      %s624 = smul.addr %s623, 4
      %s625 = scalar_lea.vmem %s6, %s624
      %s626 = smul.u32 2, %s24
      %p627 = scmp.lt.s32.totalorder %s23, 1
      %s628 = scalar_select %p627, %s23, 1
      %p629 = scmp.lt.s32.totalorder %s626, 1
      %s630 = scalar_select %p629, %s626, 1
      %s631 = smul.addr %s628, 2
      %s632 = sadd.s32 %s630, %s631
      %s633 = smul.addr %s632, 4
      %s634 = scalar_lea.vmem %s7, %s633
      // Predicated region
      $region45: #{decoder_layer_forward.9} parent=43 // pred_check
        %p635 = pneg %p189
      $region46: #{decoder_layer_forward.9} parent=43 // pred_check_branch
        %637 = sbr.rel (%p635) target = $region48
      $region47: #{decoder_layer_forward.9} parent=43 // pred_region
        %s638 = smul.u32 2, %s24
      $region48: #{decoder_layer_forward.9} parent=43 // pred_fallthru
        _
      // Predicated region
      $region49: #{decoder_layer_forward.9} parent=43 // pred_check
        %p639 = pneg %p217
      $region50: #{decoder_layer_forward.9} parent=43 // pred_check_branch
        %641 = sbr.rel (%p639) target = $region52
      $region51: #{decoder_layer_forward.9} parent=43 // pred_region
        %s642 = smul.u32 2, %s24
      $region52: #{decoder_layer_forward.9} parent=43 // pred_fallthru
        _
    $region44: #{decoder_layer_forward.9} parent=5 // pred_fallthru
      _
    %p643 = scmp.le.s32.totalorder 2, %s14
    // Predicated region
    $region53: #{decoder_layer_forward.9} parent=5 // pred_check
      %p644 = pneg %p643
    $region54: #{decoder_layer_forward.9} parent=5 // pred_check_branch
      %646 = sbr.rel (%p644) target = $region56
    $region55: #{decoder_layer_forward.9} parent=5 // pred_region
      %s647 = ssub.s32 %s14, 2
      // Predicated region
      $region57: #{decoder_layer_forward.9} parent=55 // pred_check
        %p648 = pneg %p195
      $region58: #{decoder_layer_forward.9} parent=55 // pred_check_branch
        %650 = sbr.rel (%p648) target = $region60
      $region59: #{decoder_layer_forward.9} parent=55 // pred_region
        %s651 = smul.u32 2, %s26
        %p652 = scmp.lt.s32.totalorder %s25, 1
        %s653 = scalar_select %p652, %s25, 1
        %p654 = scmp.lt.s32.totalorder %s651, 1
        %s655 = scalar_select %p654, %s651, 1
        %s656 = smul.addr %s653, 2
        %s657 = sadd.s32 %s655, %s656
        %s658 = smul.addr %s657, 4
        %s659 = scalar_lea.vmem %s6, %s658
      $region60: #{decoder_layer_forward.9} parent=55 // pred_fallthru
        _
      // Predicated region
      $region61: #{decoder_layer_forward.9} parent=55 // pred_check
        %p660 = pneg %p223
      $region62: #{decoder_layer_forward.9} parent=55 // pred_check_branch
        %662 = sbr.rel (%p660) target = $region64
      $region63: #{decoder_layer_forward.9} parent=55 // pred_region
        %s663 = smul.u32 2, %s26
        %p664 = scmp.lt.s32.totalorder %s25, 1
        %s665 = scalar_select %p664, %s25, 1
        %p666 = scmp.lt.s32.totalorder %s663, 1
        %s667 = scalar_select %p666, %s663, 1
        %s668 = smul.addr %s665, 2
        %s669 = sadd.s32 %s667, %s668
        %s670 = smul.addr %s669, 4
        %s671 = scalar_lea.vmem %s7, %s670
      $region64: #{decoder_layer_forward.9} parent=55 // pred_fallthru
        _
    $region56: #{decoder_layer_forward.9} parent=5 // pred_fallthru
      _
  $region6: #{decoder_layer_forward.9} parent=0 // loop_footer
    %s18 = sadd.s32 1, %s14
  $region7: #{decoder_layer_forward.9} parent=0 // loop_footer_branch
    %13 = sbr.rel target = $region3
  $region8: #{decoder_layer_forward.9} parent=0 // loop_exit
    _

// kernel: decoder_layer_forward.8
$region0: #{decoder_layer_forward.8}
  #allocation0 [shape = 'u32[]', space=smem, size = 0x4, offset = 0x4, fixed_abs, tag = 'smem constant byte address 0x4 - core index']
  #allocation1 [shape = 'u32[144,128]{1,0:T(1,128)}', space=vmem, size = 0x12000, scoped, tag = 'internal scratch']
  %s0 = inlined_call_operand.vmem [shape: f32[2,64,128], index: 0, kind: input, shape index: {}]
  %s1 = inlined_call_operand.vmem [shape: f32[64,128], index: 1, kind: input, shape index: {}]
  %s2 = inlined_call_operand.vmem [shape: f32[1,128], index: 2, kind: input, shape index: {}]
  %s3 = inlined_call_operand.vmem [shape: f32[1,128], index: 3, kind: input, shape index: {}]
  %s4 = inlined_call_operand.vmem [shape: bf16[128,128], index: 4, kind: input, shape index: {}]
  %s5 = inlined_call_operand.vmem [shape: f32[1,128], index: 5, kind: input, shape index: {}]
  %s6 = inlined_call_operand.vmem [shape: bf16[2,64,128], index: 6, kind: output, shape index: {}]
  %s7 = sld [smem:[#allocation0]]
  $region57: #{decoder_layer_forward.8} parent=0
    _
  %s9 = ssub.s32 1, %s7
  %s10 = scalar_select 0, %s9, %s7
  loop: start=0, step=1, limit=4
  $region2: #{decoder_layer_forward.8} parent=0 // loop_pre_header
    _
  $region3: #{decoder_layer_forward.8} parent=0 // loop_header
    %s12 = sphi 0, %s16
    %p13 = scmp.ge.s32.totalorder %s12, 4
    %s19 = sphi 0, %s31
    %s20 = sphi 0, %s27
    %s21 = sphi 0, %s19
    %s22 = sphi 0, %s20
    %s23 = sphi 0, %s21
    %s24 = sphi 0, %s22
    %s36 = sphi 0, %s38
    %s39 = sphi 0, %s36
    %s40 = sphi 0, %s39
    %s56 = sphi 0, %s40
    %s62 = sphi 0, %s64
    %s65 = sphi 0, %s62
    %s66 = sphi 0, %s65
    %s82 = sphi 0, %s66
    %s86 = sphi 0, %s86
    %s88 = sphi 0, %s86
    %s89 = sphi 0, %s88
    %s103 = sphi 0, %s89
    %s107 = sphi 0, %s107
    %s109 = sphi 0, %s107
    %s110 = sphi 0, %s109
    %s124 = sphi 0, %s110
    %s128 = sphi 0, %s128
    %s130 = sphi 0, %s128
    %s131 = sphi 0, %s130
    %s145 = sphi 0, %s131
    %s149 = sphi 0, %s149
    %s151 = sphi 0, %s149
    %s152 = sphi 0, %s151
    %s166 = sphi 0, %s152
    %s174 = sphi 0, %s176
    %s177 = sphi 0, %s174
    %s178 = sphi 0, %s177
    %s194 = sphi 0, %s178
  $region4: #{decoder_layer_forward.8} parent=0 // loop_header_branch
    %15 = sbr.rel (%p13) target = $region8
  $region5: #{decoder_layer_forward.8} parent=0 // loop_body
    %s17 = ssub.s32 %s12, 1
    %s18 = ssub.s32 %s12, 2
    %s25 = sadd.s32 1, %s20
    %p26 = scmp.ge.s32.totalorder %s25, 1
    %s27 = scalar_select %p26, 0, %s25
    %s28 = sadd.s32 1, %s19
    %s29 = scalar_select %p26, %s28, %s19
    %p30 = scmp.ge.s32.totalorder %s29, 2
    %s31 = scalar_select %p30, 0, %s29
    %s32 = ssub.s32 %s19, %s31
    %s33 = ssub.s32 %s20, %s27
    %s34 = sor.u32 %s32, %s33
    %p35 = scmp.eq.s32.totalorder %s34, 0
    %s37 = sadd.s32 %s36, 1
    %s38 = scalar_select %p35, %s36, %s37
    %p41 = pneg %p35
    %p42 = scmp.eq.s32.totalorder %s12, 1
    %p43 = por %p41, %p42
    %p44 = scmp.ne.s32.totalorder %s36, %s39
    %p45 = scmp.eq.s32.totalorder %s12, 0
    %p46 = por %p44, %p45
    %p47 = scmp.ne.s32.totalorder %s36, %s39
    %p48 = scmp.eq.s32.totalorder %s17, 1
    %p49 = por %p47, %p48
    %p50 = scmp.ne.s32.totalorder %s39, %s40
    %p51 = scmp.eq.s32.totalorder %s17, 0
    %p52 = por %p50, %p51
    %p53 = scmp.ne.s32.totalorder %s39, %s40
    %p54 = scmp.eq.s32.totalorder %s18, 1
    %p55 = por %p53, %p54
    %p57 = scmp.ne.s32.totalorder %s40, %s56
    %p58 = scmp.eq.s32.totalorder %s18, 0
    %p59 = por %p57, %p58
    %s60 = ssub.s32 %s20, %s27
    %p61 = scmp.eq.s32.totalorder %s60, 0
    %s63 = sadd.s32 %s62, 1
    %s64 = scalar_select %p61, %s62, %s63
    %p67 = pneg %p61
    %p68 = scmp.eq.s32.totalorder %s12, 1
    %p69 = por %p67, %p68
    %p70 = scmp.ne.s32.totalorder %s62, %s65
    %p71 = scmp.eq.s32.totalorder %s12, 0
    %p72 = por %p70, %p71
    %p73 = scmp.ne.s32.totalorder %s62, %s65
    %p74 = scmp.eq.s32.totalorder %s17, 1
    %p75 = por %p73, %p74
    %p76 = scmp.ne.s32.totalorder %s65, %s66
    %p77 = scmp.eq.s32.totalorder %s17, 0
    %p78 = por %p76, %p77
    %p79 = scmp.ne.s32.totalorder %s65, %s66
    %p80 = scmp.eq.s32.totalorder %s18, 1
    %p81 = por %p79, %p80
    %p83 = scmp.ne.s32.totalorder %s66, %s82
    %p84 = scmp.eq.s32.totalorder %s18, 0
    %p85 = por %p83, %p84
    %s87 = sadd.s32 %s86, 1
    %p90 = scmp.eq.s32.totalorder %s12, 1
    %p91 = scmp.ne.s32.totalorder %s86, %s88
    %p92 = scmp.eq.s32.totalorder %s12, 0
    %p93 = por %p91, %p92
    %p94 = scmp.ne.s32.totalorder %s86, %s88
    %p95 = scmp.eq.s32.totalorder %s17, 1
    %p96 = por %p94, %p95
    %p97 = scmp.ne.s32.totalorder %s88, %s89
    %p98 = scmp.eq.s32.totalorder %s17, 0
    %p99 = por %p97, %p98
    %p100 = scmp.ne.s32.totalorder %s88, %s89
    %p101 = scmp.eq.s32.totalorder %s18, 1
    %p102 = por %p100, %p101
    %p104 = scmp.ne.s32.totalorder %s89, %s103
    %p105 = scmp.eq.s32.totalorder %s18, 0
    %p106 = por %p104, %p105
    %s108 = sadd.s32 %s107, 1
    %p111 = scmp.eq.s32.totalorder %s12, 1
    %p112 = scmp.ne.s32.totalorder %s107, %s109
    %p113 = scmp.eq.s32.totalorder %s12, 0
    %p114 = por %p112, %p113
    %p115 = scmp.ne.s32.totalorder %s107, %s109
    %p116 = scmp.eq.s32.totalorder %s17, 1
    %p117 = por %p115, %p116
    %p118 = scmp.ne.s32.totalorder %s109, %s110
    %p119 = scmp.eq.s32.totalorder %s17, 0
    %p120 = por %p118, %p119
    %p121 = scmp.ne.s32.totalorder %s109, %s110
    %p122 = scmp.eq.s32.totalorder %s18, 1
    %p123 = por %p121, %p122
    %p125 = scmp.ne.s32.totalorder %s110, %s124
    %p126 = scmp.eq.s32.totalorder %s18, 0
    %p127 = por %p125, %p126
    %s129 = sadd.s32 %s128, 1
    %p132 = scmp.eq.s32.totalorder %s12, 1
    %p133 = scmp.ne.s32.totalorder %s128, %s130
    %p134 = scmp.eq.s32.totalorder %s12, 0
    %p135 = por %p133, %p134
    %p136 = scmp.ne.s32.totalorder %s128, %s130
    %p137 = scmp.eq.s32.totalorder %s17, 1
    %p138 = por %p136, %p137
    %p139 = scmp.ne.s32.totalorder %s130, %s131
    %p140 = scmp.eq.s32.totalorder %s17, 0
    %p141 = por %p139, %p140
    %p142 = scmp.ne.s32.totalorder %s130, %s131
    %p143 = scmp.eq.s32.totalorder %s18, 1
    %p144 = por %p142, %p143
    %p146 = scmp.ne.s32.totalorder %s131, %s145
    %p147 = scmp.eq.s32.totalorder %s18, 0
    %p148 = por %p146, %p147
    %s150 = sadd.s32 %s149, 1
    %p153 = scmp.eq.s32.totalorder %s12, 1
    %p154 = scmp.ne.s32.totalorder %s149, %s151
    %p155 = scmp.eq.s32.totalorder %s12, 0
    %p156 = por %p154, %p155
    %p157 = scmp.ne.s32.totalorder %s149, %s151
    %p158 = scmp.eq.s32.totalorder %s17, 1
    %p159 = por %p157, %p158
    %p160 = scmp.ne.s32.totalorder %s151, %s152
    %p161 = scmp.eq.s32.totalorder %s17, 0
    %p162 = por %p160, %p161
    %p163 = scmp.ne.s32.totalorder %s151, %s152
    %p164 = scmp.eq.s32.totalorder %s18, 1
    %p165 = por %p163, %p164
    %p167 = scmp.ne.s32.totalorder %s152, %s166
    %p168 = scmp.eq.s32.totalorder %s18, 0
    %p169 = por %p167, %p168
    %s170 = ssub.s32 %s19, %s31
    %s171 = ssub.s32 %s20, %s27
    %s172 = sor.u32 %s170, %s171
    %p173 = scmp.eq.s32.totalorder %s172, 0
    %s175 = sadd.s32 %s174, 1
    %s176 = scalar_select %p173, %s174, %s175
    %p179 = pneg %p173
    %p180 = scmp.eq.s32.totalorder %s12, 1
    %p181 = por %p179, %p180
    %p182 = scmp.ne.s32.totalorder %s174, %s177
    %p183 = scmp.eq.s32.totalorder %s12, 0
    %p184 = por %p182, %p183
    %p185 = scmp.ne.s32.totalorder %s174, %s177
    %p186 = scmp.eq.s32.totalorder %s17, 1
    %p187 = por %p185, %p186
    %p188 = scmp.ne.s32.totalorder %s177, %s178
    %p189 = scmp.eq.s32.totalorder %s17, 0
    %p190 = por %p188, %p189
    %p191 = scmp.ne.s32.totalorder %s177, %s178
    %p192 = scmp.eq.s32.totalorder %s18, 1
    %p193 = por %p191, %p192
    %p195 = scmp.ne.s32.totalorder %s178, %s194
    %p196 = scmp.eq.s32.totalorder %s18, 0
    %p197 = por %p195, %p196
    %p198 = scmp.le.s32.totalorder 1, %s12
    %p199 = scmp.lt.s32.totalorder %s12, 3
    %p200 = pnand %p198, %p199
    %p201 = pneg %p200
    // Predicated region
    $region9: #{decoder_layer_forward.8} parent=5 // pred_check
      _
    $region10: #{decoder_layer_forward.8} parent=5 // pred_check_branch
      %203 = sbr.rel (%p200) target = $region12
    $region11: #{decoder_layer_forward.8} parent=5 // pred_region
      %s204 = ssub.s32 %s12, 1
      // Predicated region
      $region13: #{decoder_layer_forward.8} parent=11 // pred_check
        %p205 = pneg %p78
      $region14: #{decoder_layer_forward.8} parent=11 // pred_check_branch
        %207 = sbr.rel (%p205) target = $region16
      $region15: #{decoder_layer_forward.8} parent=11 // pred_region
        %s208 = smul.u32 8, %s22
        %p209 = scmp.lt.s32.totalorder %s208, 7
        %s210 = scalar_select %p209, %s208, 7
        %s211 = smul.addr %s210, 8
        %s212 = scalar_lea.vmem %s1, %s211
        %s213 = smul.u32 8, %s22
      $region16: #{decoder_layer_forward.8} parent=11 // pred_fallthru
        _
      // Predicated region
      $region17: #{decoder_layer_forward.8} parent=11 // pred_check
        %p214 = pneg %p99
      $region18: #{decoder_layer_forward.8} parent=11 // pred_check_branch
        %216 = sbr.rel (%p214) target = $region20
      $region19: #{decoder_layer_forward.8} parent=11 // pred_region
        _
      $region20: #{decoder_layer_forward.8} parent=11 // pred_fallthru
        _
      // Predicated region
      $region21: #{decoder_layer_forward.8} parent=11 // pred_check
        %p217 = pneg %p120
      $region22: #{decoder_layer_forward.8} parent=11 // pred_check_branch
        %219 = sbr.rel (%p217) target = $region24
      $region23: #{decoder_layer_forward.8} parent=11 // pred_region
        _
      $region24: #{decoder_layer_forward.8} parent=11 // pred_fallthru
        _
      // Predicated region
      $region25: #{decoder_layer_forward.8} parent=11 // pred_check
        %p220 = pneg %p141
      $region26: #{decoder_layer_forward.8} parent=11 // pred_check_branch
        %222 = sbr.rel (%p220) target = $region28
      $region27: #{decoder_layer_forward.8} parent=11 // pred_region
        _
      $region28: #{decoder_layer_forward.8} parent=11 // pred_fallthru
        _
      // Predicated region
      $region29: #{decoder_layer_forward.8} parent=11 // pred_check
        %p223 = pneg %p162
      $region30: #{decoder_layer_forward.8} parent=11 // pred_check_branch
        %225 = sbr.rel (%p223) target = $region32
      $region31: #{decoder_layer_forward.8} parent=11 // pred_region
        _
      $region32: #{decoder_layer_forward.8} parent=11 // pred_fallthru
        _
    $region12: #{decoder_layer_forward.8} parent=5 // pred_fallthru
      _
    %p226 = scmp.lt.s32.totalorder %s12, 2
    // Predicated region
    $region33: #{decoder_layer_forward.8} parent=5 // pred_check
      %p227 = pneg %p226
    $region34: #{decoder_layer_forward.8} parent=5 // pred_check_branch
      %229 = sbr.rel (%p227) target = $region36
    $region35: #{decoder_layer_forward.8} parent=5 // pred_region
      // Predicated region
      $region37: #{decoder_layer_forward.8} parent=35 // pred_check
        %p230 = pneg %p46
      $region38: #{decoder_layer_forward.8} parent=35 // pred_check_branch
        %232 = sbr.rel (%p230) target = $region40
      $region39: #{decoder_layer_forward.8} parent=35 // pred_region
        %s233 = smul.u32 8, %s20
        %p234 = scmp.lt.s32.totalorder %s19, 1
        %s235 = scalar_select %p234, %s19, 1
        %p236 = scmp.lt.s32.totalorder %s233, 7
        %s237 = scalar_select %p236, %s233, 7
        %s238 = smul.addr %s235, 8
        %s239 = sadd.s32 %s237, %s238
        %s240 = smul.addr %s239, 8
        %s241 = scalar_lea.vmem %s0, %s240
        %s242 = smul.u32 8, %s20
      $region40: #{decoder_layer_forward.8} parent=35 // pred_fallthru
        _
    $region36: #{decoder_layer_forward.8} parent=5 // pred_fallthru
      _
    %p243 = scmp.le.s32.totalorder 1, %s12
    %p244 = scmp.lt.s32.totalorder %s12, 3
    %p245 = pnand %p243, %p244
    %p246 = pneg %p245
    // Predicated region
    $region41: #{decoder_layer_forward.8} parent=5 // pred_check
      _
    $region42: #{decoder_layer_forward.8} parent=5 // pred_check_branch
      %248 = sbr.rel (%p245) target = $region44
    $region43: #{decoder_layer_forward.8} parent=5 // pred_region
      %s249 = ssub.s32 %s12, 1
      %s250 = smul.u32 8, %s22
      %p251 = scmp.lt.s32.totalorder %s21, 1
      %s252 = scalar_select %p251, %s21, 1
      %p253 = scmp.lt.s32.totalorder %s250, 7
      %s254 = scalar_select %p253, %s250, 7
      %s255 = smul.addr %s252, 8
      %s256 = sadd.s32 %s254, %s255
      %s257 = smul.addr %s256, 8
      %s258 = scalar_lea.vmem %s0, %s257
      %p259 = pneg %p52
      %p260 = pneg %p49
      %s261 = smul.u32 8, %s22
      %p262 = scmp.lt.s32.totalorder %s261, 7
      %s263 = scalar_select %p262, %s261, 7
      %s264 = smul.addr %s263, 8
      %s265 = scalar_lea.vmem %s1, %s264
      %p266 = pneg %p78
      %p267 = pneg %p75
      %p268 = pneg %p99
      %p269 = pneg %p96
      %p270 = pneg %p120
      %p271 = pneg %p117
      %p272 = pneg %p141
      %p273 = pneg %p138
      %p274 = pneg %p162
      %p275 = pneg %p159
      %p276 = pneg %p190
      %p277 = pneg %p187
      %s278 = smul.u32 8, %s22
      %p279 = scmp.lt.s32.totalorder %s21, 1
      %s280 = scalar_select %p279, %s21, 1
      %p281 = scmp.lt.s32.totalorder %s278, 7
      %s282 = scalar_select %p281, %s278, 7
      %s283 = smul.addr %s280, 8
      %s284 = sadd.s32 %s282, %s283
      %s285 = smul.addr %s284, 4
      %s286 = scalar_lea.vmem %s6, %s285
      %s287 = smul.u32 8, %s22
      %p288 = scmp.lt.s32.totalorder %s21, 1
      %s289 = scalar_select %p288, %s21, 1
      %p290 = scmp.lt.s32.totalorder %s287, 7
      %s291 = scalar_select %p290, %s287, 7
      %s292 = smul.addr %s289, 8
      %s293 = sadd.s32 %s291, %s292
      %s294 = smul.addr %s293, 8
      %s295 = scalar_lea.vmem %s0, %s294
      %s296 = smul.u32 8, %s22
      %s297 = smul.u32 8, %s22
      %p298 = scmp.lt.s32.totalorder %s297, 7
      %s299 = scalar_select %p298, %s297, 7
      %s300 = smul.addr %s299, 8
      %s301 = scalar_lea.vmem %s1, %s300
      %s302 = smul.u32 8, %s22
      %s303 = smul.u32 8, %s22
      %p304 = scmp.lt.s32.totalorder %s21, 1
      %s305 = scalar_select %p304, %s21, 1
      %p306 = scmp.lt.s32.totalorder %s303, 7
      %s307 = scalar_select %p306, %s303, 7
      %s308 = smul.addr %s305, 8
      %s309 = sadd.s32 %s307, %s308
      %s310 = smul.addr %s309, 4
      %s311 = scalar_lea.vmem %s6, %s310
      %s312 = smul.u32 8, %s22
      %v314 = vld [vmem:[%s295] sm:$0xff]
      %v315 = vld [vmem:[%s295 + $0x8] sm:$0xff]
      %v316 = vld [vmem:[%s295 + $0x10] sm:$0xff]
      %v317 = vld [vmem:[%s295 + $0x18] sm:$0xff]
      %v318 = vld [vmem:[%s295 + $0x20] sm:$0xff]
      %v319 = vld [vmem:[%s295 + $0x28] sm:$0xff]
      %v320 = vld [vmem:[%s295 + $0x30] sm:$0xff]
      %v321 = vld [vmem:[%s295 + $0x38] sm:$0xff]
      %v322 = vld [vmem:[%s2] sm:$0x1]
      %v323 = vld [vmem:[%s3] sm:$0x1]
      %324 = vadd.xlane.f32.xlu0 %v314
      %v325 = vpop.xlane.xlu0 %324
      %326 = vadd.xlane.f32.xlu0 %v315
      %v327 = vpop.xlane.xlu0 %326
      %328 = vadd.xlane.f32.xlu0 %v316
      %v329 = vpop.xlane.xlu0 %328
      %330 = vadd.xlane.f32.xlu0 %v317
      %v331 = vpop.xlane.xlu0 %330
      %332 = vadd.xlane.f32.xlu0 %v318
      %v333 = vpop.xlane.xlu0 %332
      %334 = vadd.xlane.f32.xlu0 %v319
      %v335 = vpop.xlane.xlu0 %334
      %336 = vadd.xlane.f32.xlu0 %v320
      %v337 = vpop.xlane.xlu0 %336
      %338 = vadd.xlane.f32.xlu0 %v321
      %v339 = vpop.xlane.xlu0 %338
      %v340 = vrcp.pop 128.0
      %v341 = vmul.f32 %v325, %v340
      %v342 = vmul.f32 %v327, %v340
      %v343 = vmul.f32 %v329, %v340
      %v344 = vmul.f32 %v331, %v340
      %v345 = vmul.f32 %v333, %v340
      %v346 = vmul.f32 %v335, %v340
      %v347 = vmul.f32 %v337, %v340
      %v348 = vmul.f32 %v339, %v340
      %v349 = vsub.f32 %v314, %v341
      %v350 = vsub.f32 %v315, %v342
      %v351 = vsub.f32 %v316, %v343
      %v352 = vsub.f32 %v317, %v344
      %v353 = vsub.f32 %v318, %v345
      %v354 = vsub.f32 %v319, %v346
      %v355 = vsub.f32 %v320, %v347
      %v356 = vsub.f32 %v321, %v348
      %v357 = vmul.f32 %v349, %v349
      %v358 = vmul.f32 %v350, %v350
      %v359 = vmul.f32 %v351, %v351
      %v360 = vmul.f32 %v352, %v352
      %v361 = vmul.f32 %v353, %v353
      %v362 = vmul.f32 %v354, %v354
      %v363 = vmul.f32 %v355, %v355
      %v364 = vmul.f32 %v356, %v356
      %365 = vadd.xlane.f32.xlu0 %v357
      %v366 = vpop.xlane.xlu0 %365
      %367 = vadd.xlane.f32.xlu0 %v358
      %v368 = vpop.xlane.xlu0 %367
      %369 = vadd.xlane.f32.xlu0 %v359
      %v370 = vpop.xlane.xlu0 %369
      %371 = vadd.xlane.f32.xlu0 %v360
      %v372 = vpop.xlane.xlu0 %371
      %373 = vadd.xlane.f32.xlu0 %v361
      %v374 = vpop.xlane.xlu0 %373
      %375 = vadd.xlane.f32.xlu0 %v362
      %v376 = vpop.xlane.xlu0 %375
      %377 = vadd.xlane.f32.xlu0 %v363
      %v378 = vpop.xlane.xlu0 %377
      %379 = vadd.xlane.f32.xlu0 %v364
      %v380 = vpop.xlane.xlu0 %379
      %v381 = vmul.f32 %v366, %v340
      %v382 = vmul.f32 %v368, %v340
      %v383 = vmul.f32 %v370, %v340
      %v384 = vmul.f32 %v372, %v340
      %v385 = vmul.f32 %v374, %v340
      %v386 = vmul.f32 %v376, %v340
      %v387 = vmul.f32 %v378, %v340
      %v388 = vmul.f32 %v380, %v340
      %v389 = vadd.f32 %v381, 1e-05
      %v390 = vadd.f32 %v382, 1e-05
      %v391 = vadd.f32 %v383, 1e-05
      %v392 = vadd.f32 %v384, 1e-05
      %v393 = vadd.f32 %v385, 1e-05
      %v394 = vadd.f32 %v386, 1e-05
      %v395 = vadd.f32 %v387, 1e-05
      %v396 = vadd.f32 %v388, 1e-05
      %v397 = vrsqrt.pop %v389
      %v398 = vrsqrt.pop %v390
      %v399 = vrsqrt.pop %v391
      %v400 = vrsqrt.pop %v392
      %v401 = vrsqrt.pop %v393
      %v402 = vrsqrt.pop %v394
      %v403 = vrsqrt.pop %v395
      %v404 = vrsqrt.pop %v396
      %v405 = vmul.f32 %v349, %v397
      %v406 = vmul.f32 %v350, %v398
      %v407 = vmul.f32 %v351, %v399
      %v408 = vmul.f32 %v352, %v400
      %v409 = vmul.f32 %v353, %v401
      %v410 = vmul.f32 %v354, %v402
      %v411 = vmul.f32 %v355, %v403
      %v412 = vmul.f32 %v356, %v404
      %v414 = vlaneseq
      %v415 = vshrl.u32 %v414, 7
      %v416 = vsub.s32 0, %v415
      %v417 = vrot.slane %v322, %v416
      %v419 = vmul.f32 %v405, %v417
      %v420 = vmul.f32 %v406, %v417
      %v421 = vmul.f32 %v407, %v417
      %v422 = vmul.f32 %v408, %v417
      %v423 = vmul.f32 %v409, %v417
      %v424 = vmul.f32 %v410, %v417
      %v425 = vmul.f32 %v411, %v417
      %v426 = vmul.f32 %v412, %v417
      %v428 = vlaneseq
      %v429 = vshrl.u32 %v428, 7
      %v430 = vsub.s32 0, %v429
      %v431 = vrot.slane %v323, %v430
      %v433 = vadd.f32 %v419, %v431
      %v434 = vadd.f32 %v420, %v431
      %v435 = vadd.f32 %v421, %v431
      %v436 = vadd.f32 %v422, %v431
      %v437 = vadd.f32 %v423, %v431
      %v438 = vadd.f32 %v424, %v431
      %v439 = vadd.f32 %v425, %v431
      %v440 = vadd.f32 %v426, %v431
      %v441 = vld [vmem:[%s301] sm:$0xff]
      %v442 = vld [vmem:[%s301 + $0x8] sm:$0xff]
      %v443 = vld [vmem:[%s301 + $0x10] sm:$0xff]
      %v444 = vld [vmem:[%s301 + $0x18] sm:$0xff]
      %v445 = vld [vmem:[%s301 + $0x20] sm:$0xff]
      %v446 = vld [vmem:[%s301 + $0x28] sm:$0xff]
      %v447 = vld [vmem:[%s301 + $0x30] sm:$0xff]
      %v448 = vld [vmem:[%s301 + $0x38] sm:$0xff]
      %v449 = vadd.f32 %v433, %v441
      %v450 = vadd.f32 %v434, %v442
      %v451 = vadd.f32 %v435, %v443
      %v452 = vadd.f32 %v436, %v444
      %v453 = vadd.f32 %v437, %v445
      %v454 = vadd.f32 %v438, %v446
      %v455 = vadd.f32 %v439, %v447
      %v456 = vadd.f32 %v440, %v448
      %v457 = vpack.c.bf16 %v450, %v449
      %v458 = vpack.c.bf16 %v452, %v451
      %v459 = vpack.c.bf16 %v454, %v453
      %v460 = vpack.c.bf16 %v456, %v455
      %v461 = vld [vmem:[%s4] sm:$0xf]
      %v462 = vld [vmem:[%s4 + $0x4] sm:$0xf]
      %v463 = vld [vmem:[%s4 + $0x8] sm:$0xf]
      %v464 = vld [vmem:[%s4 + $0xc] sm:$0xf]
      %v465 = vld [vmem:[%s4 + $0x10] sm:$0xf]
      %v466 = vld [vmem:[%s4 + $0x14] sm:$0xf]
      %v467 = vld [vmem:[%s4 + $0x18] sm:$0xf]
      %v468 = vld [vmem:[%s4 + $0x1c] sm:$0xf]
      %v469 = vld [vmem:[%s4 + $0x20] sm:$0xf]
      %v470 = vld [vmem:[%s4 + $0x24] sm:$0xf]
      %v471 = vld [vmem:[%s4 + $0x28] sm:$0xf]
      %v472 = vld [vmem:[%s4 + $0x2c] sm:$0xf]
      %v473 = vld [vmem:[%s4 + $0x30] sm:$0xf]
      %v474 = vld [vmem:[%s4 + $0x34] sm:$0xf]
      %v475 = vld [vmem:[%s4 + $0x38] sm:$0xf]
      %v476 = vld [vmem:[%s4 + $0x3c] sm:$0xf]
      %v477 = vld [vmem:[%s5] sm:$0x1]
      %v479 = vlaneseq
      %v480 = vshrl.u32 %v479, 7
      %v481 = vsub.s32 0, %v480
      %v482 = vrot.slane %v477, %v481
      %v500 = vunpack.c.l.b16 %v461
      %v501 = vunpack.c.l.b16 %v462
      %v502 = vunpack.c.l.b16 %v463
      %v503 = vunpack.c.l.b16 %v464
      %v504 = vunpack.c.l.b16 %v465
      %v505 = vunpack.c.l.b16 %v466
      %v506 = vunpack.c.l.b16 %v467
      %v507 = vunpack.c.l.b16 %v468
      %v508 = vunpack.c.l.b16 %v469
      %v509 = vunpack.c.l.b16 %v470
      %v510 = vunpack.c.l.b16 %v471
      %v511 = vunpack.c.l.b16 %v472
      %v512 = vunpack.c.l.b16 %v473
      %v513 = vunpack.c.l.b16 %v474
      %v514 = vunpack.c.l.b16 %v475
      %v515 = vunpack.c.l.b16 %v476
      %v516 = vpack.c.b16 %v501, %v500
      %v517 = vpack.c.b16 %v503, %v502
      %v518 = vpack.c.b16 %v505, %v504
      %v519 = vpack.c.b16 %v507, %v506
      %v520 = vpack.c.b16 %v509, %v508
      %v521 = vpack.c.b16 %v511, %v510
      %v522 = vpack.c.b16 %v513, %v512
      %v523 = vpack.c.b16 %v515, %v514
      %532 = vmatprep.subr.bf16.mxu0 0
      %533 = vmatpush1.bf16.msra.mxu0 %v516
      %534 = vmatprep.subr.bf16.mxu0 0
      %535 = vmatpush1.bf16.msra.mxu0 %v517
      %536 = vmatprep.subr.bf16.mxu0 0
      %537 = vmatpush1.bf16.msra.mxu0 %v518
      %538 = vmatprep.subr.bf16.mxu0 0
      %539 = vmatpush1.bf16.msra.mxu0 %v519
      %540 = vmatprep.subr.bf16.mxu0 0
      %541 = vmatpush1.bf16.msra.mxu0 %v520
      %542 = vmatprep.subr.bf16.mxu0 0
      %543 = vmatpush1.bf16.msra.mxu0 %v521
      %544 = vmatprep.subr.bf16.mxu0 0
      %545 = vmatpush1.bf16.msra.mxu0 %v522
      %546 = vmatprep.subr.bf16.mxu0 0
      %547 = vmatpush1.bf16.msra.mxu0 %v523
      %548 = vmatprep.subr.bf16.mxu0 0
      %549 = vmatpush1.bf16.msra.mxu0 0
      %550 = vmatprep.subr.bf16.mxu0 0
      %551 = vmatpush1.bf16.msra.mxu0 0
      %552 = vmatprep.subr.bf16.mxu0 0
      %553 = vmatpush1.bf16.msra.mxu0 0
      %554 = vmatprep.subr.bf16.mxu0 0
      %555 = vmatpush1.bf16.msra.mxu0 0
      %556 = vmatprep.subr.bf16.mxu0 0
      %557 = vmatpush1.bf16.msra.mxu0 0
      %558 = vmatprep.subr.bf16.mxu0 0
      %559 = vmatpush1.bf16.msra.mxu0 0
      %560 = vmatprep.subr.bf16.mxu0 0
      %561 = vmatpush1.bf16.msra.mxu0 0
      %562 = vmatprep.subr.bf16.mxu0 0
      %563 = vmatpush1.bf16.msra.mxu0 0
      %564 = vmatprep.mubr.bf16.mxu0 0
      %565 = vmatmul.mubr.bf16.gmra.mrb[0].mxu0 %v457
      %v566 = vpop.f32.mrb[0].mxu0
      %v567 = vadd.f32 %v482, %v566
      %v568 = vpop.f32.mrb[0].mxu0
      %v569 = vpop.f32.mrb[0].mxu0
      %v570 = vadd.f32 %v482, %v569
      %v571 = vpop.f32.mrb[0].mxu0
      %572 = vmatprep.mubr.bf16.mxu0 0
      %573 = vmatmul.mubr.bf16.gmra.mrb[0].mxu0 %v458
      %v574 = vpop.f32.mrb[0].mxu0
      %v575 = vadd.f32 %v482, %v574
      %v576 = vpop.f32.mrb[0].mxu0
      %v577 = vpop.f32.mrb[0].mxu0
      %v578 = vadd.f32 %v482, %v577
      %v579 = vpop.f32.mrb[0].mxu0
      %580 = vmatprep.mubr.bf16.mxu0 0
      %581 = vmatmul.mubr.bf16.gmra.mrb[0].mxu0 %v459
      %v582 = vpop.f32.mrb[0].mxu0
      %v583 = vadd.f32 %v482, %v582
      %v584 = vpop.f32.mrb[0].mxu0
      %v585 = vpop.f32.mrb[0].mxu0
      %v586 = vadd.f32 %v482, %v585
      %v587 = vpop.f32.mrb[0].mxu0
      %588 = vmatprep.mubr.bf16.mxu0 0
      %589 = vmatmul.mubr.bf16.gmra.mrb[0].mxu0 %v460
      %v590 = vpop.f32.mrb[0].mxu0
      %v591 = vadd.f32 %v482, %v590
      %v592 = vpop.f32.mrb[0].mxu0
      %v593 = vpop.f32.mrb[0].mxu0
      %v594 = vadd.f32 %v482, %v593
      %v595 = vpop.f32.mrb[0].mxu0
      %596 = vdwg.mxu0
      %v597 = vpack.c.bf16 %v570, %v567
      %v598 = vpack.c.bf16 %v578, %v575
      %v599 = vpack.c.bf16 %v586, %v583
      %v600 = vpack.c.bf16 %v594, %v591
      %v605 = vunpack.c.l.b16 %v597
      %v606 = vunpack.c.h.b16 %v597
      %v607 = vunpack.c.l.b16 %v598
      %v608 = vunpack.c.h.b16 %v598
      %v609 = vunpack.c.l.b16 %v599
      %v610 = vunpack.c.h.b16 %v599
      %v611 = vunpack.c.l.b16 %v600
      %v612 = vunpack.c.h.b16 %v600
      %v613 = vpack.c.b16 %v605, %v605
      %v614 = vpack.c.b16 %v606, %v606
      %v615 = vpack.c.b16 %v607, %v607
      %v616 = vpack.c.b16 %v608, %v608
      %v617 = vpack.c.b16 %v609, %v609
      %v618 = vpack.c.b16 %v610, %v610
      %v619 = vpack.c.b16 %v611, %v611
      %v620 = vpack.c.b16 %v612, %v612
      %629 = vst [vmem:[%s311] sm:$0xf] %v613
      %630 = vst [vmem:[%s311 + $0x4] sm:$0xf] %v614
      %631 = vst [vmem:[%s311 + $0x8] sm:$0xf] %v615
      %632 = vst [vmem:[%s311 + $0xc] sm:$0xf] %v616
      %633 = vst [vmem:[%s311 + $0x10] sm:$0xf] %v617
      %634 = vst [vmem:[%s311 + $0x14] sm:$0xf] %v618
      %635 = vst [vmem:[%s311 + $0x18] sm:$0xf] %v619
      %636 = vst [vmem:[%s311 + $0x1c] sm:$0xf] %v620
      %s637 = smul.u32 8, %s22
      %p638 = scmp.lt.s32.totalorder %s21, 1
      %s639 = scalar_select %p638, %s21, 1
      %p640 = scmp.lt.s32.totalorder %s637, 7
      %s641 = scalar_select %p640, %s637, 7
      %s642 = smul.addr %s639, 8
      %s643 = sadd.s32 %s641, %s642
      %s644 = smul.addr %s643, 4
      %s645 = scalar_lea.vmem %s6, %s644
      // Predicated region
      $region45: #{decoder_layer_forward.8} parent=43 // pred_check
        %p646 = pneg %p187
      $region46: #{decoder_layer_forward.8} parent=43 // pred_check_branch
        %648 = sbr.rel (%p646) target = $region48
      $region47: #{decoder_layer_forward.8} parent=43 // pred_region
        %s649 = smul.u32 8, %s22
      $region48: #{decoder_layer_forward.8} parent=43 // pred_fallthru
        _
    $region44: #{decoder_layer_forward.8} parent=5 // pred_fallthru
      _
    %p650 = scmp.le.s32.totalorder 2, %s12
    // Predicated region
    $region49: #{decoder_layer_forward.8} parent=5 // pred_check
      %p651 = pneg %p650
    $region50: #{decoder_layer_forward.8} parent=5 // pred_check_branch
      %653 = sbr.rel (%p651) target = $region52
    $region51: #{decoder_layer_forward.8} parent=5 // pred_region
      %s654 = ssub.s32 %s12, 2
      // Predicated region
      $region53: #{decoder_layer_forward.8} parent=51 // pred_check
        %p655 = pneg %p193
      $region54: #{decoder_layer_forward.8} parent=51 // pred_check_branch
        %657 = sbr.rel (%p655) target = $region56
      $region55: #{decoder_layer_forward.8} parent=51 // pred_region
        %s658 = smul.u32 8, %s24
        %p659 = scmp.lt.s32.totalorder %s23, 1
        %s660 = scalar_select %p659, %s23, 1
        %p661 = scmp.lt.s32.totalorder %s658, 7
        %s662 = scalar_select %p661, %s658, 7
        %s663 = smul.addr %s660, 8
        %s664 = sadd.s32 %s662, %s663
        %s665 = smul.addr %s664, 4
        %s666 = scalar_lea.vmem %s6, %s665
      $region56: #{decoder_layer_forward.8} parent=51 // pred_fallthru
        _
    $region52: #{decoder_layer_forward.8} parent=5 // pred_fallthru
      _
  $region6: #{decoder_layer_forward.8} parent=0 // loop_footer
    %s16 = sadd.s32 1, %s12
  $region7: #{decoder_layer_forward.8} parent=0 // loop_footer_branch
    %11 = sbr.rel target = $region3
  $region8: #{decoder_layer_forward.8} parent=0 // loop_exit
    _

// kernel: decoder_layer_forward.6
$region0: #{decoder_layer_forward.6}
  #allocation0 [shape = 'u32[]', space=smem, size = 0x4, offset = 0x4, fixed_abs, tag = 'smem constant byte address 0x4 - core index']
  #allocation1 [shape = 'u32[144,128]{1,0:T(1,128)}', space=vmem, size = 0x12000, scoped, tag = 'internal scratch']
  %s0 = inlined_call_operand.vmem [shape: f32[2,64,128], index: 0, kind: input, shape index: {}]
  %s1 = inlined_call_operand.vmem [shape: f32[64,128], index: 1, kind: input, shape index: {}]
  %s2 = inlined_call_operand.vmem [shape: f32[1,128], index: 2, kind: input, shape index: {}]
  %s3 = inlined_call_operand.vmem [shape: f32[1,128], index: 3, kind: input, shape index: {}]
  %s4 = inlined_call_operand.vmem [shape: bf16[128,256], index: 4, kind: input, shape index: {}]
  %s5 = inlined_call_operand.vmem [shape: f32[1,256], index: 5, kind: input, shape index: {}]
  %s6 = inlined_call_operand.vmem [shape: bf16[128,128], index: 6, kind: input, shape index: {}]
  %s7 = inlined_call_operand.vmem [shape: f32[1,128], index: 7, kind: input, shape index: {}]
  %s8 = inlined_call_operand.vmem [shape: bf16[2,64,128], index: 8, kind: output, shape index: {0}]
  %s9 = inlined_call_operand.vmem [shape: bf16[2,64,128], index: 9, kind: output, shape index: {1}]
  %s10 = inlined_call_operand.vmem [shape: bf16[2,64,128], index: 10, kind: output, shape index: {2}]
  %11 = xla_tuple %s8, %s9, %s10
  %s12 = sld [smem:[#allocation0]]
  $region81: #{decoder_layer_forward.6} parent=0
    _
  %s14 = ssub.s32 1, %s12
  %s15 = scalar_select 0, %s14, %s12
  loop: start=0, step=1, limit=4
  $region2: #{decoder_layer_forward.6} parent=0 // loop_pre_header
    _
  $region3: #{decoder_layer_forward.6} parent=0 // loop_header
    %s17 = sphi 0, %s21
    %p18 = scmp.ge.s32.totalorder %s17, 4
    %s24 = sphi 0, %s36
    %s25 = sphi 0, %s32
    %s26 = sphi 0, %s24
    %s27 = sphi 0, %s25
    %s28 = sphi 0, %s26
    %s29 = sphi 0, %s27
    %s41 = sphi 0, %s43
    %s44 = sphi 0, %s41
    %s45 = sphi 0, %s44
    %s61 = sphi 0, %s45
    %s67 = sphi 0, %s69
    %s70 = sphi 0, %s67
    %s71 = sphi 0, %s70
    %s87 = sphi 0, %s71
    %s91 = sphi 0, %s91
    %s93 = sphi 0, %s91
    %s94 = sphi 0, %s93
    %s108 = sphi 0, %s94
    %s112 = sphi 0, %s112
    %s114 = sphi 0, %s112
    %s115 = sphi 0, %s114
    %s129 = sphi 0, %s115
    %s133 = sphi 0, %s133
    %s135 = sphi 0, %s133
    %s136 = sphi 0, %s135
    %s150 = sphi 0, %s136
    %s154 = sphi 0, %s154
    %s156 = sphi 0, %s154
    %s157 = sphi 0, %s156
    %s171 = sphi 0, %s157
    %s175 = sphi 0, %s175
    %s177 = sphi 0, %s175
    %s178 = sphi 0, %s177
    %s192 = sphi 0, %s178
    %s196 = sphi 0, %s196
    %s198 = sphi 0, %s196
    %s199 = sphi 0, %s198
    %s213 = sphi 0, %s199
    %s221 = sphi 0, %s223
    %s224 = sphi 0, %s221
    %s225 = sphi 0, %s224
    %s241 = sphi 0, %s225
    %s249 = sphi 0, %s251
    %s252 = sphi 0, %s249
    %s253 = sphi 0, %s252
    %s269 = sphi 0, %s253
    %s277 = sphi 0, %s279
    %s280 = sphi 0, %s277
    %s281 = sphi 0, %s280
    %s297 = sphi 0, %s281
  $region4: #{decoder_layer_forward.6} parent=0 // loop_header_branch
    %20 = sbr.rel (%p18) target = $region8
  $region5: #{decoder_layer_forward.6} parent=0 // loop_body
    %s22 = ssub.s32 %s17, 1
    %s23 = ssub.s32 %s17, 2
    %s30 = sadd.s32 1, %s25
    %p31 = scmp.ge.s32.totalorder %s30, 1
    %s32 = scalar_select %p31, 0, %s30
    %s33 = sadd.s32 1, %s24
    %s34 = scalar_select %p31, %s33, %s24
    %p35 = scmp.ge.s32.totalorder %s34, 2
    %s36 = scalar_select %p35, 0, %s34
    %s37 = ssub.s32 %s24, %s36
    %s38 = ssub.s32 %s25, %s32
    %s39 = sor.u32 %s37, %s38
    %p40 = scmp.eq.s32.totalorder %s39, 0
    %s42 = sadd.s32 %s41, 1
    %s43 = scalar_select %p40, %s41, %s42
    %p46 = pneg %p40
    %p47 = scmp.eq.s32.totalorder %s17, 1
    %p48 = por %p46, %p47
    %p49 = scmp.ne.s32.totalorder %s41, %s44
    %p50 = scmp.eq.s32.totalorder %s17, 0
    %p51 = por %p49, %p50
    %p52 = scmp.ne.s32.totalorder %s41, %s44
    %p53 = scmp.eq.s32.totalorder %s22, 1
    %p54 = por %p52, %p53
    %p55 = scmp.ne.s32.totalorder %s44, %s45
    %p56 = scmp.eq.s32.totalorder %s22, 0
    %p57 = por %p55, %p56
    %p58 = scmp.ne.s32.totalorder %s44, %s45
    %p59 = scmp.eq.s32.totalorder %s23, 1
    %p60 = por %p58, %p59
    %p62 = scmp.ne.s32.totalorder %s45, %s61
    %p63 = scmp.eq.s32.totalorder %s23, 0
    %p64 = por %p62, %p63
    %s65 = ssub.s32 %s25, %s32
    %p66 = scmp.eq.s32.totalorder %s65, 0
    %s68 = sadd.s32 %s67, 1
    %s69 = scalar_select %p66, %s67, %s68
    %p72 = pneg %p66
    %p73 = scmp.eq.s32.totalorder %s17, 1
    %p74 = por %p72, %p73
    %p75 = scmp.ne.s32.totalorder %s67, %s70
    %p76 = scmp.eq.s32.totalorder %s17, 0
    %p77 = por %p75, %p76
    %p78 = scmp.ne.s32.totalorder %s67, %s70
    %p79 = scmp.eq.s32.totalorder %s22, 1
    %p80 = por %p78, %p79
    %p81 = scmp.ne.s32.totalorder %s70, %s71
    %p82 = scmp.eq.s32.totalorder %s22, 0
    %p83 = por %p81, %p82
    %p84 = scmp.ne.s32.totalorder %s70, %s71
    %p85 = scmp.eq.s32.totalorder %s23, 1
    %p86 = por %p84, %p85
    %p88 = scmp.ne.s32.totalorder %s71, %s87
    %p89 = scmp.eq.s32.totalorder %s23, 0
    %p90 = por %p88, %p89
    %s92 = sadd.s32 %s91, 1
    %p95 = scmp.eq.s32.totalorder %s17, 1
    %p96 = scmp.ne.s32.totalorder %s91, %s93
    %p97 = scmp.eq.s32.totalorder %s17, 0
    %p98 = por %p96, %p97
    %p99 = scmp.ne.s32.totalorder %s91, %s93
    %p100 = scmp.eq.s32.totalorder %s22, 1
    %p101 = por %p99, %p100
    %p102 = scmp.ne.s32.totalorder %s93, %s94
    %p103 = scmp.eq.s32.totalorder %s22, 0
    %p104 = por %p102, %p103
    %p105 = scmp.ne.s32.totalorder %s93, %s94
    %p106 = scmp.eq.s32.totalorder %s23, 1
    %p107 = por %p105, %p106
    %p109 = scmp.ne.s32.totalorder %s94, %s108
    %p110 = scmp.eq.s32.totalorder %s23, 0
    %p111 = por %p109, %p110
    %s113 = sadd.s32 %s112, 1
    %p116 = scmp.eq.s32.totalorder %s17, 1
    %p117 = scmp.ne.s32.totalorder %s112, %s114
    %p118 = scmp.eq.s32.totalorder %s17, 0
    %p119 = por %p117, %p118
    %p120 = scmp.ne.s32.totalorder %s112, %s114
    %p121 = scmp.eq.s32.totalorder %s22, 1
    %p122 = por %p120, %p121
    %p123 = scmp.ne.s32.totalorder %s114, %s115
    %p124 = scmp.eq.s32.totalorder %s22, 0
    %p125 = por %p123, %p124
    %p126 = scmp.ne.s32.totalorder %s114, %s115
    %p127 = scmp.eq.s32.totalorder %s23, 1
    %p128 = por %p126, %p127
    %p130 = scmp.ne.s32.totalorder %s115, %s129
    %p131 = scmp.eq.s32.totalorder %s23, 0
    %p132 = por %p130, %p131
    %s134 = sadd.s32 %s133, 1
    %p137 = scmp.eq.s32.totalorder %s17, 1
    %p138 = scmp.ne.s32.totalorder %s133, %s135
    %p139 = scmp.eq.s32.totalorder %s17, 0
    %p140 = por %p138, %p139
    %p141 = scmp.ne.s32.totalorder %s133, %s135
    %p142 = scmp.eq.s32.totalorder %s22, 1
    %p143 = por %p141, %p142
    %p144 = scmp.ne.s32.totalorder %s135, %s136
    %p145 = scmp.eq.s32.totalorder %s22, 0
    %p146 = por %p144, %p145
    %p147 = scmp.ne.s32.totalorder %s135, %s136
    %p148 = scmp.eq.s32.totalorder %s23, 1
    %p149 = por %p147, %p148
    %p151 = scmp.ne.s32.totalorder %s136, %s150
    %p152 = scmp.eq.s32.totalorder %s23, 0
    %p153 = por %p151, %p152
    %s155 = sadd.s32 %s154, 1
    %p158 = scmp.eq.s32.totalorder %s17, 1
    %p159 = scmp.ne.s32.totalorder %s154, %s156
    %p160 = scmp.eq.s32.totalorder %s17, 0
    %p161 = por %p159, %p160
    %p162 = scmp.ne.s32.totalorder %s154, %s156
    %p163 = scmp.eq.s32.totalorder %s22, 1
    %p164 = por %p162, %p163
    %p165 = scmp.ne.s32.totalorder %s156, %s157
    %p166 = scmp.eq.s32.totalorder %s22, 0
    %p167 = por %p165, %p166
    %p168 = scmp.ne.s32.totalorder %s156, %s157
    %p169 = scmp.eq.s32.totalorder %s23, 1
    %p170 = por %p168, %p169
    %p172 = scmp.ne.s32.totalorder %s157, %s171
    %p173 = scmp.eq.s32.totalorder %s23, 0
    %p174 = por %p172, %p173
    %s176 = sadd.s32 %s175, 1
    %p179 = scmp.eq.s32.totalorder %s17, 1
    %p180 = scmp.ne.s32.totalorder %s175, %s177
    %p181 = scmp.eq.s32.totalorder %s17, 0
    %p182 = por %p180, %p181
    %p183 = scmp.ne.s32.totalorder %s175, %s177
    %p184 = scmp.eq.s32.totalorder %s22, 1
    %p185 = por %p183, %p184
    %p186 = scmp.ne.s32.totalorder %s177, %s178
    %p187 = scmp.eq.s32.totalorder %s22, 0
    %p188 = por %p186, %p187
    %p189 = scmp.ne.s32.totalorder %s177, %s178
    %p190 = scmp.eq.s32.totalorder %s23, 1
    %p191 = por %p189, %p190
    %p193 = scmp.ne.s32.totalorder %s178, %s192
    %p194 = scmp.eq.s32.totalorder %s23, 0
    %p195 = por %p193, %p194
    %s197 = sadd.s32 %s196, 1
    %p200 = scmp.eq.s32.totalorder %s17, 1
    %p201 = scmp.ne.s32.totalorder %s196, %s198
    %p202 = scmp.eq.s32.totalorder %s17, 0
    %p203 = por %p201, %p202
    %p204 = scmp.ne.s32.totalorder %s196, %s198
    %p205 = scmp.eq.s32.totalorder %s22, 1
    %p206 = por %p204, %p205
    %p207 = scmp.ne.s32.totalorder %s198, %s199
    %p208 = scmp.eq.s32.totalorder %s22, 0
    %p209 = por %p207, %p208
    %p210 = scmp.ne.s32.totalorder %s198, %s199
    %p211 = scmp.eq.s32.totalorder %s23, 1
    %p212 = por %p210, %p211
    %p214 = scmp.ne.s32.totalorder %s199, %s213
    %p215 = scmp.eq.s32.totalorder %s23, 0
    %p216 = por %p214, %p215
    %s217 = ssub.s32 %s24, %s36
    %s218 = ssub.s32 %s25, %s32
    %s219 = sor.u32 %s217, %s218
    %p220 = scmp.eq.s32.totalorder %s219, 0
    %s222 = sadd.s32 %s221, 1
    %s223 = scalar_select %p220, %s221, %s222
    %p226 = pneg %p220
    %p227 = scmp.eq.s32.totalorder %s17, 1
    %p228 = por %p226, %p227
    %p229 = scmp.ne.s32.totalorder %s221, %s224
    %p230 = scmp.eq.s32.totalorder %s17, 0
    %p231 = por %p229, %p230
    %p232 = scmp.ne.s32.totalorder %s221, %s224
    %p233 = scmp.eq.s32.totalorder %s22, 1
    %p234 = por %p232, %p233
    %p235 = scmp.ne.s32.totalorder %s224, %s225
    %p236 = scmp.eq.s32.totalorder %s22, 0
    %p237 = por %p235, %p236
    %p238 = scmp.ne.s32.totalorder %s224, %s225
    %p239 = scmp.eq.s32.totalorder %s23, 1
    %p240 = por %p238, %p239
    %p242 = scmp.ne.s32.totalorder %s225, %s241
    %p243 = scmp.eq.s32.totalorder %s23, 0
    %p244 = por %p242, %p243
    %s245 = ssub.s32 %s24, %s36
    %s246 = ssub.s32 %s25, %s32
    %s247 = sor.u32 %s245, %s246
    %p248 = scmp.eq.s32.totalorder %s247, 0
    %s250 = sadd.s32 %s249, 1
    %s251 = scalar_select %p248, %s249, %s250
    %p254 = pneg %p248
    %p255 = scmp.eq.s32.totalorder %s17, 1
    %p256 = por %p254, %p255
    %p257 = scmp.ne.s32.totalorder %s249, %s252
    %p258 = scmp.eq.s32.totalorder %s17, 0
    %p259 = por %p257, %p258
    %p260 = scmp.ne.s32.totalorder %s249, %s252
    %p261 = scmp.eq.s32.totalorder %s22, 1
    %p262 = por %p260, %p261
    %p263 = scmp.ne.s32.totalorder %s252, %s253
    %p264 = scmp.eq.s32.totalorder %s22, 0
    %p265 = por %p263, %p264
    %p266 = scmp.ne.s32.totalorder %s252, %s253
    %p267 = scmp.eq.s32.totalorder %s23, 1
    %p268 = por %p266, %p267
    %p270 = scmp.ne.s32.totalorder %s253, %s269
    %p271 = scmp.eq.s32.totalorder %s23, 0
    %p272 = por %p270, %p271
    %s273 = ssub.s32 %s24, %s36
    %s274 = ssub.s32 %s25, %s32
    %s275 = sor.u32 %s273, %s274
    %p276 = scmp.eq.s32.totalorder %s275, 0
    %s278 = sadd.s32 %s277, 1
    %s279 = scalar_select %p276, %s277, %s278
    %p282 = pneg %p276
    %p283 = scmp.eq.s32.totalorder %s17, 1
    %p284 = por %p282, %p283
    %p285 = scmp.ne.s32.totalorder %s277, %s280
    %p286 = scmp.eq.s32.totalorder %s17, 0
    %p287 = por %p285, %p286
    %p288 = scmp.ne.s32.totalorder %s277, %s280
    %p289 = scmp.eq.s32.totalorder %s22, 1
    %p290 = por %p288, %p289
    %p291 = scmp.ne.s32.totalorder %s280, %s281
    %p292 = scmp.eq.s32.totalorder %s22, 0
    %p293 = por %p291, %p292
    %p294 = scmp.ne.s32.totalorder %s280, %s281
    %p295 = scmp.eq.s32.totalorder %s23, 1
    %p296 = por %p294, %p295
    %p298 = scmp.ne.s32.totalorder %s281, %s297
    %p299 = scmp.eq.s32.totalorder %s23, 0
    %p300 = por %p298, %p299
    %p301 = scmp.le.s32.totalorder 1, %s17
    %p302 = scmp.lt.s32.totalorder %s17, 3
    %p303 = pnand %p301, %p302
    %p304 = pneg %p303
    // Predicated region
    $region9: #{decoder_layer_forward.6} parent=5 // pred_check
      _
    $region10: #{decoder_layer_forward.6} parent=5 // pred_check_branch
      %306 = sbr.rel (%p303) target = $region12
    $region11: #{decoder_layer_forward.6} parent=5 // pred_region
      %s307 = ssub.s32 %s17, 1
      // Predicated region
      $region13: #{decoder_layer_forward.6} parent=11 // pred_check
        %p308 = pneg %p83
      $region14: #{decoder_layer_forward.6} parent=11 // pred_check_branch
        %310 = sbr.rel (%p308) target = $region16
      $region15: #{decoder_layer_forward.6} parent=11 // pred_region
        %s311 = smul.u32 8, %s27
        %p312 = scmp.lt.s32.totalorder %s311, 7
        %s313 = scalar_select %p312, %s311, 7
        %s314 = smul.addr %s313, 8
        %s315 = scalar_lea.vmem %s1, %s314
        %s316 = smul.u32 8, %s27
      $region16: #{decoder_layer_forward.6} parent=11 // pred_fallthru
        _
      // Predicated region
      $region17: #{decoder_layer_forward.6} parent=11 // pred_check
        %p317 = pneg %p104
      $region18: #{decoder_layer_forward.6} parent=11 // pred_check_branch
        %319 = sbr.rel (%p317) target = $region20
      $region19: #{decoder_layer_forward.6} parent=11 // pred_region
        _
      $region20: #{decoder_layer_forward.6} parent=11 // pred_fallthru
        _
      // Predicated region
      $region21: #{decoder_layer_forward.6} parent=11 // pred_check
        %p320 = pneg %p125
      $region22: #{decoder_layer_forward.6} parent=11 // pred_check_branch
        %322 = sbr.rel (%p320) target = $region24
      $region23: #{decoder_layer_forward.6} parent=11 // pred_region
        _
      $region24: #{decoder_layer_forward.6} parent=11 // pred_fallthru
        _
      // Predicated region
      $region25: #{decoder_layer_forward.6} parent=11 // pred_check
        %p323 = pneg %p146
      $region26: #{decoder_layer_forward.6} parent=11 // pred_check_branch
        %325 = sbr.rel (%p323) target = $region28
      $region27: #{decoder_layer_forward.6} parent=11 // pred_region
        _
      $region28: #{decoder_layer_forward.6} parent=11 // pred_fallthru
        _
      // Predicated region
      $region29: #{decoder_layer_forward.6} parent=11 // pred_check
        %p326 = pneg %p167
      $region30: #{decoder_layer_forward.6} parent=11 // pred_check_branch
        %328 = sbr.rel (%p326) target = $region32
      $region31: #{decoder_layer_forward.6} parent=11 // pred_region
        _
      $region32: #{decoder_layer_forward.6} parent=11 // pred_fallthru
        _
      // Predicated region
      $region33: #{decoder_layer_forward.6} parent=11 // pred_check
        %p329 = pneg %p188
      $region34: #{decoder_layer_forward.6} parent=11 // pred_check_branch
        %331 = sbr.rel (%p329) target = $region36
      $region35: #{decoder_layer_forward.6} parent=11 // pred_region
        _
      $region36: #{decoder_layer_forward.6} parent=11 // pred_fallthru
        _
      // Predicated region
      $region37: #{decoder_layer_forward.6} parent=11 // pred_check
        %p332 = pneg %p209
      $region38: #{decoder_layer_forward.6} parent=11 // pred_check_branch
        %334 = sbr.rel (%p332) target = $region40
      $region39: #{decoder_layer_forward.6} parent=11 // pred_region
        _
      $region40: #{decoder_layer_forward.6} parent=11 // pred_fallthru
        _
    $region12: #{decoder_layer_forward.6} parent=5 // pred_fallthru
      _
    %p335 = scmp.lt.s32.totalorder %s17, 2
    // Predicated region
    $region41: #{decoder_layer_forward.6} parent=5 // pred_check
      %p336 = pneg %p335
    $region42: #{decoder_layer_forward.6} parent=5 // pred_check_branch
      %338 = sbr.rel (%p336) target = $region44
    $region43: #{decoder_layer_forward.6} parent=5 // pred_region
      // Predicated region
      $region45: #{decoder_layer_forward.6} parent=43 // pred_check
        %p339 = pneg %p51
      $region46: #{decoder_layer_forward.6} parent=43 // pred_check_branch
        %341 = sbr.rel (%p339) target = $region48
      $region47: #{decoder_layer_forward.6} parent=43 // pred_region
        %s342 = smul.u32 8, %s25
        %p343 = scmp.lt.s32.totalorder %s24, 1
        %s344 = scalar_select %p343, %s24, 1
        %p345 = scmp.lt.s32.totalorder %s342, 7
        %s346 = scalar_select %p345, %s342, 7
        %s347 = smul.addr %s344, 8
        %s348 = sadd.s32 %s346, %s347
        %s349 = smul.addr %s348, 8
        %s350 = scalar_lea.vmem %s0, %s349
        %s351 = smul.u32 8, %s25
      $region48: #{decoder_layer_forward.6} parent=43 // pred_fallthru
        _
    $region44: #{decoder_layer_forward.6} parent=5 // pred_fallthru
      _
    %p352 = scmp.le.s32.totalorder 1, %s17
    %p353 = scmp.lt.s32.totalorder %s17, 3
    %p354 = pnand %p352, %p353
    %p355 = pneg %p354
    // Predicated region
    $region49: #{decoder_layer_forward.6} parent=5 // pred_check
      _
    $region50: #{decoder_layer_forward.6} parent=5 // pred_check_branch
      %357 = sbr.rel (%p354) target = $region52
    $region51: #{decoder_layer_forward.6} parent=5 // pred_region
      %s358 = ssub.s32 %s17, 1
      %s359 = smul.u32 8, %s27
      %p360 = scmp.lt.s32.totalorder %s26, 1
      %s361 = scalar_select %p360, %s26, 1
      %p362 = scmp.lt.s32.totalorder %s359, 7
      %s363 = scalar_select %p362, %s359, 7
      %s364 = smul.addr %s361, 8
      %s365 = sadd.s32 %s363, %s364
      %s366 = smul.addr %s365, 8
      %s367 = scalar_lea.vmem %s0, %s366
      %p368 = pneg %p57
      %p369 = pneg %p54
      %s370 = smul.u32 8, %s27
      %p371 = scmp.lt.s32.totalorder %s370, 7
      %s372 = scalar_select %p371, %s370, 7
      %s373 = smul.addr %s372, 8
      %s374 = scalar_lea.vmem %s1, %s373
      %p375 = pneg %p83
      %p376 = pneg %p80
      %p377 = pneg %p104
      %p378 = pneg %p101
      %p379 = pneg %p125
      %p380 = pneg %p122
      %p381 = pneg %p146
      %p382 = pneg %p143
      %p383 = pneg %p167
      %p384 = pneg %p164
      %p385 = pneg %p188
      %p386 = pneg %p185
      %p387 = pneg %p209
      %p388 = pneg %p206
      %p389 = pneg %p237
      %p390 = pneg %p234
      %s391 = smul.u32 8, %s27
      %p392 = scmp.lt.s32.totalorder %s26, 1
      %s393 = scalar_select %p392, %s26, 1
      %p394 = scmp.lt.s32.totalorder %s391, 7
      %s395 = scalar_select %p394, %s391, 7
      %s396 = smul.addr %s393, 8
      %s397 = sadd.s32 %s395, %s396
      %s398 = smul.addr %s397, 4
      %s399 = scalar_lea.vmem %s8, %s398
      %p400 = pneg %p265
      %p401 = pneg %p262
      %s402 = smul.u32 8, %s27
      %p403 = scmp.lt.s32.totalorder %s26, 1
      %s404 = scalar_select %p403, %s26, 1
      %p405 = scmp.lt.s32.totalorder %s402, 7
      %s406 = scalar_select %p405, %s402, 7
      %s407 = smul.addr %s404, 8
      %s408 = sadd.s32 %s406, %s407
      %s409 = smul.addr %s408, 4
      %s410 = scalar_lea.vmem %s9, %s409
      %p411 = pneg %p293
      %p412 = pneg %p290
      %s413 = smul.u32 8, %s27
      %p414 = scmp.lt.s32.totalorder %s26, 1
      %s415 = scalar_select %p414, %s26, 1
      %p416 = scmp.lt.s32.totalorder %s413, 7
      %s417 = scalar_select %p416, %s413, 7
      %s418 = smul.addr %s415, 8
      %s419 = sadd.s32 %s417, %s418
      %s420 = smul.addr %s419, 4
      %s421 = scalar_lea.vmem %s10, %s420
      %s422 = smul.u32 8, %s27
      %p423 = scmp.lt.s32.totalorder %s26, 1
      %s424 = scalar_select %p423, %s26, 1
      %p425 = scmp.lt.s32.totalorder %s422, 7
      %s426 = scalar_select %p425, %s422, 7
      %s427 = smul.addr %s424, 8
      %s428 = sadd.s32 %s426, %s427
      %s429 = smul.addr %s428, 8
      %s430 = scalar_lea.vmem %s0, %s429
      %s431 = smul.u32 8, %s27
      %s432 = smul.u32 8, %s27
      %p433 = scmp.lt.s32.totalorder %s432, 7
      %s434 = scalar_select %p433, %s432, 7
      %s435 = smul.addr %s434, 8
      %s436 = scalar_lea.vmem %s1, %s435
      %s437 = smul.u32 8, %s27
      %s438 = smul.u32 8, %s27
      %p439 = scmp.lt.s32.totalorder %s26, 1
      %s440 = scalar_select %p439, %s26, 1
      %p441 = scmp.lt.s32.totalorder %s438, 7
      %s442 = scalar_select %p441, %s438, 7
      %s443 = smul.addr %s440, 8
      %s444 = sadd.s32 %s442, %s443
      %s445 = smul.addr %s444, 4
      %s446 = scalar_lea.vmem %s8, %s445
      %s447 = smul.u32 8, %s27
      %s448 = smul.u32 8, %s27
      %p449 = scmp.lt.s32.totalorder %s26, 1
      %s450 = scalar_select %p449, %s26, 1
      %p451 = scmp.lt.s32.totalorder %s448, 7
      %s452 = scalar_select %p451, %s448, 7
      %s453 = smul.addr %s450, 8
      %s454 = sadd.s32 %s452, %s453
      %s455 = smul.addr %s454, 4
      %s456 = scalar_lea.vmem %s9, %s455
      %s457 = smul.u32 8, %s27
      %s458 = smul.u32 8, %s27
      %p459 = scmp.lt.s32.totalorder %s26, 1
      %s460 = scalar_select %p459, %s26, 1
      %p461 = scmp.lt.s32.totalorder %s458, 7
      %s462 = scalar_select %p461, %s458, 7
      %s463 = smul.addr %s460, 8
      %s464 = sadd.s32 %s462, %s463
      %s465 = smul.addr %s464, 4
      %s466 = scalar_lea.vmem %s10, %s465
      %s467 = smul.u32 8, %s27
      %v469 = vld [vmem:[%s430] sm:$0xff]
      %v470 = vld [vmem:[%s430 + $0x8] sm:$0xff]
      %v471 = vld [vmem:[%s430 + $0x10] sm:$0xff]
      %v472 = vld [vmem:[%s430 + $0x18] sm:$0xff]
      %v473 = vld [vmem:[%s430 + $0x20] sm:$0xff]
      %v474 = vld [vmem:[%s430 + $0x28] sm:$0xff]
      %v475 = vld [vmem:[%s430 + $0x30] sm:$0xff]
      %v476 = vld [vmem:[%s430 + $0x38] sm:$0xff]
      %v477 = vld [vmem:[%s2] sm:$0x1]
      %v478 = vld [vmem:[%s3] sm:$0x1]
      %479 = vadd.xlane.f32.xlu0 %v469
      %v480 = vpop.xlane.xlu0 %479
      %481 = vadd.xlane.f32.xlu0 %v470
      %v482 = vpop.xlane.xlu0 %481
      %483 = vadd.xlane.f32.xlu0 %v471
      %v484 = vpop.xlane.xlu0 %483
      %485 = vadd.xlane.f32.xlu0 %v472
      %v486 = vpop.xlane.xlu0 %485
      %487 = vadd.xlane.f32.xlu0 %v473
      %v488 = vpop.xlane.xlu0 %487
      %489 = vadd.xlane.f32.xlu0 %v474
      %v490 = vpop.xlane.xlu0 %489
      %491 = vadd.xlane.f32.xlu0 %v475
      %v492 = vpop.xlane.xlu0 %491
      %493 = vadd.xlane.f32.xlu0 %v476
      %v494 = vpop.xlane.xlu0 %493
      %v495 = vrcp.pop 128.0
      %v496 = vmul.f32 %v480, %v495
      %v497 = vmul.f32 %v482, %v495
      %v498 = vmul.f32 %v484, %v495
      %v499 = vmul.f32 %v486, %v495
      %v500 = vmul.f32 %v488, %v495
      %v501 = vmul.f32 %v490, %v495
      %v502 = vmul.f32 %v492, %v495
      %v503 = vmul.f32 %v494, %v495
      %v504 = vsub.f32 %v469, %v496
      %v505 = vsub.f32 %v470, %v497
      %v506 = vsub.f32 %v471, %v498
      %v507 = vsub.f32 %v472, %v499
      %v508 = vsub.f32 %v473, %v500
      %v509 = vsub.f32 %v474, %v501
      %v510 = vsub.f32 %v475, %v502
      %v511 = vsub.f32 %v476, %v503
      %v512 = vmul.f32 %v504, %v504
      %v513 = vmul.f32 %v505, %v505
      %v514 = vmul.f32 %v506, %v506
      %v515 = vmul.f32 %v507, %v507
      %v516 = vmul.f32 %v508, %v508
      %v517 = vmul.f32 %v509, %v509
      %v518 = vmul.f32 %v510, %v510
      %v519 = vmul.f32 %v511, %v511
      %520 = vadd.xlane.f32.xlu0 %v512
      %v521 = vpop.xlane.xlu0 %520
      %522 = vadd.xlane.f32.xlu0 %v513
      %v523 = vpop.xlane.xlu0 %522
      %524 = vadd.xlane.f32.xlu0 %v514
      %v525 = vpop.xlane.xlu0 %524
      %526 = vadd.xlane.f32.xlu0 %v515
      %v527 = vpop.xlane.xlu0 %526
      %528 = vadd.xlane.f32.xlu0 %v516
      %v529 = vpop.xlane.xlu0 %528
      %530 = vadd.xlane.f32.xlu0 %v517
      %v531 = vpop.xlane.xlu0 %530
      %532 = vadd.xlane.f32.xlu0 %v518
      %v533 = vpop.xlane.xlu0 %532
      %534 = vadd.xlane.f32.xlu0 %v519
      %v535 = vpop.xlane.xlu0 %534
      %v536 = vmul.f32 %v521, %v495
      %v537 = vmul.f32 %v523, %v495
      %v538 = vmul.f32 %v525, %v495
      %v539 = vmul.f32 %v527, %v495
      %v540 = vmul.f32 %v529, %v495
      %v541 = vmul.f32 %v531, %v495
      %v542 = vmul.f32 %v533, %v495
      %v543 = vmul.f32 %v535, %v495
      %v544 = vadd.f32 %v536, 1e-05
      %v545 = vadd.f32 %v537, 1e-05
      %v546 = vadd.f32 %v538, 1e-05
      %v547 = vadd.f32 %v539, 1e-05
      %v548 = vadd.f32 %v540, 1e-05
      %v549 = vadd.f32 %v541, 1e-05
      %v550 = vadd.f32 %v542, 1e-05
      %v551 = vadd.f32 %v543, 1e-05
      %v552 = vrsqrt.pop %v544
      %v553 = vrsqrt.pop %v545
      %v554 = vrsqrt.pop %v546
      %v555 = vrsqrt.pop %v547
      %v556 = vrsqrt.pop %v548
      %v557 = vrsqrt.pop %v549
      %v558 = vrsqrt.pop %v550
      %v559 = vrsqrt.pop %v551
      %v560 = vmul.f32 %v504, %v552
      %v561 = vmul.f32 %v505, %v553
      %v562 = vmul.f32 %v506, %v554
      %v563 = vmul.f32 %v507, %v555
      %v564 = vmul.f32 %v508, %v556
      %v565 = vmul.f32 %v509, %v557
      %v566 = vmul.f32 %v510, %v558
      %v567 = vmul.f32 %v511, %v559
      %v569 = vlaneseq
      %v570 = vshrl.u32 %v569, 7
      %v571 = vsub.s32 0, %v570
      %v572 = vrot.slane %v477, %v571
      %v574 = vmul.f32 %v560, %v572
      %v575 = vmul.f32 %v561, %v572
      %v576 = vmul.f32 %v562, %v572
      %v577 = vmul.f32 %v563, %v572
      %v578 = vmul.f32 %v564, %v572
      %v579 = vmul.f32 %v565, %v572
      %v580 = vmul.f32 %v566, %v572
      %v581 = vmul.f32 %v567, %v572
      %v583 = vlaneseq
      %v584 = vshrl.u32 %v583, 7
      %v585 = vsub.s32 0, %v584
      %v586 = vrot.slane %v478, %v585
      %v588 = vadd.f32 %v574, %v586
      %v589 = vadd.f32 %v575, %v586
      %v590 = vadd.f32 %v576, %v586
      %v591 = vadd.f32 %v577, %v586
      %v592 = vadd.f32 %v578, %v586
      %v593 = vadd.f32 %v579, %v586
      %v594 = vadd.f32 %v580, %v586
      %v595 = vadd.f32 %v581, %v586
      %v596 = vld [vmem:[%s436] sm:$0xff]
      %v597 = vld [vmem:[%s436 + $0x8] sm:$0xff]
      %v598 = vld [vmem:[%s436 + $0x10] sm:$0xff]
      %v599 = vld [vmem:[%s436 + $0x18] sm:$0xff]
      %v600 = vld [vmem:[%s436 + $0x20] sm:$0xff]
      %v601 = vld [vmem:[%s436 + $0x28] sm:$0xff]
      %v602 = vld [vmem:[%s436 + $0x30] sm:$0xff]
      %v603 = vld [vmem:[%s436 + $0x38] sm:$0xff]
      %v604 = vadd.f32 %v588, %v596
      %v605 = vadd.f32 %v589, %v597
      %v606 = vadd.f32 %v590, %v598
      %v607 = vadd.f32 %v591, %v599
      %v608 = vadd.f32 %v592, %v600
      %v609 = vadd.f32 %v593, %v601
      %v610 = vadd.f32 %v594, %v602
      %v611 = vadd.f32 %v595, %v603
      %v612 = vpack.c.bf16 %v605, %v604
      %v613 = vpack.c.bf16 %v607, %v606
      %v614 = vpack.c.bf16 %v609, %v608
      %v615 = vpack.c.bf16 %v611, %v610
      %v616 = vpack.c.bf16 %v589, %v588
      %v617 = vpack.c.bf16 %v591, %v590
      %v618 = vpack.c.bf16 %v593, %v592
      %v619 = vpack.c.bf16 %v595, %v594
      %v620 = vld [vmem:[%s4] sm:$0xff]
      %v621 = vld [vmem:[%s4 + $0x8] sm:$0xff]
      %v622 = vld [vmem:[%s4 + $0x10] sm:$0xff]
      %v623 = vld [vmem:[%s4 + $0x18] sm:$0xff]
      %v624 = vld [vmem:[%s4 + $0x20] sm:$0xff]
      %v625 = vld [vmem:[%s4 + $0x28] sm:$0xff]
      %v626 = vld [vmem:[%s4 + $0x30] sm:$0xff]
      %v627 = vld [vmem:[%s4 + $0x38] sm:$0xff]
      %v628 = vld [vmem:[%s4 + $0x40] sm:$0xff]
      %v629 = vld [vmem:[%s4 + $0x48] sm:$0xff]
      %v630 = vld [vmem:[%s4 + $0x50] sm:$0xff]
      %v631 = vld [vmem:[%s4 + $0x58] sm:$0xff]
      %v632 = vld [vmem:[%s4 + $0x60] sm:$0xff]
      %v633 = vld [vmem:[%s4 + $0x68] sm:$0xff]
      %v634 = vld [vmem:[%s4 + $0x70] sm:$0xff]
      %v635 = vld [vmem:[%s4 + $0x78] sm:$0xff]
      %v636 = vld [vmem:[%s5] sm:$0x3]
      %v638 = vlaneseq
      %v639 = vshrl.u32 %v638, 7
      %v640 = vsub.s32 0, %v639
      %v641 = vrot.slane %v636, %v640
      %v642 = vlaneseq
      %v643 = vshrl.u32 %v642, 7
      %v644 = vsub.s32 1, %v643
      %v645 = vrot.slane %v636, %v644
      %v664 = vunpack.c.l.b16 %v620
      %v665 = vunpack.c.h.b16 %v620
      %v666 = vunpack.c.l.b16 %v621
      %v667 = vunpack.c.h.b16 %v621
      %v668 = vunpack.c.l.b16 %v622
      %v669 = vunpack.c.h.b16 %v622
      %v670 = vunpack.c.l.b16 %v623
      %v671 = vunpack.c.h.b16 %v623
      %v672 = vunpack.c.l.b16 %v624
      %v673 = vunpack.c.h.b16 %v624
      %v674 = vunpack.c.l.b16 %v625
      %v675 = vunpack.c.h.b16 %v625
      %v676 = vunpack.c.l.b16 %v626
      %v677 = vunpack.c.h.b16 %v626
      %v678 = vunpack.c.l.b16 %v627
      %v679 = vunpack.c.h.b16 %v627
      %v680 = vunpack.c.l.b16 %v628
      %v681 = vunpack.c.h.b16 %v628
      %v682 = vunpack.c.l.b16 %v629
      %v683 = vunpack.c.h.b16 %v629
      %v684 = vunpack.c.l.b16 %v630
      %v685 = vunpack.c.h.b16 %v630
      %v686 = vunpack.c.l.b16 %v631
      %v687 = vunpack.c.h.b16 %v631
      %v688 = vunpack.c.l.b16 %v632
      %v689 = vunpack.c.h.b16 %v632
      %v690 = vunpack.c.l.b16 %v633
      %v691 = vunpack.c.h.b16 %v633
      %v692 = vunpack.c.l.b16 %v634
      %v693 = vunpack.c.h.b16 %v634
      %v694 = vunpack.c.l.b16 %v635
      %v695 = vunpack.c.h.b16 %v635
      %v696 = vpack.c.b16 %v666, %v664
      %v697 = vpack.c.b16 %v667, %v665
      %v698 = vpack.c.b16 %v670, %v668
      %v699 = vpack.c.b16 %v671, %v669
      %v700 = vpack.c.b16 %v674, %v672
      %v701 = vpack.c.b16 %v675, %v673
      %v702 = vpack.c.b16 %v678, %v676
      %v703 = vpack.c.b16 %v679, %v677
      %v704 = vpack.c.b16 %v682, %v680
      %v705 = vpack.c.b16 %v683, %v681
      %v706 = vpack.c.b16 %v686, %v684
      %v707 = vpack.c.b16 %v687, %v685
      %v708 = vpack.c.b16 %v690, %v688
      %v709 = vpack.c.b16 %v691, %v689
      %v710 = vpack.c.b16 %v694, %v692
      %v711 = vpack.c.b16 %v695, %v693
      %728 = vmatprep.subr.bf16.mxu0 %v697
      %729 = vmatpush1.bf16.msra.mxu0 %v696
      %730 = vmatprep.subr.bf16.mxu0 %v699
      %731 = vmatpush1.bf16.msra.mxu0 %v698
      %732 = vmatprep.subr.bf16.mxu0 %v701
      %733 = vmatpush1.bf16.msra.mxu0 %v700
      %734 = vmatprep.subr.bf16.mxu0 %v703
      %735 = vmatpush1.bf16.msra.mxu0 %v702
      %736 = vmatprep.subr.bf16.mxu0 %v705
      %737 = vmatpush1.bf16.msra.mxu0 %v704
      %738 = vmatprep.subr.bf16.mxu0 %v707
      %739 = vmatpush1.bf16.msra.mxu0 %v706
      %740 = vmatprep.subr.bf16.mxu0 %v709
      %741 = vmatpush1.bf16.msra.mxu0 %v708
      %742 = vmatprep.subr.bf16.mxu0 %v711
      %743 = vmatpush1.bf16.msra.mxu0 %v710
      %744 = vmatprep.subr.bf16.mxu0 0
      %745 = vmatpush1.bf16.msra.mxu0 0
      %746 = vmatprep.subr.bf16.mxu0 0
      %747 = vmatpush1.bf16.msra.mxu0 0
      %748 = vmatprep.subr.bf16.mxu0 0
      %749 = vmatpush1.bf16.msra.mxu0 0
      %750 = vmatprep.subr.bf16.mxu0 0
      %751 = vmatpush1.bf16.msra.mxu0 0
      %752 = vmatprep.subr.bf16.mxu0 0
      %753 = vmatpush1.bf16.msra.mxu0 0
      %754 = vmatprep.subr.bf16.mxu0 0
      %755 = vmatpush1.bf16.msra.mxu0 0
      %756 = vmatprep.subr.bf16.mxu0 0
      %757 = vmatpush1.bf16.msra.mxu0 0
      %758 = vmatprep.subr.bf16.mxu0 0
      %759 = vmatpush1.bf16.msra.mxu0 0
      %760 = vmatprep.mubr.bf16.mxu0 0
      %761 = vmatmul.mubr.bf16.gmra.mrb[0].mxu0 %v612
      %v762 = vpop.f32.mrb[0].mxu0
      %v763 = vadd.f32 %v641, %v762
      %v764 = vpop.f32.mrb[0].mxu0
      %v765 = vadd.f32 %v645, %v764
      %v766 = vpop.f32.mrb[0].mxu0
      %v767 = vadd.f32 %v641, %v766
      %v768 = vpop.f32.mrb[0].mxu0
      %v769 = vadd.f32 %v645, %v768
      %770 = vmatprep.mubr.bf16.mxu0 0
      %771 = vmatmul.mubr.bf16.gmra.mrb[0].mxu0 %v613
      %v772 = vpop.f32.mrb[0].mxu0
      %v773 = vadd.f32 %v641, %v772
      %v774 = vpop.f32.mrb[0].mxu0
      %v775 = vadd.f32 %v645, %v774
      %v776 = vpop.f32.mrb[0].mxu0
      %v777 = vadd.f32 %v641, %v776
      %v778 = vpop.f32.mrb[0].mxu0
      %v779 = vadd.f32 %v645, %v778
      %780 = vmatprep.mubr.bf16.mxu0 0
      %781 = vmatmul.mubr.bf16.gmra.mrb[0].mxu0 %v614
      %v782 = vpop.f32.mrb[0].mxu0
      %v783 = vadd.f32 %v641, %v782
      %v784 = vpop.f32.mrb[0].mxu0
      %v785 = vadd.f32 %v645, %v784
      %v786 = vpop.f32.mrb[0].mxu0
      %v787 = vadd.f32 %v641, %v786
      %v788 = vpop.f32.mrb[0].mxu0
      %v789 = vadd.f32 %v645, %v788
      %790 = vmatprep.mubr.bf16.mxu0 0
      %791 = vmatmul.mubr.bf16.gmra.mrb[0].mxu0 %v615
      %v792 = vpop.f32.mrb[0].mxu0
      %v793 = vadd.f32 %v641, %v792
      %v794 = vpop.f32.mrb[0].mxu0
      %v795 = vadd.f32 %v645, %v794
      %v796 = vpop.f32.mrb[0].mxu0
      %v797 = vadd.f32 %v641, %v796
      %v798 = vpop.f32.mrb[0].mxu0
      %v799 = vadd.f32 %v645, %v798
      %800 = vdwg.mxu0
      %v801 = vpack.c.bf16 %v767, %v763
      %v802 = vpack.c.bf16 %v777, %v773
      %v803 = vpack.c.bf16 %v787, %v783
      %v804 = vpack.c.bf16 %v797, %v793
      %v809 = vunpack.c.l.b16 %v801
      %v810 = vunpack.c.h.b16 %v801
      %v811 = vunpack.c.l.b16 %v802
      %v812 = vunpack.c.h.b16 %v802
      %v813 = vunpack.c.l.b16 %v803
      %v814 = vunpack.c.h.b16 %v803
      %v815 = vunpack.c.l.b16 %v804
      %v816 = vunpack.c.h.b16 %v804
      %v817 = vpack.c.b16 %v809, %v809
      %v818 = vpack.c.b16 %v810, %v810
      %v819 = vpack.c.b16 %v811, %v811
      %v820 = vpack.c.b16 %v812, %v812
      %v821 = vpack.c.b16 %v813, %v813
      %v822 = vpack.c.b16 %v814, %v814
      %v823 = vpack.c.b16 %v815, %v815
      %v824 = vpack.c.b16 %v816, %v816
      %833 = vst [vmem:[%s446] sm:$0xf] %v817
      %834 = vst [vmem:[%s446 + $0x4] sm:$0xf] %v818
      %835 = vst [vmem:[%s446 + $0x8] sm:$0xf] %v819
      %836 = vst [vmem:[%s446 + $0xc] sm:$0xf] %v820
      %837 = vst [vmem:[%s446 + $0x10] sm:$0xf] %v821
      %838 = vst [vmem:[%s446 + $0x14] sm:$0xf] %v822
      %839 = vst [vmem:[%s446 + $0x18] sm:$0xf] %v823
      %840 = vst [vmem:[%s446 + $0x1c] sm:$0xf] %v824
      %v841 = vpack.c.bf16 %v769, %v765
      %v842 = vpack.c.bf16 %v779, %v775
      %v843 = vpack.c.bf16 %v789, %v785
      %v844 = vpack.c.bf16 %v799, %v795
      %v849 = vunpack.c.l.b16 %v841
      %v850 = vunpack.c.h.b16 %v841
      %v851 = vunpack.c.l.b16 %v842
      %v852 = vunpack.c.h.b16 %v842
      %v853 = vunpack.c.l.b16 %v843
      %v854 = vunpack.c.h.b16 %v843
      %v855 = vunpack.c.l.b16 %v844
      %v856 = vunpack.c.h.b16 %v844
      %v857 = vpack.c.b16 %v849, %v849
      %v858 = vpack.c.b16 %v850, %v850
      %v859 = vpack.c.b16 %v851, %v851
      %v860 = vpack.c.b16 %v852, %v852
      %v861 = vpack.c.b16 %v853, %v853
      %v862 = vpack.c.b16 %v854, %v854
      %v863 = vpack.c.b16 %v855, %v855
      %v864 = vpack.c.b16 %v856, %v856
      %873 = vst [vmem:[%s456] sm:$0xf] %v857
      %874 = vst [vmem:[%s456 + $0x4] sm:$0xf] %v858
      %875 = vst [vmem:[%s456 + $0x8] sm:$0xf] %v859
      %876 = vst [vmem:[%s456 + $0xc] sm:$0xf] %v860
      %877 = vst [vmem:[%s456 + $0x10] sm:$0xf] %v861
      %878 = vst [vmem:[%s456 + $0x14] sm:$0xf] %v862
      %879 = vst [vmem:[%s456 + $0x18] sm:$0xf] %v863
      %880 = vst [vmem:[%s456 + $0x1c] sm:$0xf] %v864
      %v881 = vld [vmem:[%s6] sm:$0xf]
      %v882 = vld [vmem:[%s6 + $0x4] sm:$0xf]
      %v883 = vld [vmem:[%s6 + $0x8] sm:$0xf]
      %v884 = vld [vmem:[%s6 + $0xc] sm:$0xf]
      %v885 = vld [vmem:[%s6 + $0x10] sm:$0xf]
      %v886 = vld [vmem:[%s6 + $0x14] sm:$0xf]
      %v887 = vld [vmem:[%s6 + $0x18] sm:$0xf]
      %v888 = vld [vmem:[%s6 + $0x1c] sm:$0xf]
      %v889 = vld [vmem:[%s6 + $0x20] sm:$0xf]
      %v890 = vld [vmem:[%s6 + $0x24] sm:$0xf]
      %v891 = vld [vmem:[%s6 + $0x28] sm:$0xf]
      %v892 = vld [vmem:[%s6 + $0x2c] sm:$0xf]
      %v893 = vld [vmem:[%s6 + $0x30] sm:$0xf]
      %v894 = vld [vmem:[%s6 + $0x34] sm:$0xf]
      %v895 = vld [vmem:[%s6 + $0x38] sm:$0xf]
      %v896 = vld [vmem:[%s6 + $0x3c] sm:$0xf]
      %v897 = vld [vmem:[%s7] sm:$0x1]
      %v899 = vlaneseq
      %v900 = vshrl.u32 %v899, 7
      %v901 = vsub.s32 0, %v900
      %v902 = vrot.slane %v897, %v901
      %v920 = vunpack.c.l.b16 %v881
      %v921 = vunpack.c.l.b16 %v882
      %v922 = vunpack.c.l.b16 %v883
      %v923 = vunpack.c.l.b16 %v884
      %v924 = vunpack.c.l.b16 %v885
      %v925 = vunpack.c.l.b16 %v886
      %v926 = vunpack.c.l.b16 %v887
      %v927 = vunpack.c.l.b16 %v888
      %v928 = vunpack.c.l.b16 %v889
      %v929 = vunpack.c.l.b16 %v890
      %v930 = vunpack.c.l.b16 %v891
      %v931 = vunpack.c.l.b16 %v892
      %v932 = vunpack.c.l.b16 %v893
      %v933 = vunpack.c.l.b16 %v894
      %v934 = vunpack.c.l.b16 %v895
      %v935 = vunpack.c.l.b16 %v896
      %v936 = vpack.c.b16 %v921, %v920
      %v937 = vpack.c.b16 %v923, %v922
      %v938 = vpack.c.b16 %v925, %v924
      %v939 = vpack.c.b16 %v927, %v926
      %v940 = vpack.c.b16 %v929, %v928
      %v941 = vpack.c.b16 %v931, %v930
      %v942 = vpack.c.b16 %v933, %v932
      %v943 = vpack.c.b16 %v935, %v934
      %952 = vmatprep.subr.bf16.mxu0 0
      %953 = vmatpush1.bf16.msra.mxu0 %v936
      %954 = vmatprep.subr.bf16.mxu0 0
      %955 = vmatpush1.bf16.msra.mxu0 %v937
      %956 = vmatprep.subr.bf16.mxu0 0
      %957 = vmatpush1.bf16.msra.mxu0 %v938
      %958 = vmatprep.subr.bf16.mxu0 0
      %959 = vmatpush1.bf16.msra.mxu0 %v939
      %960 = vmatprep.subr.bf16.mxu0 0
      %961 = vmatpush1.bf16.msra.mxu0 %v940
      %962 = vmatprep.subr.bf16.mxu0 0
      %963 = vmatpush1.bf16.msra.mxu0 %v941
      %964 = vmatprep.subr.bf16.mxu0 0
      %965 = vmatpush1.bf16.msra.mxu0 %v942
      %966 = vmatprep.subr.bf16.mxu0 0
      %967 = vmatpush1.bf16.msra.mxu0 %v943
      %968 = vmatprep.subr.bf16.mxu0 0
      %969 = vmatpush1.bf16.msra.mxu0 0
      %970 = vmatprep.subr.bf16.mxu0 0
      %971 = vmatpush1.bf16.msra.mxu0 0
      %972 = vmatprep.subr.bf16.mxu0 0
      %973 = vmatpush1.bf16.msra.mxu0 0
      %974 = vmatprep.subr.bf16.mxu0 0
      %975 = vmatpush1.bf16.msra.mxu0 0
      %976 = vmatprep.subr.bf16.mxu0 0
      %977 = vmatpush1.bf16.msra.mxu0 0
      %978 = vmatprep.subr.bf16.mxu0 0
      %979 = vmatpush1.bf16.msra.mxu0 0
      %980 = vmatprep.subr.bf16.mxu0 0
      %981 = vmatpush1.bf16.msra.mxu0 0
      %982 = vmatprep.subr.bf16.mxu0 0
      %983 = vmatpush1.bf16.msra.mxu0 0
      %984 = vmatprep.mubr.bf16.mxu0 0
      %985 = vmatmul.mubr.bf16.gmra.mrb[0].mxu0 %v616
      %v986 = vpop.f32.mrb[0].mxu0
      %v987 = vadd.f32 %v902, %v986
      %v988 = vpop.f32.mrb[0].mxu0
      %v989 = vpop.f32.mrb[0].mxu0
      %v990 = vadd.f32 %v902, %v989
      %v991 = vpop.f32.mrb[0].mxu0
      %992 = vmatprep.mubr.bf16.mxu0 0
      %993 = vmatmul.mubr.bf16.gmra.mrb[0].mxu0 %v617
      %v994 = vpop.f32.mrb[0].mxu0
      %v995 = vadd.f32 %v902, %v994
      %v996 = vpop.f32.mrb[0].mxu0
      %v997 = vpop.f32.mrb[0].mxu0
      %v998 = vadd.f32 %v902, %v997
      %v999 = vpop.f32.mrb[0].mxu0
      %1000 = vmatprep.mubr.bf16.mxu0 0
      %1001 = vmatmul.mubr.bf16.gmra.mrb[0].mxu0 %v618
      %v1002 = vpop.f32.mrb[0].mxu0
      %v1003 = vadd.f32 %v902, %v1002
      %v1004 = vpop.f32.mrb[0].mxu0
      %v1005 = vpop.f32.mrb[0].mxu0
      %v1006 = vadd.f32 %v902, %v1005
      %v1007 = vpop.f32.mrb[0].mxu0
      %1008 = vmatprep.mubr.bf16.mxu0 0
      %1009 = vmatmul.mubr.bf16.gmra.mrb[0].mxu0 %v619
      %v1010 = vpop.f32.mrb[0].mxu0
      %v1011 = vadd.f32 %v902, %v1010
      %v1012 = vpop.f32.mrb[0].mxu0
      %v1013 = vpop.f32.mrb[0].mxu0
      %v1014 = vadd.f32 %v902, %v1013
      %v1015 = vpop.f32.mrb[0].mxu0
      %1016 = vdwg.mxu0
      %v1017 = vpack.c.bf16 %v990, %v987
      %v1018 = vpack.c.bf16 %v998, %v995
      %v1019 = vpack.c.bf16 %v1006, %v1003
      %v1020 = vpack.c.bf16 %v1014, %v1011
      %v1025 = vunpack.c.l.b16 %v1017
      %v1026 = vunpack.c.h.b16 %v1017
      %v1027 = vunpack.c.l.b16 %v1018
      %v1028 = vunpack.c.h.b16 %v1018
      %v1029 = vunpack.c.l.b16 %v1019
      %v1030 = vunpack.c.h.b16 %v1019
      %v1031 = vunpack.c.l.b16 %v1020
      %v1032 = vunpack.c.h.b16 %v1020
      %v1033 = vpack.c.b16 %v1025, %v1025
      %v1034 = vpack.c.b16 %v1026, %v1026
      %v1035 = vpack.c.b16 %v1027, %v1027
      %v1036 = vpack.c.b16 %v1028, %v1028
      %v1037 = vpack.c.b16 %v1029, %v1029
      %v1038 = vpack.c.b16 %v1030, %v1030
      %v1039 = vpack.c.b16 %v1031, %v1031
      %v1040 = vpack.c.b16 %v1032, %v1032
      %1049 = vst [vmem:[%s466] sm:$0xf] %v1033
      %1050 = vst [vmem:[%s466 + $0x4] sm:$0xf] %v1034
      %1051 = vst [vmem:[%s466 + $0x8] sm:$0xf] %v1035
      %1052 = vst [vmem:[%s466 + $0xc] sm:$0xf] %v1036
      %1053 = vst [vmem:[%s466 + $0x10] sm:$0xf] %v1037
      %1054 = vst [vmem:[%s466 + $0x14] sm:$0xf] %v1038
      %1055 = vst [vmem:[%s466 + $0x18] sm:$0xf] %v1039
      %1056 = vst [vmem:[%s466 + $0x1c] sm:$0xf] %v1040
      %s1057 = smul.u32 8, %s27
      %p1058 = scmp.lt.s32.totalorder %s26, 1
      %s1059 = scalar_select %p1058, %s26, 1
      %p1060 = scmp.lt.s32.totalorder %s1057, 7
      %s1061 = scalar_select %p1060, %s1057, 7
      %s1062 = smul.addr %s1059, 8
      %s1063 = sadd.s32 %s1061, %s1062
      %s1064 = smul.addr %s1063, 4
      %s1065 = scalar_lea.vmem %s8, %s1064
      %s1066 = smul.u32 8, %s27
      %p1067 = scmp.lt.s32.totalorder %s26, 1
      %s1068 = scalar_select %p1067, %s26, 1
      %p1069 = scmp.lt.s32.totalorder %s1066, 7
      %s1070 = scalar_select %p1069, %s1066, 7
      %s1071 = smul.addr %s1068, 8
      %s1072 = sadd.s32 %s1070, %s1071
      %s1073 = smul.addr %s1072, 4
      %s1074 = scalar_lea.vmem %s9, %s1073
      %s1075 = smul.u32 8, %s27
      %p1076 = scmp.lt.s32.totalorder %s26, 1
      %s1077 = scalar_select %p1076, %s26, 1
      %p1078 = scmp.lt.s32.totalorder %s1075, 7
      %s1079 = scalar_select %p1078, %s1075, 7
      %s1080 = smul.addr %s1077, 8
      %s1081 = sadd.s32 %s1079, %s1080
      %s1082 = smul.addr %s1081, 4
      %s1083 = scalar_lea.vmem %s10, %s1082
      // Predicated region
      $region53: #{decoder_layer_forward.6} parent=51 // pred_check
        %p1084 = pneg %p234
      $region54: #{decoder_layer_forward.6} parent=51 // pred_check_branch
        %1086 = sbr.rel (%p1084) target = $region56
      $region55: #{decoder_layer_forward.6} parent=51 // pred_region
        %s1087 = smul.u32 8, %s27
      $region56: #{decoder_layer_forward.6} parent=51 // pred_fallthru
        _
      // Predicated region
      $region57: #{decoder_layer_forward.6} parent=51 // pred_check
        %p1088 = pneg %p262
      $region58: #{decoder_layer_forward.6} parent=51 // pred_check_branch
        %1090 = sbr.rel (%p1088) target = $region60
      $region59: #{decoder_layer_forward.6} parent=51 // pred_region
        %s1091 = smul.u32 8, %s27
      $region60: #{decoder_layer_forward.6} parent=51 // pred_fallthru
        _
      // Predicated region
      $region61: #{decoder_layer_forward.6} parent=51 // pred_check
        %p1092 = pneg %p290
      $region62: #{decoder_layer_forward.6} parent=51 // pred_check_branch
        %1094 = sbr.rel (%p1092) target = $region64
      $region63: #{decoder_layer_forward.6} parent=51 // pred_region
        %s1095 = smul.u32 8, %s27
      $region64: #{decoder_layer_forward.6} parent=51 // pred_fallthru
        _
    $region52: #{decoder_layer_forward.6} parent=5 // pred_fallthru
      _
    %p1096 = scmp.le.s32.totalorder 2, %s17
    // Predicated region
    $region65: #{decoder_layer_forward.6} parent=5 // pred_check
      %p1097 = pneg %p1096
    $region66: #{decoder_layer_forward.6} parent=5 // pred_check_branch
      %1099 = sbr.rel (%p1097) target = $region68
    $region67: #{decoder_layer_forward.6} parent=5 // pred_region
      %s1100 = ssub.s32 %s17, 2
      // Predicated region
      $region69: #{decoder_layer_forward.6} parent=67 // pred_check
        %p1101 = pneg %p240
      $region70: #{decoder_layer_forward.6} parent=67 // pred_check_branch
        %1103 = sbr.rel (%p1101) target = $region72
      $region71: #{decoder_layer_forward.6} parent=67 // pred_region
        %s1104 = smul.u32 8, %s29
        %p1105 = scmp.lt.s32.totalorder %s28, 1
        %s1106 = scalar_select %p1105, %s28, 1
        %p1107 = scmp.lt.s32.totalorder %s1104, 7
        %s1108 = scalar_select %p1107, %s1104, 7
        %s1109 = smul.addr %s1106, 8
        %s1110 = sadd.s32 %s1108, %s1109
        %s1111 = smul.addr %s1110, 4
        %s1112 = scalar_lea.vmem %s8, %s1111
      $region72: #{decoder_layer_forward.6} parent=67 // pred_fallthru
        _
      // Predicated region
      $region73: #{decoder_layer_forward.6} parent=67 // pred_check
        %p1113 = pneg %p268
      $region74: #{decoder_layer_forward.6} parent=67 // pred_check_branch
        %1115 = sbr.rel (%p1113) target = $region76
      $region75: #{decoder_layer_forward.6} parent=67 // pred_region
        %s1116 = smul.u32 8, %s29
        %p1117 = scmp.lt.s32.totalorder %s28, 1
        %s1118 = scalar_select %p1117, %s28, 1
        %p1119 = scmp.lt.s32.totalorder %s1116, 7
        %s1120 = scalar_select %p1119, %s1116, 7
        %s1121 = smul.addr %s1118, 8
        %s1122 = sadd.s32 %s1120, %s1121
        %s1123 = smul.addr %s1122, 4
        %s1124 = scalar_lea.vmem %s9, %s1123
      $region76: #{decoder_layer_forward.6} parent=67 // pred_fallthru
        _
      // Predicated region
      $region77: #{decoder_layer_forward.6} parent=67 // pred_check
        %p1125 = pneg %p296
      $region78: #{decoder_layer_forward.6} parent=67 // pred_check_branch
        %1127 = sbr.rel (%p1125) target = $region80
      $region79: #{decoder_layer_forward.6} parent=67 // pred_region
        %s1128 = smul.u32 8, %s29
        %p1129 = scmp.lt.s32.totalorder %s28, 1
        %s1130 = scalar_select %p1129, %s28, 1
        %p1131 = scmp.lt.s32.totalorder %s1128, 7
        %s1132 = scalar_select %p1131, %s1128, 7
        %s1133 = smul.addr %s1130, 8
        %s1134 = sadd.s32 %s1132, %s1133
        %s1135 = smul.addr %s1134, 4
        %s1136 = scalar_lea.vmem %s10, %s1135
      $region80: #{decoder_layer_forward.6} parent=67 // pred_fallthru
        _
    $region68: #{decoder_layer_forward.6} parent=5 // pred_fallthru
      _
  $region6: #{decoder_layer_forward.6} parent=0 // loop_footer
    %s21 = sadd.s32 1, %s17
  $region7: #{decoder_layer_forward.6} parent=0 // loop_footer_branch
    %16 = sbr.rel target = $region3
  $region8: #{decoder_layer_forward.6} parent=0 // loop_exit
    _

// kernel: decoder_layer_forward.7
$region0: #{decoder_layer_forward.7}
  #allocation0 [shape = 'u32[]', space=smem, size = 0x4, offset = 0x4, fixed_abs, tag = 'smem constant byte address 0x4 - core index']
  #allocation1 [shape = 'u32[144,128]{1,0:T(1,128)}', space=vmem, size = 0x12000, scoped, tag = 'internal scratch']
  %s0 = inlined_call_operand.vmem [shape: bf16[2,4,64,32], index: 0, kind: input, shape index: {}]
  %s1 = inlined_call_operand.vmem [shape: bf16[2,4,64,32], index: 1, kind: input, shape index: {}]
  %s2 = inlined_call_operand.vmem [shape: bf16[2,4,64,32], index: 2, kind: input, shape index: {}]
  %s3 = inlined_call_operand.vmem [shape: f32[2,64,128], index: 3, kind: input, shape index: {}]
  %s4 = inlined_call_operand.vmem [shape: bf16[4,32,128], index: 4, kind: input, shape index: {}]
  %s5 = inlined_call_operand.vmem [shape: f32[1,128], index: 5, kind: input, shape index: {}]
  %s6 = inlined_call_operand.vmem [shape: f32[1,128], index: 6, kind: input, shape index: {}]
  %s7 = inlined_call_operand.vmem [shape: f32[1,128], index: 7, kind: input, shape index: {}]
  %s8 = inlined_call_operand.vmem [shape: f32[2,64,128], index: 8, kind: output, shape index: {}]
  %s9 = sld [smem:[#allocation0]]
  $region65: #{decoder_layer_forward.7} parent=0
    _
  %s11 = ssub.s32 1, %s9
  %s12 = scalar_select 0, %s11, %s9
  loop: start=0, step=1, limit=4
  $region2: #{decoder_layer_forward.7} parent=0 // loop_pre_header
    _
  $region3: #{decoder_layer_forward.7} parent=0 // loop_header
    %s14 = sphi 0, %s18
    %p15 = scmp.ge.s32.totalorder %s14, 4
    %s21 = sphi 0, %s33
    %s22 = sphi 0, %s29
    %s23 = sphi 0, %s21
    %s24 = sphi 0, %s22
    %s25 = sphi 0, %s23
    %s26 = sphi 0, %s24
    %s38 = sphi 0, %s40
    %s41 = sphi 0, %s38
    %s42 = sphi 0, %s41
    %s58 = sphi 0, %s42
    %s64 = sphi 0, %s66
    %s67 = sphi 0, %s64
    %s68 = sphi 0, %s67
    %s84 = sphi 0, %s68
    %s90 = sphi 0, %s92
    %s93 = sphi 0, %s90
    %s94 = sphi 0, %s93
    %s110 = sphi 0, %s94
    %s118 = sphi 0, %s120
    %s121 = sphi 0, %s118
    %s122 = sphi 0, %s121
    %s138 = sphi 0, %s122
    %s142 = sphi 0, %s142
    %s144 = sphi 0, %s142
    %s145 = sphi 0, %s144
    %s159 = sphi 0, %s145
    %s163 = sphi 0, %s163
    %s165 = sphi 0, %s163
    %s166 = sphi 0, %s165
    %s180 = sphi 0, %s166
    %s184 = sphi 0, %s184
    %s186 = sphi 0, %s184
    %s187 = sphi 0, %s186
    %s201 = sphi 0, %s187
    %s205 = sphi 0, %s205
    %s207 = sphi 0, %s205
    %s208 = sphi 0, %s207
    %s222 = sphi 0, %s208
    %s230 = sphi 0, %s232
    %s233 = sphi 0, %s230
    %s234 = sphi 0, %s233
    %s250 = sphi 0, %s234
  $region4: #{decoder_layer_forward.7} parent=0 // loop_header_branch
    %17 = sbr.rel (%p15) target = $region8
  $region5: #{decoder_layer_forward.7} parent=0 // loop_body
    %s19 = ssub.s32 %s14, 1
    %s20 = ssub.s32 %s14, 2
    %s27 = sadd.s32 1, %s22
    %p28 = scmp.ge.s32.totalorder %s27, 1
    %s29 = scalar_select %p28, 0, %s27
    %s30 = sadd.s32 1, %s21
    %s31 = scalar_select %p28, %s30, %s21
    %p32 = scmp.ge.s32.totalorder %s31, 2
    %s33 = scalar_select %p32, 0, %s31
    %s34 = ssub.s32 %s21, %s33
    %s35 = ssub.s32 %s22, %s29
    %s36 = sor.u32 %s34, %s35
    %p37 = scmp.eq.s32.totalorder %s36, 0
    %s39 = sadd.s32 %s38, 1
    %s40 = scalar_select %p37, %s38, %s39
    %p43 = pneg %p37
    %p44 = scmp.eq.s32.totalorder %s14, 1
    %p45 = por %p43, %p44
    %p46 = scmp.ne.s32.totalorder %s38, %s41
    %p47 = scmp.eq.s32.totalorder %s14, 0
    %p48 = por %p46, %p47
    %p49 = scmp.ne.s32.totalorder %s38, %s41
    %p50 = scmp.eq.s32.totalorder %s19, 1
    %p51 = por %p49, %p50
    %p52 = scmp.ne.s32.totalorder %s41, %s42
    %p53 = scmp.eq.s32.totalorder %s19, 0
    %p54 = por %p52, %p53
    %p55 = scmp.ne.s32.totalorder %s41, %s42
    %p56 = scmp.eq.s32.totalorder %s20, 1
    %p57 = por %p55, %p56
    %p59 = scmp.ne.s32.totalorder %s42, %s58
    %p60 = scmp.eq.s32.totalorder %s20, 0
    %p61 = por %p59, %p60
    %s62 = ssub.s32 %s21, %s33
    %p63 = scmp.eq.s32.totalorder %s62, 0
    %s65 = sadd.s32 %s64, 1
    %s66 = scalar_select %p63, %s64, %s65
    %p69 = pneg %p63
    %p70 = scmp.eq.s32.totalorder %s14, 1
    %p71 = por %p69, %p70
    %p72 = scmp.ne.s32.totalorder %s64, %s67
    %p73 = scmp.eq.s32.totalorder %s14, 0
    %p74 = por %p72, %p73
    %p75 = scmp.ne.s32.totalorder %s64, %s67
    %p76 = scmp.eq.s32.totalorder %s19, 1
    %p77 = por %p75, %p76
    %p78 = scmp.ne.s32.totalorder %s67, %s68
    %p79 = scmp.eq.s32.totalorder %s19, 0
    %p80 = por %p78, %p79
    %p81 = scmp.ne.s32.totalorder %s67, %s68
    %p82 = scmp.eq.s32.totalorder %s20, 1
    %p83 = por %p81, %p82
    %p85 = scmp.ne.s32.totalorder %s68, %s84
    %p86 = scmp.eq.s32.totalorder %s20, 0
    %p87 = por %p85, %p86
    %s88 = ssub.s32 %s21, %s33
    %p89 = scmp.eq.s32.totalorder %s88, 0
    %s91 = sadd.s32 %s90, 1
    %s92 = scalar_select %p89, %s90, %s91
    %p95 = pneg %p89
    %p96 = scmp.eq.s32.totalorder %s14, 1
    %p97 = por %p95, %p96
    %p98 = scmp.ne.s32.totalorder %s90, %s93
    %p99 = scmp.eq.s32.totalorder %s14, 0
    %p100 = por %p98, %p99
    %p101 = scmp.ne.s32.totalorder %s90, %s93
    %p102 = scmp.eq.s32.totalorder %s19, 1
    %p103 = por %p101, %p102
    %p104 = scmp.ne.s32.totalorder %s93, %s94
    %p105 = scmp.eq.s32.totalorder %s19, 0
    %p106 = por %p104, %p105
    %p107 = scmp.ne.s32.totalorder %s93, %s94
    %p108 = scmp.eq.s32.totalorder %s20, 1
    %p109 = por %p107, %p108
    %p111 = scmp.ne.s32.totalorder %s94, %s110
    %p112 = scmp.eq.s32.totalorder %s20, 0
    %p113 = por %p111, %p112
    %s114 = ssub.s32 %s21, %s33
    %s115 = ssub.s32 %s22, %s29
    %s116 = sor.u32 %s114, %s115
    %p117 = scmp.eq.s32.totalorder %s116, 0
    %s119 = sadd.s32 %s118, 1
    %s120 = scalar_select %p117, %s118, %s119
    %p123 = pneg %p117
    %p124 = scmp.eq.s32.totalorder %s14, 1
    %p125 = por %p123, %p124
    %p126 = scmp.ne.s32.totalorder %s118, %s121
    %p127 = scmp.eq.s32.totalorder %s14, 0
    %p128 = por %p126, %p127
    %p129 = scmp.ne.s32.totalorder %s118, %s121
    %p130 = scmp.eq.s32.totalorder %s19, 1
    %p131 = por %p129, %p130
    %p132 = scmp.ne.s32.totalorder %s121, %s122
    %p133 = scmp.eq.s32.totalorder %s19, 0
    %p134 = por %p132, %p133
    %p135 = scmp.ne.s32.totalorder %s121, %s122
    %p136 = scmp.eq.s32.totalorder %s20, 1
    %p137 = por %p135, %p136
    %p139 = scmp.ne.s32.totalorder %s122, %s138
    %p140 = scmp.eq.s32.totalorder %s20, 0
    %p141 = por %p139, %p140
    %s143 = sadd.s32 %s142, 1
    %p146 = scmp.eq.s32.totalorder %s14, 1
    %p147 = scmp.ne.s32.totalorder %s142, %s144
    %p148 = scmp.eq.s32.totalorder %s14, 0
    %p149 = por %p147, %p148
    %p150 = scmp.ne.s32.totalorder %s142, %s144
    %p151 = scmp.eq.s32.totalorder %s19, 1
    %p152 = por %p150, %p151
    %p153 = scmp.ne.s32.totalorder %s144, %s145
    %p154 = scmp.eq.s32.totalorder %s19, 0
    %p155 = por %p153, %p154
    %p156 = scmp.ne.s32.totalorder %s144, %s145
    %p157 = scmp.eq.s32.totalorder %s20, 1
    %p158 = por %p156, %p157
    %p160 = scmp.ne.s32.totalorder %s145, %s159
    %p161 = scmp.eq.s32.totalorder %s20, 0
    %p162 = por %p160, %p161
    %s164 = sadd.s32 %s163, 1
    %p167 = scmp.eq.s32.totalorder %s14, 1
    %p168 = scmp.ne.s32.totalorder %s163, %s165
    %p169 = scmp.eq.s32.totalorder %s14, 0
    %p170 = por %p168, %p169
    %p171 = scmp.ne.s32.totalorder %s163, %s165
    %p172 = scmp.eq.s32.totalorder %s19, 1
    %p173 = por %p171, %p172
    %p174 = scmp.ne.s32.totalorder %s165, %s166
    %p175 = scmp.eq.s32.totalorder %s19, 0
    %p176 = por %p174, %p175
    %p177 = scmp.ne.s32.totalorder %s165, %s166
    %p178 = scmp.eq.s32.totalorder %s20, 1
    %p179 = por %p177, %p178
    %p181 = scmp.ne.s32.totalorder %s166, %s180
    %p182 = scmp.eq.s32.totalorder %s20, 0
    %p183 = por %p181, %p182
    %s185 = sadd.s32 %s184, 1
    %p188 = scmp.eq.s32.totalorder %s14, 1
    %p189 = scmp.ne.s32.totalorder %s184, %s186
    %p190 = scmp.eq.s32.totalorder %s14, 0
    %p191 = por %p189, %p190
    %p192 = scmp.ne.s32.totalorder %s184, %s186
    %p193 = scmp.eq.s32.totalorder %s19, 1
    %p194 = por %p192, %p193
    %p195 = scmp.ne.s32.totalorder %s186, %s187
    %p196 = scmp.eq.s32.totalorder %s19, 0
    %p197 = por %p195, %p196
    %p198 = scmp.ne.s32.totalorder %s186, %s187
    %p199 = scmp.eq.s32.totalorder %s20, 1
    %p200 = por %p198, %p199
    %p202 = scmp.ne.s32.totalorder %s187, %s201
    %p203 = scmp.eq.s32.totalorder %s20, 0
    %p204 = por %p202, %p203
    %s206 = sadd.s32 %s205, 1
    %p209 = scmp.eq.s32.totalorder %s14, 1
    %p210 = scmp.ne.s32.totalorder %s205, %s207
    %p211 = scmp.eq.s32.totalorder %s14, 0
    %p212 = por %p210, %p211
    %p213 = scmp.ne.s32.totalorder %s205, %s207
    %p214 = scmp.eq.s32.totalorder %s19, 1
    %p215 = por %p213, %p214
    %p216 = scmp.ne.s32.totalorder %s207, %s208
    %p217 = scmp.eq.s32.totalorder %s19, 0
    %p218 = por %p216, %p217
    %p219 = scmp.ne.s32.totalorder %s207, %s208
    %p220 = scmp.eq.s32.totalorder %s20, 1
    %p221 = por %p219, %p220
    %p223 = scmp.ne.s32.totalorder %s208, %s222
    %p224 = scmp.eq.s32.totalorder %s20, 0
    %p225 = por %p223, %p224
    %s226 = ssub.s32 %s21, %s33
    %s227 = ssub.s32 %s22, %s29
    %s228 = sor.u32 %s226, %s227
    %p229 = scmp.eq.s32.totalorder %s228, 0
    %s231 = sadd.s32 %s230, 1
    %s232 = scalar_select %p229, %s230, %s231
    %p235 = pneg %p229
    %p236 = scmp.eq.s32.totalorder %s14, 1
    %p237 = por %p235, %p236
    %p238 = scmp.ne.s32.totalorder %s230, %s233
    %p239 = scmp.eq.s32.totalorder %s14, 0
    %p240 = por %p238, %p239
    %p241 = scmp.ne.s32.totalorder %s230, %s233
    %p242 = scmp.eq.s32.totalorder %s19, 1
    %p243 = por %p241, %p242
    %p244 = scmp.ne.s32.totalorder %s233, %s234
    %p245 = scmp.eq.s32.totalorder %s19, 0
    %p246 = por %p244, %p245
    %p247 = scmp.ne.s32.totalorder %s233, %s234
    %p248 = scmp.eq.s32.totalorder %s20, 1
    %p249 = por %p247, %p248
    %p251 = scmp.ne.s32.totalorder %s234, %s250
    %p252 = scmp.eq.s32.totalorder %s20, 0
    %p253 = por %p251, %p252
    %p254 = scmp.le.s32.totalorder 1, %s14
    %p255 = scmp.lt.s32.totalorder %s14, 3
    %p256 = pnand %p254, %p255
    %p257 = pneg %p256
    // Predicated region
    $region9: #{decoder_layer_forward.7} parent=5 // pred_check
      _
    $region10: #{decoder_layer_forward.7} parent=5 // pred_check_branch
      %259 = sbr.rel (%p256) target = $region12
    $region11: #{decoder_layer_forward.7} parent=5 // pred_region
      %s260 = ssub.s32 %s14, 1
      // Predicated region
      $region13: #{decoder_layer_forward.7} parent=11 // pred_check
        %p261 = pneg %p155
      $region14: #{decoder_layer_forward.7} parent=11 // pred_check_branch
        %263 = sbr.rel (%p261) target = $region16
      $region15: #{decoder_layer_forward.7} parent=11 // pred_region
        _
      $region16: #{decoder_layer_forward.7} parent=11 // pred_fallthru
        _
      // Predicated region
      $region17: #{decoder_layer_forward.7} parent=11 // pred_check
        %p264 = pneg %p176
      $region18: #{decoder_layer_forward.7} parent=11 // pred_check_branch
        %266 = sbr.rel (%p264) target = $region20
      $region19: #{decoder_layer_forward.7} parent=11 // pred_region
        _
      $region20: #{decoder_layer_forward.7} parent=11 // pred_fallthru
        _
      // Predicated region
      $region21: #{decoder_layer_forward.7} parent=11 // pred_check
        %p267 = pneg %p197
      $region22: #{decoder_layer_forward.7} parent=11 // pred_check_branch
        %269 = sbr.rel (%p267) target = $region24
      $region23: #{decoder_layer_forward.7} parent=11 // pred_region
        _
      $region24: #{decoder_layer_forward.7} parent=11 // pred_fallthru
        _
      // Predicated region
      $region25: #{decoder_layer_forward.7} parent=11 // pred_check
        %p270 = pneg %p218
      $region26: #{decoder_layer_forward.7} parent=11 // pred_check_branch
        %272 = sbr.rel (%p270) target = $region28
      $region27: #{decoder_layer_forward.7} parent=11 // pred_region
        _
      $region28: #{decoder_layer_forward.7} parent=11 // pred_fallthru
        _
    $region12: #{decoder_layer_forward.7} parent=5 // pred_fallthru
      _
    %p273 = scmp.lt.s32.totalorder %s14, 2
    // Predicated region
    $region29: #{decoder_layer_forward.7} parent=5 // pred_check
      %p274 = pneg %p273
    $region30: #{decoder_layer_forward.7} parent=5 // pred_check_branch
      %276 = sbr.rel (%p274) target = $region32
    $region31: #{decoder_layer_forward.7} parent=5 // pred_region
      // Predicated region
      $region33: #{decoder_layer_forward.7} parent=31 // pred_check
        %p277 = pneg %p48
      $region34: #{decoder_layer_forward.7} parent=31 // pred_check_branch
        %279 = sbr.rel (%p277) target = $region36
      $region35: #{decoder_layer_forward.7} parent=31 // pred_region
        %s280 = smul.u32 8, %s22
        %p281 = scmp.lt.s32.totalorder %s21, 1
        %s282 = scalar_select %p281, %s21, 1
        %p283 = scmp.lt.s32.totalorder %s280, 7
        %s284 = scalar_select %p283, %s280, 7
        %s285 = smul.addr %s282, 32
        %s286 = sadd.s32 %s284, %s285
        %s287 = smul.addr %s286, 4
        %s288 = scalar_lea.vmem %s0, %s287
        %s289 = smul.u32 8, %s22
      $region36: #{decoder_layer_forward.7} parent=31 // pred_fallthru
        _
      // Predicated region
      $region37: #{decoder_layer_forward.7} parent=31 // pred_check
        %p290 = pneg %p74
      $region38: #{decoder_layer_forward.7} parent=31 // pred_check_branch
        %292 = sbr.rel (%p290) target = $region40
      $region39: #{decoder_layer_forward.7} parent=31 // pred_region
        %p293 = scmp.lt.s32.totalorder %s21, 1
        %s294 = scalar_select %p293, %s21, 1
        %s295 = smul.addr %s294, 32
        %s296 = smul.addr %s295, 4
        %s297 = scalar_lea.vmem %s1, %s296
      $region40: #{decoder_layer_forward.7} parent=31 // pred_fallthru
        _
      // Predicated region
      $region41: #{decoder_layer_forward.7} parent=31 // pred_check
        %p298 = pneg %p100
      $region42: #{decoder_layer_forward.7} parent=31 // pred_check_branch
        %300 = sbr.rel (%p298) target = $region44
      $region43: #{decoder_layer_forward.7} parent=31 // pred_region
        %p301 = scmp.lt.s32.totalorder %s21, 1
        %s302 = scalar_select %p301, %s21, 1
        %s303 = smul.addr %s302, 32
        %s304 = smul.addr %s303, 4
        %s305 = scalar_lea.vmem %s2, %s304
      $region44: #{decoder_layer_forward.7} parent=31 // pred_fallthru
        _
      // Predicated region
      $region45: #{decoder_layer_forward.7} parent=31 // pred_check
        %p306 = pneg %p128
      $region46: #{decoder_layer_forward.7} parent=31 // pred_check_branch
        %308 = sbr.rel (%p306) target = $region48
      $region47: #{decoder_layer_forward.7} parent=31 // pred_region
        %s309 = smul.u32 8, %s22
        %p310 = scmp.lt.s32.totalorder %s21, 1
        %s311 = scalar_select %p310, %s21, 1
        %p312 = scmp.lt.s32.totalorder %s309, 7
        %s313 = scalar_select %p312, %s309, 7
        %s314 = smul.addr %s311, 8
        %s315 = sadd.s32 %s313, %s314
        %s316 = smul.addr %s315, 8
        %s317 = scalar_lea.vmem %s3, %s316
        %s318 = smul.u32 8, %s22
      $region48: #{decoder_layer_forward.7} parent=31 // pred_fallthru
        _
    $region32: #{decoder_layer_forward.7} parent=5 // pred_fallthru
      _
    %p319 = scmp.le.s32.totalorder 1, %s14
    %p320 = scmp.lt.s32.totalorder %s14, 3
    %p321 = pnand %p319, %p320
    %p322 = pneg %p321
    // Predicated region
    $region49: #{decoder_layer_forward.7} parent=5 // pred_check
      _
    $region50: #{decoder_layer_forward.7} parent=5 // pred_check_branch
      %324 = sbr.rel (%p321) target = $region52
    $region51: #{decoder_layer_forward.7} parent=5 // pred_region
      %s325 = ssub.s32 %s14, 1
      %s326 = smul.u32 8, %s24
      %p327 = scmp.lt.s32.totalorder %s23, 1
      %s328 = scalar_select %p327, %s23, 1
      %p329 = scmp.lt.s32.totalorder %s326, 7
      %s330 = scalar_select %p329, %s326, 7
      %s331 = smul.addr %s328, 32
      %s332 = sadd.s32 %s330, %s331
      %s333 = smul.addr %s332, 4
      %s334 = scalar_lea.vmem %s0, %s333
      %p335 = pneg %p54
      %p336 = pneg %p51
      %p337 = scmp.lt.s32.totalorder %s23, 1
      %s338 = scalar_select %p337, %s23, 1
      %s339 = smul.addr %s338, 32
      %s340 = smul.addr %s339, 4
      %s341 = scalar_lea.vmem %s1, %s340
      %p342 = pneg %p80
      %p343 = pneg %p77
      %p344 = scmp.lt.s32.totalorder %s23, 1
      %s345 = scalar_select %p344, %s23, 1
      %s346 = smul.addr %s345, 32
      %s347 = smul.addr %s346, 4
      %s348 = scalar_lea.vmem %s2, %s347
      %p349 = pneg %p106
      %p350 = pneg %p103
      %s351 = smul.u32 8, %s24
      %p352 = scmp.lt.s32.totalorder %s23, 1
      %s353 = scalar_select %p352, %s23, 1
      %p354 = scmp.lt.s32.totalorder %s351, 7
      %s355 = scalar_select %p354, %s351, 7
      %s356 = smul.addr %s353, 8
      %s357 = sadd.s32 %s355, %s356
      %s358 = smul.addr %s357, 8
      %s359 = scalar_lea.vmem %s3, %s358
      %p360 = pneg %p134
      %p361 = pneg %p131
      %p362 = pneg %p155
      %p363 = pneg %p152
      %p364 = pneg %p176
      %p365 = pneg %p173
      %p366 = pneg %p197
      %p367 = pneg %p194
      %p368 = pneg %p218
      %p369 = pneg %p215
      %p370 = pneg %p246
      %p371 = pneg %p243
      %s372 = smul.u32 8, %s24
      %p373 = scmp.lt.s32.totalorder %s23, 1
      %s374 = scalar_select %p373, %s23, 1
      %p375 = scmp.lt.s32.totalorder %s372, 7
      %s376 = scalar_select %p375, %s372, 7
      %s377 = smul.addr %s374, 8
      %s378 = sadd.s32 %s376, %s377
      %s379 = smul.addr %s378, 8
      %s380 = scalar_lea.vmem %s8, %s379
      %s381 = smul.u32 8, %s24
      %p382 = scmp.lt.s32.totalorder %s23, 1
      %s383 = scalar_select %p382, %s23, 1
      %p384 = scmp.lt.s32.totalorder %s381, 7
      %s385 = scalar_select %p384, %s381, 7
      %s386 = smul.addr %s383, 32
      %s387 = sadd.s32 %s385, %s386
      %s388 = smul.addr %s387, 4
      %s389 = scalar_lea.vmem %s0, %s388
      %s390 = smul.u32 8, %s24
      %p391 = scmp.lt.s32.totalorder %s23, 1
      %s392 = scalar_select %p391, %s23, 1
      %s393 = smul.addr %s392, 32
      %s394 = smul.addr %s393, 4
      %s395 = scalar_lea.vmem %s1, %s394
      %p396 = scmp.lt.s32.totalorder %s23, 1
      %s397 = scalar_select %p396, %s23, 1
      %s398 = smul.addr %s397, 32
      %s399 = smul.addr %s398, 4
      %s400 = scalar_lea.vmem %s2, %s399
      %s401 = smul.u32 8, %s24
      %p402 = scmp.lt.s32.totalorder %s23, 1
      %s403 = scalar_select %p402, %s23, 1
      %p404 = scmp.lt.s32.totalorder %s401, 7
      %s405 = scalar_select %p404, %s401, 7
      %s406 = smul.addr %s403, 8
      %s407 = sadd.s32 %s405, %s406
      %s408 = smul.addr %s407, 8
      %s409 = scalar_lea.vmem %s3, %s408
      %s410 = smul.u32 8, %s24
      %s411 = smul.u32 8, %s24
      %p412 = scmp.lt.s32.totalorder %s23, 1
      %s413 = scalar_select %p412, %s23, 1
      %p414 = scmp.lt.s32.totalorder %s411, 7
      %s415 = scalar_select %p414, %s411, 7
      %s416 = smul.addr %s413, 8
      %s417 = sadd.s32 %s415, %s416
      %s418 = smul.addr %s417, 8
      %s419 = scalar_lea.vmem %s8, %s418
      %s420 = smul.u32 8, %s24
      %v422 = vld [vmem:[%s389] sm:$0xf]
      %v423 = vld [vmem:[%s389 + $0x4] sm:$0xf]
      %v424 = vld [vmem:[%s389 + $0x8] sm:$0xf]
      %v425 = vld [vmem:[%s389 + $0xc] sm:$0xf]
      %v426 = vld [vmem:[%s389 + $0x10] sm:$0xf]
      %v427 = vld [vmem:[%s389 + $0x14] sm:$0xf]
      %v428 = vld [vmem:[%s389 + $0x18] sm:$0xf]
      %v429 = vld [vmem:[%s389 + $0x1c] sm:$0xf]
      %v430 = vld [vmem:[%s395] sm:$0xf]
      %v431 = vld [vmem:[%s395 + $0x4] sm:$0xf]
      %v432 = vld [vmem:[%s395 + $0x8] sm:$0xf]
      %v433 = vld [vmem:[%s395 + $0xc] sm:$0xf]
      %v434 = vld [vmem:[%s395 + $0x10] sm:$0xf]
      %v435 = vld [vmem:[%s395 + $0x14] sm:$0xf]
      %v436 = vld [vmem:[%s395 + $0x18] sm:$0xf]
      %v437 = vld [vmem:[%s395 + $0x1c] sm:$0xf]
      %v438 = vld [vmem:[%s400] sm:$0xf]
      %v439 = vld [vmem:[%s400 + $0x4] sm:$0xf]
      %v440 = vld [vmem:[%s400 + $0x8] sm:$0xf]
      %v441 = vld [vmem:[%s400 + $0xc] sm:$0xf]
      %v442 = vld [vmem:[%s400 + $0x10] sm:$0xf]
      %v443 = vld [vmem:[%s400 + $0x14] sm:$0xf]
      %v444 = vld [vmem:[%s400 + $0x18] sm:$0xf]
      %v445 = vld [vmem:[%s400 + $0x1c] sm:$0xf]
      %v454 = vunpack.c.l.b16 %v422
      %v455 = vunpack.c.l.b16 %v423
      %v456 = vunpack.c.l.b16 %v424
      %v457 = vunpack.c.l.b16 %v425
      %v458 = vunpack.c.l.b16 %v426
      %v459 = vunpack.c.l.b16 %v427
      %v460 = vunpack.c.l.b16 %v428
      %v461 = vunpack.c.l.b16 %v429
      %v462 = vpack.c.b16 %v455, %v454
      %v463 = vpack.c.b16 %v457, %v456
      %v464 = vpack.c.b16 %v459, %v458
      %v465 = vpack.c.b16 %v461, %v460
      %v474 = vunpack.c.l.b16 %v430
      %v475 = vunpack.c.l.b16 %v431
      %v476 = vunpack.c.l.b16 %v432
      %v477 = vunpack.c.l.b16 %v433
      %v478 = vunpack.c.l.b16 %v434
      %v479 = vunpack.c.l.b16 %v435
      %v480 = vunpack.c.l.b16 %v436
      %v481 = vunpack.c.l.b16 %v437
      %v482 = vpack.c.b16 %v475, %v474
      %v483 = vpack.c.b16 %v477, %v476
      %v484 = vpack.c.b16 %v479, %v478
      %v485 = vpack.c.b16 %v481, %v480
      %vm486 = vcmask 261120
      %v488 = vsel %vm486, %v462, 0
      %v491 = vsel %vm486, %v463, 0
      %v494 = vsel %vm486, %v464, 0
      %v497 = vsel %vm486, %v465, 0
      %v500 = vsel %vm486, %v482, 0
      %v503 = vsel %vm486, %v483, 0
      %v506 = vsel %vm486, %v484, 0
      %v509 = vsel %vm486, %v485, 0
      %511 = vmatprep.subr.bf16.mxu0 0
      %512 = vmatpush1.bf16.xpose.msra.mxu0 %v500
      %513 = vmatprep.subr.bf16.mxu0 0
      %514 = vmatpush1.bf16.xpose.msra.mxu0 %v503
      %515 = vmatprep.subr.bf16.mxu0 0
      %516 = vmatpush1.bf16.xpose.msra.mxu0 %v506
      %517 = vmatprep.subr.bf16.mxu0 0
      %518 = vmatpush1.bf16.xpose.msra.mxu0 %v509
      %519 = vmatprep.subr.bf16.mxu0 0
      %520 = vmatpush1.bf16.xpose.msra.mxu0 0
      %521 = vmatprep.subr.bf16.mxu0 0
      %522 = vmatpush1.bf16.xpose.msra.mxu0 0
      %523 = vmatprep.subr.bf16.mxu0 0
      %524 = vmatpush1.bf16.xpose.msra.mxu0 0
      %525 = vmatprep.subr.bf16.mxu0 0
      %526 = vmatpush1.bf16.xpose.msra.mxu0 0
      %527 = vmatprep.subr.bf16.mxu0 0
      %528 = vmatpush1.bf16.xpose.msra.mxu0 0
      %529 = vmatprep.subr.bf16.mxu0 0
      %530 = vmatpush1.bf16.xpose.msra.mxu0 0
      %531 = vmatprep.subr.bf16.mxu0 0
      %532 = vmatpush1.bf16.xpose.msra.mxu0 0
      %533 = vmatprep.subr.bf16.mxu0 0
      %534 = vmatpush1.bf16.xpose.msra.mxu0 0
      %535 = vmatprep.subr.bf16.mxu0 0
      %536 = vmatpush1.bf16.xpose.msra.mxu0 0
      %537 = vmatprep.subr.bf16.mxu0 0
      %538 = vmatpush1.bf16.xpose.msra.mxu0 0
      %539 = vmatprep.subr.bf16.mxu0 0
      %540 = vmatpush1.bf16.xpose.msra.mxu0 0
      %541 = vmatprep.subr.bf16.mxu0 0
      %542 = vmatpush1.bf16.xpose.msra.mxu0 0
      %543 = vmatprep.mubr.bf16.mxu0 0
      %544 = vmatmul.mubr.bf16.gmra.mrb[0].mxu0 %v488
      %v545 = vpop.f32.mrb[0].mxu0
      %v546 = vadd.f32 0.0, %v545
      %v547 = vpop.f32.mrb[0].mxu0
      %v548 = vpop.f32.mrb[0].mxu0
      %v549 = vadd.f32 0.0, %v548
      %v550 = vpop.f32.mrb[0].mxu0
      %551 = vmatprep.mubr.bf16.mxu0 0
      %552 = vmatmul.mubr.bf16.gmra.mrb[0].mxu0 %v491
      %v553 = vpop.f32.mrb[0].mxu0
      %v554 = vadd.f32 0.0, %v553
      %v555 = vpop.f32.mrb[0].mxu0
      %v556 = vpop.f32.mrb[0].mxu0
      %v557 = vadd.f32 0.0, %v556
      %v558 = vpop.f32.mrb[0].mxu0
      %559 = vmatprep.mubr.bf16.mxu0 0
      %560 = vmatmul.mubr.bf16.gmra.mrb[0].mxu0 %v494
      %v561 = vpop.f32.mrb[0].mxu0
      %v562 = vadd.f32 0.0, %v561
      %v563 = vpop.f32.mrb[0].mxu0
      %v564 = vpop.f32.mrb[0].mxu0
      %v565 = vadd.f32 0.0, %v564
      %v566 = vpop.f32.mrb[0].mxu0
      %567 = vmatprep.mubr.bf16.mxu0 0
      %568 = vmatmul.mubr.bf16.gmra.mrb[0].mxu0 %v497
      %v569 = vpop.f32.mrb[0].mxu0
      %v570 = vadd.f32 0.0, %v569
      %v571 = vpop.f32.mrb[0].mxu0
      %v572 = vpop.f32.mrb[0].mxu0
      %v573 = vadd.f32 0.0, %v572
      %v574 = vpop.f32.mrb[0].mxu0
      %575 = vdwg.mxu0
      %vm576 = vcmask 523264
      %v577 = vsel %vm576, %v546, -inf
      %578 = vmax.xlane.f32.xlu0 %v577
      %v579 = vpop.xlane.xlu0 %578
      %v580 = vsel %vm576, %v549, -inf
      %581 = vmax.xlane.f32.xlu0 %v580
      %v582 = vpop.xlane.xlu0 %581
      %v583 = vsel %vm576, %v554, -inf
      %584 = vmax.xlane.f32.xlu0 %v583
      %v585 = vpop.xlane.xlu0 %584
      %v586 = vsel %vm576, %v557, -inf
      %587 = vmax.xlane.f32.xlu0 %v586
      %v588 = vpop.xlane.xlu0 %587
      %v589 = vsel %vm576, %v562, -inf
      %590 = vmax.xlane.f32.xlu0 %v589
      %v591 = vpop.xlane.xlu0 %590
      %v592 = vsel %vm576, %v565, -inf
      %593 = vmax.xlane.f32.xlu0 %v592
      %v594 = vpop.xlane.xlu0 %593
      %v595 = vsel %vm576, %v570, -inf
      %596 = vmax.xlane.f32.xlu0 %v595
      %v597 = vpop.xlane.xlu0 %596
      %v598 = vsel %vm576, %v573, -inf
      %599 = vmax.xlane.f32.xlu0 %v598
      %v600 = vpop.xlane.xlu0 %599
      %v601 = vsub.f32 %v546, %v579
      %v602 = vsub.f32 %v549, %v582
      %v603 = vsub.f32 %v554, %v585
      %v604 = vsub.f32 %v557, %v588
      %v605 = vsub.f32 %v562, %v591
      %v606 = vsub.f32 %v565, %v594
      %v607 = vsub.f32 %v570, %v597
      %v608 = vsub.f32 %v573, %v600
      %v609 = vmul.f32 %v601, 1.442695
      %v610 = vpow.pop %v609
      %v611 = vmul.f32 %v602, 1.442695
      %v612 = vpow.pop %v611
      %v613 = vmul.f32 %v603, 1.442695
      %v614 = vpow.pop %v613
      %v615 = vmul.f32 %v604, 1.442695
      %v616 = vpow.pop %v615
      %v617 = vmul.f32 %v605, 1.442695
      %v618 = vpow.pop %v617
      %v619 = vmul.f32 %v606, 1.442695
      %v620 = vpow.pop %v619
      %v621 = vmul.f32 %v607, 1.442695
      %v622 = vpow.pop %v621
      %v623 = vmul.f32 %v608, 1.442695
      %v624 = vpow.pop %v623
      %v625 = vsel %vm576, %v610, 0.0
      %626 = vadd.xlane.f32.xlu0 %v625
      %v627 = vpop.xlane.xlu0 %626
      %v628 = vsel %vm576, %v612, 0.0
      %629 = vadd.xlane.f32.xlu0 %v628
      %v630 = vpop.xlane.xlu0 %629
      %v631 = vsel %vm576, %v614, 0.0
      %632 = vadd.xlane.f32.xlu0 %v631
      %v633 = vpop.xlane.xlu0 %632
      %v634 = vsel %vm576, %v616, 0.0
      %635 = vadd.xlane.f32.xlu0 %v634
      %v636 = vpop.xlane.xlu0 %635
      %v637 = vsel %vm576, %v618, 0.0
      %638 = vadd.xlane.f32.xlu0 %v637
      %v639 = vpop.xlane.xlu0 %638
      %v640 = vsel %vm576, %v620, 0.0
      %641 = vadd.xlane.f32.xlu0 %v640
      %v642 = vpop.xlane.xlu0 %641
      %v643 = vsel %vm576, %v622, 0.0
      %644 = vadd.xlane.f32.xlu0 %v643
      %v645 = vpop.xlane.xlu0 %644
      %v646 = vsel %vm576, %v624, 0.0
      %647 = vadd.xlane.f32.xlu0 %v646
      %v648 = vpop.xlane.xlu0 %647
      %v649 = vrcp.pop %v627
      %v650 = vrcp.pop %v630
      %v651 = vrcp.pop %v633
      %v652 = vrcp.pop %v636
      %v653 = vrcp.pop %v639
      %v654 = vrcp.pop %v642
      %v655 = vrcp.pop %v645
      %v656 = vrcp.pop %v648
      %v657 = vmul.f32 %v610, %v649
      %v658 = vmul.f32 %v612, %v650
      %v659 = vmul.f32 %v614, %v651
      %v660 = vmul.f32 %v616, %v652
      %v661 = vmul.f32 %v618, %v653
      %v662 = vmul.f32 %v620, %v654
      %v663 = vmul.f32 %v622, %v655
      %v664 = vmul.f32 %v624, %v656
      %v665 = vpack.c.bf16 %v658, %v657
      %v666 = vpack.c.bf16 %v660, %v659
      %v667 = vpack.c.bf16 %v662, %v661
      %v668 = vpack.c.bf16 %v664, %v663
      %v677 = vunpack.c.l.b16 %v438
      %v678 = vunpack.c.l.b16 %v439
      %v679 = vunpack.c.l.b16 %v440
      %v680 = vunpack.c.l.b16 %v441
      %v681 = vunpack.c.l.b16 %v442
      %v682 = vunpack.c.l.b16 %v443
      %v683 = vunpack.c.l.b16 %v444
      %v684 = vunpack.c.l.b16 %v445
      %v685 = vpack.c.b16 %v678, %v677
      %v686 = vpack.c.b16 %v680, %v679
      %v687 = vpack.c.b16 %v682, %v681
      %v688 = vpack.c.b16 %v684, %v683
      %v694 = vsel %vm576, %v665, 0
      %v697 = vsel %vm576, %v666, 0
      %v700 = vsel %vm576, %v667, 0
      %v703 = vsel %vm576, %v668, 0
      %705 = vmatprep.subr.bf16.mxu0 0
      %706 = vmatpush1.bf16.msra.mxu0 %v685
      %707 = vmatprep.subr.bf16.mxu0 0
      %708 = vmatpush1.bf16.msra.mxu0 %v686
      %709 = vmatprep.subr.bf16.mxu0 0
      %710 = vmatpush1.bf16.msra.mxu0 %v687
      %711 = vmatprep.subr.bf16.mxu0 0
      %712 = vmatpush1.bf16.msra.mxu0 %v688
      %713 = vmatprep.subr.bf16.mxu0 0
      %714 = vmatpush1.bf16.msra.mxu0 0
      %715 = vmatprep.subr.bf16.mxu0 0
      %716 = vmatpush1.bf16.msra.mxu0 0
      %717 = vmatprep.subr.bf16.mxu0 0
      %718 = vmatpush1.bf16.msra.mxu0 0
      %719 = vmatprep.subr.bf16.mxu0 0
      %720 = vmatpush1.bf16.msra.mxu0 0
      %721 = vmatprep.subr.bf16.mxu0 0
      %722 = vmatpush1.bf16.msra.mxu0 0
      %723 = vmatprep.subr.bf16.mxu0 0
      %724 = vmatpush1.bf16.msra.mxu0 0
      %725 = vmatprep.subr.bf16.mxu0 0
      %726 = vmatpush1.bf16.msra.mxu0 0
      %727 = vmatprep.subr.bf16.mxu0 0
      %728 = vmatpush1.bf16.msra.mxu0 0
      %729 = vmatprep.subr.bf16.mxu0 0
      %730 = vmatpush1.bf16.msra.mxu0 0
      %731 = vmatprep.subr.bf16.mxu0 0
      %732 = vmatpush1.bf16.msra.mxu0 0
      %733 = vmatprep.subr.bf16.mxu0 0
      %734 = vmatpush1.bf16.msra.mxu0 0
      %735 = vmatprep.subr.bf16.mxu0 0
      %736 = vmatpush1.bf16.msra.mxu0 0
      %737 = vmatprep.mubr.bf16.mxu0 0
      %738 = vmatmul.mubr.bf16.gmra.mrb[0].mxu0 %v694
      %v739 = vpop.f32.mrb[0].mxu0
      %v740 = vadd.f32 0.0, %v739
      %v741 = vpop.f32.mrb[0].mxu0
      %v742 = vpop.f32.mrb[0].mxu0
      %v743 = vadd.f32 0.0, %v742
      %v744 = vpop.f32.mrb[0].mxu0
      %745 = vmatprep.mubr.bf16.mxu0 0
      %746 = vmatmul.mubr.bf16.gmra.mrb[0].mxu0 %v697
      %v747 = vpop.f32.mrb[0].mxu0
      %v748 = vadd.f32 0.0, %v747
      %v749 = vpop.f32.mrb[0].mxu0
      %v750 = vpop.f32.mrb[0].mxu0
      %v751 = vadd.f32 0.0, %v750
      %v752 = vpop.f32.mrb[0].mxu0
      %753 = vmatprep.mubr.bf16.mxu0 0
      %754 = vmatmul.mubr.bf16.gmra.mrb[0].mxu0 %v700
      %v755 = vpop.f32.mrb[0].mxu0
      %v756 = vadd.f32 0.0, %v755
      %v757 = vpop.f32.mrb[0].mxu0
      %v758 = vpop.f32.mrb[0].mxu0
      %v759 = vadd.f32 0.0, %v758
      %v760 = vpop.f32.mrb[0].mxu0
      %761 = vmatprep.mubr.bf16.mxu0 0
      %762 = vmatmul.mubr.bf16.gmra.mrb[0].mxu0 %v703
      %v763 = vpop.f32.mrb[0].mxu0
      %v764 = vadd.f32 0.0, %v763
      %v765 = vpop.f32.mrb[0].mxu0
      %v766 = vpop.f32.mrb[0].mxu0
      %v767 = vadd.f32 0.0, %v766
      %v768 = vpop.f32.mrb[0].mxu0
      %769 = vdwg.mxu0
      %v770 = vpack.c.bf16 %v743, %v740
      %v771 = vpack.c.bf16 %v751, %v748
      %v772 = vpack.c.bf16 %v759, %v756
      %v773 = vpack.c.bf16 %v767, %v764
      %v774 = vld [vmem:[%s4] sm:$0xf]
      %v775 = vld [vmem:[%s4 + $0x4] sm:$0xf]
      %v776 = vld [vmem:[%s4 + $0x8] sm:$0xf]
      %v777 = vld [vmem:[%s4 + $0xc] sm:$0xf]
      %s778 = scalar_lea.vmem %s389, 32
      %v779 = vld [vmem:[%s778] sm:$0xf]
      %v780 = vld [vmem:[%s778 + $0x4] sm:$0xf]
      %v781 = vld [vmem:[%s778 + $0x8] sm:$0xf]
      %v782 = vld [vmem:[%s778 + $0xc] sm:$0xf]
      %v783 = vld [vmem:[%s778 + $0x10] sm:$0xf]
      %v784 = vld [vmem:[%s778 + $0x14] sm:$0xf]
      %v785 = vld [vmem:[%s778 + $0x18] sm:$0xf]
      %v786 = vld [vmem:[%s778 + $0x1c] sm:$0xf]
      %s787 = scalar_lea.vmem %s395, 32
      %v788 = vld [vmem:[%s787] sm:$0xf]
      %v789 = vld [vmem:[%s787 + $0x4] sm:$0xf]
      %v790 = vld [vmem:[%s787 + $0x8] sm:$0xf]
      %v791 = vld [vmem:[%s787 + $0xc] sm:$0xf]
      %v792 = vld [vmem:[%s787 + $0x10] sm:$0xf]
      %v793 = vld [vmem:[%s787 + $0x14] sm:$0xf]
      %v794 = vld [vmem:[%s787 + $0x18] sm:$0xf]
      %v795 = vld [vmem:[%s787 + $0x1c] sm:$0xf]
      %s796 = scalar_lea.vmem %s400, 32
      %v797 = vld [vmem:[%s796] sm:$0xf]
      %v798 = vld [vmem:[%s796 + $0x4] sm:$0xf]
      %v799 = vld [vmem:[%s796 + $0x8] sm:$0xf]
      %v800 = vld [vmem:[%s796 + $0xc] sm:$0xf]
      %v801 = vld [vmem:[%s796 + $0x10] sm:$0xf]
      %v802 = vld [vmem:[%s796 + $0x14] sm:$0xf]
      %v803 = vld [vmem:[%s796 + $0x18] sm:$0xf]
      %v804 = vld [vmem:[%s796 + $0x1c] sm:$0xf]
      %v813 = vunpack.c.l.b16 %v779
      %v814 = vunpack.c.l.b16 %v780
      %v815 = vunpack.c.l.b16 %v781
      %v816 = vunpack.c.l.b16 %v782
      %v817 = vunpack.c.l.b16 %v783
      %v818 = vunpack.c.l.b16 %v784
      %v819 = vunpack.c.l.b16 %v785
      %v820 = vunpack.c.l.b16 %v786
      %v821 = vpack.c.b16 %v814, %v813
      %v822 = vpack.c.b16 %v816, %v815
      %v823 = vpack.c.b16 %v818, %v817
      %v824 = vpack.c.b16 %v820, %v819
      %v833 = vunpack.c.l.b16 %v788
      %v834 = vunpack.c.l.b16 %v789
      %v835 = vunpack.c.l.b16 %v790
      %v836 = vunpack.c.l.b16 %v791
      %v837 = vunpack.c.l.b16 %v792
      %v838 = vunpack.c.l.b16 %v793
      %v839 = vunpack.c.l.b16 %v794
      %v840 = vunpack.c.l.b16 %v795
      %v841 = vpack.c.b16 %v834, %v833
      %v842 = vpack.c.b16 %v836, %v835
      %v843 = vpack.c.b16 %v838, %v837
      %v844 = vpack.c.b16 %v840, %v839
      %v846 = vsel %vm486, %v821, 0
      %v849 = vsel %vm486, %v822, 0
      %v852 = vsel %vm486, %v823, 0
      %v855 = vsel %vm486, %v824, 0
      %v858 = vsel %vm486, %v841, 0
      %v861 = vsel %vm486, %v842, 0
      %v864 = vsel %vm486, %v843, 0
      %v867 = vsel %vm486, %v844, 0
      %869 = vmatprep.subr.bf16.mxu0 0
      %870 = vmatpush1.bf16.xpose.msra.mxu0 %v858
      %871 = vmatprep.subr.bf16.mxu0 0
      %872 = vmatpush1.bf16.xpose.msra.mxu0 %v861
      %873 = vmatprep.subr.bf16.mxu0 0
      %874 = vmatpush1.bf16.xpose.msra.mxu0 %v864
      %875 = vmatprep.subr.bf16.mxu0 0
      %876 = vmatpush1.bf16.xpose.msra.mxu0 %v867
      %877 = vmatprep.subr.bf16.mxu0 0
      %878 = vmatpush1.bf16.xpose.msra.mxu0 0
      %879 = vmatprep.subr.bf16.mxu0 0
      %880 = vmatpush1.bf16.xpose.msra.mxu0 0
      %881 = vmatprep.subr.bf16.mxu0 0
      %882 = vmatpush1.bf16.xpose.msra.mxu0 0
      %883 = vmatprep.subr.bf16.mxu0 0
      %884 = vmatpush1.bf16.xpose.msra.mxu0 0
      %885 = vmatprep.subr.bf16.mxu0 0
      %886 = vmatpush1.bf16.xpose.msra.mxu0 0
      %887 = vmatprep.subr.bf16.mxu0 0
      %888 = vmatpush1.bf16.xpose.msra.mxu0 0
      %889 = vmatprep.subr.bf16.mxu0 0
      %890 = vmatpush1.bf16.xpose.msra.mxu0 0
      %891 = vmatprep.subr.bf16.mxu0 0
      %892 = vmatpush1.bf16.xpose.msra.mxu0 0
      %893 = vmatprep.subr.bf16.mxu0 0
      %894 = vmatpush1.bf16.xpose.msra.mxu0 0
      %895 = vmatprep.subr.bf16.mxu0 0
      %896 = vmatpush1.bf16.xpose.msra.mxu0 0
      %897 = vmatprep.subr.bf16.mxu0 0
      %898 = vmatpush1.bf16.xpose.msra.mxu0 0
      %899 = vmatprep.subr.bf16.mxu0 0
      %900 = vmatpush1.bf16.xpose.msra.mxu0 0
      %901 = vmatprep.mubr.bf16.mxu0 0
      %902 = vmatmul.mubr.bf16.gmra.mrb[0].mxu0 %v846
      %v903 = vpop.f32.mrb[0].mxu0
      %v904 = vadd.f32 0.0, %v903
      %v905 = vpop.f32.mrb[0].mxu0
      %v906 = vpop.f32.mrb[0].mxu0
      %v907 = vadd.f32 0.0, %v906
      %v908 = vpop.f32.mrb[0].mxu0
      %909 = vmatprep.mubr.bf16.mxu0 0
      %910 = vmatmul.mubr.bf16.gmra.mrb[0].mxu0 %v849
      %v911 = vpop.f32.mrb[0].mxu0
      %v912 = vadd.f32 0.0, %v911
      %v913 = vpop.f32.mrb[0].mxu0
      %v914 = vpop.f32.mrb[0].mxu0
      %v915 = vadd.f32 0.0, %v914
      %v916 = vpop.f32.mrb[0].mxu0
      %917 = vmatprep.mubr.bf16.mxu0 0
      %918 = vmatmul.mubr.bf16.gmra.mrb[0].mxu0 %v852
      %v919 = vpop.f32.mrb[0].mxu0
      %v920 = vadd.f32 0.0, %v919
      %v921 = vpop.f32.mrb[0].mxu0
      %v922 = vpop.f32.mrb[0].mxu0
      %v923 = vadd.f32 0.0, %v922
      %v924 = vpop.f32.mrb[0].mxu0
      %925 = vmatprep.mubr.bf16.mxu0 0
      %926 = vmatmul.mubr.bf16.gmra.mrb[0].mxu0 %v855
      %v927 = vpop.f32.mrb[0].mxu0
      %v928 = vadd.f32 0.0, %v927
      %v929 = vpop.f32.mrb[0].mxu0
      %v930 = vpop.f32.mrb[0].mxu0
      %v931 = vadd.f32 0.0, %v930
      %v932 = vpop.f32.mrb[0].mxu0
      %933 = vdwg.mxu0
      %v934 = vsel %vm576, %v904, -inf
      %935 = vmax.xlane.f32.xlu0 %v934
      %v936 = vpop.xlane.xlu0 %935
      %v937 = vsel %vm576, %v907, -inf
      %938 = vmax.xlane.f32.xlu0 %v937
      %v939 = vpop.xlane.xlu0 %938
      %v940 = vsel %vm576, %v912, -inf
      %941 = vmax.xlane.f32.xlu0 %v940
      %v942 = vpop.xlane.xlu0 %941
      %v943 = vsel %vm576, %v915, -inf
      %944 = vmax.xlane.f32.xlu0 %v943
      %v945 = vpop.xlane.xlu0 %944
      %v946 = vsel %vm576, %v920, -inf
      %947 = vmax.xlane.f32.xlu0 %v946
      %v948 = vpop.xlane.xlu0 %947
      %v949 = vsel %vm576, %v923, -inf
      %950 = vmax.xlane.f32.xlu0 %v949
      %v951 = vpop.xlane.xlu0 %950
      %v952 = vsel %vm576, %v928, -inf
      %953 = vmax.xlane.f32.xlu0 %v952
      %v954 = vpop.xlane.xlu0 %953
      %v955 = vsel %vm576, %v931, -inf
      %956 = vmax.xlane.f32.xlu0 %v955
      %v957 = vpop.xlane.xlu0 %956
      %v958 = vsub.f32 %v904, %v936
      %v959 = vsub.f32 %v907, %v939
      %v960 = vsub.f32 %v912, %v942
      %v961 = vsub.f32 %v915, %v945
      %v962 = vsub.f32 %v920, %v948
      %v963 = vsub.f32 %v923, %v951
      %v964 = vsub.f32 %v928, %v954
      %v965 = vsub.f32 %v931, %v957
      %v966 = vmul.f32 %v958, 1.442695
      %v967 = vpow.pop %v966
      %v968 = vmul.f32 %v959, 1.442695
      %v969 = vpow.pop %v968
      %v970 = vmul.f32 %v960, 1.442695
      %v971 = vpow.pop %v970
      %v972 = vmul.f32 %v961, 1.442695
      %v973 = vpow.pop %v972
      %v974 = vmul.f32 %v962, 1.442695
      %v975 = vpow.pop %v974
      %v976 = vmul.f32 %v963, 1.442695
      %v977 = vpow.pop %v976
      %v978 = vmul.f32 %v964, 1.442695
      %v979 = vpow.pop %v978
      %v980 = vmul.f32 %v965, 1.442695
      %v981 = vpow.pop %v980
      %v982 = vsel %vm576, %v967, 0.0
      %983 = vadd.xlane.f32.xlu0 %v982
      %v984 = vpop.xlane.xlu0 %983
      %v985 = vsel %vm576, %v969, 0.0
      %986 = vadd.xlane.f32.xlu0 %v985
      %v987 = vpop.xlane.xlu0 %986
      %v988 = vsel %vm576, %v971, 0.0
      %989 = vadd.xlane.f32.xlu0 %v988
      %v990 = vpop.xlane.xlu0 %989
      %v991 = vsel %vm576, %v973, 0.0
      %992 = vadd.xlane.f32.xlu0 %v991
      %v993 = vpop.xlane.xlu0 %992
      %v994 = vsel %vm576, %v975, 0.0
      %995 = vadd.xlane.f32.xlu0 %v994
      %v996 = vpop.xlane.xlu0 %995
      %v997 = vsel %vm576, %v977, 0.0
      %998 = vadd.xlane.f32.xlu0 %v997
      %v999 = vpop.xlane.xlu0 %998
      %v1000 = vsel %vm576, %v979, 0.0
      %1001 = vadd.xlane.f32.xlu0 %v1000
      %v1002 = vpop.xlane.xlu0 %1001
      %v1003 = vsel %vm576, %v981, 0.0
      %1004 = vadd.xlane.f32.xlu0 %v1003
      %v1005 = vpop.xlane.xlu0 %1004
      %v1006 = vrcp.pop %v984
      %v1007 = vrcp.pop %v987
      %v1008 = vrcp.pop %v990
      %v1009 = vrcp.pop %v993
      %v1010 = vrcp.pop %v996
      %v1011 = vrcp.pop %v999
      %v1012 = vrcp.pop %v1002
      %v1013 = vrcp.pop %v1005
      %v1014 = vmul.f32 %v967, %v1006
      %v1015 = vmul.f32 %v969, %v1007
      %v1016 = vmul.f32 %v971, %v1008
      %v1017 = vmul.f32 %v973, %v1009
      %v1018 = vmul.f32 %v975, %v1010
      %v1019 = vmul.f32 %v977, %v1011
      %v1020 = vmul.f32 %v979, %v1012
      %v1021 = vmul.f32 %v981, %v1013
      %v1022 = vpack.c.bf16 %v1015, %v1014
      %v1023 = vpack.c.bf16 %v1017, %v1016
      %v1024 = vpack.c.bf16 %v1019, %v1018
      %v1025 = vpack.c.bf16 %v1021, %v1020
      %v1034 = vunpack.c.l.b16 %v797
      %v1035 = vunpack.c.l.b16 %v798
      %v1036 = vunpack.c.l.b16 %v799
      %v1037 = vunpack.c.l.b16 %v800
      %v1038 = vunpack.c.l.b16 %v801
      %v1039 = vunpack.c.l.b16 %v802
      %v1040 = vunpack.c.l.b16 %v803
      %v1041 = vunpack.c.l.b16 %v804
      %v1042 = vpack.c.b16 %v1035, %v1034
      %v1043 = vpack.c.b16 %v1037, %v1036
      %v1044 = vpack.c.b16 %v1039, %v1038
      %v1045 = vpack.c.b16 %v1041, %v1040
      %v1051 = vsel %vm576, %v1022, 0
      %v1054 = vsel %vm576, %v1023, 0
      %v1057 = vsel %vm576, %v1024, 0
      %v1060 = vsel %vm576, %v1025, 0
      %1062 = vmatprep.subr.bf16.mxu0 0
      %1063 = vmatpush1.bf16.msra.mxu0 %v1042
      %1064 = vmatprep.subr.bf16.mxu0 0
      %1065 = vmatpush1.bf16.msra.mxu0 %v1043
      %1066 = vmatprep.subr.bf16.mxu0 0
      %1067 = vmatpush1.bf16.msra.mxu0 %v1044
      %1068 = vmatprep.subr.bf16.mxu0 0
      %1069 = vmatpush1.bf16.msra.mxu0 %v1045
      %1070 = vmatprep.subr.bf16.mxu0 0
      %1071 = vmatpush1.bf16.msra.mxu0 0
      %1072 = vmatprep.subr.bf16.mxu0 0
      %1073 = vmatpush1.bf16.msra.mxu0 0
      %1074 = vmatprep.subr.bf16.mxu0 0
      %1075 = vmatpush1.bf16.msra.mxu0 0
      %1076 = vmatprep.subr.bf16.mxu0 0
      %1077 = vmatpush1.bf16.msra.mxu0 0
      %1078 = vmatprep.subr.bf16.mxu0 0
      %1079 = vmatpush1.bf16.msra.mxu0 0
      %1080 = vmatprep.subr.bf16.mxu0 0
      %1081 = vmatpush1.bf16.msra.mxu0 0
      %1082 = vmatprep.subr.bf16.mxu0 0
      %1083 = vmatpush1.bf16.msra.mxu0 0
      %1084 = vmatprep.subr.bf16.mxu0 0
      %1085 = vmatpush1.bf16.msra.mxu0 0
      %1086 = vmatprep.subr.bf16.mxu0 0
      %1087 = vmatpush1.bf16.msra.mxu0 0
      %1088 = vmatprep.subr.bf16.mxu0 0
      %1089 = vmatpush1.bf16.msra.mxu0 0
      %1090 = vmatprep.subr.bf16.mxu0 0
      %1091 = vmatpush1.bf16.msra.mxu0 0
      %1092 = vmatprep.subr.bf16.mxu0 0
      %1093 = vmatpush1.bf16.msra.mxu0 0
      %1094 = vmatprep.mubr.bf16.mxu0 0
      %1095 = vmatmul.mubr.bf16.gmra.mrb[0].mxu0 %v1051
      %v1096 = vpop.f32.mrb[0].mxu0
      %v1097 = vadd.f32 0.0, %v1096
      %v1098 = vpop.f32.mrb[0].mxu0
      %v1099 = vpop.f32.mrb[0].mxu0
      %v1100 = vadd.f32 0.0, %v1099
      %v1101 = vpop.f32.mrb[0].mxu0
      %1102 = vmatprep.mubr.bf16.mxu0 0
      %1103 = vmatmul.mubr.bf16.gmra.mrb[0].mxu0 %v1054
      %v1104 = vpop.f32.mrb[0].mxu0
      %v1105 = vadd.f32 0.0, %v1104
      %v1106 = vpop.f32.mrb[0].mxu0
      %v1107 = vpop.f32.mrb[0].mxu0
      %v1108 = vadd.f32 0.0, %v1107
      %v1109 = vpop.f32.mrb[0].mxu0
      %1110 = vmatprep.mubr.bf16.mxu0 0
      %1111 = vmatmul.mubr.bf16.gmra.mrb[0].mxu0 %v1057
      %v1112 = vpop.f32.mrb[0].mxu0
      %v1113 = vadd.f32 0.0, %v1112
      %v1114 = vpop.f32.mrb[0].mxu0
      %v1115 = vpop.f32.mrb[0].mxu0
      %v1116 = vadd.f32 0.0, %v1115
      %v1117 = vpop.f32.mrb[0].mxu0
      %1118 = vmatprep.mubr.bf16.mxu0 0
      %1119 = vmatmul.mubr.bf16.gmra.mrb[0].mxu0 %v1060
      %v1120 = vpop.f32.mrb[0].mxu0
      %v1121 = vadd.f32 0.0, %v1120
      %v1122 = vpop.f32.mrb[0].mxu0
      %v1123 = vpop.f32.mrb[0].mxu0
      %v1124 = vadd.f32 0.0, %v1123
      %v1125 = vpop.f32.mrb[0].mxu0
      %1126 = vdwg.mxu0
      %v1127 = vpack.c.bf16 %v1100, %v1097
      %v1128 = vpack.c.bf16 %v1108, %v1105
      %v1129 = vpack.c.bf16 %v1116, %v1113
      %v1130 = vpack.c.bf16 %v1124, %v1121
      %s1131 = scalar_lea.vmem %s4, 16
      %v1132 = vld [vmem:[%s1131] sm:$0xf]
      %v1133 = vld [vmem:[%s1131 + $0x4] sm:$0xf]
      %v1134 = vld [vmem:[%s1131 + $0x8] sm:$0xf]
      %v1135 = vld [vmem:[%s1131 + $0xc] sm:$0xf]
      %v1140 = vunpack.c.l.b16 %v1132
      %v1141 = vunpack.c.l.b16 %v1133
      %v1142 = vunpack.c.l.b16 %v1134
      %v1143 = vunpack.c.l.b16 %v1135
      %v1144 = vpack.c.b16 %v1141, %v1140
      %v1145 = vpack.c.b16 %v1143, %v1142
      %v1149 = vsel %vm486, %v1127, 0
      %v1152 = vsel %vm486, %v1128, 0
      %v1155 = vsel %vm486, %v1129, 0
      %v1158 = vsel %vm486, %v1130, 0
      %1160 = vmatprep.subr.bf16.mxu0 0
      %1161 = vmatpush1.bf16.msra.mxu0 %v1144
      %1162 = vmatprep.subr.bf16.mxu0 0
      %1163 = vmatpush1.bf16.msra.mxu0 %v1145
      %1164 = vmatprep.subr.bf16.mxu0 0
      %1165 = vmatpush1.bf16.msra.mxu0 0
      %1166 = vmatprep.subr.bf16.mxu0 0
      %1167 = vmatpush1.bf16.msra.mxu0 0
      %1168 = vmatprep.subr.bf16.mxu0 0
      %1169 = vmatpush1.bf16.msra.mxu0 0
      %1170 = vmatprep.subr.bf16.mxu0 0
      %1171 = vmatpush1.bf16.msra.mxu0 0
      %1172 = vmatprep.subr.bf16.mxu0 0
      %1173 = vmatpush1.bf16.msra.mxu0 0
      %1174 = vmatprep.subr.bf16.mxu0 0
      %1175 = vmatpush1.bf16.msra.mxu0 0
      %1176 = vmatprep.subr.bf16.mxu0 0
      %1177 = vmatpush1.bf16.msra.mxu0 0
      %1178 = vmatprep.subr.bf16.mxu0 0
      %1179 = vmatpush1.bf16.msra.mxu0 0
      %1180 = vmatprep.subr.bf16.mxu0 0
      %1181 = vmatpush1.bf16.msra.mxu0 0
      %1182 = vmatprep.subr.bf16.mxu0 0
      %1183 = vmatpush1.bf16.msra.mxu0 0
      %1184 = vmatprep.subr.bf16.mxu0 0
      %1185 = vmatpush1.bf16.msra.mxu0 0
      %1186 = vmatprep.subr.bf16.mxu0 0
      %1187 = vmatpush1.bf16.msra.mxu0 0
      %1188 = vmatprep.subr.bf16.mxu0 0
      %1189 = vmatpush1.bf16.msra.mxu0 0
      %1190 = vmatprep.subr.bf16.mxu0 0
      %1191 = vmatpush1.bf16.msra.mxu0 0
      %1192 = vmatprep.mubr.bf16.mxu0 0
      %1193 = vmatmul.mubr.bf16.gmra.mrb[0].mxu0 %v1149
      %v1194 = vpop.f32.mrb[0].mxu0
      %v1195 = vadd.f32 0.0, %v1194
      %v1196 = vpop.f32.mrb[0].mxu0
      %v1197 = vpop.f32.mrb[0].mxu0
      %v1198 = vadd.f32 0.0, %v1197
      %v1199 = vpop.f32.mrb[0].mxu0
      %1200 = vmatprep.mubr.bf16.mxu0 0
      %1201 = vmatmul.mubr.bf16.gmra.mrb[0].mxu0 %v1152
      %v1202 = vpop.f32.mrb[0].mxu0
      %v1203 = vadd.f32 0.0, %v1202
      %v1204 = vpop.f32.mrb[0].mxu0
      %v1205 = vpop.f32.mrb[0].mxu0
      %v1206 = vadd.f32 0.0, %v1205
      %v1207 = vpop.f32.mrb[0].mxu0
      %1208 = vmatprep.mubr.bf16.mxu0 0
      %1209 = vmatmul.mubr.bf16.gmra.mrb[0].mxu0 %v1155
      %v1210 = vpop.f32.mrb[0].mxu0
      %v1211 = vadd.f32 0.0, %v1210
      %v1212 = vpop.f32.mrb[0].mxu0
      %v1213 = vpop.f32.mrb[0].mxu0
      %v1214 = vadd.f32 0.0, %v1213
      %v1215 = vpop.f32.mrb[0].mxu0
      %1216 = vmatprep.mubr.bf16.mxu0 0
      %1217 = vmatmul.mubr.bf16.gmra.mrb[0].mxu0 %v1158
      %v1218 = vpop.f32.mrb[0].mxu0
      %v1219 = vadd.f32 0.0, %v1218
      %v1220 = vpop.f32.mrb[0].mxu0
      %v1221 = vpop.f32.mrb[0].mxu0
      %v1222 = vadd.f32 0.0, %v1221
      %v1223 = vpop.f32.mrb[0].mxu0
      %1224 = vdwg.mxu0
      %v1229 = vunpack.c.l.b16 %v774
      %v1230 = vunpack.c.l.b16 %v775
      %v1231 = vunpack.c.l.b16 %v776
      %v1232 = vunpack.c.l.b16 %v777
      %v1233 = vpack.c.b16 %v1230, %v1229
      %v1234 = vpack.c.b16 %v1232, %v1231
      %v1238 = vsel %vm486, %v770, 0
      %v1241 = vsel %vm486, %v771, 0
      %v1244 = vsel %vm486, %v772, 0
      %v1247 = vsel %vm486, %v773, 0
      %1249 = vmatprep.subr.bf16.mxu0 0
      %1250 = vmatpush1.bf16.msra.mxu0 %v1233
      %1251 = vmatprep.subr.bf16.mxu0 0
      %1252 = vmatpush1.bf16.msra.mxu0 %v1234
      %1253 = vmatprep.subr.bf16.mxu0 0
      %1254 = vmatpush1.bf16.msra.mxu0 0
      %1255 = vmatprep.subr.bf16.mxu0 0
      %1256 = vmatpush1.bf16.msra.mxu0 0
      %1257 = vmatprep.subr.bf16.mxu0 0
      %1258 = vmatpush1.bf16.msra.mxu0 0
      %1259 = vmatprep.subr.bf16.mxu0 0
      %1260 = vmatpush1.bf16.msra.mxu0 0
      %1261 = vmatprep.subr.bf16.mxu0 0
      %1262 = vmatpush1.bf16.msra.mxu0 0
      %1263 = vmatprep.subr.bf16.mxu0 0
      %1264 = vmatpush1.bf16.msra.mxu0 0
      %1265 = vmatprep.subr.bf16.mxu0 0
      %1266 = vmatpush1.bf16.msra.mxu0 0
      %1267 = vmatprep.subr.bf16.mxu0 0
      %1268 = vmatpush1.bf16.msra.mxu0 0
      %1269 = vmatprep.subr.bf16.mxu0 0
      %1270 = vmatpush1.bf16.msra.mxu0 0
      %1271 = vmatprep.subr.bf16.mxu0 0
      %1272 = vmatpush1.bf16.msra.mxu0 0
      %1273 = vmatprep.subr.bf16.mxu0 0
      %1274 = vmatpush1.bf16.msra.mxu0 0
      %1275 = vmatprep.subr.bf16.mxu0 0
      %1276 = vmatpush1.bf16.msra.mxu0 0
      %1277 = vmatprep.subr.bf16.mxu0 0
      %1278 = vmatpush1.bf16.msra.mxu0 0
      %1279 = vmatprep.subr.bf16.mxu0 0
      %1280 = vmatpush1.bf16.msra.mxu0 0
      %1281 = vmatprep.mubr.bf16.mxu0 0
      %1282 = vmatmul.mubr.bf16.gmra.mrb[0].mxu0 %v1238
      %v1283 = vpop.f32.mrb[0].mxu0
      %v1284 = vadd.f32 %v1195, %v1283
      %v1285 = vpop.f32.mrb[0].mxu0
      %v1286 = vpop.f32.mrb[0].mxu0
      %v1287 = vadd.f32 %v1198, %v1286
      %v1288 = vpop.f32.mrb[0].mxu0
      %1289 = vmatprep.mubr.bf16.mxu0 0
      %1290 = vmatmul.mubr.bf16.gmra.mrb[0].mxu0 %v1241
      %v1291 = vpop.f32.mrb[0].mxu0
      %v1292 = vadd.f32 %v1203, %v1291
      %v1293 = vpop.f32.mrb[0].mxu0
      %v1294 = vpop.f32.mrb[0].mxu0
      %v1295 = vadd.f32 %v1206, %v1294
      %v1296 = vpop.f32.mrb[0].mxu0
      %1297 = vmatprep.mubr.bf16.mxu0 0
      %1298 = vmatmul.mubr.bf16.gmra.mrb[0].mxu0 %v1244
      %v1299 = vpop.f32.mrb[0].mxu0
      %v1300 = vadd.f32 %v1211, %v1299
      %v1301 = vpop.f32.mrb[0].mxu0
      %v1302 = vpop.f32.mrb[0].mxu0
      %v1303 = vadd.f32 %v1214, %v1302
      %v1304 = vpop.f32.mrb[0].mxu0
      %1305 = vmatprep.mubr.bf16.mxu0 0
      %1306 = vmatmul.mubr.bf16.gmra.mrb[0].mxu0 %v1247
      %v1307 = vpop.f32.mrb[0].mxu0
      %v1308 = vadd.f32 %v1219, %v1307
      %v1309 = vpop.f32.mrb[0].mxu0
      %v1310 = vpop.f32.mrb[0].mxu0
      %v1311 = vadd.f32 %v1222, %v1310
      %v1312 = vpop.f32.mrb[0].mxu0
      %1313 = vdwg.mxu0
      %s1314 = scalar_lea.vmem %s389, 64
      %v1315 = vld [vmem:[%s1314] sm:$0xf]
      %v1316 = vld [vmem:[%s1314 + $0x4] sm:$0xf]
      %v1317 = vld [vmem:[%s1314 + $0x8] sm:$0xf]
      %v1318 = vld [vmem:[%s1314 + $0xc] sm:$0xf]
      %v1319 = vld [vmem:[%s1314 + $0x10] sm:$0xf]
      %v1320 = vld [vmem:[%s1314 + $0x14] sm:$0xf]
      %v1321 = vld [vmem:[%s1314 + $0x18] sm:$0xf]
      %v1322 = vld [vmem:[%s1314 + $0x1c] sm:$0xf]
      %s1323 = scalar_lea.vmem %s395, 64
      %v1324 = vld [vmem:[%s1323] sm:$0xf]
      %v1325 = vld [vmem:[%s1323 + $0x4] sm:$0xf]
      %v1326 = vld [vmem:[%s1323 + $0x8] sm:$0xf]
      %v1327 = vld [vmem:[%s1323 + $0xc] sm:$0xf]
      %v1328 = vld [vmem:[%s1323 + $0x10] sm:$0xf]
      %v1329 = vld [vmem:[%s1323 + $0x14] sm:$0xf]
      %v1330 = vld [vmem:[%s1323 + $0x18] sm:$0xf]
      %v1331 = vld [vmem:[%s1323 + $0x1c] sm:$0xf]
      %s1332 = scalar_lea.vmem %s400, 64
      %v1333 = vld [vmem:[%s1332] sm:$0xf]
      %v1334 = vld [vmem:[%s1332 + $0x4] sm:$0xf]
      %v1335 = vld [vmem:[%s1332 + $0x8] sm:$0xf]
      %v1336 = vld [vmem:[%s1332 + $0xc] sm:$0xf]
      %v1337 = vld [vmem:[%s1332 + $0x10] sm:$0xf]
      %v1338 = vld [vmem:[%s1332 + $0x14] sm:$0xf]
      %v1339 = vld [vmem:[%s1332 + $0x18] sm:$0xf]
      %v1340 = vld [vmem:[%s1332 + $0x1c] sm:$0xf]
      %v1349 = vunpack.c.l.b16 %v1315
      %v1350 = vunpack.c.l.b16 %v1316
      %v1351 = vunpack.c.l.b16 %v1317
      %v1352 = vunpack.c.l.b16 %v1318
      %v1353 = vunpack.c.l.b16 %v1319
      %v1354 = vunpack.c.l.b16 %v1320
      %v1355 = vunpack.c.l.b16 %v1321
      %v1356 = vunpack.c.l.b16 %v1322
      %v1357 = vpack.c.b16 %v1350, %v1349
      %v1358 = vpack.c.b16 %v1352, %v1351
      %v1359 = vpack.c.b16 %v1354, %v1353
      %v1360 = vpack.c.b16 %v1356, %v1355
      %v1369 = vunpack.c.l.b16 %v1324
      %v1370 = vunpack.c.l.b16 %v1325
      %v1371 = vunpack.c.l.b16 %v1326
      %v1372 = vunpack.c.l.b16 %v1327
      %v1373 = vunpack.c.l.b16 %v1328
      %v1374 = vunpack.c.l.b16 %v1329
      %v1375 = vunpack.c.l.b16 %v1330
      %v1376 = vunpack.c.l.b16 %v1331
      %v1377 = vpack.c.b16 %v1370, %v1369
      %v1378 = vpack.c.b16 %v1372, %v1371
      %v1379 = vpack.c.b16 %v1374, %v1373
      %v1380 = vpack.c.b16 %v1376, %v1375
      %v1382 = vsel %vm486, %v1357, 0
      %v1385 = vsel %vm486, %v1358, 0
      %v1388 = vsel %vm486, %v1359, 0
      %v1391 = vsel %vm486, %v1360, 0
      %v1394 = vsel %vm486, %v1377, 0
      %v1397 = vsel %vm486, %v1378, 0
      %v1400 = vsel %vm486, %v1379, 0
      %v1403 = vsel %vm486, %v1380, 0
      %1405 = vmatprep.subr.bf16.mxu0 0
      %1406 = vmatpush1.bf16.xpose.msra.mxu0 %v1394
      %1407 = vmatprep.subr.bf16.mxu0 0
      %1408 = vmatpush1.bf16.xpose.msra.mxu0 %v1397
      %1409 = vmatprep.subr.bf16.mxu0 0
      %1410 = vmatpush1.bf16.xpose.msra.mxu0 %v1400
      %1411 = vmatprep.subr.bf16.mxu0 0
      %1412 = vmatpush1.bf16.xpose.msra.mxu0 %v1403
      %1413 = vmatprep.subr.bf16.mxu0 0
      %1414 = vmatpush1.bf16.xpose.msra.mxu0 0
      %1415 = vmatprep.subr.bf16.mxu0 0
      %1416 = vmatpush1.bf16.xpose.msra.mxu0 0
      %1417 = vmatprep.subr.bf16.mxu0 0
      %1418 = vmatpush1.bf16.xpose.msra.mxu0 0
      %1419 = vmatprep.subr.bf16.mxu0 0
      %1420 = vmatpush1.bf16.xpose.msra.mxu0 0
      %1421 = vmatprep.subr.bf16.mxu0 0
      %1422 = vmatpush1.bf16.xpose.msra.mxu0 0
      %1423 = vmatprep.subr.bf16.mxu0 0
      %1424 = vmatpush1.bf16.xpose.msra.mxu0 0
      %1425 = vmatprep.subr.bf16.mxu0 0
      %1426 = vmatpush1.bf16.xpose.msra.mxu0 0
      %1427 = vmatprep.subr.bf16.mxu0 0
      %1428 = vmatpush1.bf16.xpose.msra.mxu0 0
      %1429 = vmatprep.subr.bf16.mxu0 0
      %1430 = vmatpush1.bf16.xpose.msra.mxu0 0
      %1431 = vmatprep.subr.bf16.mxu0 0
      %1432 = vmatpush1.bf16.xpose.msra.mxu0 0
      %1433 = vmatprep.subr.bf16.mxu0 0
      %1434 = vmatpush1.bf16.xpose.msra.mxu0 0
      %1435 = vmatprep.subr.bf16.mxu0 0
      %1436 = vmatpush1.bf16.xpose.msra.mxu0 0
      %1437 = vmatprep.mubr.bf16.mxu0 0
      %1438 = vmatmul.mubr.bf16.gmra.mrb[0].mxu0 %v1382
      %v1439 = vpop.f32.mrb[0].mxu0
      %v1440 = vadd.f32 0.0, %v1439
      %v1441 = vpop.f32.mrb[0].mxu0
      %v1442 = vpop.f32.mrb[0].mxu0
      %v1443 = vadd.f32 0.0, %v1442
      %v1444 = vpop.f32.mrb[0].mxu0
      %1445 = vmatprep.mubr.bf16.mxu0 0
      %1446 = vmatmul.mubr.bf16.gmra.mrb[0].mxu0 %v1385
      %v1447 = vpop.f32.mrb[0].mxu0
      %v1448 = vadd.f32 0.0, %v1447
      %v1449 = vpop.f32.mrb[0].mxu0
      %v1450 = vpop.f32.mrb[0].mxu0
      %v1451 = vadd.f32 0.0, %v1450
      %v1452 = vpop.f32.mrb[0].mxu0
      %1453 = vmatprep.mubr.bf16.mxu0 0
      %1454 = vmatmul.mubr.bf16.gmra.mrb[0].mxu0 %v1388
      %v1455 = vpop.f32.mrb[0].mxu0
      %v1456 = vadd.f32 0.0, %v1455
      %v1457 = vpop.f32.mrb[0].mxu0
      %v1458 = vpop.f32.mrb[0].mxu0
      %v1459 = vadd.f32 0.0, %v1458
      %v1460 = vpop.f32.mrb[0].mxu0
      %1461 = vmatprep.mubr.bf16.mxu0 0
      %1462 = vmatmul.mubr.bf16.gmra.mrb[0].mxu0 %v1391
      %v1463 = vpop.f32.mrb[0].mxu0
      %v1464 = vadd.f32 0.0, %v1463
      %v1465 = vpop.f32.mrb[0].mxu0
      %v1466 = vpop.f32.mrb[0].mxu0
      %v1467 = vadd.f32 0.0, %v1466
      %v1468 = vpop.f32.mrb[0].mxu0
      %1469 = vdwg.mxu0
      %v1470 = vsel %vm576, %v1440, -inf
      %1471 = vmax.xlane.f32.xlu0 %v1470
      %v1472 = vpop.xlane.xlu0 %1471
      %v1473 = vsel %vm576, %v1443, -inf
      %1474 = vmax.xlane.f32.xlu0 %v1473
      %v1475 = vpop.xlane.xlu0 %1474
      %v1476 = vsel %vm576, %v1448, -inf
      %1477 = vmax.xlane.f32.xlu0 %v1476
      %v1478 = vpop.xlane.xlu0 %1477
      %v1479 = vsel %vm576, %v1451, -inf
      %1480 = vmax.xlane.f32.xlu0 %v1479
      %v1481 = vpop.xlane.xlu0 %1480
      %v1482 = vsel %vm576, %v1456, -inf
      %1483 = vmax.xlane.f32.xlu0 %v1482
      %v1484 = vpop.xlane.xlu0 %1483
      %v1485 = vsel %vm576, %v1459, -inf
      %1486 = vmax.xlane.f32.xlu0 %v1485
      %v1487 = vpop.xlane.xlu0 %1486
      %v1488 = vsel %vm576, %v1464, -inf
      %1489 = vmax.xlane.f32.xlu0 %v1488
      %v1490 = vpop.xlane.xlu0 %1489
      %v1491 = vsel %vm576, %v1467, -inf
      %1492 = vmax.xlane.f32.xlu0 %v1491
      %v1493 = vpop.xlane.xlu0 %1492
      %v1494 = vsub.f32 %v1440, %v1472
      %v1495 = vsub.f32 %v1443, %v1475
      %v1496 = vsub.f32 %v1448, %v1478
      %v1497 = vsub.f32 %v1451, %v1481
      %v1498 = vsub.f32 %v1456, %v1484
      %v1499 = vsub.f32 %v1459, %v1487
      %v1500 = vsub.f32 %v1464, %v1490
      %v1501 = vsub.f32 %v1467, %v1493
      %v1502 = vmul.f32 %v1494, 1.442695
      %v1503 = vpow.pop %v1502
      %v1504 = vmul.f32 %v1495, 1.442695
      %v1505 = vpow.pop %v1504
      %v1506 = vmul.f32 %v1496, 1.442695
      %v1507 = vpow.pop %v1506
      %v1508 = vmul.f32 %v1497, 1.442695
      %v1509 = vpow.pop %v1508
      %v1510 = vmul.f32 %v1498, 1.442695
      %v1511 = vpow.pop %v1510
      %v1512 = vmul.f32 %v1499, 1.442695
      %v1513 = vpow.pop %v1512
      %v1514 = vmul.f32 %v1500, 1.442695
      %v1515 = vpow.pop %v1514
      %v1516 = vmul.f32 %v1501, 1.442695
      %v1517 = vpow.pop %v1516
      %v1518 = vsel %vm576, %v1503, 0.0
      %1519 = vadd.xlane.f32.xlu0 %v1518
      %v1520 = vpop.xlane.xlu0 %1519
      %v1521 = vsel %vm576, %v1505, 0.0
      %1522 = vadd.xlane.f32.xlu0 %v1521
      %v1523 = vpop.xlane.xlu0 %1522
      %v1524 = vsel %vm576, %v1507, 0.0
      %1525 = vadd.xlane.f32.xlu0 %v1524
      %v1526 = vpop.xlane.xlu0 %1525
      %v1527 = vsel %vm576, %v1509, 0.0
      %1528 = vadd.xlane.f32.xlu0 %v1527
      %v1529 = vpop.xlane.xlu0 %1528
      %v1530 = vsel %vm576, %v1511, 0.0
      %1531 = vadd.xlane.f32.xlu0 %v1530
      %v1532 = vpop.xlane.xlu0 %1531
      %v1533 = vsel %vm576, %v1513, 0.0
      %1534 = vadd.xlane.f32.xlu0 %v1533
      %v1535 = vpop.xlane.xlu0 %1534
      %v1536 = vsel %vm576, %v1515, 0.0
      %1537 = vadd.xlane.f32.xlu0 %v1536
      %v1538 = vpop.xlane.xlu0 %1537
      %v1539 = vsel %vm576, %v1517, 0.0
      %1540 = vadd.xlane.f32.xlu0 %v1539
      %v1541 = vpop.xlane.xlu0 %1540
      %v1542 = vrcp.pop %v1520
      %v1543 = vrcp.pop %v1523
      %v1544 = vrcp.pop %v1526
      %v1545 = vrcp.pop %v1529
      %v1546 = vrcp.pop %v1532
      %v1547 = vrcp.pop %v1535
      %v1548 = vrcp.pop %v1538
      %v1549 = vrcp.pop %v1541
      %v1550 = vmul.f32 %v1503, %v1542
      %v1551 = vmul.f32 %v1505, %v1543
      %v1552 = vmul.f32 %v1507, %v1544
      %v1553 = vmul.f32 %v1509, %v1545
      %v1554 = vmul.f32 %v1511, %v1546
      %v1555 = vmul.f32 %v1513, %v1547
      %v1556 = vmul.f32 %v1515, %v1548
      %v1557 = vmul.f32 %v1517, %v1549
      %v1558 = vpack.c.bf16 %v1551, %v1550
      %v1559 = vpack.c.bf16 %v1553, %v1552
      %v1560 = vpack.c.bf16 %v1555, %v1554
      %v1561 = vpack.c.bf16 %v1557, %v1556
      %v1570 = vunpack.c.l.b16 %v1333
      %v1571 = vunpack.c.l.b16 %v1334
      %v1572 = vunpack.c.l.b16 %v1335
      %v1573 = vunpack.c.l.b16 %v1336
      %v1574 = vunpack.c.l.b16 %v1337
      %v1575 = vunpack.c.l.b16 %v1338
      %v1576 = vunpack.c.l.b16 %v1339
      %v1577 = vunpack.c.l.b16 %v1340
      %v1578 = vpack.c.b16 %v1571, %v1570
      %v1579 = vpack.c.b16 %v1573, %v1572
      %v1580 = vpack.c.b16 %v1575, %v1574
      %v1581 = vpack.c.b16 %v1577, %v1576
      %v1587 = vsel %vm576, %v1558, 0
      %v1590 = vsel %vm576, %v1559, 0
      %v1593 = vsel %vm576, %v1560, 0
      %v1596 = vsel %vm576, %v1561, 0
      %1598 = vmatprep.subr.bf16.mxu0 0
      %1599 = vmatpush1.bf16.msra.mxu0 %v1578
      %1600 = vmatprep.subr.bf16.mxu0 0
      %1601 = vmatpush1.bf16.msra.mxu0 %v1579
      %1602 = vmatprep.subr.bf16.mxu0 0
      %1603 = vmatpush1.bf16.msra.mxu0 %v1580
      %1604 = vmatprep.subr.bf16.mxu0 0
      %1605 = vmatpush1.bf16.msra.mxu0 %v1581
      %1606 = vmatprep.subr.bf16.mxu0 0
      %1607 = vmatpush1.bf16.msra.mxu0 0
      %1608 = vmatprep.subr.bf16.mxu0 0
      %1609 = vmatpush1.bf16.msra.mxu0 0
      %1610 = vmatprep.subr.bf16.mxu0 0
      %1611 = vmatpush1.bf16.msra.mxu0 0
      %1612 = vmatprep.subr.bf16.mxu0 0
      %1613 = vmatpush1.bf16.msra.mxu0 0
      %1614 = vmatprep.subr.bf16.mxu0 0
      %1615 = vmatpush1.bf16.msra.mxu0 0
      %1616 = vmatprep.subr.bf16.mxu0 0
      %1617 = vmatpush1.bf16.msra.mxu0 0
      %1618 = vmatprep.subr.bf16.mxu0 0
      %1619 = vmatpush1.bf16.msra.mxu0 0
      %1620 = vmatprep.subr.bf16.mxu0 0
      %1621 = vmatpush1.bf16.msra.mxu0 0
      %1622 = vmatprep.subr.bf16.mxu0 0
      %1623 = vmatpush1.bf16.msra.mxu0 0
      %1624 = vmatprep.subr.bf16.mxu0 0
      %1625 = vmatpush1.bf16.msra.mxu0 0
      %1626 = vmatprep.subr.bf16.mxu0 0
      %1627 = vmatpush1.bf16.msra.mxu0 0
      %1628 = vmatprep.subr.bf16.mxu0 0
      %1629 = vmatpush1.bf16.msra.mxu0 0
      %1630 = vmatprep.mubr.bf16.mxu0 0
      %1631 = vmatmul.mubr.bf16.gmra.mrb[0].mxu0 %v1587
      %v1632 = vpop.f32.mrb[0].mxu0
      %v1633 = vadd.f32 0.0, %v1632
      %v1634 = vpop.f32.mrb[0].mxu0
      %v1635 = vpop.f32.mrb[0].mxu0
      %v1636 = vadd.f32 0.0, %v1635
      %v1637 = vpop.f32.mrb[0].mxu0
      %1638 = vmatprep.mubr.bf16.mxu0 0
      %1639 = vmatmul.mubr.bf16.gmra.mrb[0].mxu0 %v1590
      %v1640 = vpop.f32.mrb[0].mxu0
      %v1641 = vadd.f32 0.0, %v1640
      %v1642 = vpop.f32.mrb[0].mxu0
      %v1643 = vpop.f32.mrb[0].mxu0
      %v1644 = vadd.f32 0.0, %v1643
      %v1645 = vpop.f32.mrb[0].mxu0
      %1646 = vmatprep.mubr.bf16.mxu0 0
      %1647 = vmatmul.mubr.bf16.gmra.mrb[0].mxu0 %v1593
      %v1648 = vpop.f32.mrb[0].mxu0
      %v1649 = vadd.f32 0.0, %v1648
      %v1650 = vpop.f32.mrb[0].mxu0
      %v1651 = vpop.f32.mrb[0].mxu0
      %v1652 = vadd.f32 0.0, %v1651
      %v1653 = vpop.f32.mrb[0].mxu0
      %1654 = vmatprep.mubr.bf16.mxu0 0
      %1655 = vmatmul.mubr.bf16.gmra.mrb[0].mxu0 %v1596
      %v1656 = vpop.f32.mrb[0].mxu0
      %v1657 = vadd.f32 0.0, %v1656
      %v1658 = vpop.f32.mrb[0].mxu0
      %v1659 = vpop.f32.mrb[0].mxu0
      %v1660 = vadd.f32 0.0, %v1659
      %v1661 = vpop.f32.mrb[0].mxu0
      %1662 = vdwg.mxu0
      %v1663 = vpack.c.bf16 %v1636, %v1633
      %v1664 = vpack.c.bf16 %v1644, %v1641
      %v1665 = vpack.c.bf16 %v1652, %v1649
      %v1666 = vpack.c.bf16 %v1660, %v1657
      %s1667 = scalar_lea.vmem %s4, 32
      %v1668 = vld [vmem:[%s1667] sm:$0xf]
      %v1669 = vld [vmem:[%s1667 + $0x4] sm:$0xf]
      %v1670 = vld [vmem:[%s1667 + $0x8] sm:$0xf]
      %v1671 = vld [vmem:[%s1667 + $0xc] sm:$0xf]
      %v1676 = vunpack.c.l.b16 %v1668
      %v1677 = vunpack.c.l.b16 %v1669
      %v1678 = vunpack.c.l.b16 %v1670
      %v1679 = vunpack.c.l.b16 %v1671
      %v1680 = vpack.c.b16 %v1677, %v1676
      %v1681 = vpack.c.b16 %v1679, %v1678
      %v1685 = vsel %vm486, %v1663, 0
      %v1688 = vsel %vm486, %v1664, 0
      %v1691 = vsel %vm486, %v1665, 0
      %v1694 = vsel %vm486, %v1666, 0
      %1696 = vmatprep.subr.bf16.mxu0 0
      %1697 = vmatpush1.bf16.msra.mxu0 %v1680
      %1698 = vmatprep.subr.bf16.mxu0 0
      %1699 = vmatpush1.bf16.msra.mxu0 %v1681
      %1700 = vmatprep.subr.bf16.mxu0 0
      %1701 = vmatpush1.bf16.msra.mxu0 0
      %1702 = vmatprep.subr.bf16.mxu0 0
      %1703 = vmatpush1.bf16.msra.mxu0 0
      %1704 = vmatprep.subr.bf16.mxu0 0
      %1705 = vmatpush1.bf16.msra.mxu0 0
      %1706 = vmatprep.subr.bf16.mxu0 0
      %1707 = vmatpush1.bf16.msra.mxu0 0
      %1708 = vmatprep.subr.bf16.mxu0 0
      %1709 = vmatpush1.bf16.msra.mxu0 0
      %1710 = vmatprep.subr.bf16.mxu0 0
      %1711 = vmatpush1.bf16.msra.mxu0 0
      %1712 = vmatprep.subr.bf16.mxu0 0
      %1713 = vmatpush1.bf16.msra.mxu0 0
      %1714 = vmatprep.subr.bf16.mxu0 0
      %1715 = vmatpush1.bf16.msra.mxu0 0
      %1716 = vmatprep.subr.bf16.mxu0 0
      %1717 = vmatpush1.bf16.msra.mxu0 0
      %1718 = vmatprep.subr.bf16.mxu0 0
      %1719 = vmatpush1.bf16.msra.mxu0 0
      %1720 = vmatprep.subr.bf16.mxu0 0
      %1721 = vmatpush1.bf16.msra.mxu0 0
      %1722 = vmatprep.subr.bf16.mxu0 0
      %1723 = vmatpush1.bf16.msra.mxu0 0
      %1724 = vmatprep.subr.bf16.mxu0 0
      %1725 = vmatpush1.bf16.msra.mxu0 0
      %1726 = vmatprep.subr.bf16.mxu0 0
      %1727 = vmatpush1.bf16.msra.mxu0 0
      %1728 = vmatprep.mubr.bf16.mxu0 0
      %1729 = vmatmul.mubr.bf16.gmra.mrb[0].mxu0 %v1685
      %v1730 = vpop.f32.mrb[0].mxu0
      %v1731 = vadd.f32 0.0, %v1730
      %v1732 = vpop.f32.mrb[0].mxu0
      %v1733 = vpop.f32.mrb[0].mxu0
      %v1734 = vadd.f32 0.0, %v1733
      %v1735 = vpop.f32.mrb[0].mxu0
      %1736 = vmatprep.mubr.bf16.mxu0 0
      %1737 = vmatmul.mubr.bf16.gmra.mrb[0].mxu0 %v1688
      %v1738 = vpop.f32.mrb[0].mxu0
      %v1739 = vadd.f32 0.0, %v1738
      %v1740 = vpop.f32.mrb[0].mxu0
      %v1741 = vpop.f32.mrb[0].mxu0
      %v1742 = vadd.f32 0.0, %v1741
      %v1743 = vpop.f32.mrb[0].mxu0
      %1744 = vmatprep.mubr.bf16.mxu0 0
      %1745 = vmatmul.mubr.bf16.gmra.mrb[0].mxu0 %v1691
      %v1746 = vpop.f32.mrb[0].mxu0
      %v1747 = vadd.f32 0.0, %v1746
      %v1748 = vpop.f32.mrb[0].mxu0
      %v1749 = vpop.f32.mrb[0].mxu0
      %v1750 = vadd.f32 0.0, %v1749
      %v1751 = vpop.f32.mrb[0].mxu0
      %1752 = vmatprep.mubr.bf16.mxu0 0
      %1753 = vmatmul.mubr.bf16.gmra.mrb[0].mxu0 %v1694
      %v1754 = vpop.f32.mrb[0].mxu0
      %v1755 = vadd.f32 0.0, %v1754
      %v1756 = vpop.f32.mrb[0].mxu0
      %v1757 = vpop.f32.mrb[0].mxu0
      %v1758 = vadd.f32 0.0, %v1757
      %v1759 = vpop.f32.mrb[0].mxu0
      %1760 = vdwg.mxu0
      %v1761 = vadd.f32 %v1284, %v1731
      %v1762 = vadd.f32 %v1287, %v1734
      %v1763 = vadd.f32 %v1292, %v1739
      %v1764 = vadd.f32 %v1295, %v1742
      %v1765 = vadd.f32 %v1300, %v1747
      %v1766 = vadd.f32 %v1303, %v1750
      %v1767 = vadd.f32 %v1308, %v1755
      %v1768 = vadd.f32 %v1311, %v1758
      %s1769 = scalar_lea.vmem %s389, 96
      %v1770 = vld [vmem:[%s1769] sm:$0xf]
      %v1771 = vld [vmem:[%s1769 + $0x4] sm:$0xf]
      %v1772 = vld [vmem:[%s1769 + $0x8] sm:$0xf]
      %v1773 = vld [vmem:[%s1769 + $0xc] sm:$0xf]
      %v1774 = vld [vmem:[%s1769 + $0x10] sm:$0xf]
      %v1775 = vld [vmem:[%s1769 + $0x14] sm:$0xf]
      %v1776 = vld [vmem:[%s1769 + $0x18] sm:$0xf]
      %v1777 = vld [vmem:[%s1769 + $0x1c] sm:$0xf]
      %s1778 = scalar_lea.vmem %s395, 96
      %v1779 = vld [vmem:[%s1778] sm:$0xf]
      %v1780 = vld [vmem:[%s1778 + $0x4] sm:$0xf]
      %v1781 = vld [vmem:[%s1778 + $0x8] sm:$0xf]
      %v1782 = vld [vmem:[%s1778 + $0xc] sm:$0xf]
      %v1783 = vld [vmem:[%s1778 + $0x10] sm:$0xf]
      %v1784 = vld [vmem:[%s1778 + $0x14] sm:$0xf]
      %v1785 = vld [vmem:[%s1778 + $0x18] sm:$0xf]
      %v1786 = vld [vmem:[%s1778 + $0x1c] sm:$0xf]
      %s1787 = scalar_lea.vmem %s400, 96
      %v1788 = vld [vmem:[%s1787] sm:$0xf]
      %v1789 = vld [vmem:[%s1787 + $0x4] sm:$0xf]
      %v1790 = vld [vmem:[%s1787 + $0x8] sm:$0xf]
      %v1791 = vld [vmem:[%s1787 + $0xc] sm:$0xf]
      %v1792 = vld [vmem:[%s1787 + $0x10] sm:$0xf]
      %v1793 = vld [vmem:[%s1787 + $0x14] sm:$0xf]
      %v1794 = vld [vmem:[%s1787 + $0x18] sm:$0xf]
      %v1795 = vld [vmem:[%s1787 + $0x1c] sm:$0xf]
      %v1804 = vunpack.c.l.b16 %v1770
      %v1805 = vunpack.c.l.b16 %v1771
      %v1806 = vunpack.c.l.b16 %v1772
      %v1807 = vunpack.c.l.b16 %v1773
      %v1808 = vunpack.c.l.b16 %v1774
      %v1809 = vunpack.c.l.b16 %v1775
      %v1810 = vunpack.c.l.b16 %v1776
      %v1811 = vunpack.c.l.b16 %v1777
      %v1812 = vpack.c.b16 %v1805, %v1804
      %v1813 = vpack.c.b16 %v1807, %v1806
      %v1814 = vpack.c.b16 %v1809, %v1808
      %v1815 = vpack.c.b16 %v1811, %v1810
      %v1824 = vunpack.c.l.b16 %v1779
      %v1825 = vunpack.c.l.b16 %v1780
      %v1826 = vunpack.c.l.b16 %v1781
      %v1827 = vunpack.c.l.b16 %v1782
      %v1828 = vunpack.c.l.b16 %v1783
      %v1829 = vunpack.c.l.b16 %v1784
      %v1830 = vunpack.c.l.b16 %v1785
      %v1831 = vunpack.c.l.b16 %v1786
      %v1832 = vpack.c.b16 %v1825, %v1824
      %v1833 = vpack.c.b16 %v1827, %v1826
      %v1834 = vpack.c.b16 %v1829, %v1828
      %v1835 = vpack.c.b16 %v1831, %v1830
      %v1837 = vsel %vm486, %v1812, 0
      %v1840 = vsel %vm486, %v1813, 0
      %v1843 = vsel %vm486, %v1814, 0
      %v1846 = vsel %vm486, %v1815, 0
      %v1849 = vsel %vm486, %v1832, 0
      %v1852 = vsel %vm486, %v1833, 0
      %v1855 = vsel %vm486, %v1834, 0
      %v1858 = vsel %vm486, %v1835, 0
      %1860 = vmatprep.subr.bf16.mxu0 0
      %1861 = vmatpush1.bf16.xpose.msra.mxu0 %v1849
      %1862 = vmatprep.subr.bf16.mxu0 0
      %1863 = vmatpush1.bf16.xpose.msra.mxu0 %v1852
      %1864 = vmatprep.subr.bf16.mxu0 0
      %1865 = vmatpush1.bf16.xpose.msra.mxu0 %v1855
      %1866 = vmatprep.subr.bf16.mxu0 0
      %1867 = vmatpush1.bf16.xpose.msra.mxu0 %v1858
      %1868 = vmatprep.subr.bf16.mxu0 0
      %1869 = vmatpush1.bf16.xpose.msra.mxu0 0
      %1870 = vmatprep.subr.bf16.mxu0 0
      %1871 = vmatpush1.bf16.xpose.msra.mxu0 0
      %1872 = vmatprep.subr.bf16.mxu0 0
      %1873 = vmatpush1.bf16.xpose.msra.mxu0 0
      %1874 = vmatprep.subr.bf16.mxu0 0
      %1875 = vmatpush1.bf16.xpose.msra.mxu0 0
      %1876 = vmatprep.subr.bf16.mxu0 0
      %1877 = vmatpush1.bf16.xpose.msra.mxu0 0
      %1878 = vmatprep.subr.bf16.mxu0 0
      %1879 = vmatpush1.bf16.xpose.msra.mxu0 0
      %1880 = vmatprep.subr.bf16.mxu0 0
      %1881 = vmatpush1.bf16.xpose.msra.mxu0 0
      %1882 = vmatprep.subr.bf16.mxu0 0
      %1883 = vmatpush1.bf16.xpose.msra.mxu0 0
      %1884 = vmatprep.subr.bf16.mxu0 0
      %1885 = vmatpush1.bf16.xpose.msra.mxu0 0
      %1886 = vmatprep.subr.bf16.mxu0 0
      %1887 = vmatpush1.bf16.xpose.msra.mxu0 0
      %1888 = vmatprep.subr.bf16.mxu0 0
      %1889 = vmatpush1.bf16.xpose.msra.mxu0 0
      %1890 = vmatprep.subr.bf16.mxu0 0
      %1891 = vmatpush1.bf16.xpose.msra.mxu0 0
      %1892 = vmatprep.mubr.bf16.mxu0 0
      %1893 = vmatmul.mubr.bf16.gmra.mrb[0].mxu0 %v1837
      %v1894 = vpop.f32.mrb[0].mxu0
      %v1895 = vadd.f32 0.0, %v1894
      %v1896 = vpop.f32.mrb[0].mxu0
      %v1897 = vpop.f32.mrb[0].mxu0
      %v1898 = vadd.f32 0.0, %v1897
      %v1899 = vpop.f32.mrb[0].mxu0
      %1900 = vmatprep.mubr.bf16.mxu0 0
      %1901 = vmatmul.mubr.bf16.gmra.mrb[0].mxu0 %v1840
      %v1902 = vpop.f32.mrb[0].mxu0
      %v1903 = vadd.f32 0.0, %v1902
      %v1904 = vpop.f32.mrb[0].mxu0
      %v1905 = vpop.f32.mrb[0].mxu0
      %v1906 = vadd.f32 0.0, %v1905
      %v1907 = vpop.f32.mrb[0].mxu0
      %1908 = vmatprep.mubr.bf16.mxu0 0
      %1909 = vmatmul.mubr.bf16.gmra.mrb[0].mxu0 %v1843
      %v1910 = vpop.f32.mrb[0].mxu0
      %v1911 = vadd.f32 0.0, %v1910
      %v1912 = vpop.f32.mrb[0].mxu0
      %v1913 = vpop.f32.mrb[0].mxu0
      %v1914 = vadd.f32 0.0, %v1913
      %v1915 = vpop.f32.mrb[0].mxu0
      %1916 = vmatprep.mubr.bf16.mxu0 0
      %1917 = vmatmul.mubr.bf16.gmra.mrb[0].mxu0 %v1846
      %v1918 = vpop.f32.mrb[0].mxu0
      %v1919 = vadd.f32 0.0, %v1918
      %v1920 = vpop.f32.mrb[0].mxu0
      %v1921 = vpop.f32.mrb[0].mxu0
      %v1922 = vadd.f32 0.0, %v1921
      %v1923 = vpop.f32.mrb[0].mxu0
      %1924 = vdwg.mxu0
      %v1925 = vsel %vm576, %v1895, -inf
      %1926 = vmax.xlane.f32.xlu0 %v1925
      %v1927 = vpop.xlane.xlu0 %1926
      %v1928 = vsel %vm576, %v1898, -inf
      %1929 = vmax.xlane.f32.xlu0 %v1928
      %v1930 = vpop.xlane.xlu0 %1929
      %v1931 = vsel %vm576, %v1903, -inf
      %1932 = vmax.xlane.f32.xlu0 %v1931
      %v1933 = vpop.xlane.xlu0 %1932
      %v1934 = vsel %vm576, %v1906, -inf
      %1935 = vmax.xlane.f32.xlu0 %v1934
      %v1936 = vpop.xlane.xlu0 %1935
      %v1937 = vsel %vm576, %v1911, -inf
      %1938 = vmax.xlane.f32.xlu0 %v1937
      %v1939 = vpop.xlane.xlu0 %1938
      %v1940 = vsel %vm576, %v1914, -inf
      %1941 = vmax.xlane.f32.xlu0 %v1940
      %v1942 = vpop.xlane.xlu0 %1941
      %v1943 = vsel %vm576, %v1919, -inf
      %1944 = vmax.xlane.f32.xlu0 %v1943
      %v1945 = vpop.xlane.xlu0 %1944
      %v1946 = vsel %vm576, %v1922, -inf
      %1947 = vmax.xlane.f32.xlu0 %v1946
      %v1948 = vpop.xlane.xlu0 %1947
      %v1949 = vsub.f32 %v1895, %v1927
      %v1950 = vsub.f32 %v1898, %v1930
      %v1951 = vsub.f32 %v1903, %v1933
      %v1952 = vsub.f32 %v1906, %v1936
      %v1953 = vsub.f32 %v1911, %v1939
      %v1954 = vsub.f32 %v1914, %v1942
      %v1955 = vsub.f32 %v1919, %v1945
      %v1956 = vsub.f32 %v1922, %v1948
      %v1957 = vmul.f32 %v1949, 1.442695
      %v1958 = vpow.pop %v1957
      %v1959 = vmul.f32 %v1950, 1.442695
      %v1960 = vpow.pop %v1959
      %v1961 = vmul.f32 %v1951, 1.442695
      %v1962 = vpow.pop %v1961
      %v1963 = vmul.f32 %v1952, 1.442695
      %v1964 = vpow.pop %v1963
      %v1965 = vmul.f32 %v1953, 1.442695
      %v1966 = vpow.pop %v1965
      %v1967 = vmul.f32 %v1954, 1.442695
      %v1968 = vpow.pop %v1967
      %v1969 = vmul.f32 %v1955, 1.442695
      %v1970 = vpow.pop %v1969
      %v1971 = vmul.f32 %v1956, 1.442695
      %v1972 = vpow.pop %v1971
      %v1973 = vsel %vm576, %v1958, 0.0
      %1974 = vadd.xlane.f32.xlu0 %v1973
      %v1975 = vpop.xlane.xlu0 %1974
      %v1976 = vsel %vm576, %v1960, 0.0
      %1977 = vadd.xlane.f32.xlu0 %v1976
      %v1978 = vpop.xlane.xlu0 %1977
      %v1979 = vsel %vm576, %v1962, 0.0
      %1980 = vadd.xlane.f32.xlu0 %v1979
      %v1981 = vpop.xlane.xlu0 %1980
      %v1982 = vsel %vm576, %v1964, 0.0
      %1983 = vadd.xlane.f32.xlu0 %v1982
      %v1984 = vpop.xlane.xlu0 %1983
      %v1985 = vsel %vm576, %v1966, 0.0
      %1986 = vadd.xlane.f32.xlu0 %v1985
      %v1987 = vpop.xlane.xlu0 %1986
      %v1988 = vsel %vm576, %v1968, 0.0
      %1989 = vadd.xlane.f32.xlu0 %v1988
      %v1990 = vpop.xlane.xlu0 %1989
      %v1991 = vsel %vm576, %v1970, 0.0
      %1992 = vadd.xlane.f32.xlu0 %v1991
      %v1993 = vpop.xlane.xlu0 %1992
      %v1994 = vsel %vm576, %v1972, 0.0
      %1995 = vadd.xlane.f32.xlu0 %v1994
      %v1996 = vpop.xlane.xlu0 %1995
      %v1997 = vrcp.pop %v1975
      %v1998 = vrcp.pop %v1978
      %v1999 = vrcp.pop %v1981
      %v2000 = vrcp.pop %v1984
      %v2001 = vrcp.pop %v1987
      %v2002 = vrcp.pop %v1990
      %v2003 = vrcp.pop %v1993
      %v2004 = vrcp.pop %v1996
      %v2005 = vmul.f32 %v1958, %v1997
      %v2006 = vmul.f32 %v1960, %v1998
      %v2007 = vmul.f32 %v1962, %v1999
      %v2008 = vmul.f32 %v1964, %v2000
      %v2009 = vmul.f32 %v1966, %v2001
      %v2010 = vmul.f32 %v1968, %v2002
      %v2011 = vmul.f32 %v1970, %v2003
      %v2012 = vmul.f32 %v1972, %v2004
      %v2013 = vpack.c.bf16 %v2006, %v2005
      %v2014 = vpack.c.bf16 %v2008, %v2007
      %v2015 = vpack.c.bf16 %v2010, %v2009
      %v2016 = vpack.c.bf16 %v2012, %v2011
      %v2025 = vunpack.c.l.b16 %v1788
      %v2026 = vunpack.c.l.b16 %v1789
      %v2027 = vunpack.c.l.b16 %v1790
      %v2028 = vunpack.c.l.b16 %v1791
      %v2029 = vunpack.c.l.b16 %v1792
      %v2030 = vunpack.c.l.b16 %v1793
      %v2031 = vunpack.c.l.b16 %v1794
      %v2032 = vunpack.c.l.b16 %v1795
      %v2033 = vpack.c.b16 %v2026, %v2025
      %v2034 = vpack.c.b16 %v2028, %v2027
      %v2035 = vpack.c.b16 %v2030, %v2029
      %v2036 = vpack.c.b16 %v2032, %v2031
      %v2042 = vsel %vm576, %v2013, 0
      %v2045 = vsel %vm576, %v2014, 0
      %v2048 = vsel %vm576, %v2015, 0
      %v2051 = vsel %vm576, %v2016, 0
      %2053 = vmatprep.subr.bf16.mxu0 0
      %2054 = vmatpush1.bf16.msra.mxu0 %v2033
      %2055 = vmatprep.subr.bf16.mxu0 0
      %2056 = vmatpush1.bf16.msra.mxu0 %v2034
      %2057 = vmatprep.subr.bf16.mxu0 0
      %2058 = vmatpush1.bf16.msra.mxu0 %v2035
      %2059 = vmatprep.subr.bf16.mxu0 0
      %2060 = vmatpush1.bf16.msra.mxu0 %v2036
      %2061 = vmatprep.subr.bf16.mxu0 0
      %2062 = vmatpush1.bf16.msra.mxu0 0
      %2063 = vmatprep.subr.bf16.mxu0 0
      %2064 = vmatpush1.bf16.msra.mxu0 0
      %2065 = vmatprep.subr.bf16.mxu0 0
      %2066 = vmatpush1.bf16.msra.mxu0 0
      %2067 = vmatprep.subr.bf16.mxu0 0
      %2068 = vmatpush1.bf16.msra.mxu0 0
      %2069 = vmatprep.subr.bf16.mxu0 0
      %2070 = vmatpush1.bf16.msra.mxu0 0
      %2071 = vmatprep.subr.bf16.mxu0 0
      %2072 = vmatpush1.bf16.msra.mxu0 0
      %2073 = vmatprep.subr.bf16.mxu0 0
      %2074 = vmatpush1.bf16.msra.mxu0 0
      %2075 = vmatprep.subr.bf16.mxu0 0
      %2076 = vmatpush1.bf16.msra.mxu0 0
      %2077 = vmatprep.subr.bf16.mxu0 0
      %2078 = vmatpush1.bf16.msra.mxu0 0
      %2079 = vmatprep.subr.bf16.mxu0 0
      %2080 = vmatpush1.bf16.msra.mxu0 0
      %2081 = vmatprep.subr.bf16.mxu0 0
      %2082 = vmatpush1.bf16.msra.mxu0 0
      %2083 = vmatprep.subr.bf16.mxu0 0
      %2084 = vmatpush1.bf16.msra.mxu0 0
      %2085 = vmatprep.mubr.bf16.mxu0 0
      %2086 = vmatmul.mubr.bf16.gmra.mrb[0].mxu0 %v2042
      %v2087 = vpop.f32.mrb[0].mxu0
      %v2088 = vadd.f32 0.0, %v2087
      %v2089 = vpop.f32.mrb[0].mxu0
      %v2090 = vpop.f32.mrb[0].mxu0
      %v2091 = vadd.f32 0.0, %v2090
      %v2092 = vpop.f32.mrb[0].mxu0
      %2093 = vmatprep.mubr.bf16.mxu0 0
      %2094 = vmatmul.mubr.bf16.gmra.mrb[0].mxu0 %v2045
      %v2095 = vpop.f32.mrb[0].mxu0
      %v2096 = vadd.f32 0.0, %v2095
      %v2097 = vpop.f32.mrb[0].mxu0
      %v2098 = vpop.f32.mrb[0].mxu0
      %v2099 = vadd.f32 0.0, %v2098
      %v2100 = vpop.f32.mrb[0].mxu0
      %2101 = vmatprep.mubr.bf16.mxu0 0
      %2102 = vmatmul.mubr.bf16.gmra.mrb[0].mxu0 %v2048
      %v2103 = vpop.f32.mrb[0].mxu0
      %v2104 = vadd.f32 0.0, %v2103
      %v2105 = vpop.f32.mrb[0].mxu0
      %v2106 = vpop.f32.mrb[0].mxu0
      %v2107 = vadd.f32 0.0, %v2106
      %v2108 = vpop.f32.mrb[0].mxu0
      %2109 = vmatprep.mubr.bf16.mxu0 0
      %2110 = vmatmul.mubr.bf16.gmra.mrb[0].mxu0 %v2051
      %v2111 = vpop.f32.mrb[0].mxu0
      %v2112 = vadd.f32 0.0, %v2111
      %v2113 = vpop.f32.mrb[0].mxu0
      %v2114 = vpop.f32.mrb[0].mxu0
      %v2115 = vadd.f32 0.0, %v2114
      %v2116 = vpop.f32.mrb[0].mxu0
      %2117 = vdwg.mxu0
      %v2118 = vpack.c.bf16 %v2091, %v2088
      %v2119 = vpack.c.bf16 %v2099, %v2096
      %v2120 = vpack.c.bf16 %v2107, %v2104
      %v2121 = vpack.c.bf16 %v2115, %v2112
      %s2122 = scalar_lea.vmem %s4, 48
      %v2123 = vld [vmem:[%s2122] sm:$0xf]
      %v2124 = vld [vmem:[%s2122 + $0x4] sm:$0xf]
      %v2125 = vld [vmem:[%s2122 + $0x8] sm:$0xf]
      %v2126 = vld [vmem:[%s2122 + $0xc] sm:$0xf]
      %v2131 = vunpack.c.l.b16 %v2123
      %v2132 = vunpack.c.l.b16 %v2124
      %v2133 = vunpack.c.l.b16 %v2125
      %v2134 = vunpack.c.l.b16 %v2126
      %v2135 = vpack.c.b16 %v2132, %v2131
      %v2136 = vpack.c.b16 %v2134, %v2133
      %v2140 = vsel %vm486, %v2118, 0
      %v2143 = vsel %vm486, %v2119, 0
      %v2146 = vsel %vm486, %v2120, 0
      %v2149 = vsel %vm486, %v2121, 0
      %2151 = vmatprep.subr.bf16.mxu0 0
      %2152 = vmatpush1.bf16.msra.mxu0 %v2135
      %2153 = vmatprep.subr.bf16.mxu0 0
      %2154 = vmatpush1.bf16.msra.mxu0 %v2136
      %2155 = vmatprep.subr.bf16.mxu0 0
      %2156 = vmatpush1.bf16.msra.mxu0 0
      %2157 = vmatprep.subr.bf16.mxu0 0
      %2158 = vmatpush1.bf16.msra.mxu0 0
      %2159 = vmatprep.subr.bf16.mxu0 0
      %2160 = vmatpush1.bf16.msra.mxu0 0
      %2161 = vmatprep.subr.bf16.mxu0 0
      %2162 = vmatpush1.bf16.msra.mxu0 0
      %2163 = vmatprep.subr.bf16.mxu0 0
      %2164 = vmatpush1.bf16.msra.mxu0 0
      %2165 = vmatprep.subr.bf16.mxu0 0
      %2166 = vmatpush1.bf16.msra.mxu0 0
      %2167 = vmatprep.subr.bf16.mxu0 0
      %2168 = vmatpush1.bf16.msra.mxu0 0
      %2169 = vmatprep.subr.bf16.mxu0 0
      %2170 = vmatpush1.bf16.msra.mxu0 0
      %2171 = vmatprep.subr.bf16.mxu0 0
      %2172 = vmatpush1.bf16.msra.mxu0 0
      %2173 = vmatprep.subr.bf16.mxu0 0
      %2174 = vmatpush1.bf16.msra.mxu0 0
      %2175 = vmatprep.subr.bf16.mxu0 0
      %2176 = vmatpush1.bf16.msra.mxu0 0
      %2177 = vmatprep.subr.bf16.mxu0 0
      %2178 = vmatpush1.bf16.msra.mxu0 0
      %2179 = vmatprep.subr.bf16.mxu0 0
      %2180 = vmatpush1.bf16.msra.mxu0 0
      %2181 = vmatprep.subr.bf16.mxu0 0
      %2182 = vmatpush1.bf16.msra.mxu0 0
      %2183 = vmatprep.mubr.bf16.mxu0 0
      %2184 = vmatmul.mubr.bf16.gmra.mrb[0].mxu0 %v2140
      %v2185 = vpop.f32.mrb[0].mxu0
      %v2186 = vadd.f32 0.0, %v2185
      %v2187 = vpop.f32.mrb[0].mxu0
      %v2188 = vpop.f32.mrb[0].mxu0
      %v2189 = vadd.f32 0.0, %v2188
      %v2190 = vpop.f32.mrb[0].mxu0
      %2191 = vmatprep.mubr.bf16.mxu0 0
      %2192 = vmatmul.mubr.bf16.gmra.mrb[0].mxu0 %v2143
      %v2193 = vpop.f32.mrb[0].mxu0
      %v2194 = vadd.f32 0.0, %v2193
      %v2195 = vpop.f32.mrb[0].mxu0
      %v2196 = vpop.f32.mrb[0].mxu0
      %v2197 = vadd.f32 0.0, %v2196
      %v2198 = vpop.f32.mrb[0].mxu0
      %2199 = vmatprep.mubr.bf16.mxu0 0
      %2200 = vmatmul.mubr.bf16.gmra.mrb[0].mxu0 %v2146
      %v2201 = vpop.f32.mrb[0].mxu0
      %v2202 = vadd.f32 0.0, %v2201
      %v2203 = vpop.f32.mrb[0].mxu0
      %v2204 = vpop.f32.mrb[0].mxu0
      %v2205 = vadd.f32 0.0, %v2204
      %v2206 = vpop.f32.mrb[0].mxu0
      %2207 = vmatprep.mubr.bf16.mxu0 0
      %2208 = vmatmul.mubr.bf16.gmra.mrb[0].mxu0 %v2149
      %v2209 = vpop.f32.mrb[0].mxu0
      %v2210 = vadd.f32 0.0, %v2209
      %v2211 = vpop.f32.mrb[0].mxu0
      %v2212 = vpop.f32.mrb[0].mxu0
      %v2213 = vadd.f32 0.0, %v2212
      %v2214 = vpop.f32.mrb[0].mxu0
      %2215 = vdwg.mxu0
      %v2216 = vadd.f32 %v1761, %v2186
      %v2217 = vadd.f32 %v1762, %v2189
      %v2218 = vadd.f32 %v1763, %v2194
      %v2219 = vadd.f32 %v1764, %v2197
      %v2220 = vadd.f32 %v1765, %v2202
      %v2221 = vadd.f32 %v1766, %v2205
      %v2222 = vadd.f32 %v1767, %v2210
      %v2223 = vadd.f32 %v1768, %v2213
      %v2224 = vld [vmem:[%s5] sm:$0x1]
      %v2226 = vlaneseq
      %v2227 = vshrl.u32 %v2226, 7
      %v2228 = vsub.s32 0, %v2227
      %v2229 = vrot.slane %v2224, %v2228
      %v2231 = vadd.f32 %v2216, %v2229
      %v2232 = vadd.f32 %v2217, %v2229
      %v2233 = vadd.f32 %v2218, %v2229
      %v2234 = vadd.f32 %v2219, %v2229
      %v2235 = vadd.f32 %v2220, %v2229
      %v2236 = vadd.f32 %v2221, %v2229
      %v2237 = vadd.f32 %v2222, %v2229
      %v2238 = vadd.f32 %v2223, %v2229
      %v2239 = vld [vmem:[%s6] sm:$0x1]
      %v2240 = vld [vmem:[%s7] sm:$0x1]
      %2241 = vadd.xlane.f32.xlu0 %v2231
      %v2242 = vpop.xlane.xlu0 %2241
      %2243 = vadd.xlane.f32.xlu0 %v2232
      %v2244 = vpop.xlane.xlu0 %2243
      %2245 = vadd.xlane.f32.xlu0 %v2233
      %v2246 = vpop.xlane.xlu0 %2245
      %2247 = vadd.xlane.f32.xlu0 %v2234
      %v2248 = vpop.xlane.xlu0 %2247
      %2249 = vadd.xlane.f32.xlu0 %v2235
      %v2250 = vpop.xlane.xlu0 %2249
      %2251 = vadd.xlane.f32.xlu0 %v2236
      %v2252 = vpop.xlane.xlu0 %2251
      %2253 = vadd.xlane.f32.xlu0 %v2237
      %v2254 = vpop.xlane.xlu0 %2253
      %2255 = vadd.xlane.f32.xlu0 %v2238
      %v2256 = vpop.xlane.xlu0 %2255
      %v2257 = vrcp.pop 128.0
      %v2258 = vmul.f32 %v2242, %v2257
      %v2259 = vmul.f32 %v2244, %v2257
      %v2260 = vmul.f32 %v2246, %v2257
      %v2261 = vmul.f32 %v2248, %v2257
      %v2262 = vmul.f32 %v2250, %v2257
      %v2263 = vmul.f32 %v2252, %v2257
      %v2264 = vmul.f32 %v2254, %v2257
      %v2265 = vmul.f32 %v2256, %v2257
      %v2266 = vsub.f32 %v2231, %v2258
      %v2267 = vsub.f32 %v2232, %v2259
      %v2268 = vsub.f32 %v2233, %v2260
      %v2269 = vsub.f32 %v2234, %v2261
      %v2270 = vsub.f32 %v2235, %v2262
      %v2271 = vsub.f32 %v2236, %v2263
      %v2272 = vsub.f32 %v2237, %v2264
      %v2273 = vsub.f32 %v2238, %v2265
      %v2274 = vmul.f32 %v2266, %v2266
      %v2275 = vmul.f32 %v2267, %v2267
      %v2276 = vmul.f32 %v2268, %v2268
      %v2277 = vmul.f32 %v2269, %v2269
      %v2278 = vmul.f32 %v2270, %v2270
      %v2279 = vmul.f32 %v2271, %v2271
      %v2280 = vmul.f32 %v2272, %v2272
      %v2281 = vmul.f32 %v2273, %v2273
      %2282 = vadd.xlane.f32.xlu0 %v2274
      %v2283 = vpop.xlane.xlu0 %2282
      %2284 = vadd.xlane.f32.xlu0 %v2275
      %v2285 = vpop.xlane.xlu0 %2284
      %2286 = vadd.xlane.f32.xlu0 %v2276
      %v2287 = vpop.xlane.xlu0 %2286
      %2288 = vadd.xlane.f32.xlu0 %v2277
      %v2289 = vpop.xlane.xlu0 %2288
      %2290 = vadd.xlane.f32.xlu0 %v2278
      %v2291 = vpop.xlane.xlu0 %2290
      %2292 = vadd.xlane.f32.xlu0 %v2279
      %v2293 = vpop.xlane.xlu0 %2292
      %2294 = vadd.xlane.f32.xlu0 %v2280
      %v2295 = vpop.xlane.xlu0 %2294
      %2296 = vadd.xlane.f32.xlu0 %v2281
      %v2297 = vpop.xlane.xlu0 %2296
      %v2298 = vmul.f32 %v2283, %v2257
      %v2299 = vmul.f32 %v2285, %v2257
      %v2300 = vmul.f32 %v2287, %v2257
      %v2301 = vmul.f32 %v2289, %v2257
      %v2302 = vmul.f32 %v2291, %v2257
      %v2303 = vmul.f32 %v2293, %v2257
      %v2304 = vmul.f32 %v2295, %v2257
      %v2305 = vmul.f32 %v2297, %v2257
      %v2306 = vadd.f32 %v2298, 1e-05
      %v2307 = vadd.f32 %v2299, 1e-05
      %v2308 = vadd.f32 %v2300, 1e-05
      %v2309 = vadd.f32 %v2301, 1e-05
      %v2310 = vadd.f32 %v2302, 1e-05
      %v2311 = vadd.f32 %v2303, 1e-05
      %v2312 = vadd.f32 %v2304, 1e-05
      %v2313 = vadd.f32 %v2305, 1e-05
      %v2314 = vrsqrt.pop %v2306
      %v2315 = vrsqrt.pop %v2307
      %v2316 = vrsqrt.pop %v2308
      %v2317 = vrsqrt.pop %v2309
      %v2318 = vrsqrt.pop %v2310
      %v2319 = vrsqrt.pop %v2311
      %v2320 = vrsqrt.pop %v2312
      %v2321 = vrsqrt.pop %v2313
      %v2322 = vmul.f32 %v2266, %v2314
      %v2323 = vmul.f32 %v2267, %v2315
      %v2324 = vmul.f32 %v2268, %v2316
      %v2325 = vmul.f32 %v2269, %v2317
      %v2326 = vmul.f32 %v2270, %v2318
      %v2327 = vmul.f32 %v2271, %v2319
      %v2328 = vmul.f32 %v2272, %v2320
      %v2329 = vmul.f32 %v2273, %v2321
      %v2331 = vlaneseq
      %v2332 = vshrl.u32 %v2331, 7
      %v2333 = vsub.s32 0, %v2332
      %v2334 = vrot.slane %v2239, %v2333
      %v2336 = vmul.f32 %v2322, %v2334
      %v2337 = vmul.f32 %v2323, %v2334
      %v2338 = vmul.f32 %v2324, %v2334
      %v2339 = vmul.f32 %v2325, %v2334
      %v2340 = vmul.f32 %v2326, %v2334
      %v2341 = vmul.f32 %v2327, %v2334
      %v2342 = vmul.f32 %v2328, %v2334
      %v2343 = vmul.f32 %v2329, %v2334
      %v2345 = vlaneseq
      %v2346 = vshrl.u32 %v2345, 7
      %v2347 = vsub.s32 0, %v2346
      %v2348 = vrot.slane %v2240, %v2347
      %v2350 = vadd.f32 %v2336, %v2348
      %v2351 = vadd.f32 %v2337, %v2348
      %v2352 = vadd.f32 %v2338, %v2348
      %v2353 = vadd.f32 %v2339, %v2348
      %v2354 = vadd.f32 %v2340, %v2348
      %v2355 = vadd.f32 %v2341, %v2348
      %v2356 = vadd.f32 %v2342, %v2348
      %v2357 = vadd.f32 %v2343, %v2348
      %v2358 = vld [vmem:[%s409] sm:$0xff]
      %v2359 = vld [vmem:[%s409 + $0x8] sm:$0xff]
      %v2360 = vld [vmem:[%s409 + $0x10] sm:$0xff]
      %v2361 = vld [vmem:[%s409 + $0x18] sm:$0xff]
      %v2362 = vld [vmem:[%s409 + $0x20] sm:$0xff]
      %v2363 = vld [vmem:[%s409 + $0x28] sm:$0xff]
      %v2364 = vld [vmem:[%s409 + $0x30] sm:$0xff]
      %v2365 = vld [vmem:[%s409 + $0x38] sm:$0xff]
      %v2366 = vadd.f32 %v2358, %v2350
      %v2367 = vadd.f32 %v2359, %v2351
      %v2368 = vadd.f32 %v2360, %v2352
      %v2369 = vadd.f32 %v2361, %v2353
      %v2370 = vadd.f32 %v2362, %v2354
      %v2371 = vadd.f32 %v2363, %v2355
      %v2372 = vadd.f32 %v2364, %v2356
      %v2373 = vadd.f32 %v2365, %v2357
      %2374 = vst [vmem:[%s419] sm:$0xff] %v2366
      %2375 = vst [vmem:[%s419 + $0x8] sm:$0xff] %v2367
      %2376 = vst [vmem:[%s419 + $0x10] sm:$0xff] %v2368
      %2377 = vst [vmem:[%s419 + $0x18] sm:$0xff] %v2369
      %2378 = vst [vmem:[%s419 + $0x20] sm:$0xff] %v2370
      %2379 = vst [vmem:[%s419 + $0x28] sm:$0xff] %v2371
      %2380 = vst [vmem:[%s419 + $0x30] sm:$0xff] %v2372
      %2381 = vst [vmem:[%s419 + $0x38] sm:$0xff] %v2373
      %s2382 = smul.u32 8, %s24
      %p2383 = scmp.lt.s32.totalorder %s23, 1
      %s2384 = scalar_select %p2383, %s23, 1
      %p2385 = scmp.lt.s32.totalorder %s2382, 7
      %s2386 = scalar_select %p2385, %s2382, 7
      %s2387 = smul.addr %s2384, 8
      %s2388 = sadd.s32 %s2386, %s2387
      %s2389 = smul.addr %s2388, 8
      %s2390 = scalar_lea.vmem %s8, %s2389
      // Predicated region
      $region53: #{decoder_layer_forward.7} parent=51 // pred_check
        %p2391 = pneg %p243
      $region54: #{decoder_layer_forward.7} parent=51 // pred_check_branch
        %2393 = sbr.rel (%p2391) target = $region56
      $region55: #{decoder_layer_forward.7} parent=51 // pred_region
        %s2394 = smul.u32 8, %s24
      $region56: #{decoder_layer_forward.7} parent=51 // pred_fallthru
        _
    $region52: #{decoder_layer_forward.7} parent=5 // pred_fallthru
      _
    %p2395 = scmp.le.s32.totalorder 2, %s14
    // Predicated region
    $region57: #{decoder_layer_forward.7} parent=5 // pred_check
      %p2396 = pneg %p2395
    $region58: #{decoder_layer_forward.7} parent=5 // pred_check_branch
      %2398 = sbr.rel (%p2396) target = $region60
    $region59: #{decoder_layer_forward.7} parent=5 // pred_region
      %s2399 = ssub.s32 %s14, 2
      // Predicated region
      $region61: #{decoder_layer_forward.7} parent=59 // pred_check
        %p2400 = pneg %p249
      $region62: #{decoder_layer_forward.7} parent=59 // pred_check_branch
        %2402 = sbr.rel (%p2400) target = $region64
      $region63: #{decoder_layer_forward.7} parent=59 // pred_region
        %s2403 = smul.u32 8, %s26
        %p2404 = scmp.lt.s32.totalorder %s25, 1
        %s2405 = scalar_select %p2404, %s25, 1
        %p2406 = scmp.lt.s32.totalorder %s2403, 7
        %s2407 = scalar_select %p2406, %s2403, 7
        %s2408 = smul.addr %s2405, 8
        %s2409 = sadd.s32 %s2407, %s2408
        %s2410 = smul.addr %s2409, 8
        %s2411 = scalar_lea.vmem %s8, %s2410
      $region64: #{decoder_layer_forward.7} parent=59 // pred_fallthru
        _
    $region60: #{decoder_layer_forward.7} parent=5 // pred_fallthru
      _
  $region6: #{decoder_layer_forward.7} parent=0 // loop_footer
    %s18 = sadd.s32 1, %s14
  $region7: #{decoder_layer_forward.7} parent=0 // loop_footer_branch
    %13 = sbr.rel target = $region3
  $region8: #{decoder_layer_forward.7} parent=0 // loop_exit
    _

// kernel: decoder_layer_forward.11
$region0: #{decoder_layer_forward.11}
  #allocation0 [shape = 'u32[]', space=smem, size = 0x4, offset = 0x4, fixed_abs, tag = 'smem constant byte address 0x4 - core index']
  #allocation1 [shape = 'u32[144,128]{1,0:T(1,128)}', space=vmem, size = 0x12000, scoped, tag = 'internal scratch']
  %s0 = inlined_call_operand.vmem [shape: f32[128,128], index: 0, kind: input, shape index: {}]
  %s1 = inlined_call_operand.vmem [shape: f32[1,128], index: 1, kind: input, shape index: {}]
  %s2 = inlined_call_operand.vmem [shape: f32[1,128], index: 2, kind: input, shape index: {}]
  %s3 = inlined_call_operand.vmem [shape: bf16[128,256], index: 3, kind: input, shape index: {}]
  %s4 = inlined_call_operand.vmem [shape: f32[1,256], index: 4, kind: input, shape index: {}]
  %s5 = inlined_call_operand.vmem [shape: f32[1,256], index: 5, kind: input, shape index: {}]
  %s6 = inlined_call_operand.vmem [shape: f32[1,256], index: 6, kind: input, shape index: {}]
  %s7 = inlined_call_operand.vmem [shape: bf16[256,128], index: 7, kind: input, shape index: {}]
  %s8 = inlined_call_operand.vmem [shape: f32[1,128], index: 8, kind: input, shape index: {}]
  %s9 = inlined_call_operand.vmem [shape: f32[128,128], index: 9, kind: output, shape index: {}]
  %s10 = sld [smem:[#allocation0]]
  $region46: #{decoder_layer_forward.11} parent=0
    _
  %s12 = ssub.s32 1, %s10
  %s13 = scalar_select 0, %s12, %s10
  // Predicated region
  $region2: #{decoder_layer_forward.11} parent=0 // pred_check
    _
  $region3: #{decoder_layer_forward.11} parent=0 // pred_check_branch
    %15 = sbr.rel (0) target = $region5
  $region4: #{decoder_layer_forward.11} parent=0 // pred_region
    _
  $region5: #{decoder_layer_forward.11} parent=0 // pred_fallthru
    _
  // Predicated region
  $region6: #{decoder_layer_forward.11} parent=0 // pred_check
    _
  $region7: #{decoder_layer_forward.11} parent=0 // pred_check_branch
    %17 = sbr.rel (0) target = $region9
  $region8: #{decoder_layer_forward.11} parent=0 // pred_region
    _
  $region9: #{decoder_layer_forward.11} parent=0 // pred_fallthru
    _
  // Predicated region
  $region10: #{decoder_layer_forward.11} parent=0 // pred_check
    _
  $region11: #{decoder_layer_forward.11} parent=0 // pred_check_branch
    %19 = sbr.rel (0) target = $region13
  $region12: #{decoder_layer_forward.11} parent=0 // pred_region
    _
  $region13: #{decoder_layer_forward.11} parent=0 // pred_fallthru
    _
  // Predicated region
  $region14: #{decoder_layer_forward.11} parent=0 // pred_check
    _
  $region15: #{decoder_layer_forward.11} parent=0 // pred_check_branch
    %21 = sbr.rel (0) target = $region17
  $region16: #{decoder_layer_forward.11} parent=0 // pred_region
    _
  $region17: #{decoder_layer_forward.11} parent=0 // pred_fallthru
    _
  // Predicated region
  $region18: #{decoder_layer_forward.11} parent=0 // pred_check
    _
  $region19: #{decoder_layer_forward.11} parent=0 // pred_check_branch
    %23 = sbr.rel (0) target = $region21
  $region20: #{decoder_layer_forward.11} parent=0 // pred_region
    _
  $region21: #{decoder_layer_forward.11} parent=0 // pred_fallthru
    _
  // Predicated region
  $region22: #{decoder_layer_forward.11} parent=0 // pred_check
    _
  $region23: #{decoder_layer_forward.11} parent=0 // pred_check_branch
    %25 = sbr.rel (0) target = $region25
  $region24: #{decoder_layer_forward.11} parent=0 // pred_region
    _
  $region25: #{decoder_layer_forward.11} parent=0 // pred_fallthru
    _
  // Predicated region
  $region26: #{decoder_layer_forward.11} parent=0 // pred_check
    _
  $region27: #{decoder_layer_forward.11} parent=0 // pred_check_branch
    %27 = sbr.rel (0) target = $region29
  $region28: #{decoder_layer_forward.11} parent=0 // pred_region
    _
  $region29: #{decoder_layer_forward.11} parent=0 // pred_fallthru
    _
  // Predicated region
  $region30: #{decoder_layer_forward.11} parent=0 // pred_check
    _
  $region31: #{decoder_layer_forward.11} parent=0 // pred_check_branch
    %29 = sbr.rel (0) target = $region33
  $region32: #{decoder_layer_forward.11} parent=0 // pred_region
    _
  $region33: #{decoder_layer_forward.11} parent=0 // pred_fallthru
    _
  // Predicated region
  $region34: #{decoder_layer_forward.11} parent=0 // pred_check
    _
  $region35: #{decoder_layer_forward.11} parent=0 // pred_check_branch
    %31 = sbr.rel (0) target = $region37
  $region36: #{decoder_layer_forward.11} parent=0 // pred_region
    _
  $region37: #{decoder_layer_forward.11} parent=0 // pred_fallthru
    _
  %v33 = vld [vmem:[%s0] sm:$0xff]
  %v34 = vld [vmem:[%s0 + $0x8] sm:$0xff]
  %v35 = vld [vmem:[%s0 + $0x10] sm:$0xff]
  %v36 = vld [vmem:[%s0 + $0x18] sm:$0xff]
  %v37 = vld [vmem:[%s0 + $0x20] sm:$0xff]
  %v38 = vld [vmem:[%s0 + $0x28] sm:$0xff]
  %v39 = vld [vmem:[%s0 + $0x30] sm:$0xff]
  %v40 = vld [vmem:[%s0 + $0x38] sm:$0xff]
  %v41 = vld [vmem:[%s0 + $0x40] sm:$0xff]
  %v42 = vld [vmem:[%s0 + $0x48] sm:$0xff]
  %v43 = vld [vmem:[%s0 + $0x50] sm:$0xff]
  %v44 = vld [vmem:[%s0 + $0x58] sm:$0xff]
  %v45 = vld [vmem:[%s0 + $0x60] sm:$0xff]
  %v46 = vld [vmem:[%s0 + $0x68] sm:$0xff]
  %v47 = vld [vmem:[%s0 + $0x70] sm:$0xff]
  %v48 = vld [vmem:[%s0 + $0x78] sm:$0xff]
  %v49 = vld [vmem:[%s1] sm:$0x1]
  %v50 = vld [vmem:[%s2] sm:$0x1]
  %51 = vadd.xlane.f32.xlu0 %v33
  %v52 = vpop.xlane.xlu0 %51
  %53 = vadd.xlane.f32.xlu0 %v34
  %v54 = vpop.xlane.xlu0 %53
  %55 = vadd.xlane.f32.xlu0 %v35
  %v56 = vpop.xlane.xlu0 %55
  %57 = vadd.xlane.f32.xlu0 %v36
  %v58 = vpop.xlane.xlu0 %57
  %59 = vadd.xlane.f32.xlu0 %v37
  %v60 = vpop.xlane.xlu0 %59
  %61 = vadd.xlane.f32.xlu0 %v38
  %v62 = vpop.xlane.xlu0 %61
  %63 = vadd.xlane.f32.xlu0 %v39
  %v64 = vpop.xlane.xlu0 %63
  %65 = vadd.xlane.f32.xlu0 %v40
  %v66 = vpop.xlane.xlu0 %65
  %67 = vadd.xlane.f32.xlu0 %v41
  %v68 = vpop.xlane.xlu0 %67
  %69 = vadd.xlane.f32.xlu0 %v42
  %v70 = vpop.xlane.xlu0 %69
  %71 = vadd.xlane.f32.xlu0 %v43
  %v72 = vpop.xlane.xlu0 %71
  %73 = vadd.xlane.f32.xlu0 %v44
  %v74 = vpop.xlane.xlu0 %73
  %75 = vadd.xlane.f32.xlu0 %v45
  %v76 = vpop.xlane.xlu0 %75
  %77 = vadd.xlane.f32.xlu0 %v46
  %v78 = vpop.xlane.xlu0 %77
  %79 = vadd.xlane.f32.xlu0 %v47
  %v80 = vpop.xlane.xlu0 %79
  %81 = vadd.xlane.f32.xlu0 %v48
  %v82 = vpop.xlane.xlu0 %81
  %v83 = vrcp.pop 128.0
  %v84 = vmul.f32 %v52, %v83
  %v85 = vmul.f32 %v54, %v83
  %v86 = vmul.f32 %v56, %v83
  %v87 = vmul.f32 %v58, %v83
  %v88 = vmul.f32 %v60, %v83
  %v89 = vmul.f32 %v62, %v83
  %v90 = vmul.f32 %v64, %v83
  %v91 = vmul.f32 %v66, %v83
  %v92 = vmul.f32 %v68, %v83
  %v93 = vmul.f32 %v70, %v83
  %v94 = vmul.f32 %v72, %v83
  %v95 = vmul.f32 %v74, %v83
  %v96 = vmul.f32 %v76, %v83
  %v97 = vmul.f32 %v78, %v83
  %v98 = vmul.f32 %v80, %v83
  %v99 = vmul.f32 %v82, %v83
  %v100 = vsub.f32 %v33, %v84
  %v101 = vsub.f32 %v34, %v85
  %v102 = vsub.f32 %v35, %v86
  %v103 = vsub.f32 %v36, %v87
  %v104 = vsub.f32 %v37, %v88
  %v105 = vsub.f32 %v38, %v89
  %v106 = vsub.f32 %v39, %v90
  %v107 = vsub.f32 %v40, %v91
  %v108 = vsub.f32 %v41, %v92
  %v109 = vsub.f32 %v42, %v93
  %v110 = vsub.f32 %v43, %v94
  %v111 = vsub.f32 %v44, %v95
  %v112 = vsub.f32 %v45, %v96
  %v113 = vsub.f32 %v46, %v97
  %v114 = vsub.f32 %v47, %v98
  %v115 = vsub.f32 %v48, %v99
  %v116 = vmul.f32 %v100, %v100
  %v117 = vmul.f32 %v101, %v101
  %v118 = vmul.f32 %v102, %v102
  %v119 = vmul.f32 %v103, %v103
  %v120 = vmul.f32 %v104, %v104
  %v121 = vmul.f32 %v105, %v105
  %v122 = vmul.f32 %v106, %v106
  %v123 = vmul.f32 %v107, %v107
  %v124 = vmul.f32 %v108, %v108
  %v125 = vmul.f32 %v109, %v109
  %v126 = vmul.f32 %v110, %v110
  %v127 = vmul.f32 %v111, %v111
  %v128 = vmul.f32 %v112, %v112
  %v129 = vmul.f32 %v113, %v113
  %v130 = vmul.f32 %v114, %v114
  %v131 = vmul.f32 %v115, %v115
  %132 = vadd.xlane.f32.xlu0 %v116
  %v133 = vpop.xlane.xlu0 %132
  %134 = vadd.xlane.f32.xlu0 %v117
  %v135 = vpop.xlane.xlu0 %134
  %136 = vadd.xlane.f32.xlu0 %v118
  %v137 = vpop.xlane.xlu0 %136
  %138 = vadd.xlane.f32.xlu0 %v119
  %v139 = vpop.xlane.xlu0 %138
  %140 = vadd.xlane.f32.xlu0 %v120
  %v141 = vpop.xlane.xlu0 %140
  %142 = vadd.xlane.f32.xlu0 %v121
  %v143 = vpop.xlane.xlu0 %142
  %144 = vadd.xlane.f32.xlu0 %v122
  %v145 = vpop.xlane.xlu0 %144
  %146 = vadd.xlane.f32.xlu0 %v123
  %v147 = vpop.xlane.xlu0 %146
  %148 = vadd.xlane.f32.xlu0 %v124
  %v149 = vpop.xlane.xlu0 %148
  %150 = vadd.xlane.f32.xlu0 %v125
  %v151 = vpop.xlane.xlu0 %150
  %152 = vadd.xlane.f32.xlu0 %v126
  %v153 = vpop.xlane.xlu0 %152
  %154 = vadd.xlane.f32.xlu0 %v127
  %v155 = vpop.xlane.xlu0 %154
  %156 = vadd.xlane.f32.xlu0 %v128
  %v157 = vpop.xlane.xlu0 %156
  %158 = vadd.xlane.f32.xlu0 %v129
  %v159 = vpop.xlane.xlu0 %158
  %160 = vadd.xlane.f32.xlu0 %v130
  %v161 = vpop.xlane.xlu0 %160
  %162 = vadd.xlane.f32.xlu0 %v131
  %v163 = vpop.xlane.xlu0 %162
  %v164 = vmul.f32 %v133, %v83
  %v165 = vmul.f32 %v135, %v83
  %v166 = vmul.f32 %v137, %v83
  %v167 = vmul.f32 %v139, %v83
  %v168 = vmul.f32 %v141, %v83
  %v169 = vmul.f32 %v143, %v83
  %v170 = vmul.f32 %v145, %v83
  %v171 = vmul.f32 %v147, %v83
  %v172 = vmul.f32 %v149, %v83
  %v173 = vmul.f32 %v151, %v83
  %v174 = vmul.f32 %v153, %v83
  %v175 = vmul.f32 %v155, %v83
  %v176 = vmul.f32 %v157, %v83
  %v177 = vmul.f32 %v159, %v83
  %v178 = vmul.f32 %v161, %v83
  %v179 = vmul.f32 %v163, %v83
  %v180 = vadd.f32 %v164, 1e-05
  %v181 = vadd.f32 %v165, 1e-05
  %v182 = vadd.f32 %v166, 1e-05
  %v183 = vadd.f32 %v167, 1e-05
  %v184 = vadd.f32 %v168, 1e-05
  %v185 = vadd.f32 %v169, 1e-05
  %v186 = vadd.f32 %v170, 1e-05
  %v187 = vadd.f32 %v171, 1e-05
  %v188 = vadd.f32 %v172, 1e-05
  %v189 = vadd.f32 %v173, 1e-05
  %v190 = vadd.f32 %v174, 1e-05
  %v191 = vadd.f32 %v175, 1e-05
  %v192 = vadd.f32 %v176, 1e-05
  %v193 = vadd.f32 %v177, 1e-05
  %v194 = vadd.f32 %v178, 1e-05
  %v195 = vadd.f32 %v179, 1e-05
  %v196 = vrsqrt.pop %v180
  %v197 = vrsqrt.pop %v181
  %v198 = vrsqrt.pop %v182
  %v199 = vrsqrt.pop %v183
  %v200 = vrsqrt.pop %v184
  %v201 = vrsqrt.pop %v185
  %v202 = vrsqrt.pop %v186
  %v203 = vrsqrt.pop %v187
  %v204 = vrsqrt.pop %v188
  %v205 = vrsqrt.pop %v189
  %v206 = vrsqrt.pop %v190
  %v207 = vrsqrt.pop %v191
  %v208 = vrsqrt.pop %v192
  %v209 = vrsqrt.pop %v193
  %v210 = vrsqrt.pop %v194
  %v211 = vrsqrt.pop %v195
  %v212 = vmul.f32 %v100, %v196
  %v213 = vmul.f32 %v101, %v197
  %v214 = vmul.f32 %v102, %v198
  %v215 = vmul.f32 %v103, %v199
  %v216 = vmul.f32 %v104, %v200
  %v217 = vmul.f32 %v105, %v201
  %v218 = vmul.f32 %v106, %v202
  %v219 = vmul.f32 %v107, %v203
  %v220 = vmul.f32 %v108, %v204
  %v221 = vmul.f32 %v109, %v205
  %v222 = vmul.f32 %v110, %v206
  %v223 = vmul.f32 %v111, %v207
  %v224 = vmul.f32 %v112, %v208
  %v225 = vmul.f32 %v113, %v209
  %v226 = vmul.f32 %v114, %v210
  %v227 = vmul.f32 %v115, %v211
  %v229 = vlaneseq
  %v230 = vshrl.u32 %v229, 7
  %v231 = vsub.s32 0, %v230
  %v232 = vrot.slane %v49, %v231
  %v234 = vmul.f32 %v212, %v232
  %v235 = vmul.f32 %v213, %v232
  %v236 = vmul.f32 %v214, %v232
  %v237 = vmul.f32 %v215, %v232
  %v238 = vmul.f32 %v216, %v232
  %v239 = vmul.f32 %v217, %v232
  %v240 = vmul.f32 %v218, %v232
  %v241 = vmul.f32 %v219, %v232
  %v242 = vmul.f32 %v220, %v232
  %v243 = vmul.f32 %v221, %v232
  %v244 = vmul.f32 %v222, %v232
  %v245 = vmul.f32 %v223, %v232
  %v246 = vmul.f32 %v224, %v232
  %v247 = vmul.f32 %v225, %v232
  %v248 = vmul.f32 %v226, %v232
  %v249 = vmul.f32 %v227, %v232
  %v251 = vlaneseq
  %v252 = vshrl.u32 %v251, 7
  %v253 = vsub.s32 0, %v252
  %v254 = vrot.slane %v50, %v253
  %v256 = vadd.f32 %v234, %v254
  %v257 = vadd.f32 %v235, %v254
  %v258 = vadd.f32 %v236, %v254
  %v259 = vadd.f32 %v237, %v254
  %v260 = vadd.f32 %v238, %v254
  %v261 = vadd.f32 %v239, %v254
  %v262 = vadd.f32 %v240, %v254
  %v263 = vadd.f32 %v241, %v254
  %v264 = vadd.f32 %v242, %v254
  %v265 = vadd.f32 %v243, %v254
  %v266 = vadd.f32 %v244, %v254
  %v267 = vadd.f32 %v245, %v254
  %v268 = vadd.f32 %v246, %v254
  %v269 = vadd.f32 %v247, %v254
  %v270 = vadd.f32 %v248, %v254
  %v271 = vadd.f32 %v249, %v254
  %v272 = vpack.c.bf16 %v257, %v256
  %v273 = vpack.c.bf16 %v259, %v258
  %v274 = vpack.c.bf16 %v261, %v260
  %v275 = vpack.c.bf16 %v263, %v262
  %v276 = vpack.c.bf16 %v265, %v264
  %v277 = vpack.c.bf16 %v267, %v266
  %v278 = vpack.c.bf16 %v269, %v268
  %v279 = vpack.c.bf16 %v271, %v270
  %v280 = vld [vmem:[%s3] sm:$0xff]
  %v281 = vld [vmem:[%s3 + $0x8] sm:$0xff]
  %v282 = vld [vmem:[%s3 + $0x10] sm:$0xff]
  %v283 = vld [vmem:[%s3 + $0x18] sm:$0xff]
  %v284 = vld [vmem:[%s3 + $0x20] sm:$0xff]
  %v285 = vld [vmem:[%s3 + $0x28] sm:$0xff]
  %v286 = vld [vmem:[%s3 + $0x30] sm:$0xff]
  %v287 = vld [vmem:[%s3 + $0x38] sm:$0xff]
  %v288 = vld [vmem:[%s3 + $0x40] sm:$0xff]
  %v289 = vld [vmem:[%s3 + $0x48] sm:$0xff]
  %v290 = vld [vmem:[%s3 + $0x50] sm:$0xff]
  %v291 = vld [vmem:[%s3 + $0x58] sm:$0xff]
  %v292 = vld [vmem:[%s3 + $0x60] sm:$0xff]
  %v293 = vld [vmem:[%s3 + $0x68] sm:$0xff]
  %v294 = vld [vmem:[%s3 + $0x70] sm:$0xff]
  %v295 = vld [vmem:[%s3 + $0x78] sm:$0xff]
  %v296 = vld [vmem:[%s4] sm:$0x3]
  %v298 = vlaneseq
  %v299 = vshrl.u32 %v298, 7
  %v300 = vsub.s32 0, %v299
  %v301 = vrot.slane %v296, %v300
  %v302 = vlaneseq
  %v303 = vshrl.u32 %v302, 7
  %v304 = vsub.s32 1, %v303
  %v305 = vrot.slane %v296, %v304
  %v324 = vunpack.c.l.b16 %v280
  %v325 = vunpack.c.h.b16 %v280
  %v326 = vunpack.c.l.b16 %v281
  %v327 = vunpack.c.h.b16 %v281
  %v328 = vunpack.c.l.b16 %v282
  %v329 = vunpack.c.h.b16 %v282
  %v330 = vunpack.c.l.b16 %v283
  %v331 = vunpack.c.h.b16 %v283
  %v332 = vunpack.c.l.b16 %v284
  %v333 = vunpack.c.h.b16 %v284
  %v334 = vunpack.c.l.b16 %v285
  %v335 = vunpack.c.h.b16 %v285
  %v336 = vunpack.c.l.b16 %v286
  %v337 = vunpack.c.h.b16 %v286
  %v338 = vunpack.c.l.b16 %v287
  %v339 = vunpack.c.h.b16 %v287
  %v340 = vunpack.c.l.b16 %v288
  %v341 = vunpack.c.h.b16 %v288
  %v342 = vunpack.c.l.b16 %v289
  %v343 = vunpack.c.h.b16 %v289
  %v344 = vunpack.c.l.b16 %v290
  %v345 = vunpack.c.h.b16 %v290
  %v346 = vunpack.c.l.b16 %v291
  %v347 = vunpack.c.h.b16 %v291
  %v348 = vunpack.c.l.b16 %v292
  %v349 = vunpack.c.h.b16 %v292
  %v350 = vunpack.c.l.b16 %v293
  %v351 = vunpack.c.h.b16 %v293
  %v352 = vunpack.c.l.b16 %v294
  %v353 = vunpack.c.h.b16 %v294
  %v354 = vunpack.c.l.b16 %v295
  %v355 = vunpack.c.h.b16 %v295
  %v356 = vpack.c.b16 %v326, %v324
  %v357 = vpack.c.b16 %v327, %v325
  %v358 = vpack.c.b16 %v330, %v328
  %v359 = vpack.c.b16 %v331, %v329
  %v360 = vpack.c.b16 %v334, %v332
  %v361 = vpack.c.b16 %v335, %v333
  %v362 = vpack.c.b16 %v338, %v336
  %v363 = vpack.c.b16 %v339, %v337
  %v364 = vpack.c.b16 %v342, %v340
  %v365 = vpack.c.b16 %v343, %v341
  %v366 = vpack.c.b16 %v346, %v344
  %v367 = vpack.c.b16 %v347, %v345
  %v368 = vpack.c.b16 %v350, %v348
  %v369 = vpack.c.b16 %v351, %v349
  %v370 = vpack.c.b16 %v354, %v352
  %v371 = vpack.c.b16 %v355, %v353
  %388 = vmatprep.subr.bf16.mxu0 %v357
  %389 = vmatpush1.bf16.msra.mxu0 %v356
  %390 = vmatprep.subr.bf16.mxu0 %v359
  %391 = vmatpush1.bf16.msra.mxu0 %v358
  %392 = vmatprep.subr.bf16.mxu0 %v361
  %393 = vmatpush1.bf16.msra.mxu0 %v360
  %394 = vmatprep.subr.bf16.mxu0 %v363
  %395 = vmatpush1.bf16.msra.mxu0 %v362
  %396 = vmatprep.subr.bf16.mxu0 %v365
  %397 = vmatpush1.bf16.msra.mxu0 %v364
  %398 = vmatprep.subr.bf16.mxu0 %v367
  %399 = vmatpush1.bf16.msra.mxu0 %v366
  %400 = vmatprep.subr.bf16.mxu0 %v369
  %401 = vmatpush1.bf16.msra.mxu0 %v368
  %402 = vmatprep.subr.bf16.mxu0 %v371
  %403 = vmatpush1.bf16.msra.mxu0 %v370
  %404 = vmatprep.subr.bf16.mxu0 0
  %405 = vmatpush1.bf16.msra.mxu0 0
  %406 = vmatprep.subr.bf16.mxu0 0
  %407 = vmatpush1.bf16.msra.mxu0 0
  %408 = vmatprep.subr.bf16.mxu0 0
  %409 = vmatpush1.bf16.msra.mxu0 0
  %410 = vmatprep.subr.bf16.mxu0 0
  %411 = vmatpush1.bf16.msra.mxu0 0
  %412 = vmatprep.subr.bf16.mxu0 0
  %413 = vmatpush1.bf16.msra.mxu0 0
  %414 = vmatprep.subr.bf16.mxu0 0
  %415 = vmatpush1.bf16.msra.mxu0 0
  %416 = vmatprep.subr.bf16.mxu0 0
  %417 = vmatpush1.bf16.msra.mxu0 0
  %418 = vmatprep.subr.bf16.mxu0 0
  %419 = vmatpush1.bf16.msra.mxu0 0
  %420 = vmatprep.mubr.bf16.mxu0 0
  %421 = vmatmul.mubr.bf16.gmra.mrb[0].mxu0 %v272
  %v422 = vpop.f32.mrb[0].mxu0
  %v423 = vadd.f32 %v301, %v422
  %v424 = vpop.f32.mrb[0].mxu0
  %v425 = vadd.f32 %v305, %v424
  %v426 = vpop.f32.mrb[0].mxu0
  %v427 = vadd.f32 %v301, %v426
  %v428 = vpop.f32.mrb[0].mxu0
  %v429 = vadd.f32 %v305, %v428
  %430 = vmatprep.mubr.bf16.mxu0 0
  %431 = vmatmul.mubr.bf16.gmra.mrb[0].mxu0 %v273
  %v432 = vpop.f32.mrb[0].mxu0
  %v433 = vadd.f32 %v301, %v432
  %v434 = vpop.f32.mrb[0].mxu0
  %v435 = vadd.f32 %v305, %v434
  %v436 = vpop.f32.mrb[0].mxu0
  %v437 = vadd.f32 %v301, %v436
  %v438 = vpop.f32.mrb[0].mxu0
  %v439 = vadd.f32 %v305, %v438
  %440 = vmatprep.mubr.bf16.mxu0 0
  %441 = vmatmul.mubr.bf16.gmra.mrb[0].mxu0 %v274
  %v442 = vpop.f32.mrb[0].mxu0
  %v443 = vadd.f32 %v301, %v442
  %v444 = vpop.f32.mrb[0].mxu0
  %v445 = vadd.f32 %v305, %v444
  %v446 = vpop.f32.mrb[0].mxu0
  %v447 = vadd.f32 %v301, %v446
  %v448 = vpop.f32.mrb[0].mxu0
  %v449 = vadd.f32 %v305, %v448
  %450 = vmatprep.mubr.bf16.mxu0 0
  %451 = vmatmul.mubr.bf16.gmra.mrb[0].mxu0 %v275
  %v452 = vpop.f32.mrb[0].mxu0
  %v453 = vadd.f32 %v301, %v452
  %v454 = vpop.f32.mrb[0].mxu0
  %v455 = vadd.f32 %v305, %v454
  %v456 = vpop.f32.mrb[0].mxu0
  %v457 = vadd.f32 %v301, %v456
  %v458 = vpop.f32.mrb[0].mxu0
  %v459 = vadd.f32 %v305, %v458
  %460 = vmatprep.mubr.bf16.mxu0 0
  %461 = vmatmul.mubr.bf16.gmra.mrb[0].mxu0 %v276
  %v462 = vpop.f32.mrb[0].mxu0
  %v463 = vadd.f32 %v301, %v462
  %v464 = vpop.f32.mrb[0].mxu0
  %v465 = vadd.f32 %v305, %v464
  %v466 = vpop.f32.mrb[0].mxu0
  %v467 = vadd.f32 %v301, %v466
  %v468 = vpop.f32.mrb[0].mxu0
  %v469 = vadd.f32 %v305, %v468
  %470 = vmatprep.mubr.bf16.mxu0 0
  %471 = vmatmul.mubr.bf16.gmra.mrb[0].mxu0 %v277
  %v472 = vpop.f32.mrb[0].mxu0
  %v473 = vadd.f32 %v301, %v472
  %v474 = vpop.f32.mrb[0].mxu0
  %v475 = vadd.f32 %v305, %v474
  %v476 = vpop.f32.mrb[0].mxu0
  %v477 = vadd.f32 %v301, %v476
  %v478 = vpop.f32.mrb[0].mxu0
  %v479 = vadd.f32 %v305, %v478
  %480 = vmatprep.mubr.bf16.mxu0 0
  %481 = vmatmul.mubr.bf16.gmra.mrb[0].mxu0 %v278
  %v482 = vpop.f32.mrb[0].mxu0
  %v483 = vadd.f32 %v301, %v482
  %v484 = vpop.f32.mrb[0].mxu0
  %v485 = vadd.f32 %v305, %v484
  %v486 = vpop.f32.mrb[0].mxu0
  %v487 = vadd.f32 %v301, %v486
  %v488 = vpop.f32.mrb[0].mxu0
  %v489 = vadd.f32 %v305, %v488
  %490 = vmatprep.mubr.bf16.mxu0 0
  %491 = vmatmul.mubr.bf16.gmra.mrb[0].mxu0 %v279
  %v492 = vpop.f32.mrb[0].mxu0
  %v493 = vadd.f32 %v301, %v492
  %v494 = vpop.f32.mrb[0].mxu0
  %v495 = vadd.f32 %v305, %v494
  %v496 = vpop.f32.mrb[0].mxu0
  %v497 = vadd.f32 %v301, %v496
  %v498 = vpop.f32.mrb[0].mxu0
  %v499 = vadd.f32 %v305, %v498
  %500 = vdwg.mxu0
  %v501 = vmax.f32 %v423, 0.0
  %v502 = vmax.f32 %v425, 0.0
  %v503 = vmax.f32 %v427, 0.0
  %v504 = vmax.f32 %v429, 0.0
  %v505 = vmax.f32 %v433, 0.0
  %v506 = vmax.f32 %v435, 0.0
  %v507 = vmax.f32 %v437, 0.0
  %v508 = vmax.f32 %v439, 0.0
  %v509 = vmax.f32 %v443, 0.0
  %v510 = vmax.f32 %v445, 0.0
  %v511 = vmax.f32 %v447, 0.0
  %v512 = vmax.f32 %v449, 0.0
  %v513 = vmax.f32 %v453, 0.0
  %v514 = vmax.f32 %v455, 0.0
  %v515 = vmax.f32 %v457, 0.0
  %v516 = vmax.f32 %v459, 0.0
  %v517 = vmax.f32 %v463, 0.0
  %v518 = vmax.f32 %v465, 0.0
  %v519 = vmax.f32 %v467, 0.0
  %v520 = vmax.f32 %v469, 0.0
  %v521 = vmax.f32 %v473, 0.0
  %v522 = vmax.f32 %v475, 0.0
  %v523 = vmax.f32 %v477, 0.0
  %v524 = vmax.f32 %v479, 0.0
  %v525 = vmax.f32 %v483, 0.0
  %v526 = vmax.f32 %v485, 0.0
  %v527 = vmax.f32 %v487, 0.0
  %v528 = vmax.f32 %v489, 0.0
  %v529 = vmax.f32 %v493, 0.0
  %v530 = vmax.f32 %v495, 0.0
  %v531 = vmax.f32 %v497, 0.0
  %v532 = vmax.f32 %v499, 0.0
  %v533 = vld [vmem:[%s5] sm:$0x3]
  %v534 = vld [vmem:[%s6] sm:$0x3]
  %v535 = vadd.f32 %v501, %v502
  %536 = vadd.xlane.f32.xlu0 %v535
  %v537 = vpop.xlane.xlu0 %536
  %v538 = vadd.f32 %v503, %v504
  %539 = vadd.xlane.f32.xlu0 %v538
  %v540 = vpop.xlane.xlu0 %539
  %v541 = vadd.f32 %v505, %v506
  %542 = vadd.xlane.f32.xlu0 %v541
  %v543 = vpop.xlane.xlu0 %542
  %v544 = vadd.f32 %v507, %v508
  %545 = vadd.xlane.f32.xlu0 %v544
  %v546 = vpop.xlane.xlu0 %545
  %v547 = vadd.f32 %v509, %v510
  %548 = vadd.xlane.f32.xlu0 %v547
  %v549 = vpop.xlane.xlu0 %548
  %v550 = vadd.f32 %v511, %v512
  %551 = vadd.xlane.f32.xlu0 %v550
  %v552 = vpop.xlane.xlu0 %551
  %v553 = vadd.f32 %v513, %v514
  %554 = vadd.xlane.f32.xlu0 %v553
  %v555 = vpop.xlane.xlu0 %554
  %v556 = vadd.f32 %v515, %v516
  %557 = vadd.xlane.f32.xlu0 %v556
  %v558 = vpop.xlane.xlu0 %557
  %v559 = vadd.f32 %v517, %v518
  %560 = vadd.xlane.f32.xlu0 %v559
  %v561 = vpop.xlane.xlu0 %560
  %v562 = vadd.f32 %v519, %v520
  %563 = vadd.xlane.f32.xlu0 %v562
  %v564 = vpop.xlane.xlu0 %563
  %v565 = vadd.f32 %v521, %v522
  %566 = vadd.xlane.f32.xlu0 %v565
  %v567 = vpop.xlane.xlu0 %566
  %v568 = vadd.f32 %v523, %v524
  %569 = vadd.xlane.f32.xlu0 %v568
  %v570 = vpop.xlane.xlu0 %569
  %v571 = vadd.f32 %v525, %v526
  %572 = vadd.xlane.f32.xlu0 %v571
  %v573 = vpop.xlane.xlu0 %572
  %v574 = vadd.f32 %v527, %v528
  %575 = vadd.xlane.f32.xlu0 %v574
  %v576 = vpop.xlane.xlu0 %575
  %v577 = vadd.f32 %v529, %v530
  %578 = vadd.xlane.f32.xlu0 %v577
  %v579 = vpop.xlane.xlu0 %578
  %v580 = vadd.f32 %v531, %v532
  %581 = vadd.xlane.f32.xlu0 %v580
  %v582 = vpop.xlane.xlu0 %581
  %v583 = vrcp.pop 256.0
  %v584 = vmul.f32 %v537, %v583
  %v585 = vmul.f32 %v540, %v583
  %v586 = vmul.f32 %v543, %v583
  %v587 = vmul.f32 %v546, %v583
  %v588 = vmul.f32 %v549, %v583
  %v589 = vmul.f32 %v552, %v583
  %v590 = vmul.f32 %v555, %v583
  %v591 = vmul.f32 %v558, %v583
  %v592 = vmul.f32 %v561, %v583
  %v593 = vmul.f32 %v564, %v583
  %v594 = vmul.f32 %v567, %v583
  %v595 = vmul.f32 %v570, %v583
  %v596 = vmul.f32 %v573, %v583
  %v597 = vmul.f32 %v576, %v583
  %v598 = vmul.f32 %v579, %v583
  %v599 = vmul.f32 %v582, %v583
  %v600 = vsub.f32 %v501, %v584
  %v601 = vsub.f32 %v502, %v584
  %v602 = vsub.f32 %v503, %v585
  %v603 = vsub.f32 %v504, %v585
  %v604 = vsub.f32 %v505, %v586
  %v605 = vsub.f32 %v506, %v586
  %v606 = vsub.f32 %v507, %v587
  %v607 = vsub.f32 %v508, %v587
  %v608 = vsub.f32 %v509, %v588
  %v609 = vsub.f32 %v510, %v588
  %v610 = vsub.f32 %v511, %v589
  %v611 = vsub.f32 %v512, %v589
  %v612 = vsub.f32 %v513, %v590
  %v613 = vsub.f32 %v514, %v590
  %v614 = vsub.f32 %v515, %v591
  %v615 = vsub.f32 %v516, %v591
  %v616 = vsub.f32 %v517, %v592
  %v617 = vsub.f32 %v518, %v592
  %v618 = vsub.f32 %v519, %v593
  %v619 = vsub.f32 %v520, %v593
  %v620 = vsub.f32 %v521, %v594
  %v621 = vsub.f32 %v522, %v594
  %v622 = vsub.f32 %v523, %v595
  %v623 = vsub.f32 %v524, %v595
  %v624 = vsub.f32 %v525, %v596
  %v625 = vsub.f32 %v526, %v596
  %v626 = vsub.f32 %v527, %v597
  %v627 = vsub.f32 %v528, %v597
  %v628 = vsub.f32 %v529, %v598
  %v629 = vsub.f32 %v530, %v598
  %v630 = vsub.f32 %v531, %v599
  %v631 = vsub.f32 %v532, %v599
  %v632 = vmul.f32 %v600, %v600
  %v633 = vmul.f32 %v601, %v601
  %v634 = vmul.f32 %v602, %v602
  %v635 = vmul.f32 %v603, %v603
  %v636 = vmul.f32 %v604, %v604
  %v637 = vmul.f32 %v605, %v605
  %v638 = vmul.f32 %v606, %v606
  %v639 = vmul.f32 %v607, %v607
  %v640 = vmul.f32 %v608, %v608
  %v641 = vmul.f32 %v609, %v609
  %v642 = vmul.f32 %v610, %v610
  %v643 = vmul.f32 %v611, %v611
  %v644 = vmul.f32 %v612, %v612
  %v645 = vmul.f32 %v613, %v613
  %v646 = vmul.f32 %v614, %v614
  %v647 = vmul.f32 %v615, %v615
  %v648 = vmul.f32 %v616, %v616
  %v649 = vmul.f32 %v617, %v617
  %v650 = vmul.f32 %v618, %v618
  %v651 = vmul.f32 %v619, %v619
  %v652 = vmul.f32 %v620, %v620
  %v653 = vmul.f32 %v621, %v621
  %v654 = vmul.f32 %v622, %v622
  %v655 = vmul.f32 %v623, %v623
  %v656 = vmul.f32 %v624, %v624
  %v657 = vmul.f32 %v625, %v625
  %v658 = vmul.f32 %v626, %v626
  %v659 = vmul.f32 %v627, %v627
  %v660 = vmul.f32 %v628, %v628
  %v661 = vmul.f32 %v629, %v629
  %v662 = vmul.f32 %v630, %v630
  %v663 = vmul.f32 %v631, %v631
  %v664 = vadd.f32 %v632, %v633
  %665 = vadd.xlane.f32.xlu0 %v664
  %v666 = vpop.xlane.xlu0 %665
  %v667 = vadd.f32 %v634, %v635
  %668 = vadd.xlane.f32.xlu0 %v667
  %v669 = vpop.xlane.xlu0 %668
  %v670 = vadd.f32 %v636, %v637
  %671 = vadd.xlane.f32.xlu0 %v670
  %v672 = vpop.xlane.xlu0 %671
  %v673 = vadd.f32 %v638, %v639
  %674 = vadd.xlane.f32.xlu0 %v673
  %v675 = vpop.xlane.xlu0 %674
  %v676 = vadd.f32 %v640, %v641
  %677 = vadd.xlane.f32.xlu0 %v676
  %v678 = vpop.xlane.xlu0 %677
  %v679 = vadd.f32 %v642, %v643
  %680 = vadd.xlane.f32.xlu0 %v679
  %v681 = vpop.xlane.xlu0 %680
  %v682 = vadd.f32 %v644, %v645
  %683 = vadd.xlane.f32.xlu0 %v682
  %v684 = vpop.xlane.xlu0 %683
  %v685 = vadd.f32 %v646, %v647
  %686 = vadd.xlane.f32.xlu0 %v685
  %v687 = vpop.xlane.xlu0 %686
  %v688 = vadd.f32 %v648, %v649
  %689 = vadd.xlane.f32.xlu0 %v688
  %v690 = vpop.xlane.xlu0 %689
  %v691 = vadd.f32 %v650, %v651
  %692 = vadd.xlane.f32.xlu0 %v691
  %v693 = vpop.xlane.xlu0 %692
  %v694 = vadd.f32 %v652, %v653
  %695 = vadd.xlane.f32.xlu0 %v694
  %v696 = vpop.xlane.xlu0 %695
  %v697 = vadd.f32 %v654, %v655
  %698 = vadd.xlane.f32.xlu0 %v697
  %v699 = vpop.xlane.xlu0 %698
  %v700 = vadd.f32 %v656, %v657
  %701 = vadd.xlane.f32.xlu0 %v700
  %v702 = vpop.xlane.xlu0 %701
  %v703 = vadd.f32 %v658, %v659
  %704 = vadd.xlane.f32.xlu0 %v703
  %v705 = vpop.xlane.xlu0 %704
  %v706 = vadd.f32 %v660, %v661
  %707 = vadd.xlane.f32.xlu0 %v706
  %v708 = vpop.xlane.xlu0 %707
  %v709 = vadd.f32 %v662, %v663
  %710 = vadd.xlane.f32.xlu0 %v709
  %v711 = vpop.xlane.xlu0 %710
  %v712 = vmul.f32 %v666, %v583
  %v713 = vmul.f32 %v669, %v583
  %v714 = vmul.f32 %v672, %v583
  %v715 = vmul.f32 %v675, %v583
  %v716 = vmul.f32 %v678, %v583
  %v717 = vmul.f32 %v681, %v583
  %v718 = vmul.f32 %v684, %v583
  %v719 = vmul.f32 %v687, %v583
  %v720 = vmul.f32 %v690, %v583
  %v721 = vmul.f32 %v693, %v583
  %v722 = vmul.f32 %v696, %v583
  %v723 = vmul.f32 %v699, %v583
  %v724 = vmul.f32 %v702, %v583
  %v725 = vmul.f32 %v705, %v583
  %v726 = vmul.f32 %v708, %v583
  %v727 = vmul.f32 %v711, %v583
  %v728 = vadd.f32 %v712, 1e-05
  %v729 = vadd.f32 %v713, 1e-05
  %v730 = vadd.f32 %v714, 1e-05
  %v731 = vadd.f32 %v715, 1e-05
  %v732 = vadd.f32 %v716, 1e-05
  %v733 = vadd.f32 %v717, 1e-05
  %v734 = vadd.f32 %v718, 1e-05
  %v735 = vadd.f32 %v719, 1e-05
  %v736 = vadd.f32 %v720, 1e-05
  %v737 = vadd.f32 %v721, 1e-05
  %v738 = vadd.f32 %v722, 1e-05
  %v739 = vadd.f32 %v723, 1e-05
  %v740 = vadd.f32 %v724, 1e-05
  %v741 = vadd.f32 %v725, 1e-05
  %v742 = vadd.f32 %v726, 1e-05
  %v743 = vadd.f32 %v727, 1e-05
  %v744 = vrsqrt.pop %v728
  %v745 = vrsqrt.pop %v729
  %v746 = vrsqrt.pop %v730
  %v747 = vrsqrt.pop %v731
  %v748 = vrsqrt.pop %v732
  %v749 = vrsqrt.pop %v733
  %v750 = vrsqrt.pop %v734
  %v751 = vrsqrt.pop %v735
  %v752 = vrsqrt.pop %v736
  %v753 = vrsqrt.pop %v737
  %v754 = vrsqrt.pop %v738
  %v755 = vrsqrt.pop %v739
  %v756 = vrsqrt.pop %v740
  %v757 = vrsqrt.pop %v741
  %v758 = vrsqrt.pop %v742
  %v759 = vrsqrt.pop %v743
  %v760 = vmul.f32 %v600, %v744
  %v761 = vmul.f32 %v601, %v744
  %v762 = vmul.f32 %v602, %v745
  %v763 = vmul.f32 %v603, %v745
  %v764 = vmul.f32 %v604, %v746
  %v765 = vmul.f32 %v605, %v746
  %v766 = vmul.f32 %v606, %v747
  %v767 = vmul.f32 %v607, %v747
  %v768 = vmul.f32 %v608, %v748
  %v769 = vmul.f32 %v609, %v748
  %v770 = vmul.f32 %v610, %v749
  %v771 = vmul.f32 %v611, %v749
  %v772 = vmul.f32 %v612, %v750
  %v773 = vmul.f32 %v613, %v750
  %v774 = vmul.f32 %v614, %v751
  %v775 = vmul.f32 %v615, %v751
  %v776 = vmul.f32 %v616, %v752
  %v777 = vmul.f32 %v617, %v752
  %v778 = vmul.f32 %v618, %v753
  %v779 = vmul.f32 %v619, %v753
  %v780 = vmul.f32 %v620, %v754
  %v781 = vmul.f32 %v621, %v754
  %v782 = vmul.f32 %v622, %v755
  %v783 = vmul.f32 %v623, %v755
  %v784 = vmul.f32 %v624, %v756
  %v785 = vmul.f32 %v625, %v756
  %v786 = vmul.f32 %v626, %v757
  %v787 = vmul.f32 %v627, %v757
  %v788 = vmul.f32 %v628, %v758
  %v789 = vmul.f32 %v629, %v758
  %v790 = vmul.f32 %v630, %v759
  %v791 = vmul.f32 %v631, %v759
  %v793 = vlaneseq
  %v794 = vshrl.u32 %v793, 7
  %v795 = vsub.s32 0, %v794
  %v796 = vrot.slane %v533, %v795
  %v797 = vlaneseq
  %v798 = vshrl.u32 %v797, 7
  %v799 = vsub.s32 1, %v798
  %v800 = vrot.slane %v533, %v799
  %v803 = vmul.f32 %v760, %v796
  %v804 = vmul.f32 %v761, %v800
  %v805 = vmul.f32 %v762, %v796
  %v806 = vmul.f32 %v763, %v800
  %v807 = vmul.f32 %v764, %v796
  %v808 = vmul.f32 %v765, %v800
  %v809 = vmul.f32 %v766, %v796
  %v810 = vmul.f32 %v767, %v800
  %v811 = vmul.f32 %v768, %v796
  %v812 = vmul.f32 %v769, %v800
  %v813 = vmul.f32 %v770, %v796
  %v814 = vmul.f32 %v771, %v800
  %v815 = vmul.f32 %v772, %v796
  %v816 = vmul.f32 %v773, %v800
  %v817 = vmul.f32 %v774, %v796
  %v818 = vmul.f32 %v775, %v800
  %v819 = vmul.f32 %v776, %v796
  %v820 = vmul.f32 %v777, %v800
  %v821 = vmul.f32 %v778, %v796
  %v822 = vmul.f32 %v779, %v800
  %v823 = vmul.f32 %v780, %v796
  %v824 = vmul.f32 %v781, %v800
  %v825 = vmul.f32 %v782, %v796
  %v826 = vmul.f32 %v783, %v800
  %v827 = vmul.f32 %v784, %v796
  %v828 = vmul.f32 %v785, %v800
  %v829 = vmul.f32 %v786, %v796
  %v830 = vmul.f32 %v787, %v800
  %v831 = vmul.f32 %v788, %v796
  %v832 = vmul.f32 %v789, %v800
  %v833 = vmul.f32 %v790, %v796
  %v834 = vmul.f32 %v791, %v800
  %v836 = vlaneseq
  %v837 = vshrl.u32 %v836, 7
  %v838 = vsub.s32 0, %v837
  %v839 = vrot.slane %v534, %v838
  %v840 = vlaneseq
  %v841 = vshrl.u32 %v840, 7
  %v842 = vsub.s32 1, %v841
  %v843 = vrot.slane %v534, %v842
  %v846 = vadd.f32 %v803, %v839
  %v847 = vadd.f32 %v804, %v843
  %v848 = vadd.f32 %v805, %v839
  %v849 = vadd.f32 %v806, %v843
  %v850 = vadd.f32 %v807, %v839
  %v851 = vadd.f32 %v808, %v843
  %v852 = vadd.f32 %v809, %v839
  %v853 = vadd.f32 %v810, %v843
  %v854 = vadd.f32 %v811, %v839
  %v855 = vadd.f32 %v812, %v843
  %v856 = vadd.f32 %v813, %v839
  %v857 = vadd.f32 %v814, %v843
  %v858 = vadd.f32 %v815, %v839
  %v859 = vadd.f32 %v816, %v843
  %v860 = vadd.f32 %v817, %v839
  %v861 = vadd.f32 %v818, %v843
  %v862 = vadd.f32 %v819, %v839
  %v863 = vadd.f32 %v820, %v843
  %v864 = vadd.f32 %v821, %v839
  %v865 = vadd.f32 %v822, %v843
  %v866 = vadd.f32 %v823, %v839
  %v867 = vadd.f32 %v824, %v843
  %v868 = vadd.f32 %v825, %v839
  %v869 = vadd.f32 %v826, %v843
  %v870 = vadd.f32 %v827, %v839
  %v871 = vadd.f32 %v828, %v843
  %v872 = vadd.f32 %v829, %v839
  %v873 = vadd.f32 %v830, %v843
  %v874 = vadd.f32 %v831, %v839
  %v875 = vadd.f32 %v832, %v843
  %v876 = vadd.f32 %v833, %v839
  %v877 = vadd.f32 %v834, %v843
  %v878 = vpack.c.bf16 %v848, %v846
  %v879 = vpack.c.bf16 %v849, %v847
  %v880 = vpack.c.bf16 %v852, %v850
  %v881 = vpack.c.bf16 %v853, %v851
  %v882 = vpack.c.bf16 %v856, %v854
  %v883 = vpack.c.bf16 %v857, %v855
  %v884 = vpack.c.bf16 %v860, %v858
  %v885 = vpack.c.bf16 %v861, %v859
  %v886 = vpack.c.bf16 %v864, %v862
  %v887 = vpack.c.bf16 %v865, %v863
  %v888 = vpack.c.bf16 %v868, %v866
  %v889 = vpack.c.bf16 %v869, %v867
  %v890 = vpack.c.bf16 %v872, %v870
  %v891 = vpack.c.bf16 %v873, %v871
  %v892 = vpack.c.bf16 %v876, %v874
  %v893 = vpack.c.bf16 %v877, %v875
  %v894 = vld [vmem:[%s7] sm:$0xf]
  %v895 = vld [vmem:[%s7 + $0x4] sm:$0xf]
  %v896 = vld [vmem:[%s7 + $0x8] sm:$0xf]
  %v897 = vld [vmem:[%s7 + $0xc] sm:$0xf]
  %v898 = vld [vmem:[%s7 + $0x10] sm:$0xf]
  %v899 = vld [vmem:[%s7 + $0x14] sm:$0xf]
  %v900 = vld [vmem:[%s7 + $0x18] sm:$0xf]
  %v901 = vld [vmem:[%s7 + $0x1c] sm:$0xf]
  %v902 = vld [vmem:[%s7 + $0x20] sm:$0xf]
  %v903 = vld [vmem:[%s7 + $0x24] sm:$0xf]
  %v904 = vld [vmem:[%s7 + $0x28] sm:$0xf]
  %v905 = vld [vmem:[%s7 + $0x2c] sm:$0xf]
  %v906 = vld [vmem:[%s7 + $0x30] sm:$0xf]
  %v907 = vld [vmem:[%s7 + $0x34] sm:$0xf]
  %v908 = vld [vmem:[%s7 + $0x38] sm:$0xf]
  %v909 = vld [vmem:[%s7 + $0x3c] sm:$0xf]
  %v910 = vld [vmem:[%s7 + $0x40] sm:$0xf]
  %v911 = vld [vmem:[%s7 + $0x44] sm:$0xf]
  %v912 = vld [vmem:[%s7 + $0x48] sm:$0xf]
  %v913 = vld [vmem:[%s7 + $0x4c] sm:$0xf]
  %v914 = vld [vmem:[%s7 + $0x50] sm:$0xf]
  %v915 = vld [vmem:[%s7 + $0x54] sm:$0xf]
  %v916 = vld [vmem:[%s7 + $0x58] sm:$0xf]
  %v917 = vld [vmem:[%s7 + $0x5c] sm:$0xf]
  %v918 = vld [vmem:[%s7 + $0x60] sm:$0xf]
  %v919 = vld [vmem:[%s7 + $0x64] sm:$0xf]
  %v920 = vld [vmem:[%s7 + $0x68] sm:$0xf]
  %v921 = vld [vmem:[%s7 + $0x6c] sm:$0xf]
  %v922 = vld [vmem:[%s7 + $0x70] sm:$0xf]
  %v923 = vld [vmem:[%s7 + $0x74] sm:$0xf]
  %v924 = vld [vmem:[%s7 + $0x78] sm:$0xf]
  %v925 = vld [vmem:[%s7 + $0x7c] sm:$0xf]
  %v926 = vld [vmem:[%s8] sm:$0x1]
  %v928 = vlaneseq
  %v929 = vshrl.u32 %v928, 7
  %v930 = vsub.s32 0, %v929
  %v931 = vrot.slane %v926, %v930
  %v965 = vunpack.c.l.b16 %v894
  %v966 = vunpack.c.l.b16 %v895
  %v967 = vunpack.c.l.b16 %v896
  %v968 = vunpack.c.l.b16 %v897
  %v969 = vunpack.c.l.b16 %v898
  %v970 = vunpack.c.l.b16 %v899
  %v971 = vunpack.c.l.b16 %v900
  %v972 = vunpack.c.l.b16 %v901
  %v973 = vunpack.c.l.b16 %v902
  %v974 = vunpack.c.l.b16 %v903
  %v975 = vunpack.c.l.b16 %v904
  %v976 = vunpack.c.l.b16 %v905
  %v977 = vunpack.c.l.b16 %v906
  %v978 = vunpack.c.l.b16 %v907
  %v979 = vunpack.c.l.b16 %v908
  %v980 = vunpack.c.l.b16 %v909
  %v981 = vunpack.c.l.b16 %v910
  %v982 = vunpack.c.l.b16 %v911
  %v983 = vunpack.c.l.b16 %v912
  %v984 = vunpack.c.l.b16 %v913
  %v985 = vunpack.c.l.b16 %v914
  %v986 = vunpack.c.l.b16 %v915
  %v987 = vunpack.c.l.b16 %v916
  %v988 = vunpack.c.l.b16 %v917
  %v989 = vunpack.c.l.b16 %v918
  %v990 = vunpack.c.l.b16 %v919
  %v991 = vunpack.c.l.b16 %v920
  %v992 = vunpack.c.l.b16 %v921
  %v993 = vunpack.c.l.b16 %v922
  %v994 = vunpack.c.l.b16 %v923
  %v995 = vunpack.c.l.b16 %v924
  %v996 = vunpack.c.l.b16 %v925
  %v997 = vpack.c.b16 %v966, %v965
  %v998 = vpack.c.b16 %v968, %v967
  %v999 = vpack.c.b16 %v970, %v969
  %v1000 = vpack.c.b16 %v972, %v971
  %v1001 = vpack.c.b16 %v974, %v973
  %v1002 = vpack.c.b16 %v976, %v975
  %v1003 = vpack.c.b16 %v978, %v977
  %v1004 = vpack.c.b16 %v980, %v979
  %v1005 = vpack.c.b16 %v982, %v981
  %v1006 = vpack.c.b16 %v984, %v983
  %v1007 = vpack.c.b16 %v986, %v985
  %v1008 = vpack.c.b16 %v988, %v987
  %v1009 = vpack.c.b16 %v990, %v989
  %v1010 = vpack.c.b16 %v992, %v991
  %v1011 = vpack.c.b16 %v994, %v993
  %v1012 = vpack.c.b16 %v996, %v995
  %1029 = vmatprep.subr.bf16.mxu0 0
  %1030 = vmatpush1.bf16.msra.mxu0 %v997
  %1031 = vmatprep.subr.bf16.mxu0 0
  %1032 = vmatpush1.bf16.msra.mxu0 %v998
  %1033 = vmatprep.subr.bf16.mxu0 0
  %1034 = vmatpush1.bf16.msra.mxu0 %v999
  %1035 = vmatprep.subr.bf16.mxu0 0
  %1036 = vmatpush1.bf16.msra.mxu0 %v1000
  %1037 = vmatprep.subr.bf16.mxu0 0
  %1038 = vmatpush1.bf16.msra.mxu0 %v1001
  %1039 = vmatprep.subr.bf16.mxu0 0
  %1040 = vmatpush1.bf16.msra.mxu0 %v1002
  %1041 = vmatprep.subr.bf16.mxu0 0
  %1042 = vmatpush1.bf16.msra.mxu0 %v1003
  %1043 = vmatprep.subr.bf16.mxu0 0
  %1044 = vmatpush1.bf16.msra.mxu0 %v1004
  %1045 = vmatprep.subr.bf16.mxu0 0
  %1046 = vmatpush1.bf16.msra.mxu0 %v1005
  %1047 = vmatprep.subr.bf16.mxu0 0
  %1048 = vmatpush1.bf16.msra.mxu0 %v1006
  %1049 = vmatprep.subr.bf16.mxu0 0
  %1050 = vmatpush1.bf16.msra.mxu0 %v1007
  %1051 = vmatprep.subr.bf16.mxu0 0
  %1052 = vmatpush1.bf16.msra.mxu0 %v1008
  %1053 = vmatprep.subr.bf16.mxu0 0
  %1054 = vmatpush1.bf16.msra.mxu0 %v1009
  %1055 = vmatprep.subr.bf16.mxu0 0
  %1056 = vmatpush1.bf16.msra.mxu0 %v1010
  %1057 = vmatprep.subr.bf16.mxu0 0
  %1058 = vmatpush1.bf16.msra.mxu0 %v1011
  %1059 = vmatprep.subr.bf16.mxu0 0
  %1060 = vmatpush1.bf16.msra.mxu0 %v1012
  %1061 = vmatprep.mubr.bf16.mxu0 %v879
  %1062 = vmatmul.mubr.bf16.gmra.mrb[0].mxu0 %v878
  %v1063 = vpop.f32.mrb[0].mxu0
  %v1064 = vadd.f32 %v931, %v1063
  %v1065 = vpop.f32.mrb[0].mxu0
  %v1066 = vpop.f32.mrb[0].mxu0
  %v1067 = vadd.f32 %v931, %v1066
  %v1068 = vpop.f32.mrb[0].mxu0
  %1069 = vmatprep.mubr.bf16.mxu0 %v881
  %1070 = vmatmul.mubr.bf16.gmra.mrb[0].mxu0 %v880
  %v1071 = vpop.f32.mrb[0].mxu0
  %v1072 = vadd.f32 %v931, %v1071
  %v1073 = vpop.f32.mrb[0].mxu0
  %v1074 = vpop.f32.mrb[0].mxu0
  %v1075 = vadd.f32 %v931, %v1074
  %v1076 = vpop.f32.mrb[0].mxu0
  %1077 = vmatprep.mubr.bf16.mxu0 %v883
  %1078 = vmatmul.mubr.bf16.gmra.mrb[0].mxu0 %v882
  %v1079 = vpop.f32.mrb[0].mxu0
  %v1080 = vadd.f32 %v931, %v1079
  %v1081 = vpop.f32.mrb[0].mxu0
  %v1082 = vpop.f32.mrb[0].mxu0
  %v1083 = vadd.f32 %v931, %v1082
  %v1084 = vpop.f32.mrb[0].mxu0
  %1085 = vmatprep.mubr.bf16.mxu0 %v885
  %1086 = vmatmul.mubr.bf16.gmra.mrb[0].mxu0 %v884
  %v1087 = vpop.f32.mrb[0].mxu0
  %v1088 = vadd.f32 %v931, %v1087
  %v1089 = vpop.f32.mrb[0].mxu0
  %v1090 = vpop.f32.mrb[0].mxu0
  %v1091 = vadd.f32 %v931, %v1090
  %v1092 = vpop.f32.mrb[0].mxu0
  %1093 = vmatprep.mubr.bf16.mxu0 %v887
  %1094 = vmatmul.mubr.bf16.gmra.mrb[0].mxu0 %v886
  %v1095 = vpop.f32.mrb[0].mxu0
  %v1096 = vadd.f32 %v931, %v1095
  %v1097 = vpop.f32.mrb[0].mxu0
  %v1098 = vpop.f32.mrb[0].mxu0
  %v1099 = vadd.f32 %v931, %v1098
  %v1100 = vpop.f32.mrb[0].mxu0
  %1101 = vmatprep.mubr.bf16.mxu0 %v889
  %1102 = vmatmul.mubr.bf16.gmra.mrb[0].mxu0 %v888
  %v1103 = vpop.f32.mrb[0].mxu0
  %v1104 = vadd.f32 %v931, %v1103
  %v1105 = vpop.f32.mrb[0].mxu0
  %v1106 = vpop.f32.mrb[0].mxu0
  %v1107 = vadd.f32 %v931, %v1106
  %v1108 = vpop.f32.mrb[0].mxu0
  %1109 = vmatprep.mubr.bf16.mxu0 %v891
  %1110 = vmatmul.mubr.bf16.gmra.mrb[0].mxu0 %v890
  %v1111 = vpop.f32.mrb[0].mxu0
  %v1112 = vadd.f32 %v931, %v1111
  %v1113 = vpop.f32.mrb[0].mxu0
  %v1114 = vpop.f32.mrb[0].mxu0
  %v1115 = vadd.f32 %v931, %v1114
  %v1116 = vpop.f32.mrb[0].mxu0
  %1117 = vmatprep.mubr.bf16.mxu0 %v893
  %1118 = vmatmul.mubr.bf16.gmra.mrb[0].mxu0 %v892
  %v1119 = vpop.f32.mrb[0].mxu0
  %v1120 = vadd.f32 %v931, %v1119
  %v1121 = vpop.f32.mrb[0].mxu0
  %v1122 = vpop.f32.mrb[0].mxu0
  %v1123 = vadd.f32 %v931, %v1122
  %v1124 = vpop.f32.mrb[0].mxu0
  %1125 = vdwg.mxu0
  %v1126 = vadd.f32 %v33, %v1064
  %v1127 = vadd.f32 %v34, %v1067
  %v1128 = vadd.f32 %v35, %v1072
  %v1129 = vadd.f32 %v36, %v1075
  %v1130 = vadd.f32 %v37, %v1080
  %v1131 = vadd.f32 %v38, %v1083
  %v1132 = vadd.f32 %v39, %v1088
  %v1133 = vadd.f32 %v40, %v1091
  %v1134 = vadd.f32 %v41, %v1096
  %v1135 = vadd.f32 %v42, %v1099
  %v1136 = vadd.f32 %v43, %v1104
  %v1137 = vadd.f32 %v44, %v1107
  %v1138 = vadd.f32 %v45, %v1112
  %v1139 = vadd.f32 %v46, %v1115
  %v1140 = vadd.f32 %v47, %v1120
  %v1141 = vadd.f32 %v48, %v1123
  %1142 = vst [vmem:[%s9] sm:$0xff] %v1126
  %1143 = vst [vmem:[%s9 + $0x8] sm:$0xff] %v1127
  %1144 = vst [vmem:[%s9 + $0x10] sm:$0xff] %v1128
  %1145 = vst [vmem:[%s9 + $0x18] sm:$0xff] %v1129
  %1146 = vst [vmem:[%s9 + $0x20] sm:$0xff] %v1130
  %1147 = vst [vmem:[%s9 + $0x28] sm:$0xff] %v1131
  %1148 = vst [vmem:[%s9 + $0x30] sm:$0xff] %v1132
  %1149 = vst [vmem:[%s9 + $0x38] sm:$0xff] %v1133
  %1150 = vst [vmem:[%s9 + $0x40] sm:$0xff] %v1134
  %1151 = vst [vmem:[%s9 + $0x48] sm:$0xff] %v1135
  %1152 = vst [vmem:[%s9 + $0x50] sm:$0xff] %v1136
  %1153 = vst [vmem:[%s9 + $0x58] sm:$0xff] %v1137
  %1154 = vst [vmem:[%s9 + $0x60] sm:$0xff] %v1138
  %1155 = vst [vmem:[%s9 + $0x68] sm:$0xff] %v1139
  %1156 = vst [vmem:[%s9 + $0x70] sm:$0xff] %v1140
  %1157 = vst [vmem:[%s9 + $0x78] sm:$0xff] %v1141
  // Predicated region
  $region38: #{decoder_layer_forward.11} parent=0 // pred_check
    _
  $region39: #{decoder_layer_forward.11} parent=0 // pred_check_branch
    %1159 = sbr.rel (0) target = $region41
  $region40: #{decoder_layer_forward.11} parent=0 // pred_region
    _
  $region41: #{decoder_layer_forward.11} parent=0 // pred_fallthru
    _
  // Predicated region
  $region42: #{decoder_layer_forward.11} parent=0 // pred_check
    _
  $region43: #{decoder_layer_forward.11} parent=0 // pred_check_branch
    %1161 = sbr.rel (0) target = $region45
  $region44: #{decoder_layer_forward.11} parent=0 // pred_region
    _
  $region45: #{decoder_layer_forward.11} parent=0 // pred_fallthru
    _

// kernel: decoder_layer_forward.10
$region0: #{decoder_layer_forward.10}
  #allocation0 [shape = 'u32[]', space=smem, size = 0x4, offset = 0x4, fixed_abs, tag = 'smem constant byte address 0x4 - core index']
  #allocation1 [shape = 'u32[144,128]{1,0:T(1,128)}', space=vmem, size = 0x12000, scoped, tag = 'internal scratch']
  %s0 = inlined_call_operand.vmem [shape: bf16[2,4,64,32], index: 0, kind: input, shape index: {}]
  %s1 = inlined_call_operand.vmem [shape: bf16[2,4,16,32], index: 1, kind: input, shape index: {}]
  %s2 = inlined_call_operand.vmem [shape: bf16[2,4,16,32], index: 2, kind: input, shape index: {}]
  %s3 = inlined_call_operand.vmem [shape: f32[2,1,16], index: 3, kind: input, shape index: {}]
  %s4 = inlined_call_operand.vmem [shape: f32[2,64,128], index: 4, kind: input, shape index: {}]
  %s5 = inlined_call_operand.vmem [shape: bf16[4,32,128], index: 5, kind: input, shape index: {}]
  %s6 = inlined_call_operand.vmem [shape: f32[1,128], index: 6, kind: input, shape index: {}]
  %s7 = inlined_call_operand.vmem [shape: f32[1,128], index: 7, kind: input, shape index: {}]
  %s8 = inlined_call_operand.vmem [shape: f32[1,128], index: 8, kind: input, shape index: {}]
  %s9 = inlined_call_operand.vmem [shape: f32[2,64,128], index: 9, kind: output, shape index: {}]
  %s10 = sld [smem:[#allocation0]]
  $region69: #{decoder_layer_forward.10} parent=0
    _
  %s12 = ssub.s32 1, %s10
  %s13 = scalar_select 0, %s12, %s10
  loop: start=0, step=1, limit=4
  $region2: #{decoder_layer_forward.10} parent=0 // loop_pre_header
    _
  $region3: #{decoder_layer_forward.10} parent=0 // loop_header
    %s15 = sphi 0, %s19
    %p16 = scmp.ge.s32.totalorder %s15, 4
    %s22 = sphi 0, %s34
    %s23 = sphi 0, %s30
    %s24 = sphi 0, %s22
    %s25 = sphi 0, %s23
    %s26 = sphi 0, %s24
    %s27 = sphi 0, %s25
    %s39 = sphi 0, %s41
    %s42 = sphi 0, %s39
    %s43 = sphi 0, %s42
    %s59 = sphi 0, %s43
    %s65 = sphi 0, %s67
    %s68 = sphi 0, %s65
    %s69 = sphi 0, %s68
    %s85 = sphi 0, %s69
    %s91 = sphi 0, %s93
    %s94 = sphi 0, %s91
    %s95 = sphi 0, %s94
    %s111 = sphi 0, %s95
    %s117 = sphi 0, %s119
    %s120 = sphi 0, %s117
    %s121 = sphi 0, %s120
    %s137 = sphi 0, %s121
    %s145 = sphi 0, %s147
    %s148 = sphi 0, %s145
    %s149 = sphi 0, %s148
    %s165 = sphi 0, %s149
    %s169 = sphi 0, %s169
    %s171 = sphi 0, %s169
    %s172 = sphi 0, %s171
    %s186 = sphi 0, %s172
    %s190 = sphi 0, %s190
    %s192 = sphi 0, %s190
    %s193 = sphi 0, %s192
    %s207 = sphi 0, %s193
    %s211 = sphi 0, %s211
    %s213 = sphi 0, %s211
    %s214 = sphi 0, %s213
    %s228 = sphi 0, %s214
    %s232 = sphi 0, %s232
    %s234 = sphi 0, %s232
    %s235 = sphi 0, %s234
    %s249 = sphi 0, %s235
    %s257 = sphi 0, %s259
    %s260 = sphi 0, %s257
    %s261 = sphi 0, %s260
    %s277 = sphi 0, %s261
  $region4: #{decoder_layer_forward.10} parent=0 // loop_header_branch
    %18 = sbr.rel (%p16) target = $region8
  $region5: #{decoder_layer_forward.10} parent=0 // loop_body
    %s20 = ssub.s32 %s15, 1
    %s21 = ssub.s32 %s15, 2
    %s28 = sadd.s32 1, %s23
    %p29 = scmp.ge.s32.totalorder %s28, 1
    %s30 = scalar_select %p29, 0, %s28
    %s31 = sadd.s32 1, %s22
    %s32 = scalar_select %p29, %s31, %s22
    %p33 = scmp.ge.s32.totalorder %s32, 2
    %s34 = scalar_select %p33, 0, %s32
    %s35 = ssub.s32 %s22, %s34
    %s36 = ssub.s32 %s23, %s30
    %s37 = sor.u32 %s35, %s36
    %p38 = scmp.eq.s32.totalorder %s37, 0
    %s40 = sadd.s32 %s39, 1
    %s41 = scalar_select %p38, %s39, %s40
    %p44 = pneg %p38
    %p45 = scmp.eq.s32.totalorder %s15, 1
    %p46 = por %p44, %p45
    %p47 = scmp.ne.s32.totalorder %s39, %s42
    %p48 = scmp.eq.s32.totalorder %s15, 0
    %p49 = por %p47, %p48
    %p50 = scmp.ne.s32.totalorder %s39, %s42
    %p51 = scmp.eq.s32.totalorder %s20, 1
    %p52 = por %p50, %p51
    %p53 = scmp.ne.s32.totalorder %s42, %s43
    %p54 = scmp.eq.s32.totalorder %s20, 0
    %p55 = por %p53, %p54
    %p56 = scmp.ne.s32.totalorder %s42, %s43
    %p57 = scmp.eq.s32.totalorder %s21, 1
    %p58 = por %p56, %p57
    %p60 = scmp.ne.s32.totalorder %s43, %s59
    %p61 = scmp.eq.s32.totalorder %s21, 0
    %p62 = por %p60, %p61
    %s63 = ssub.s32 %s22, %s34
    %p64 = scmp.eq.s32.totalorder %s63, 0
    %s66 = sadd.s32 %s65, 1
    %s67 = scalar_select %p64, %s65, %s66
    %p70 = pneg %p64
    %p71 = scmp.eq.s32.totalorder %s15, 1
    %p72 = por %p70, %p71
    %p73 = scmp.ne.s32.totalorder %s65, %s68
    %p74 = scmp.eq.s32.totalorder %s15, 0
    %p75 = por %p73, %p74
    %p76 = scmp.ne.s32.totalorder %s65, %s68
    %p77 = scmp.eq.s32.totalorder %s20, 1
    %p78 = por %p76, %p77
    %p79 = scmp.ne.s32.totalorder %s68, %s69
    %p80 = scmp.eq.s32.totalorder %s20, 0
    %p81 = por %p79, %p80
    %p82 = scmp.ne.s32.totalorder %s68, %s69
    %p83 = scmp.eq.s32.totalorder %s21, 1
    %p84 = por %p82, %p83
    %p86 = scmp.ne.s32.totalorder %s69, %s85
    %p87 = scmp.eq.s32.totalorder %s21, 0
    %p88 = por %p86, %p87
    %s89 = ssub.s32 %s22, %s34
    %p90 = scmp.eq.s32.totalorder %s89, 0
    %s92 = sadd.s32 %s91, 1
    %s93 = scalar_select %p90, %s91, %s92
    %p96 = pneg %p90
    %p97 = scmp.eq.s32.totalorder %s15, 1
    %p98 = por %p96, %p97
    %p99 = scmp.ne.s32.totalorder %s91, %s94
    %p100 = scmp.eq.s32.totalorder %s15, 0
    %p101 = por %p99, %p100
    %p102 = scmp.ne.s32.totalorder %s91, %s94
    %p103 = scmp.eq.s32.totalorder %s20, 1
    %p104 = por %p102, %p103
    %p105 = scmp.ne.s32.totalorder %s94, %s95
    %p106 = scmp.eq.s32.totalorder %s20, 0
    %p107 = por %p105, %p106
    %p108 = scmp.ne.s32.totalorder %s94, %s95
    %p109 = scmp.eq.s32.totalorder %s21, 1
    %p110 = por %p108, %p109
    %p112 = scmp.ne.s32.totalorder %s95, %s111
    %p113 = scmp.eq.s32.totalorder %s21, 0
    %p114 = por %p112, %p113
    %s115 = ssub.s32 %s22, %s34
    %p116 = scmp.eq.s32.totalorder %s115, 0
    %s118 = sadd.s32 %s117, 1
    %s119 = scalar_select %p116, %s117, %s118
    %p122 = pneg %p116
    %p123 = scmp.eq.s32.totalorder %s15, 1
    %p124 = por %p122, %p123
    %p125 = scmp.ne.s32.totalorder %s117, %s120
    %p126 = scmp.eq.s32.totalorder %s15, 0
    %p127 = por %p125, %p126
    %p128 = scmp.ne.s32.totalorder %s117, %s120
    %p129 = scmp.eq.s32.totalorder %s20, 1
    %p130 = por %p128, %p129
    %p131 = scmp.ne.s32.totalorder %s120, %s121
    %p132 = scmp.eq.s32.totalorder %s20, 0
    %p133 = por %p131, %p132
    %p134 = scmp.ne.s32.totalorder %s120, %s121
    %p135 = scmp.eq.s32.totalorder %s21, 1
    %p136 = por %p134, %p135
    %p138 = scmp.ne.s32.totalorder %s121, %s137
    %p139 = scmp.eq.s32.totalorder %s21, 0
    %p140 = por %p138, %p139
    %s141 = ssub.s32 %s22, %s34
    %s142 = ssub.s32 %s23, %s30
    %s143 = sor.u32 %s141, %s142
    %p144 = scmp.eq.s32.totalorder %s143, 0
    %s146 = sadd.s32 %s145, 1
    %s147 = scalar_select %p144, %s145, %s146
    %p150 = pneg %p144
    %p151 = scmp.eq.s32.totalorder %s15, 1
    %p152 = por %p150, %p151
    %p153 = scmp.ne.s32.totalorder %s145, %s148
    %p154 = scmp.eq.s32.totalorder %s15, 0
    %p155 = por %p153, %p154
    %p156 = scmp.ne.s32.totalorder %s145, %s148
    %p157 = scmp.eq.s32.totalorder %s20, 1
    %p158 = por %p156, %p157
    %p159 = scmp.ne.s32.totalorder %s148, %s149
    %p160 = scmp.eq.s32.totalorder %s20, 0
    %p161 = por %p159, %p160
    %p162 = scmp.ne.s32.totalorder %s148, %s149
    %p163 = scmp.eq.s32.totalorder %s21, 1
    %p164 = por %p162, %p163
    %p166 = scmp.ne.s32.totalorder %s149, %s165
    %p167 = scmp.eq.s32.totalorder %s21, 0
    %p168 = por %p166, %p167
    %s170 = sadd.s32 %s169, 1
    %p173 = scmp.eq.s32.totalorder %s15, 1
    %p174 = scmp.ne.s32.totalorder %s169, %s171
    %p175 = scmp.eq.s32.totalorder %s15, 0
    %p176 = por %p174, %p175
    %p177 = scmp.ne.s32.totalorder %s169, %s171
    %p178 = scmp.eq.s32.totalorder %s20, 1
    %p179 = por %p177, %p178
    %p180 = scmp.ne.s32.totalorder %s171, %s172
    %p181 = scmp.eq.s32.totalorder %s20, 0
    %p182 = por %p180, %p181
    %p183 = scmp.ne.s32.totalorder %s171, %s172
    %p184 = scmp.eq.s32.totalorder %s21, 1
    %p185 = por %p183, %p184
    %p187 = scmp.ne.s32.totalorder %s172, %s186
    %p188 = scmp.eq.s32.totalorder %s21, 0
    %p189 = por %p187, %p188
    %s191 = sadd.s32 %s190, 1
    %p194 = scmp.eq.s32.totalorder %s15, 1
    %p195 = scmp.ne.s32.totalorder %s190, %s192
    %p196 = scmp.eq.s32.totalorder %s15, 0
    %p197 = por %p195, %p196
    %p198 = scmp.ne.s32.totalorder %s190, %s192
    %p199 = scmp.eq.s32.totalorder %s20, 1
    %p200 = por %p198, %p199
    %p201 = scmp.ne.s32.totalorder %s192, %s193
    %p202 = scmp.eq.s32.totalorder %s20, 0
    %p203 = por %p201, %p202
    %p204 = scmp.ne.s32.totalorder %s192, %s193
    %p205 = scmp.eq.s32.totalorder %s21, 1
    %p206 = por %p204, %p205
    %p208 = scmp.ne.s32.totalorder %s193, %s207
    %p209 = scmp.eq.s32.totalorder %s21, 0
    %p210 = por %p208, %p209
    %s212 = sadd.s32 %s211, 1
    %p215 = scmp.eq.s32.totalorder %s15, 1
    %p216 = scmp.ne.s32.totalorder %s211, %s213
    %p217 = scmp.eq.s32.totalorder %s15, 0
    %p218 = por %p216, %p217
    %p219 = scmp.ne.s32.totalorder %s211, %s213
    %p220 = scmp.eq.s32.totalorder %s20, 1
    %p221 = por %p219, %p220
    %p222 = scmp.ne.s32.totalorder %s213, %s214
    %p223 = scmp.eq.s32.totalorder %s20, 0
    %p224 = por %p222, %p223
    %p225 = scmp.ne.s32.totalorder %s213, %s214
    %p226 = scmp.eq.s32.totalorder %s21, 1
    %p227 = por %p225, %p226
    %p229 = scmp.ne.s32.totalorder %s214, %s228
    %p230 = scmp.eq.s32.totalorder %s21, 0
    %p231 = por %p229, %p230
    %s233 = sadd.s32 %s232, 1
    %p236 = scmp.eq.s32.totalorder %s15, 1
    %p237 = scmp.ne.s32.totalorder %s232, %s234
    %p238 = scmp.eq.s32.totalorder %s15, 0
    %p239 = por %p237, %p238
    %p240 = scmp.ne.s32.totalorder %s232, %s234
    %p241 = scmp.eq.s32.totalorder %s20, 1
    %p242 = por %p240, %p241
    %p243 = scmp.ne.s32.totalorder %s234, %s235
    %p244 = scmp.eq.s32.totalorder %s20, 0
    %p245 = por %p243, %p244
    %p246 = scmp.ne.s32.totalorder %s234, %s235
    %p247 = scmp.eq.s32.totalorder %s21, 1
    %p248 = por %p246, %p247
    %p250 = scmp.ne.s32.totalorder %s235, %s249
    %p251 = scmp.eq.s32.totalorder %s21, 0
    %p252 = por %p250, %p251
    %s253 = ssub.s32 %s22, %s34
    %s254 = ssub.s32 %s23, %s30
    %s255 = sor.u32 %s253, %s254
    %p256 = scmp.eq.s32.totalorder %s255, 0
    %s258 = sadd.s32 %s257, 1
    %s259 = scalar_select %p256, %s257, %s258
    %p262 = pneg %p256
    %p263 = scmp.eq.s32.totalorder %s15, 1
    %p264 = por %p262, %p263
    %p265 = scmp.ne.s32.totalorder %s257, %s260
    %p266 = scmp.eq.s32.totalorder %s15, 0
    %p267 = por %p265, %p266
    %p268 = scmp.ne.s32.totalorder %s257, %s260
    %p269 = scmp.eq.s32.totalorder %s20, 1
    %p270 = por %p268, %p269
    %p271 = scmp.ne.s32.totalorder %s260, %s261
    %p272 = scmp.eq.s32.totalorder %s20, 0
    %p273 = por %p271, %p272
    %p274 = scmp.ne.s32.totalorder %s260, %s261
    %p275 = scmp.eq.s32.totalorder %s21, 1
    %p276 = por %p274, %p275
    %p278 = scmp.ne.s32.totalorder %s261, %s277
    %p279 = scmp.eq.s32.totalorder %s21, 0
    %p280 = por %p278, %p279
    %p281 = scmp.le.s32.totalorder 1, %s15
    %p282 = scmp.lt.s32.totalorder %s15, 3
    %p283 = pnand %p281, %p282
    %p284 = pneg %p283
    // Predicated region
    $region9: #{decoder_layer_forward.10} parent=5 // pred_check
      _
    $region10: #{decoder_layer_forward.10} parent=5 // pred_check_branch
      %286 = sbr.rel (%p283) target = $region12
    $region11: #{decoder_layer_forward.10} parent=5 // pred_region
      %s287 = ssub.s32 %s15, 1
      // Predicated region
      $region13: #{decoder_layer_forward.10} parent=11 // pred_check
        %p288 = pneg %p182
      $region14: #{decoder_layer_forward.10} parent=11 // pred_check_branch
        %290 = sbr.rel (%p288) target = $region16
      $region15: #{decoder_layer_forward.10} parent=11 // pred_region
        _
      $region16: #{decoder_layer_forward.10} parent=11 // pred_fallthru
        _
      // Predicated region
      $region17: #{decoder_layer_forward.10} parent=11 // pred_check
        %p291 = pneg %p203
      $region18: #{decoder_layer_forward.10} parent=11 // pred_check_branch
        %293 = sbr.rel (%p291) target = $region20
      $region19: #{decoder_layer_forward.10} parent=11 // pred_region
        _
      $region20: #{decoder_layer_forward.10} parent=11 // pred_fallthru
        _
      // Predicated region
      $region21: #{decoder_layer_forward.10} parent=11 // pred_check
        %p294 = pneg %p224
      $region22: #{decoder_layer_forward.10} parent=11 // pred_check_branch
        %296 = sbr.rel (%p294) target = $region24
      $region23: #{decoder_layer_forward.10} parent=11 // pred_region
        _
      $region24: #{decoder_layer_forward.10} parent=11 // pred_fallthru
        _
      // Predicated region
      $region25: #{decoder_layer_forward.10} parent=11 // pred_check
        %p297 = pneg %p245
      $region26: #{decoder_layer_forward.10} parent=11 // pred_check_branch
        %299 = sbr.rel (%p297) target = $region28
      $region27: #{decoder_layer_forward.10} parent=11 // pred_region
        _
      $region28: #{decoder_layer_forward.10} parent=11 // pred_fallthru
        _
    $region12: #{decoder_layer_forward.10} parent=5 // pred_fallthru
      _
    %p300 = scmp.lt.s32.totalorder %s15, 2
    // Predicated region
    $region29: #{decoder_layer_forward.10} parent=5 // pred_check
      %p301 = pneg %p300
    $region30: #{decoder_layer_forward.10} parent=5 // pred_check_branch
      %303 = sbr.rel (%p301) target = $region32
    $region31: #{decoder_layer_forward.10} parent=5 // pred_region
      // Predicated region
      $region33: #{decoder_layer_forward.10} parent=31 // pred_check
        %p304 = pneg %p49
      $region34: #{decoder_layer_forward.10} parent=31 // pred_check_branch
        %306 = sbr.rel (%p304) target = $region36
      $region35: #{decoder_layer_forward.10} parent=31 // pred_region
        %s307 = smul.u32 8, %s23
        %p308 = scmp.lt.s32.totalorder %s22, 1
        %s309 = scalar_select %p308, %s22, 1
        %p310 = scmp.lt.s32.totalorder %s307, 7
        %s311 = scalar_select %p310, %s307, 7
        %s312 = smul.addr %s309, 32
        %s313 = sadd.s32 %s311, %s312
        %s314 = smul.addr %s313, 4
        %s315 = scalar_lea.vmem %s0, %s314
        %s316 = smul.u32 8, %s23
      $region36: #{decoder_layer_forward.10} parent=31 // pred_fallthru
        _
      // Predicated region
      $region37: #{decoder_layer_forward.10} parent=31 // pred_check
        %p317 = pneg %p75
      $region38: #{decoder_layer_forward.10} parent=31 // pred_check_branch
        %319 = sbr.rel (%p317) target = $region40
      $region39: #{decoder_layer_forward.10} parent=31 // pred_region
        %p320 = scmp.lt.s32.totalorder %s22, 1
        %s321 = scalar_select %p320, %s22, 1
        %s322 = smul.addr %s321, 8
        %s323 = smul.addr %s322, 4
        %s324 = scalar_lea.vmem %s1, %s323
      $region40: #{decoder_layer_forward.10} parent=31 // pred_fallthru
        _
      // Predicated region
      $region41: #{decoder_layer_forward.10} parent=31 // pred_check
        %p325 = pneg %p101
      $region42: #{decoder_layer_forward.10} parent=31 // pred_check_branch
        %327 = sbr.rel (%p325) target = $region44
      $region43: #{decoder_layer_forward.10} parent=31 // pred_region
        %p328 = scmp.lt.s32.totalorder %s22, 1
        %s329 = scalar_select %p328, %s22, 1
        %s330 = smul.addr %s329, 8
        %s331 = smul.addr %s330, 4
        %s332 = scalar_lea.vmem %s2, %s331
      $region44: #{decoder_layer_forward.10} parent=31 // pred_fallthru
        _
      // Predicated region
      $region45: #{decoder_layer_forward.10} parent=31 // pred_check
        %p333 = pneg %p127
      $region46: #{decoder_layer_forward.10} parent=31 // pred_check_branch
        %335 = sbr.rel (%p333) target = $region48
      $region47: #{decoder_layer_forward.10} parent=31 // pred_region
        %p336 = scmp.lt.s32.totalorder %s22, 1
        %s337 = scalar_select %p336, %s22, 1
        %s338 = scalar_lea.vmem %s3, %s337
      $region48: #{decoder_layer_forward.10} parent=31 // pred_fallthru
        _
      // Predicated region
      $region49: #{decoder_layer_forward.10} parent=31 // pred_check
        %p339 = pneg %p155
      $region50: #{decoder_layer_forward.10} parent=31 // pred_check_branch
        %341 = sbr.rel (%p339) target = $region52
      $region51: #{decoder_layer_forward.10} parent=31 // pred_region
        %s342 = smul.u32 8, %s23
        %p343 = scmp.lt.s32.totalorder %s22, 1
        %s344 = scalar_select %p343, %s22, 1
        %p345 = scmp.lt.s32.totalorder %s342, 7
        %s346 = scalar_select %p345, %s342, 7
        %s347 = smul.addr %s344, 8
        %s348 = sadd.s32 %s346, %s347
        %s349 = smul.addr %s348, 8
        %s350 = scalar_lea.vmem %s4, %s349
        %s351 = smul.u32 8, %s23
      $region52: #{decoder_layer_forward.10} parent=31 // pred_fallthru
        _
    $region32: #{decoder_layer_forward.10} parent=5 // pred_fallthru
      _
    %p352 = scmp.le.s32.totalorder 1, %s15
    %p353 = scmp.lt.s32.totalorder %s15, 3
    %p354 = pnand %p352, %p353
    %p355 = pneg %p354
    // Predicated region
    $region53: #{decoder_layer_forward.10} parent=5 // pred_check
      _
    $region54: #{decoder_layer_forward.10} parent=5 // pred_check_branch
      %357 = sbr.rel (%p354) target = $region56
    $region55: #{decoder_layer_forward.10} parent=5 // pred_region
      %s358 = ssub.s32 %s15, 1
      %s359 = smul.u32 8, %s25
      %p360 = scmp.lt.s32.totalorder %s24, 1
      %s361 = scalar_select %p360, %s24, 1
      %p362 = scmp.lt.s32.totalorder %s359, 7
      %s363 = scalar_select %p362, %s359, 7
      %s364 = smul.addr %s361, 32
      %s365 = sadd.s32 %s363, %s364
      %s366 = smul.addr %s365, 4
      %s367 = scalar_lea.vmem %s0, %s366
      %p368 = pneg %p55
      %p369 = pneg %p52
      %p370 = scmp.lt.s32.totalorder %s24, 1
      %s371 = scalar_select %p370, %s24, 1
      %s372 = smul.addr %s371, 8
      %s373 = smul.addr %s372, 4
      %s374 = scalar_lea.vmem %s1, %s373
      %p375 = pneg %p81
      %p376 = pneg %p78
      %p377 = scmp.lt.s32.totalorder %s24, 1
      %s378 = scalar_select %p377, %s24, 1
      %s379 = smul.addr %s378, 8
      %s380 = smul.addr %s379, 4
      %s381 = scalar_lea.vmem %s2, %s380
      %p382 = pneg %p107
      %p383 = pneg %p104
      %p384 = scmp.lt.s32.totalorder %s24, 1
      %s385 = scalar_select %p384, %s24, 1
      %s386 = scalar_lea.vmem %s3, %s385
      %p387 = pneg %p133
      %p388 = pneg %p130
      %s389 = smul.u32 8, %s25
      %p390 = scmp.lt.s32.totalorder %s24, 1
      %s391 = scalar_select %p390, %s24, 1
      %p392 = scmp.lt.s32.totalorder %s389, 7
      %s393 = scalar_select %p392, %s389, 7
      %s394 = smul.addr %s391, 8
      %s395 = sadd.s32 %s393, %s394
      %s396 = smul.addr %s395, 8
      %s397 = scalar_lea.vmem %s4, %s396
      %p398 = pneg %p161
      %p399 = pneg %p158
      %p400 = pneg %p182
      %p401 = pneg %p179
      %p402 = pneg %p203
      %p403 = pneg %p200
      %p404 = pneg %p224
      %p405 = pneg %p221
      %p406 = pneg %p245
      %p407 = pneg %p242
      %p408 = pneg %p273
      %p409 = pneg %p270
      %s410 = smul.u32 8, %s25
      %p411 = scmp.lt.s32.totalorder %s24, 1
      %s412 = scalar_select %p411, %s24, 1
      %p413 = scmp.lt.s32.totalorder %s410, 7
      %s414 = scalar_select %p413, %s410, 7
      %s415 = smul.addr %s412, 8
      %s416 = sadd.s32 %s414, %s415
      %s417 = smul.addr %s416, 8
      %s418 = scalar_lea.vmem %s9, %s417
      %s419 = smul.u32 8, %s25
      %p420 = scmp.lt.s32.totalorder %s24, 1
      %s421 = scalar_select %p420, %s24, 1
      %p422 = scmp.lt.s32.totalorder %s419, 7
      %s423 = scalar_select %p422, %s419, 7
      %s424 = smul.addr %s421, 32
      %s425 = sadd.s32 %s423, %s424
      %s426 = smul.addr %s425, 4
      %s427 = scalar_lea.vmem %s0, %s426
      %s428 = smul.u32 8, %s25
      %p429 = scmp.lt.s32.totalorder %s24, 1
      %s430 = scalar_select %p429, %s24, 1
      %s431 = smul.addr %s430, 8
      %s432 = smul.addr %s431, 4
      %s433 = scalar_lea.vmem %s1, %s432
      %p434 = scmp.lt.s32.totalorder %s24, 1
      %s435 = scalar_select %p434, %s24, 1
      %s436 = smul.addr %s435, 8
      %s437 = smul.addr %s436, 4
      %s438 = scalar_lea.vmem %s2, %s437
      %p439 = scmp.lt.s32.totalorder %s24, 1
      %s440 = scalar_select %p439, %s24, 1
      %s441 = scalar_lea.vmem %s3, %s440
      %s442 = smul.u32 8, %s25
      %p443 = scmp.lt.s32.totalorder %s24, 1
      %s444 = scalar_select %p443, %s24, 1
      %p445 = scmp.lt.s32.totalorder %s442, 7
      %s446 = scalar_select %p445, %s442, 7
      %s447 = smul.addr %s444, 8
      %s448 = sadd.s32 %s446, %s447
      %s449 = smul.addr %s448, 8
      %s450 = scalar_lea.vmem %s4, %s449
      %s451 = smul.u32 8, %s25
      %s452 = smul.u32 8, %s25
      %p453 = scmp.lt.s32.totalorder %s24, 1
      %s454 = scalar_select %p453, %s24, 1
      %p455 = scmp.lt.s32.totalorder %s452, 7
      %s456 = scalar_select %p455, %s452, 7
      %s457 = smul.addr %s454, 8
      %s458 = sadd.s32 %s456, %s457
      %s459 = smul.addr %s458, 8
      %s460 = scalar_lea.vmem %s9, %s459
      %s461 = smul.u32 8, %s25
      %v463 = vld [vmem:[%s441] sm:$0x1]
      %v464 = vmul.f32 %v463, 1e+30
      %v465 = vld [vmem:[%s427] sm:$0xf]
      %v466 = vld [vmem:[%s427 + $0x4] sm:$0xf]
      %v467 = vld [vmem:[%s427 + $0x8] sm:$0xf]
      %v468 = vld [vmem:[%s427 + $0xc] sm:$0xf]
      %v469 = vld [vmem:[%s427 + $0x10] sm:$0xf]
      %v470 = vld [vmem:[%s427 + $0x14] sm:$0xf]
      %v471 = vld [vmem:[%s427 + $0x18] sm:$0xf]
      %v472 = vld [vmem:[%s427 + $0x1c] sm:$0xf]
      %v473 = vld [vmem:[%s433] sm:$0xf]
      %v474 = vld [vmem:[%s433 + $0x4] sm:$0xf]
      %v475 = vld [vmem:[%s438] sm:$0xf]
      %v476 = vld [vmem:[%s438 + $0x4] sm:$0xf]
      %v485 = vunpack.c.l.b16 %v465
      %v486 = vunpack.c.l.b16 %v466
      %v487 = vunpack.c.l.b16 %v467
      %v488 = vunpack.c.l.b16 %v468
      %v489 = vunpack.c.l.b16 %v469
      %v490 = vunpack.c.l.b16 %v470
      %v491 = vunpack.c.l.b16 %v471
      %v492 = vunpack.c.l.b16 %v472
      %v493 = vpack.c.b16 %v486, %v485
      %v494 = vpack.c.b16 %v488, %v487
      %v495 = vpack.c.b16 %v490, %v489
      %v496 = vpack.c.b16 %v492, %v491
      %v499 = vunpack.c.l.b16 %v473
      %v500 = vunpack.c.l.b16 %v474
      %v501 = vpack.c.b16 %v500, %v499
      %vm502 = vcmask 261120
      %v504 = vsel %vm502, %v493, 0
      %v507 = vsel %vm502, %v494, 0
      %v510 = vsel %vm502, %v495, 0
      %v513 = vsel %vm502, %v496, 0
      %v516 = vsel %vm502, %v501, 0
      %518 = vmatprep.subr.bf16.mxu0 0
      %519 = vmatpush1.bf16.xpose.msra.mxu0 %v516
      %520 = vmatprep.subr.bf16.mxu0 0
      %521 = vmatpush1.bf16.xpose.msra.mxu0 0
      %522 = vmatprep.subr.bf16.mxu0 0
      %523 = vmatpush1.bf16.xpose.msra.mxu0 0
      %524 = vmatprep.subr.bf16.mxu0 0
      %525 = vmatpush1.bf16.xpose.msra.mxu0 0
      %526 = vmatprep.subr.bf16.mxu0 0
      %527 = vmatpush1.bf16.xpose.msra.mxu0 0
      %528 = vmatprep.subr.bf16.mxu0 0
      %529 = vmatpush1.bf16.xpose.msra.mxu0 0
      %530 = vmatprep.subr.bf16.mxu0 0
      %531 = vmatpush1.bf16.xpose.msra.mxu0 0
      %532 = vmatprep.subr.bf16.mxu0 0
      %533 = vmatpush1.bf16.xpose.msra.mxu0 0
      %534 = vmatprep.subr.bf16.mxu0 0
      %535 = vmatpush1.bf16.xpose.msra.mxu0 0
      %536 = vmatprep.subr.bf16.mxu0 0
      %537 = vmatpush1.bf16.xpose.msra.mxu0 0
      %538 = vmatprep.subr.bf16.mxu0 0
      %539 = vmatpush1.bf16.xpose.msra.mxu0 0
      %540 = vmatprep.subr.bf16.mxu0 0
      %541 = vmatpush1.bf16.xpose.msra.mxu0 0
      %542 = vmatprep.subr.bf16.mxu0 0
      %543 = vmatpush1.bf16.xpose.msra.mxu0 0
      %544 = vmatprep.subr.bf16.mxu0 0
      %545 = vmatpush1.bf16.xpose.msra.mxu0 0
      %546 = vmatprep.subr.bf16.mxu0 0
      %547 = vmatpush1.bf16.xpose.msra.mxu0 0
      %548 = vmatprep.subr.bf16.mxu0 0
      %549 = vmatpush1.bf16.xpose.msra.mxu0 0
      %550 = vmatprep.mubr.bf16.mxu0 0
      %551 = vmatmul.mubr.bf16.gmra.mrb[0].mxu0 %v504
      %v552 = vpop.f32.mrb[0].mxu0
      %v553 = vadd.f32 0.0, %v552
      %v554 = vpop.f32.mrb[0].mxu0
      %v555 = vpop.f32.mrb[0].mxu0
      %v556 = vadd.f32 0.0, %v555
      %v557 = vpop.f32.mrb[0].mxu0
      %558 = vmatprep.mubr.bf16.mxu0 0
      %559 = vmatmul.mubr.bf16.gmra.mrb[0].mxu0 %v507
      %v560 = vpop.f32.mrb[0].mxu0
      %v561 = vadd.f32 0.0, %v560
      %v562 = vpop.f32.mrb[0].mxu0
      %v563 = vpop.f32.mrb[0].mxu0
      %v564 = vadd.f32 0.0, %v563
      %v565 = vpop.f32.mrb[0].mxu0
      %566 = vmatprep.mubr.bf16.mxu0 0
      %567 = vmatmul.mubr.bf16.gmra.mrb[0].mxu0 %v510
      %v568 = vpop.f32.mrb[0].mxu0
      %v569 = vadd.f32 0.0, %v568
      %v570 = vpop.f32.mrb[0].mxu0
      %v571 = vpop.f32.mrb[0].mxu0
      %v572 = vadd.f32 0.0, %v571
      %v573 = vpop.f32.mrb[0].mxu0
      %574 = vmatprep.mubr.bf16.mxu0 0
      %575 = vmatmul.mubr.bf16.gmra.mrb[0].mxu0 %v513
      %v576 = vpop.f32.mrb[0].mxu0
      %v577 = vadd.f32 0.0, %v576
      %v578 = vpop.f32.mrb[0].mxu0
      %v579 = vpop.f32.mrb[0].mxu0
      %v580 = vadd.f32 0.0, %v579
      %v581 = vpop.f32.mrb[0].mxu0
      %582 = vdwg.mxu0
      %v584 = vlaneseq
      %v585 = vshrl.u32 %v584, 7
      %v586 = vsub.s32 0, %v585
      %v587 = vrot.slane %v464, %v586
      %v589 = vsub.f32 %v553, %v587
      %v590 = vsub.f32 %v556, %v587
      %v591 = vsub.f32 %v561, %v587
      %v592 = vsub.f32 %v564, %v587
      %v593 = vsub.f32 %v569, %v587
      %v594 = vsub.f32 %v572, %v587
      %v595 = vsub.f32 %v577, %v587
      %v596 = vsub.f32 %v580, %v587
      %vm597 = vcmask 130048
      %v598 = vsel %vm597, %v589, -inf
      %599 = vmax.xlane.f32.xlu0 %v598
      %v600 = vpop.xlane.xlu0 %599
      %v601 = vsel %vm597, %v590, -inf
      %602 = vmax.xlane.f32.xlu0 %v601
      %v603 = vpop.xlane.xlu0 %602
      %v604 = vsel %vm597, %v591, -inf
      %605 = vmax.xlane.f32.xlu0 %v604
      %v606 = vpop.xlane.xlu0 %605
      %v607 = vsel %vm597, %v592, -inf
      %608 = vmax.xlane.f32.xlu0 %v607
      %v609 = vpop.xlane.xlu0 %608
      %v610 = vsel %vm597, %v593, -inf
      %611 = vmax.xlane.f32.xlu0 %v610
      %v612 = vpop.xlane.xlu0 %611
      %v613 = vsel %vm597, %v594, -inf
      %614 = vmax.xlane.f32.xlu0 %v613
      %v615 = vpop.xlane.xlu0 %614
      %v616 = vsel %vm597, %v595, -inf
      %617 = vmax.xlane.f32.xlu0 %v616
      %v618 = vpop.xlane.xlu0 %617
      %v619 = vsel %vm597, %v596, -inf
      %620 = vmax.xlane.f32.xlu0 %v619
      %v621 = vpop.xlane.xlu0 %620
      %v622 = vsub.f32 %v589, %v600
      %v623 = vsub.f32 %v590, %v603
      %v624 = vsub.f32 %v591, %v606
      %v625 = vsub.f32 %v592, %v609
      %v626 = vsub.f32 %v593, %v612
      %v627 = vsub.f32 %v594, %v615
      %v628 = vsub.f32 %v595, %v618
      %v629 = vsub.f32 %v596, %v621
      %v630 = vmul.f32 %v622, 1.442695
      %v631 = vpow.pop %v630
      %v632 = vmul.f32 %v623, 1.442695
      %v633 = vpow.pop %v632
      %v634 = vmul.f32 %v624, 1.442695
      %v635 = vpow.pop %v634
      %v636 = vmul.f32 %v625, 1.442695
      %v637 = vpow.pop %v636
      %v638 = vmul.f32 %v626, 1.442695
      %v639 = vpow.pop %v638
      %v640 = vmul.f32 %v627, 1.442695
      %v641 = vpow.pop %v640
      %v642 = vmul.f32 %v628, 1.442695
      %v643 = vpow.pop %v642
      %v644 = vmul.f32 %v629, 1.442695
      %v645 = vpow.pop %v644
      %v646 = vsel %vm597, %v631, 0.0
      %647 = vadd.xlane.f32.xlu0 %v646
      %v648 = vpop.xlane.xlu0 %647
      %v649 = vsel %vm597, %v633, 0.0
      %650 = vadd.xlane.f32.xlu0 %v649
      %v651 = vpop.xlane.xlu0 %650
      %v652 = vsel %vm597, %v635, 0.0
      %653 = vadd.xlane.f32.xlu0 %v652
      %v654 = vpop.xlane.xlu0 %653
      %v655 = vsel %vm597, %v637, 0.0
      %656 = vadd.xlane.f32.xlu0 %v655
      %v657 = vpop.xlane.xlu0 %656
      %v658 = vsel %vm597, %v639, 0.0
      %659 = vadd.xlane.f32.xlu0 %v658
      %v660 = vpop.xlane.xlu0 %659
      %v661 = vsel %vm597, %v641, 0.0
      %662 = vadd.xlane.f32.xlu0 %v661
      %v663 = vpop.xlane.xlu0 %662
      %v664 = vsel %vm597, %v643, 0.0
      %665 = vadd.xlane.f32.xlu0 %v664
      %v666 = vpop.xlane.xlu0 %665
      %v667 = vsel %vm597, %v645, 0.0
      %668 = vadd.xlane.f32.xlu0 %v667
      %v669 = vpop.xlane.xlu0 %668
      %v670 = vrcp.pop %v648
      %v671 = vrcp.pop %v651
      %v672 = vrcp.pop %v654
      %v673 = vrcp.pop %v657
      %v674 = vrcp.pop %v660
      %v675 = vrcp.pop %v663
      %v676 = vrcp.pop %v666
      %v677 = vrcp.pop %v669
      %v678 = vmul.f32 %v631, %v670
      %v679 = vmul.f32 %v633, %v671
      %v680 = vmul.f32 %v635, %v672
      %v681 = vmul.f32 %v637, %v673
      %v682 = vmul.f32 %v639, %v674
      %v683 = vmul.f32 %v641, %v675
      %v684 = vmul.f32 %v643, %v676
      %v685 = vmul.f32 %v645, %v677
      %v686 = vpack.c.bf16 %v679, %v678
      %v687 = vpack.c.bf16 %v681, %v680
      %v688 = vpack.c.bf16 %v683, %v682
      %v689 = vpack.c.bf16 %v685, %v684
      %v692 = vunpack.c.l.b16 %v475
      %v693 = vunpack.c.l.b16 %v476
      %v694 = vpack.c.b16 %v693, %v692
      %v697 = vsel %vm597, %v686, 0
      %v700 = vsel %vm597, %v687, 0
      %v703 = vsel %vm597, %v688, 0
      %v706 = vsel %vm597, %v689, 0
      %708 = vmatprep.subr.bf16.mxu0 0
      %709 = vmatpush1.bf16.msra.mxu0 %v694
      %710 = vmatprep.subr.bf16.mxu0 0
      %711 = vmatpush1.bf16.msra.mxu0 0
      %712 = vmatprep.subr.bf16.mxu0 0
      %713 = vmatpush1.bf16.msra.mxu0 0
      %714 = vmatprep.subr.bf16.mxu0 0
      %715 = vmatpush1.bf16.msra.mxu0 0
      %716 = vmatprep.subr.bf16.mxu0 0
      %717 = vmatpush1.bf16.msra.mxu0 0
      %718 = vmatprep.subr.bf16.mxu0 0
      %719 = vmatpush1.bf16.msra.mxu0 0
      %720 = vmatprep.subr.bf16.mxu0 0
      %721 = vmatpush1.bf16.msra.mxu0 0
      %722 = vmatprep.subr.bf16.mxu0 0
      %723 = vmatpush1.bf16.msra.mxu0 0
      %724 = vmatprep.subr.bf16.mxu0 0
      %725 = vmatpush1.bf16.msra.mxu0 0
      %726 = vmatprep.subr.bf16.mxu0 0
      %727 = vmatpush1.bf16.msra.mxu0 0
      %728 = vmatprep.subr.bf16.mxu0 0
      %729 = vmatpush1.bf16.msra.mxu0 0
      %730 = vmatprep.subr.bf16.mxu0 0
      %731 = vmatpush1.bf16.msra.mxu0 0
      %732 = vmatprep.subr.bf16.mxu0 0
      %733 = vmatpush1.bf16.msra.mxu0 0
      %734 = vmatprep.subr.bf16.mxu0 0
      %735 = vmatpush1.bf16.msra.mxu0 0
      %736 = vmatprep.subr.bf16.mxu0 0
      %737 = vmatpush1.bf16.msra.mxu0 0
      %738 = vmatprep.subr.bf16.mxu0 0
      %739 = vmatpush1.bf16.msra.mxu0 0
      %740 = vmatprep.mubr.bf16.mxu0 0
      %741 = vmatmul.mubr.bf16.gmra.mrb[0].mxu0 %v697
      %v742 = vpop.f32.mrb[0].mxu0
      %v743 = vadd.f32 0.0, %v742
      %v744 = vpop.f32.mrb[0].mxu0
      %v745 = vpop.f32.mrb[0].mxu0
      %v746 = vadd.f32 0.0, %v745
      %v747 = vpop.f32.mrb[0].mxu0
      %748 = vmatprep.mubr.bf16.mxu0 0
      %749 = vmatmul.mubr.bf16.gmra.mrb[0].mxu0 %v700
      %v750 = vpop.f32.mrb[0].mxu0
      %v751 = vadd.f32 0.0, %v750
      %v752 = vpop.f32.mrb[0].mxu0
      %v753 = vpop.f32.mrb[0].mxu0
      %v754 = vadd.f32 0.0, %v753
      %v755 = vpop.f32.mrb[0].mxu0
      %756 = vmatprep.mubr.bf16.mxu0 0
      %757 = vmatmul.mubr.bf16.gmra.mrb[0].mxu0 %v703
      %v758 = vpop.f32.mrb[0].mxu0
      %v759 = vadd.f32 0.0, %v758
      %v760 = vpop.f32.mrb[0].mxu0
      %v761 = vpop.f32.mrb[0].mxu0
      %v762 = vadd.f32 0.0, %v761
      %v763 = vpop.f32.mrb[0].mxu0
      %764 = vmatprep.mubr.bf16.mxu0 0
      %765 = vmatmul.mubr.bf16.gmra.mrb[0].mxu0 %v706
      %v766 = vpop.f32.mrb[0].mxu0
      %v767 = vadd.f32 0.0, %v766
      %v768 = vpop.f32.mrb[0].mxu0
      %v769 = vpop.f32.mrb[0].mxu0
      %v770 = vadd.f32 0.0, %v769
      %v771 = vpop.f32.mrb[0].mxu0
      %772 = vdwg.mxu0
      %v773 = vpack.c.bf16 %v746, %v743
      %v774 = vpack.c.bf16 %v754, %v751
      %v775 = vpack.c.bf16 %v762, %v759
      %v776 = vpack.c.bf16 %v770, %v767
      %v777 = vld [vmem:[%s5] sm:$0xf]
      %v778 = vld [vmem:[%s5 + $0x4] sm:$0xf]
      %v779 = vld [vmem:[%s5 + $0x8] sm:$0xf]
      %v780 = vld [vmem:[%s5 + $0xc] sm:$0xf]
      %s781 = scalar_lea.vmem %s427, 32
      %v782 = vld [vmem:[%s781] sm:$0xf]
      %v783 = vld [vmem:[%s781 + $0x4] sm:$0xf]
      %v784 = vld [vmem:[%s781 + $0x8] sm:$0xf]
      %v785 = vld [vmem:[%s781 + $0xc] sm:$0xf]
      %v786 = vld [vmem:[%s781 + $0x10] sm:$0xf]
      %v787 = vld [vmem:[%s781 + $0x14] sm:$0xf]
      %v788 = vld [vmem:[%s781 + $0x18] sm:$0xf]
      %v789 = vld [vmem:[%s781 + $0x1c] sm:$0xf]
      %s790 = scalar_lea.vmem %s433, 8
      %v791 = vld [vmem:[%s790] sm:$0xf]
      %v792 = vld [vmem:[%s790 + $0x4] sm:$0xf]
      %s793 = scalar_lea.vmem %s438, 8
      %v794 = vld [vmem:[%s793] sm:$0xf]
      %v795 = vld [vmem:[%s793 + $0x4] sm:$0xf]
      %v804 = vunpack.c.l.b16 %v782
      %v805 = vunpack.c.l.b16 %v783
      %v806 = vunpack.c.l.b16 %v784
      %v807 = vunpack.c.l.b16 %v785
      %v808 = vunpack.c.l.b16 %v786
      %v809 = vunpack.c.l.b16 %v787
      %v810 = vunpack.c.l.b16 %v788
      %v811 = vunpack.c.l.b16 %v789
      %v812 = vpack.c.b16 %v805, %v804
      %v813 = vpack.c.b16 %v807, %v806
      %v814 = vpack.c.b16 %v809, %v808
      %v815 = vpack.c.b16 %v811, %v810
      %v818 = vunpack.c.l.b16 %v791
      %v819 = vunpack.c.l.b16 %v792
      %v820 = vpack.c.b16 %v819, %v818
      %v822 = vsel %vm502, %v812, 0
      %v825 = vsel %vm502, %v813, 0
      %v828 = vsel %vm502, %v814, 0
      %v831 = vsel %vm502, %v815, 0
      %v834 = vsel %vm502, %v820, 0
      %836 = vmatprep.subr.bf16.mxu0 0
      %837 = vmatpush1.bf16.xpose.msra.mxu0 %v834
      %838 = vmatprep.subr.bf16.mxu0 0
      %839 = vmatpush1.bf16.xpose.msra.mxu0 0
      %840 = vmatprep.subr.bf16.mxu0 0
      %841 = vmatpush1.bf16.xpose.msra.mxu0 0
      %842 = vmatprep.subr.bf16.mxu0 0
      %843 = vmatpush1.bf16.xpose.msra.mxu0 0
      %844 = vmatprep.subr.bf16.mxu0 0
      %845 = vmatpush1.bf16.xpose.msra.mxu0 0
      %846 = vmatprep.subr.bf16.mxu0 0
      %847 = vmatpush1.bf16.xpose.msra.mxu0 0
      %848 = vmatprep.subr.bf16.mxu0 0
      %849 = vmatpush1.bf16.xpose.msra.mxu0 0
      %850 = vmatprep.subr.bf16.mxu0 0
      %851 = vmatpush1.bf16.xpose.msra.mxu0 0
      %852 = vmatprep.subr.bf16.mxu0 0
      %853 = vmatpush1.bf16.xpose.msra.mxu0 0
      %854 = vmatprep.subr.bf16.mxu0 0
      %855 = vmatpush1.bf16.xpose.msra.mxu0 0
      %856 = vmatprep.subr.bf16.mxu0 0
      %857 = vmatpush1.bf16.xpose.msra.mxu0 0
      %858 = vmatprep.subr.bf16.mxu0 0
      %859 = vmatpush1.bf16.xpose.msra.mxu0 0
      %860 = vmatprep.subr.bf16.mxu0 0
      %861 = vmatpush1.bf16.xpose.msra.mxu0 0
      %862 = vmatprep.subr.bf16.mxu0 0
      %863 = vmatpush1.bf16.xpose.msra.mxu0 0
      %864 = vmatprep.subr.bf16.mxu0 0
      %865 = vmatpush1.bf16.xpose.msra.mxu0 0
      %866 = vmatprep.subr.bf16.mxu0 0
      %867 = vmatpush1.bf16.xpose.msra.mxu0 0
      %868 = vmatprep.mubr.bf16.mxu0 0
      %869 = vmatmul.mubr.bf16.gmra.mrb[0].mxu0 %v822
      %v870 = vpop.f32.mrb[0].mxu0
      %v871 = vadd.f32 0.0, %v870
      %v872 = vpop.f32.mrb[0].mxu0
      %v873 = vpop.f32.mrb[0].mxu0
      %v874 = vadd.f32 0.0, %v873
      %v875 = vpop.f32.mrb[0].mxu0
      %876 = vmatprep.mubr.bf16.mxu0 0
      %877 = vmatmul.mubr.bf16.gmra.mrb[0].mxu0 %v825
      %v878 = vpop.f32.mrb[0].mxu0
      %v879 = vadd.f32 0.0, %v878
      %v880 = vpop.f32.mrb[0].mxu0
      %v881 = vpop.f32.mrb[0].mxu0
      %v882 = vadd.f32 0.0, %v881
      %v883 = vpop.f32.mrb[0].mxu0
      %884 = vmatprep.mubr.bf16.mxu0 0
      %885 = vmatmul.mubr.bf16.gmra.mrb[0].mxu0 %v828
      %v886 = vpop.f32.mrb[0].mxu0
      %v887 = vadd.f32 0.0, %v886
      %v888 = vpop.f32.mrb[0].mxu0
      %v889 = vpop.f32.mrb[0].mxu0
      %v890 = vadd.f32 0.0, %v889
      %v891 = vpop.f32.mrb[0].mxu0
      %892 = vmatprep.mubr.bf16.mxu0 0
      %893 = vmatmul.mubr.bf16.gmra.mrb[0].mxu0 %v831
      %v894 = vpop.f32.mrb[0].mxu0
      %v895 = vadd.f32 0.0, %v894
      %v896 = vpop.f32.mrb[0].mxu0
      %v897 = vpop.f32.mrb[0].mxu0
      %v898 = vadd.f32 0.0, %v897
      %v899 = vpop.f32.mrb[0].mxu0
      %900 = vdwg.mxu0
      %v901 = vsub.f32 %v871, %v587
      %v902 = vsub.f32 %v874, %v587
      %v903 = vsub.f32 %v879, %v587
      %v904 = vsub.f32 %v882, %v587
      %v905 = vsub.f32 %v887, %v587
      %v906 = vsub.f32 %v890, %v587
      %v907 = vsub.f32 %v895, %v587
      %v908 = vsub.f32 %v898, %v587
      %v909 = vsel %vm597, %v901, -inf
      %910 = vmax.xlane.f32.xlu0 %v909
      %v911 = vpop.xlane.xlu0 %910
      %v912 = vsel %vm597, %v902, -inf
      %913 = vmax.xlane.f32.xlu0 %v912
      %v914 = vpop.xlane.xlu0 %913
      %v915 = vsel %vm597, %v903, -inf
      %916 = vmax.xlane.f32.xlu0 %v915
      %v917 = vpop.xlane.xlu0 %916
      %v918 = vsel %vm597, %v904, -inf
      %919 = vmax.xlane.f32.xlu0 %v918
      %v920 = vpop.xlane.xlu0 %919
      %v921 = vsel %vm597, %v905, -inf
      %922 = vmax.xlane.f32.xlu0 %v921
      %v923 = vpop.xlane.xlu0 %922
      %v924 = vsel %vm597, %v906, -inf
      %925 = vmax.xlane.f32.xlu0 %v924
      %v926 = vpop.xlane.xlu0 %925
      %v927 = vsel %vm597, %v907, -inf
      %928 = vmax.xlane.f32.xlu0 %v927
      %v929 = vpop.xlane.xlu0 %928
      %v930 = vsel %vm597, %v908, -inf
      %931 = vmax.xlane.f32.xlu0 %v930
      %v932 = vpop.xlane.xlu0 %931
      %v933 = vsub.f32 %v901, %v911
      %v934 = vsub.f32 %v902, %v914
      %v935 = vsub.f32 %v903, %v917
      %v936 = vsub.f32 %v904, %v920
      %v937 = vsub.f32 %v905, %v923
      %v938 = vsub.f32 %v906, %v926
      %v939 = vsub.f32 %v907, %v929
      %v940 = vsub.f32 %v908, %v932
      %v941 = vmul.f32 %v933, 1.442695
      %v942 = vpow.pop %v941
      %v943 = vmul.f32 %v934, 1.442695
      %v944 = vpow.pop %v943
      %v945 = vmul.f32 %v935, 1.442695
      %v946 = vpow.pop %v945
      %v947 = vmul.f32 %v936, 1.442695
      %v948 = vpow.pop %v947
      %v949 = vmul.f32 %v937, 1.442695
      %v950 = vpow.pop %v949
      %v951 = vmul.f32 %v938, 1.442695
      %v952 = vpow.pop %v951
      %v953 = vmul.f32 %v939, 1.442695
      %v954 = vpow.pop %v953
      %v955 = vmul.f32 %v940, 1.442695
      %v956 = vpow.pop %v955
      %v957 = vsel %vm597, %v942, 0.0
      %958 = vadd.xlane.f32.xlu0 %v957
      %v959 = vpop.xlane.xlu0 %958
      %v960 = vsel %vm597, %v944, 0.0
      %961 = vadd.xlane.f32.xlu0 %v960
      %v962 = vpop.xlane.xlu0 %961
      %v963 = vsel %vm597, %v946, 0.0
      %964 = vadd.xlane.f32.xlu0 %v963
      %v965 = vpop.xlane.xlu0 %964
      %v966 = vsel %vm597, %v948, 0.0
      %967 = vadd.xlane.f32.xlu0 %v966
      %v968 = vpop.xlane.xlu0 %967
      %v969 = vsel %vm597, %v950, 0.0
      %970 = vadd.xlane.f32.xlu0 %v969
      %v971 = vpop.xlane.xlu0 %970
      %v972 = vsel %vm597, %v952, 0.0
      %973 = vadd.xlane.f32.xlu0 %v972
      %v974 = vpop.xlane.xlu0 %973
      %v975 = vsel %vm597, %v954, 0.0
      %976 = vadd.xlane.f32.xlu0 %v975
      %v977 = vpop.xlane.xlu0 %976
      %v978 = vsel %vm597, %v956, 0.0
      %979 = vadd.xlane.f32.xlu0 %v978
      %v980 = vpop.xlane.xlu0 %979
      %v981 = vrcp.pop %v959
      %v982 = vrcp.pop %v962
      %v983 = vrcp.pop %v965
      %v984 = vrcp.pop %v968
      %v985 = vrcp.pop %v971
      %v986 = vrcp.pop %v974
      %v987 = vrcp.pop %v977
      %v988 = vrcp.pop %v980
      %v989 = vmul.f32 %v942, %v981
      %v990 = vmul.f32 %v944, %v982
      %v991 = vmul.f32 %v946, %v983
      %v992 = vmul.f32 %v948, %v984
      %v993 = vmul.f32 %v950, %v985
      %v994 = vmul.f32 %v952, %v986
      %v995 = vmul.f32 %v954, %v987
      %v996 = vmul.f32 %v956, %v988
      %v997 = vpack.c.bf16 %v990, %v989
      %v998 = vpack.c.bf16 %v992, %v991
      %v999 = vpack.c.bf16 %v994, %v993
      %v1000 = vpack.c.bf16 %v996, %v995
      %v1003 = vunpack.c.l.b16 %v794
      %v1004 = vunpack.c.l.b16 %v795
      %v1005 = vpack.c.b16 %v1004, %v1003
      %v1008 = vsel %vm597, %v997, 0
      %v1011 = vsel %vm597, %v998, 0
      %v1014 = vsel %vm597, %v999, 0
      %v1017 = vsel %vm597, %v1000, 0
      %1019 = vmatprep.subr.bf16.mxu0 0
      %1020 = vmatpush1.bf16.msra.mxu0 %v1005
      %1021 = vmatprep.subr.bf16.mxu0 0
      %1022 = vmatpush1.bf16.msra.mxu0 0
      %1023 = vmatprep.subr.bf16.mxu0 0
      %1024 = vmatpush1.bf16.msra.mxu0 0
      %1025 = vmatprep.subr.bf16.mxu0 0
      %1026 = vmatpush1.bf16.msra.mxu0 0
      %1027 = vmatprep.subr.bf16.mxu0 0
      %1028 = vmatpush1.bf16.msra.mxu0 0
      %1029 = vmatprep.subr.bf16.mxu0 0
      %1030 = vmatpush1.bf16.msra.mxu0 0
      %1031 = vmatprep.subr.bf16.mxu0 0
      %1032 = vmatpush1.bf16.msra.mxu0 0
      %1033 = vmatprep.subr.bf16.mxu0 0
      %1034 = vmatpush1.bf16.msra.mxu0 0
      %1035 = vmatprep.subr.bf16.mxu0 0
      %1036 = vmatpush1.bf16.msra.mxu0 0
      %1037 = vmatprep.subr.bf16.mxu0 0
      %1038 = vmatpush1.bf16.msra.mxu0 0
      %1039 = vmatprep.subr.bf16.mxu0 0
      %1040 = vmatpush1.bf16.msra.mxu0 0
      %1041 = vmatprep.subr.bf16.mxu0 0
      %1042 = vmatpush1.bf16.msra.mxu0 0
      %1043 = vmatprep.subr.bf16.mxu0 0
      %1044 = vmatpush1.bf16.msra.mxu0 0
      %1045 = vmatprep.subr.bf16.mxu0 0
      %1046 = vmatpush1.bf16.msra.mxu0 0
      %1047 = vmatprep.subr.bf16.mxu0 0
      %1048 = vmatpush1.bf16.msra.mxu0 0
      %1049 = vmatprep.subr.bf16.mxu0 0
      %1050 = vmatpush1.bf16.msra.mxu0 0
      %1051 = vmatprep.mubr.bf16.mxu0 0
      %1052 = vmatmul.mubr.bf16.gmra.mrb[0].mxu0 %v1008
      %v1053 = vpop.f32.mrb[0].mxu0
      %v1054 = vadd.f32 0.0, %v1053
      %v1055 = vpop.f32.mrb[0].mxu0
      %v1056 = vpop.f32.mrb[0].mxu0
      %v1057 = vadd.f32 0.0, %v1056
      %v1058 = vpop.f32.mrb[0].mxu0
      %1059 = vmatprep.mubr.bf16.mxu0 0
      %1060 = vmatmul.mubr.bf16.gmra.mrb[0].mxu0 %v1011
      %v1061 = vpop.f32.mrb[0].mxu0
      %v1062 = vadd.f32 0.0, %v1061
      %v1063 = vpop.f32.mrb[0].mxu0
      %v1064 = vpop.f32.mrb[0].mxu0
      %v1065 = vadd.f32 0.0, %v1064
      %v1066 = vpop.f32.mrb[0].mxu0
      %1067 = vmatprep.mubr.bf16.mxu0 0
      %1068 = vmatmul.mubr.bf16.gmra.mrb[0].mxu0 %v1014
      %v1069 = vpop.f32.mrb[0].mxu0
      %v1070 = vadd.f32 0.0, %v1069
      %v1071 = vpop.f32.mrb[0].mxu0
      %v1072 = vpop.f32.mrb[0].mxu0
      %v1073 = vadd.f32 0.0, %v1072
      %v1074 = vpop.f32.mrb[0].mxu0
      %1075 = vmatprep.mubr.bf16.mxu0 0
      %1076 = vmatmul.mubr.bf16.gmra.mrb[0].mxu0 %v1017
      %v1077 = vpop.f32.mrb[0].mxu0
      %v1078 = vadd.f32 0.0, %v1077
      %v1079 = vpop.f32.mrb[0].mxu0
      %v1080 = vpop.f32.mrb[0].mxu0
      %v1081 = vadd.f32 0.0, %v1080
      %v1082 = vpop.f32.mrb[0].mxu0
      %1083 = vdwg.mxu0
      %v1084 = vpack.c.bf16 %v1057, %v1054
      %v1085 = vpack.c.bf16 %v1065, %v1062
      %v1086 = vpack.c.bf16 %v1073, %v1070
      %v1087 = vpack.c.bf16 %v1081, %v1078
      %s1088 = scalar_lea.vmem %s5, 16
      %v1089 = vld [vmem:[%s1088] sm:$0xf]
      %v1090 = vld [vmem:[%s1088 + $0x4] sm:$0xf]
      %v1091 = vld [vmem:[%s1088 + $0x8] sm:$0xf]
      %v1092 = vld [vmem:[%s1088 + $0xc] sm:$0xf]
      %v1097 = vunpack.c.l.b16 %v1089
      %v1098 = vunpack.c.l.b16 %v1090
      %v1099 = vunpack.c.l.b16 %v1091
      %v1100 = vunpack.c.l.b16 %v1092
      %v1101 = vpack.c.b16 %v1098, %v1097
      %v1102 = vpack.c.b16 %v1100, %v1099
      %v1106 = vsel %vm502, %v1084, 0
      %v1109 = vsel %vm502, %v1085, 0
      %v1112 = vsel %vm502, %v1086, 0
      %v1115 = vsel %vm502, %v1087, 0
      %1117 = vmatprep.subr.bf16.mxu0 0
      %1118 = vmatpush1.bf16.msra.mxu0 %v1101
      %1119 = vmatprep.subr.bf16.mxu0 0
      %1120 = vmatpush1.bf16.msra.mxu0 %v1102
      %1121 = vmatprep.subr.bf16.mxu0 0
      %1122 = vmatpush1.bf16.msra.mxu0 0
      %1123 = vmatprep.subr.bf16.mxu0 0
      %1124 = vmatpush1.bf16.msra.mxu0 0
      %1125 = vmatprep.subr.bf16.mxu0 0
      %1126 = vmatpush1.bf16.msra.mxu0 0
      %1127 = vmatprep.subr.bf16.mxu0 0
      %1128 = vmatpush1.bf16.msra.mxu0 0
      %1129 = vmatprep.subr.bf16.mxu0 0
      %1130 = vmatpush1.bf16.msra.mxu0 0
      %1131 = vmatprep.subr.bf16.mxu0 0
      %1132 = vmatpush1.bf16.msra.mxu0 0
      %1133 = vmatprep.subr.bf16.mxu0 0
      %1134 = vmatpush1.bf16.msra.mxu0 0
      %1135 = vmatprep.subr.bf16.mxu0 0
      %1136 = vmatpush1.bf16.msra.mxu0 0
      %1137 = vmatprep.subr.bf16.mxu0 0
      %1138 = vmatpush1.bf16.msra.mxu0 0
      %1139 = vmatprep.subr.bf16.mxu0 0
      %1140 = vmatpush1.bf16.msra.mxu0 0
      %1141 = vmatprep.subr.bf16.mxu0 0
      %1142 = vmatpush1.bf16.msra.mxu0 0
      %1143 = vmatprep.subr.bf16.mxu0 0
      %1144 = vmatpush1.bf16.msra.mxu0 0
      %1145 = vmatprep.subr.bf16.mxu0 0
      %1146 = vmatpush1.bf16.msra.mxu0 0
      %1147 = vmatprep.subr.bf16.mxu0 0
      %1148 = vmatpush1.bf16.msra.mxu0 0
      %1149 = vmatprep.mubr.bf16.mxu0 0
      %1150 = vmatmul.mubr.bf16.gmra.mrb[0].mxu0 %v1106
      %v1151 = vpop.f32.mrb[0].mxu0
      %v1152 = vadd.f32 0.0, %v1151
      %v1153 = vpop.f32.mrb[0].mxu0
      %v1154 = vpop.f32.mrb[0].mxu0
      %v1155 = vadd.f32 0.0, %v1154
      %v1156 = vpop.f32.mrb[0].mxu0
      %1157 = vmatprep.mubr.bf16.mxu0 0
      %1158 = vmatmul.mubr.bf16.gmra.mrb[0].mxu0 %v1109
      %v1159 = vpop.f32.mrb[0].mxu0
      %v1160 = vadd.f32 0.0, %v1159
      %v1161 = vpop.f32.mrb[0].mxu0
      %v1162 = vpop.f32.mrb[0].mxu0
      %v1163 = vadd.f32 0.0, %v1162
      %v1164 = vpop.f32.mrb[0].mxu0
      %1165 = vmatprep.mubr.bf16.mxu0 0
      %1166 = vmatmul.mubr.bf16.gmra.mrb[0].mxu0 %v1112
      %v1167 = vpop.f32.mrb[0].mxu0
      %v1168 = vadd.f32 0.0, %v1167
      %v1169 = vpop.f32.mrb[0].mxu0
      %v1170 = vpop.f32.mrb[0].mxu0
      %v1171 = vadd.f32 0.0, %v1170
      %v1172 = vpop.f32.mrb[0].mxu0
      %1173 = vmatprep.mubr.bf16.mxu0 0
      %1174 = vmatmul.mubr.bf16.gmra.mrb[0].mxu0 %v1115
      %v1175 = vpop.f32.mrb[0].mxu0
      %v1176 = vadd.f32 0.0, %v1175
      %v1177 = vpop.f32.mrb[0].mxu0
      %v1178 = vpop.f32.mrb[0].mxu0
      %v1179 = vadd.f32 0.0, %v1178
      %v1180 = vpop.f32.mrb[0].mxu0
      %1181 = vdwg.mxu0
      %v1186 = vunpack.c.l.b16 %v777
      %v1187 = vunpack.c.l.b16 %v778
      %v1188 = vunpack.c.l.b16 %v779
      %v1189 = vunpack.c.l.b16 %v780
      %v1190 = vpack.c.b16 %v1187, %v1186
      %v1191 = vpack.c.b16 %v1189, %v1188
      %v1195 = vsel %vm502, %v773, 0
      %v1198 = vsel %vm502, %v774, 0
      %v1201 = vsel %vm502, %v775, 0
      %v1204 = vsel %vm502, %v776, 0
      %1206 = vmatprep.subr.bf16.mxu0 0
      %1207 = vmatpush1.bf16.msra.mxu0 %v1190
      %1208 = vmatprep.subr.bf16.mxu0 0
      %1209 = vmatpush1.bf16.msra.mxu0 %v1191
      %1210 = vmatprep.subr.bf16.mxu0 0
      %1211 = vmatpush1.bf16.msra.mxu0 0
      %1212 = vmatprep.subr.bf16.mxu0 0
      %1213 = vmatpush1.bf16.msra.mxu0 0
      %1214 = vmatprep.subr.bf16.mxu0 0
      %1215 = vmatpush1.bf16.msra.mxu0 0
      %1216 = vmatprep.subr.bf16.mxu0 0
      %1217 = vmatpush1.bf16.msra.mxu0 0
      %1218 = vmatprep.subr.bf16.mxu0 0
      %1219 = vmatpush1.bf16.msra.mxu0 0
      %1220 = vmatprep.subr.bf16.mxu0 0
      %1221 = vmatpush1.bf16.msra.mxu0 0
      %1222 = vmatprep.subr.bf16.mxu0 0
      %1223 = vmatpush1.bf16.msra.mxu0 0
      %1224 = vmatprep.subr.bf16.mxu0 0
      %1225 = vmatpush1.bf16.msra.mxu0 0
      %1226 = vmatprep.subr.bf16.mxu0 0
      %1227 = vmatpush1.bf16.msra.mxu0 0
      %1228 = vmatprep.subr.bf16.mxu0 0
      %1229 = vmatpush1.bf16.msra.mxu0 0
      %1230 = vmatprep.subr.bf16.mxu0 0
      %1231 = vmatpush1.bf16.msra.mxu0 0
      %1232 = vmatprep.subr.bf16.mxu0 0
      %1233 = vmatpush1.bf16.msra.mxu0 0
      %1234 = vmatprep.subr.bf16.mxu0 0
      %1235 = vmatpush1.bf16.msra.mxu0 0
      %1236 = vmatprep.subr.bf16.mxu0 0
      %1237 = vmatpush1.bf16.msra.mxu0 0
      %1238 = vmatprep.mubr.bf16.mxu0 0
      %1239 = vmatmul.mubr.bf16.gmra.mrb[0].mxu0 %v1195
      %v1240 = vpop.f32.mrb[0].mxu0
      %v1241 = vadd.f32 %v1152, %v1240
      %v1242 = vpop.f32.mrb[0].mxu0
      %v1243 = vpop.f32.mrb[0].mxu0
      %v1244 = vadd.f32 %v1155, %v1243
      %v1245 = vpop.f32.mrb[0].mxu0
      %1246 = vmatprep.mubr.bf16.mxu0 0
      %1247 = vmatmul.mubr.bf16.gmra.mrb[0].mxu0 %v1198
      %v1248 = vpop.f32.mrb[0].mxu0
      %v1249 = vadd.f32 %v1160, %v1248
      %v1250 = vpop.f32.mrb[0].mxu0
      %v1251 = vpop.f32.mrb[0].mxu0
      %v1252 = vadd.f32 %v1163, %v1251
      %v1253 = vpop.f32.mrb[0].mxu0
      %1254 = vmatprep.mubr.bf16.mxu0 0
      %1255 = vmatmul.mubr.bf16.gmra.mrb[0].mxu0 %v1201
      %v1256 = vpop.f32.mrb[0].mxu0
      %v1257 = vadd.f32 %v1168, %v1256
      %v1258 = vpop.f32.mrb[0].mxu0
      %v1259 = vpop.f32.mrb[0].mxu0
      %v1260 = vadd.f32 %v1171, %v1259
      %v1261 = vpop.f32.mrb[0].mxu0
      %1262 = vmatprep.mubr.bf16.mxu0 0
      %1263 = vmatmul.mubr.bf16.gmra.mrb[0].mxu0 %v1204
      %v1264 = vpop.f32.mrb[0].mxu0
      %v1265 = vadd.f32 %v1176, %v1264
      %v1266 = vpop.f32.mrb[0].mxu0
      %v1267 = vpop.f32.mrb[0].mxu0
      %v1268 = vadd.f32 %v1179, %v1267
      %v1269 = vpop.f32.mrb[0].mxu0
      %1270 = vdwg.mxu0
      %s1271 = scalar_lea.vmem %s427, 64
      %v1272 = vld [vmem:[%s1271] sm:$0xf]
      %v1273 = vld [vmem:[%s1271 + $0x4] sm:$0xf]
      %v1274 = vld [vmem:[%s1271 + $0x8] sm:$0xf]
      %v1275 = vld [vmem:[%s1271 + $0xc] sm:$0xf]
      %v1276 = vld [vmem:[%s1271 + $0x10] sm:$0xf]
      %v1277 = vld [vmem:[%s1271 + $0x14] sm:$0xf]
      %v1278 = vld [vmem:[%s1271 + $0x18] sm:$0xf]
      %v1279 = vld [vmem:[%s1271 + $0x1c] sm:$0xf]
      %s1280 = scalar_lea.vmem %s433, 16
      %v1281 = vld [vmem:[%s1280] sm:$0xf]
      %v1282 = vld [vmem:[%s1280 + $0x4] sm:$0xf]
      %s1283 = scalar_lea.vmem %s438, 16
      %v1284 = vld [vmem:[%s1283] sm:$0xf]
      %v1285 = vld [vmem:[%s1283 + $0x4] sm:$0xf]
      %v1294 = vunpack.c.l.b16 %v1272
      %v1295 = vunpack.c.l.b16 %v1273
      %v1296 = vunpack.c.l.b16 %v1274
      %v1297 = vunpack.c.l.b16 %v1275
      %v1298 = vunpack.c.l.b16 %v1276
      %v1299 = vunpack.c.l.b16 %v1277
      %v1300 = vunpack.c.l.b16 %v1278
      %v1301 = vunpack.c.l.b16 %v1279
      %v1302 = vpack.c.b16 %v1295, %v1294
      %v1303 = vpack.c.b16 %v1297, %v1296
      %v1304 = vpack.c.b16 %v1299, %v1298
      %v1305 = vpack.c.b16 %v1301, %v1300
      %v1308 = vunpack.c.l.b16 %v1281
      %v1309 = vunpack.c.l.b16 %v1282
      %v1310 = vpack.c.b16 %v1309, %v1308
      %v1312 = vsel %vm502, %v1302, 0
      %v1315 = vsel %vm502, %v1303, 0
      %v1318 = vsel %vm502, %v1304, 0
      %v1321 = vsel %vm502, %v1305, 0
      %v1324 = vsel %vm502, %v1310, 0
      %1326 = vmatprep.subr.bf16.mxu0 0
      %1327 = vmatpush1.bf16.xpose.msra.mxu0 %v1324
      %1328 = vmatprep.subr.bf16.mxu0 0
      %1329 = vmatpush1.bf16.xpose.msra.mxu0 0
      %1330 = vmatprep.subr.bf16.mxu0 0
      %1331 = vmatpush1.bf16.xpose.msra.mxu0 0
      %1332 = vmatprep.subr.bf16.mxu0 0
      %1333 = vmatpush1.bf16.xpose.msra.mxu0 0
      %1334 = vmatprep.subr.bf16.mxu0 0
      %1335 = vmatpush1.bf16.xpose.msra.mxu0 0
      %1336 = vmatprep.subr.bf16.mxu0 0
      %1337 = vmatpush1.bf16.xpose.msra.mxu0 0
      %1338 = vmatprep.subr.bf16.mxu0 0
      %1339 = vmatpush1.bf16.xpose.msra.mxu0 0
      %1340 = vmatprep.subr.bf16.mxu0 0
      %1341 = vmatpush1.bf16.xpose.msra.mxu0 0
      %1342 = vmatprep.subr.bf16.mxu0 0
      %1343 = vmatpush1.bf16.xpose.msra.mxu0 0
      %1344 = vmatprep.subr.bf16.mxu0 0
      %1345 = vmatpush1.bf16.xpose.msra.mxu0 0
      %1346 = vmatprep.subr.bf16.mxu0 0
      %1347 = vmatpush1.bf16.xpose.msra.mxu0 0
      %1348 = vmatprep.subr.bf16.mxu0 0
      %1349 = vmatpush1.bf16.xpose.msra.mxu0 0
      %1350 = vmatprep.subr.bf16.mxu0 0
      %1351 = vmatpush1.bf16.xpose.msra.mxu0 0
      %1352 = vmatprep.subr.bf16.mxu0 0
      %1353 = vmatpush1.bf16.xpose.msra.mxu0 0
      %1354 = vmatprep.subr.bf16.mxu0 0
      %1355 = vmatpush1.bf16.xpose.msra.mxu0 0
      %1356 = vmatprep.subr.bf16.mxu0 0
      %1357 = vmatpush1.bf16.xpose.msra.mxu0 0
      %1358 = vmatprep.mubr.bf16.mxu0 0
      %1359 = vmatmul.mubr.bf16.gmra.mrb[0].mxu0 %v1312
      %v1360 = vpop.f32.mrb[0].mxu0
      %v1361 = vadd.f32 0.0, %v1360
      %v1362 = vpop.f32.mrb[0].mxu0
      %v1363 = vpop.f32.mrb[0].mxu0
      %v1364 = vadd.f32 0.0, %v1363
      %v1365 = vpop.f32.mrb[0].mxu0
      %1366 = vmatprep.mubr.bf16.mxu0 0
      %1367 = vmatmul.mubr.bf16.gmra.mrb[0].mxu0 %v1315
      %v1368 = vpop.f32.mrb[0].mxu0
      %v1369 = vadd.f32 0.0, %v1368
      %v1370 = vpop.f32.mrb[0].mxu0
      %v1371 = vpop.f32.mrb[0].mxu0
      %v1372 = vadd.f32 0.0, %v1371
      %v1373 = vpop.f32.mrb[0].mxu0
      %1374 = vmatprep.mubr.bf16.mxu0 0
      %1375 = vmatmul.mubr.bf16.gmra.mrb[0].mxu0 %v1318
      %v1376 = vpop.f32.mrb[0].mxu0
      %v1377 = vadd.f32 0.0, %v1376
      %v1378 = vpop.f32.mrb[0].mxu0
      %v1379 = vpop.f32.mrb[0].mxu0
      %v1380 = vadd.f32 0.0, %v1379
      %v1381 = vpop.f32.mrb[0].mxu0
      %1382 = vmatprep.mubr.bf16.mxu0 0
      %1383 = vmatmul.mubr.bf16.gmra.mrb[0].mxu0 %v1321
      %v1384 = vpop.f32.mrb[0].mxu0
      %v1385 = vadd.f32 0.0, %v1384
      %v1386 = vpop.f32.mrb[0].mxu0
      %v1387 = vpop.f32.mrb[0].mxu0
      %v1388 = vadd.f32 0.0, %v1387
      %v1389 = vpop.f32.mrb[0].mxu0
      %1390 = vdwg.mxu0
      %v1391 = vsub.f32 %v1361, %v587
      %v1392 = vsub.f32 %v1364, %v587
      %v1393 = vsub.f32 %v1369, %v587
      %v1394 = vsub.f32 %v1372, %v587
      %v1395 = vsub.f32 %v1377, %v587
      %v1396 = vsub.f32 %v1380, %v587
      %v1397 = vsub.f32 %v1385, %v587
      %v1398 = vsub.f32 %v1388, %v587
      %v1399 = vsel %vm597, %v1391, -inf
      %1400 = vmax.xlane.f32.xlu0 %v1399
      %v1401 = vpop.xlane.xlu0 %1400
      %v1402 = vsel %vm597, %v1392, -inf
      %1403 = vmax.xlane.f32.xlu0 %v1402
      %v1404 = vpop.xlane.xlu0 %1403
      %v1405 = vsel %vm597, %v1393, -inf
      %1406 = vmax.xlane.f32.xlu0 %v1405
      %v1407 = vpop.xlane.xlu0 %1406
      %v1408 = vsel %vm597, %v1394, -inf
      %1409 = vmax.xlane.f32.xlu0 %v1408
      %v1410 = vpop.xlane.xlu0 %1409
      %v1411 = vsel %vm597, %v1395, -inf
      %1412 = vmax.xlane.f32.xlu0 %v1411
      %v1413 = vpop.xlane.xlu0 %1412
      %v1414 = vsel %vm597, %v1396, -inf
      %1415 = vmax.xlane.f32.xlu0 %v1414
      %v1416 = vpop.xlane.xlu0 %1415
      %v1417 = vsel %vm597, %v1397, -inf
      %1418 = vmax.xlane.f32.xlu0 %v1417
      %v1419 = vpop.xlane.xlu0 %1418
      %v1420 = vsel %vm597, %v1398, -inf
      %1421 = vmax.xlane.f32.xlu0 %v1420
      %v1422 = vpop.xlane.xlu0 %1421
      %v1423 = vsub.f32 %v1391, %v1401
      %v1424 = vsub.f32 %v1392, %v1404
      %v1425 = vsub.f32 %v1393, %v1407
      %v1426 = vsub.f32 %v1394, %v1410
      %v1427 = vsub.f32 %v1395, %v1413
      %v1428 = vsub.f32 %v1396, %v1416
      %v1429 = vsub.f32 %v1397, %v1419
      %v1430 = vsub.f32 %v1398, %v1422
      %v1431 = vmul.f32 %v1423, 1.442695
      %v1432 = vpow.pop %v1431
      %v1433 = vmul.f32 %v1424, 1.442695
      %v1434 = vpow.pop %v1433
      %v1435 = vmul.f32 %v1425, 1.442695
      %v1436 = vpow.pop %v1435
      %v1437 = vmul.f32 %v1426, 1.442695
      %v1438 = vpow.pop %v1437
      %v1439 = vmul.f32 %v1427, 1.442695
      %v1440 = vpow.pop %v1439
      %v1441 = vmul.f32 %v1428, 1.442695
      %v1442 = vpow.pop %v1441
      %v1443 = vmul.f32 %v1429, 1.442695
      %v1444 = vpow.pop %v1443
      %v1445 = vmul.f32 %v1430, 1.442695
      %v1446 = vpow.pop %v1445
      %v1447 = vsel %vm597, %v1432, 0.0
      %1448 = vadd.xlane.f32.xlu0 %v1447
      %v1449 = vpop.xlane.xlu0 %1448
      %v1450 = vsel %vm597, %v1434, 0.0
      %1451 = vadd.xlane.f32.xlu0 %v1450
      %v1452 = vpop.xlane.xlu0 %1451
      %v1453 = vsel %vm597, %v1436, 0.0
      %1454 = vadd.xlane.f32.xlu0 %v1453
      %v1455 = vpop.xlane.xlu0 %1454
      %v1456 = vsel %vm597, %v1438, 0.0
      %1457 = vadd.xlane.f32.xlu0 %v1456
      %v1458 = vpop.xlane.xlu0 %1457
      %v1459 = vsel %vm597, %v1440, 0.0
      %1460 = vadd.xlane.f32.xlu0 %v1459
      %v1461 = vpop.xlane.xlu0 %1460
      %v1462 = vsel %vm597, %v1442, 0.0
      %1463 = vadd.xlane.f32.xlu0 %v1462
      %v1464 = vpop.xlane.xlu0 %1463
      %v1465 = vsel %vm597, %v1444, 0.0
      %1466 = vadd.xlane.f32.xlu0 %v1465
      %v1467 = vpop.xlane.xlu0 %1466
      %v1468 = vsel %vm597, %v1446, 0.0
      %1469 = vadd.xlane.f32.xlu0 %v1468
      %v1470 = vpop.xlane.xlu0 %1469
      %v1471 = vrcp.pop %v1449
      %v1472 = vrcp.pop %v1452
      %v1473 = vrcp.pop %v1455
      %v1474 = vrcp.pop %v1458
      %v1475 = vrcp.pop %v1461
      %v1476 = vrcp.pop %v1464
      %v1477 = vrcp.pop %v1467
      %v1478 = vrcp.pop %v1470
      %v1479 = vmul.f32 %v1432, %v1471
      %v1480 = vmul.f32 %v1434, %v1472
      %v1481 = vmul.f32 %v1436, %v1473
      %v1482 = vmul.f32 %v1438, %v1474
      %v1483 = vmul.f32 %v1440, %v1475
      %v1484 = vmul.f32 %v1442, %v1476
      %v1485 = vmul.f32 %v1444, %v1477
      %v1486 = vmul.f32 %v1446, %v1478
      %v1487 = vpack.c.bf16 %v1480, %v1479
      %v1488 = vpack.c.bf16 %v1482, %v1481
      %v1489 = vpack.c.bf16 %v1484, %v1483
      %v1490 = vpack.c.bf16 %v1486, %v1485
      %v1493 = vunpack.c.l.b16 %v1284
      %v1494 = vunpack.c.l.b16 %v1285
      %v1495 = vpack.c.b16 %v1494, %v1493
      %v1498 = vsel %vm597, %v1487, 0
      %v1501 = vsel %vm597, %v1488, 0
      %v1504 = vsel %vm597, %v1489, 0
      %v1507 = vsel %vm597, %v1490, 0
      %1509 = vmatprep.subr.bf16.mxu0 0
      %1510 = vmatpush1.bf16.msra.mxu0 %v1495
      %1511 = vmatprep.subr.bf16.mxu0 0
      %1512 = vmatpush1.bf16.msra.mxu0 0
      %1513 = vmatprep.subr.bf16.mxu0 0
      %1514 = vmatpush1.bf16.msra.mxu0 0
      %1515 = vmatprep.subr.bf16.mxu0 0
      %1516 = vmatpush1.bf16.msra.mxu0 0
      %1517 = vmatprep.subr.bf16.mxu0 0
      %1518 = vmatpush1.bf16.msra.mxu0 0
      %1519 = vmatprep.subr.bf16.mxu0 0
      %1520 = vmatpush1.bf16.msra.mxu0 0
      %1521 = vmatprep.subr.bf16.mxu0 0
      %1522 = vmatpush1.bf16.msra.mxu0 0
      %1523 = vmatprep.subr.bf16.mxu0 0
      %1524 = vmatpush1.bf16.msra.mxu0 0
      %1525 = vmatprep.subr.bf16.mxu0 0
      %1526 = vmatpush1.bf16.msra.mxu0 0
      %1527 = vmatprep.subr.bf16.mxu0 0
      %1528 = vmatpush1.bf16.msra.mxu0 0
      %1529 = vmatprep.subr.bf16.mxu0 0
      %1530 = vmatpush1.bf16.msra.mxu0 0
      %1531 = vmatprep.subr.bf16.mxu0 0
      %1532 = vmatpush1.bf16.msra.mxu0 0
      %1533 = vmatprep.subr.bf16.mxu0 0
      %1534 = vmatpush1.bf16.msra.mxu0 0
      %1535 = vmatprep.subr.bf16.mxu0 0
      %1536 = vmatpush1.bf16.msra.mxu0 0
      %1537 = vmatprep.subr.bf16.mxu0 0
      %1538 = vmatpush1.bf16.msra.mxu0 0
      %1539 = vmatprep.subr.bf16.mxu0 0
      %1540 = vmatpush1.bf16.msra.mxu0 0
      %1541 = vmatprep.mubr.bf16.mxu0 0
      %1542 = vmatmul.mubr.bf16.gmra.mrb[0].mxu0 %v1498
      %v1543 = vpop.f32.mrb[0].mxu0
      %v1544 = vadd.f32 0.0, %v1543
      %v1545 = vpop.f32.mrb[0].mxu0
      %v1546 = vpop.f32.mrb[0].mxu0
      %v1547 = vadd.f32 0.0, %v1546
      %v1548 = vpop.f32.mrb[0].mxu0
      %1549 = vmatprep.mubr.bf16.mxu0 0
      %1550 = vmatmul.mubr.bf16.gmra.mrb[0].mxu0 %v1501
      %v1551 = vpop.f32.mrb[0].mxu0
      %v1552 = vadd.f32 0.0, %v1551
      %v1553 = vpop.f32.mrb[0].mxu0
      %v1554 = vpop.f32.mrb[0].mxu0
      %v1555 = vadd.f32 0.0, %v1554
      %v1556 = vpop.f32.mrb[0].mxu0
      %1557 = vmatprep.mubr.bf16.mxu0 0
      %1558 = vmatmul.mubr.bf16.gmra.mrb[0].mxu0 %v1504
      %v1559 = vpop.f32.mrb[0].mxu0
      %v1560 = vadd.f32 0.0, %v1559
      %v1561 = vpop.f32.mrb[0].mxu0
      %v1562 = vpop.f32.mrb[0].mxu0
      %v1563 = vadd.f32 0.0, %v1562
      %v1564 = vpop.f32.mrb[0].mxu0
      %1565 = vmatprep.mubr.bf16.mxu0 0
      %1566 = vmatmul.mubr.bf16.gmra.mrb[0].mxu0 %v1507
      %v1567 = vpop.f32.mrb[0].mxu0
      %v1568 = vadd.f32 0.0, %v1567
      %v1569 = vpop.f32.mrb[0].mxu0
      %v1570 = vpop.f32.mrb[0].mxu0
      %v1571 = vadd.f32 0.0, %v1570
      %v1572 = vpop.f32.mrb[0].mxu0
      %1573 = vdwg.mxu0
      %v1574 = vpack.c.bf16 %v1547, %v1544
      %v1575 = vpack.c.bf16 %v1555, %v1552
      %v1576 = vpack.c.bf16 %v1563, %v1560
      %v1577 = vpack.c.bf16 %v1571, %v1568
      %s1578 = scalar_lea.vmem %s5, 32
      %v1579 = vld [vmem:[%s1578] sm:$0xf]
      %v1580 = vld [vmem:[%s1578 + $0x4] sm:$0xf]
      %v1581 = vld [vmem:[%s1578 + $0x8] sm:$0xf]
      %v1582 = vld [vmem:[%s1578 + $0xc] sm:$0xf]
      %v1587 = vunpack.c.l.b16 %v1579
      %v1588 = vunpack.c.l.b16 %v1580
      %v1589 = vunpack.c.l.b16 %v1581
      %v1590 = vunpack.c.l.b16 %v1582
      %v1591 = vpack.c.b16 %v1588, %v1587
      %v1592 = vpack.c.b16 %v1590, %v1589
      %v1596 = vsel %vm502, %v1574, 0
      %v1599 = vsel %vm502, %v1575, 0
      %v1602 = vsel %vm502, %v1576, 0
      %v1605 = vsel %vm502, %v1577, 0
      %1607 = vmatprep.subr.bf16.mxu0 0
      %1608 = vmatpush1.bf16.msra.mxu0 %v1591
      %1609 = vmatprep.subr.bf16.mxu0 0
      %1610 = vmatpush1.bf16.msra.mxu0 %v1592
      %1611 = vmatprep.subr.bf16.mxu0 0
      %1612 = vmatpush1.bf16.msra.mxu0 0
      %1613 = vmatprep.subr.bf16.mxu0 0
      %1614 = vmatpush1.bf16.msra.mxu0 0
      %1615 = vmatprep.subr.bf16.mxu0 0
      %1616 = vmatpush1.bf16.msra.mxu0 0
      %1617 = vmatprep.subr.bf16.mxu0 0
      %1618 = vmatpush1.bf16.msra.mxu0 0
      %1619 = vmatprep.subr.bf16.mxu0 0
      %1620 = vmatpush1.bf16.msra.mxu0 0
      %1621 = vmatprep.subr.bf16.mxu0 0
      %1622 = vmatpush1.bf16.msra.mxu0 0
      %1623 = vmatprep.subr.bf16.mxu0 0
      %1624 = vmatpush1.bf16.msra.mxu0 0
      %1625 = vmatprep.subr.bf16.mxu0 0
      %1626 = vmatpush1.bf16.msra.mxu0 0
      %1627 = vmatprep.subr.bf16.mxu0 0
      %1628 = vmatpush1.bf16.msra.mxu0 0
      %1629 = vmatprep.subr.bf16.mxu0 0
      %1630 = vmatpush1.bf16.msra.mxu0 0
      %1631 = vmatprep.subr.bf16.mxu0 0
      %1632 = vmatpush1.bf16.msra.mxu0 0
      %1633 = vmatprep.subr.bf16.mxu0 0
      %1634 = vmatpush1.bf16.msra.mxu0 0
      %1635 = vmatprep.subr.bf16.mxu0 0
      %1636 = vmatpush1.bf16.msra.mxu0 0
      %1637 = vmatprep.subr.bf16.mxu0 0
      %1638 = vmatpush1.bf16.msra.mxu0 0
      %1639 = vmatprep.mubr.bf16.mxu0 0
      %1640 = vmatmul.mubr.bf16.gmra.mrb[0].mxu0 %v1596
      %v1641 = vpop.f32.mrb[0].mxu0
      %v1642 = vadd.f32 0.0, %v1641
      %v1643 = vpop.f32.mrb[0].mxu0
      %v1644 = vpop.f32.mrb[0].mxu0
      %v1645 = vadd.f32 0.0, %v1644
      %v1646 = vpop.f32.mrb[0].mxu0
      %1647 = vmatprep.mubr.bf16.mxu0 0
      %1648 = vmatmul.mubr.bf16.gmra.mrb[0].mxu0 %v1599
      %v1649 = vpop.f32.mrb[0].mxu0
      %v1650 = vadd.f32 0.0, %v1649
      %v1651 = vpop.f32.mrb[0].mxu0
      %v1652 = vpop.f32.mrb[0].mxu0
      %v1653 = vadd.f32 0.0, %v1652
      %v1654 = vpop.f32.mrb[0].mxu0
      %1655 = vmatprep.mubr.bf16.mxu0 0
      %1656 = vmatmul.mubr.bf16.gmra.mrb[0].mxu0 %v1602
      %v1657 = vpop.f32.mrb[0].mxu0
      %v1658 = vadd.f32 0.0, %v1657
      %v1659 = vpop.f32.mrb[0].mxu0
      %v1660 = vpop.f32.mrb[0].mxu0
      %v1661 = vadd.f32 0.0, %v1660
      %v1662 = vpop.f32.mrb[0].mxu0
      %1663 = vmatprep.mubr.bf16.mxu0 0
      %1664 = vmatmul.mubr.bf16.gmra.mrb[0].mxu0 %v1605
      %v1665 = vpop.f32.mrb[0].mxu0
      %v1666 = vadd.f32 0.0, %v1665
      %v1667 = vpop.f32.mrb[0].mxu0
      %v1668 = vpop.f32.mrb[0].mxu0
      %v1669 = vadd.f32 0.0, %v1668
      %v1670 = vpop.f32.mrb[0].mxu0
      %1671 = vdwg.mxu0
      %v1672 = vadd.f32 %v1241, %v1642
      %v1673 = vadd.f32 %v1244, %v1645
      %v1674 = vadd.f32 %v1249, %v1650
      %v1675 = vadd.f32 %v1252, %v1653
      %v1676 = vadd.f32 %v1257, %v1658
      %v1677 = vadd.f32 %v1260, %v1661
      %v1678 = vadd.f32 %v1265, %v1666
      %v1679 = vadd.f32 %v1268, %v1669
      %s1680 = scalar_lea.vmem %s427, 96
      %v1681 = vld [vmem:[%s1680] sm:$0xf]
      %v1682 = vld [vmem:[%s1680 + $0x4] sm:$0xf]
      %v1683 = vld [vmem:[%s1680 + $0x8] sm:$0xf]
      %v1684 = vld [vmem:[%s1680 + $0xc] sm:$0xf]
      %v1685 = vld [vmem:[%s1680 + $0x10] sm:$0xf]
      %v1686 = vld [vmem:[%s1680 + $0x14] sm:$0xf]
      %v1687 = vld [vmem:[%s1680 + $0x18] sm:$0xf]
      %v1688 = vld [vmem:[%s1680 + $0x1c] sm:$0xf]
      %s1689 = scalar_lea.vmem %s433, 24
      %v1690 = vld [vmem:[%s1689] sm:$0xf]
      %v1691 = vld [vmem:[%s1689 + $0x4] sm:$0xf]
      %s1692 = scalar_lea.vmem %s438, 24
      %v1693 = vld [vmem:[%s1692] sm:$0xf]
      %v1694 = vld [vmem:[%s1692 + $0x4] sm:$0xf]
      %v1703 = vunpack.c.l.b16 %v1681
      %v1704 = vunpack.c.l.b16 %v1682
      %v1705 = vunpack.c.l.b16 %v1683
      %v1706 = vunpack.c.l.b16 %v1684
      %v1707 = vunpack.c.l.b16 %v1685
      %v1708 = vunpack.c.l.b16 %v1686
      %v1709 = vunpack.c.l.b16 %v1687
      %v1710 = vunpack.c.l.b16 %v1688
      %v1711 = vpack.c.b16 %v1704, %v1703
      %v1712 = vpack.c.b16 %v1706, %v1705
      %v1713 = vpack.c.b16 %v1708, %v1707
      %v1714 = vpack.c.b16 %v1710, %v1709
      %v1717 = vunpack.c.l.b16 %v1690
      %v1718 = vunpack.c.l.b16 %v1691
      %v1719 = vpack.c.b16 %v1718, %v1717
      %v1721 = vsel %vm502, %v1711, 0
      %v1724 = vsel %vm502, %v1712, 0
      %v1727 = vsel %vm502, %v1713, 0
      %v1730 = vsel %vm502, %v1714, 0
      %v1733 = vsel %vm502, %v1719, 0
      %1735 = vmatprep.subr.bf16.mxu0 0
      %1736 = vmatpush1.bf16.xpose.msra.mxu0 %v1733
      %1737 = vmatprep.subr.bf16.mxu0 0
      %1738 = vmatpush1.bf16.xpose.msra.mxu0 0
      %1739 = vmatprep.subr.bf16.mxu0 0
      %1740 = vmatpush1.bf16.xpose.msra.mxu0 0
      %1741 = vmatprep.subr.bf16.mxu0 0
      %1742 = vmatpush1.bf16.xpose.msra.mxu0 0
      %1743 = vmatprep.subr.bf16.mxu0 0
      %1744 = vmatpush1.bf16.xpose.msra.mxu0 0
      %1745 = vmatprep.subr.bf16.mxu0 0
      %1746 = vmatpush1.bf16.xpose.msra.mxu0 0
      %1747 = vmatprep.subr.bf16.mxu0 0
      %1748 = vmatpush1.bf16.xpose.msra.mxu0 0
      %1749 = vmatprep.subr.bf16.mxu0 0
      %1750 = vmatpush1.bf16.xpose.msra.mxu0 0
      %1751 = vmatprep.subr.bf16.mxu0 0
      %1752 = vmatpush1.bf16.xpose.msra.mxu0 0
      %1753 = vmatprep.subr.bf16.mxu0 0
      %1754 = vmatpush1.bf16.xpose.msra.mxu0 0
      %1755 = vmatprep.subr.bf16.mxu0 0
      %1756 = vmatpush1.bf16.xpose.msra.mxu0 0
      %1757 = vmatprep.subr.bf16.mxu0 0
      %1758 = vmatpush1.bf16.xpose.msra.mxu0 0
      %1759 = vmatprep.subr.bf16.mxu0 0
      %1760 = vmatpush1.bf16.xpose.msra.mxu0 0
      %1761 = vmatprep.subr.bf16.mxu0 0
      %1762 = vmatpush1.bf16.xpose.msra.mxu0 0
      %1763 = vmatprep.subr.bf16.mxu0 0
      %1764 = vmatpush1.bf16.xpose.msra.mxu0 0
      %1765 = vmatprep.subr.bf16.mxu0 0
      %1766 = vmatpush1.bf16.xpose.msra.mxu0 0
      %1767 = vmatprep.mubr.bf16.mxu0 0
      %1768 = vmatmul.mubr.bf16.gmra.mrb[0].mxu0 %v1721
      %v1769 = vpop.f32.mrb[0].mxu0
      %v1770 = vadd.f32 0.0, %v1769
      %v1771 = vpop.f32.mrb[0].mxu0
      %v1772 = vpop.f32.mrb[0].mxu0
      %v1773 = vadd.f32 0.0, %v1772
      %v1774 = vpop.f32.mrb[0].mxu0
      %1775 = vmatprep.mubr.bf16.mxu0 0
      %1776 = vmatmul.mubr.bf16.gmra.mrb[0].mxu0 %v1724
      %v1777 = vpop.f32.mrb[0].mxu0
      %v1778 = vadd.f32 0.0, %v1777
      %v1779 = vpop.f32.mrb[0].mxu0
      %v1780 = vpop.f32.mrb[0].mxu0
      %v1781 = vadd.f32 0.0, %v1780
      %v1782 = vpop.f32.mrb[0].mxu0
      %1783 = vmatprep.mubr.bf16.mxu0 0
      %1784 = vmatmul.mubr.bf16.gmra.mrb[0].mxu0 %v1727
      %v1785 = vpop.f32.mrb[0].mxu0
      %v1786 = vadd.f32 0.0, %v1785
      %v1787 = vpop.f32.mrb[0].mxu0
      %v1788 = vpop.f32.mrb[0].mxu0
      %v1789 = vadd.f32 0.0, %v1788
      %v1790 = vpop.f32.mrb[0].mxu0
      %1791 = vmatprep.mubr.bf16.mxu0 0
      %1792 = vmatmul.mubr.bf16.gmra.mrb[0].mxu0 %v1730
      %v1793 = vpop.f32.mrb[0].mxu0
      %v1794 = vadd.f32 0.0, %v1793
      %v1795 = vpop.f32.mrb[0].mxu0
      %v1796 = vpop.f32.mrb[0].mxu0
      %v1797 = vadd.f32 0.0, %v1796
      %v1798 = vpop.f32.mrb[0].mxu0
      %1799 = vdwg.mxu0
      %v1800 = vsub.f32 %v1770, %v587
      %v1801 = vsub.f32 %v1773, %v587
      %v1802 = vsub.f32 %v1778, %v587
      %v1803 = vsub.f32 %v1781, %v587
      %v1804 = vsub.f32 %v1786, %v587
      %v1805 = vsub.f32 %v1789, %v587
      %v1806 = vsub.f32 %v1794, %v587
      %v1807 = vsub.f32 %v1797, %v587
      %v1808 = vsel %vm597, %v1800, -inf
      %1809 = vmax.xlane.f32.xlu0 %v1808
      %v1810 = vpop.xlane.xlu0 %1809
      %v1811 = vsel %vm597, %v1801, -inf
      %1812 = vmax.xlane.f32.xlu0 %v1811
      %v1813 = vpop.xlane.xlu0 %1812
      %v1814 = vsel %vm597, %v1802, -inf
      %1815 = vmax.xlane.f32.xlu0 %v1814
      %v1816 = vpop.xlane.xlu0 %1815
      %v1817 = vsel %vm597, %v1803, -inf
      %1818 = vmax.xlane.f32.xlu0 %v1817
      %v1819 = vpop.xlane.xlu0 %1818
      %v1820 = vsel %vm597, %v1804, -inf
      %1821 = vmax.xlane.f32.xlu0 %v1820
      %v1822 = vpop.xlane.xlu0 %1821
      %v1823 = vsel %vm597, %v1805, -inf
      %1824 = vmax.xlane.f32.xlu0 %v1823
      %v1825 = vpop.xlane.xlu0 %1824
      %v1826 = vsel %vm597, %v1806, -inf
      %1827 = vmax.xlane.f32.xlu0 %v1826
      %v1828 = vpop.xlane.xlu0 %1827
      %v1829 = vsel %vm597, %v1807, -inf
      %1830 = vmax.xlane.f32.xlu0 %v1829
      %v1831 = vpop.xlane.xlu0 %1830
      %v1832 = vsub.f32 %v1800, %v1810
      %v1833 = vsub.f32 %v1801, %v1813
      %v1834 = vsub.f32 %v1802, %v1816
      %v1835 = vsub.f32 %v1803, %v1819
      %v1836 = vsub.f32 %v1804, %v1822
      %v1837 = vsub.f32 %v1805, %v1825
      %v1838 = vsub.f32 %v1806, %v1828
      %v1839 = vsub.f32 %v1807, %v1831
      %v1840 = vmul.f32 %v1832, 1.442695
      %v1841 = vpow.pop %v1840
      %v1842 = vmul.f32 %v1833, 1.442695
      %v1843 = vpow.pop %v1842
      %v1844 = vmul.f32 %v1834, 1.442695
      %v1845 = vpow.pop %v1844
      %v1846 = vmul.f32 %v1835, 1.442695
      %v1847 = vpow.pop %v1846
      %v1848 = vmul.f32 %v1836, 1.442695
      %v1849 = vpow.pop %v1848
      %v1850 = vmul.f32 %v1837, 1.442695
      %v1851 = vpow.pop %v1850
      %v1852 = vmul.f32 %v1838, 1.442695
      %v1853 = vpow.pop %v1852
      %v1854 = vmul.f32 %v1839, 1.442695
      %v1855 = vpow.pop %v1854
      %v1856 = vsel %vm597, %v1841, 0.0
      %1857 = vadd.xlane.f32.xlu0 %v1856
      %v1858 = vpop.xlane.xlu0 %1857
      %v1859 = vsel %vm597, %v1843, 0.0
      %1860 = vadd.xlane.f32.xlu0 %v1859
      %v1861 = vpop.xlane.xlu0 %1860
      %v1862 = vsel %vm597, %v1845, 0.0
      %1863 = vadd.xlane.f32.xlu0 %v1862
      %v1864 = vpop.xlane.xlu0 %1863
      %v1865 = vsel %vm597, %v1847, 0.0
      %1866 = vadd.xlane.f32.xlu0 %v1865
      %v1867 = vpop.xlane.xlu0 %1866
      %v1868 = vsel %vm597, %v1849, 0.0
      %1869 = vadd.xlane.f32.xlu0 %v1868
      %v1870 = vpop.xlane.xlu0 %1869
      %v1871 = vsel %vm597, %v1851, 0.0
      %1872 = vadd.xlane.f32.xlu0 %v1871
      %v1873 = vpop.xlane.xlu0 %1872
      %v1874 = vsel %vm597, %v1853, 0.0
      %1875 = vadd.xlane.f32.xlu0 %v1874
      %v1876 = vpop.xlane.xlu0 %1875
      %v1877 = vsel %vm597, %v1855, 0.0
      %1878 = vadd.xlane.f32.xlu0 %v1877
      %v1879 = vpop.xlane.xlu0 %1878
      %v1880 = vrcp.pop %v1858
      %v1881 = vrcp.pop %v1861
      %v1882 = vrcp.pop %v1864
      %v1883 = vrcp.pop %v1867
      %v1884 = vrcp.pop %v1870
      %v1885 = vrcp.pop %v1873
      %v1886 = vrcp.pop %v1876
      %v1887 = vrcp.pop %v1879
      %v1888 = vmul.f32 %v1841, %v1880
      %v1889 = vmul.f32 %v1843, %v1881
      %v1890 = vmul.f32 %v1845, %v1882
      %v1891 = vmul.f32 %v1847, %v1883
      %v1892 = vmul.f32 %v1849, %v1884
      %v1893 = vmul.f32 %v1851, %v1885
      %v1894 = vmul.f32 %v1853, %v1886
      %v1895 = vmul.f32 %v1855, %v1887
      %v1896 = vpack.c.bf16 %v1889, %v1888
      %v1897 = vpack.c.bf16 %v1891, %v1890
      %v1898 = vpack.c.bf16 %v1893, %v1892
      %v1899 = vpack.c.bf16 %v1895, %v1894
      %v1902 = vunpack.c.l.b16 %v1693
      %v1903 = vunpack.c.l.b16 %v1694
      %v1904 = vpack.c.b16 %v1903, %v1902
      %v1907 = vsel %vm597, %v1896, 0
      %v1910 = vsel %vm597, %v1897, 0
      %v1913 = vsel %vm597, %v1898, 0
      %v1916 = vsel %vm597, %v1899, 0
      %1918 = vmatprep.subr.bf16.mxu0 0
      %1919 = vmatpush1.bf16.msra.mxu0 %v1904
      %1920 = vmatprep.subr.bf16.mxu0 0
      %1921 = vmatpush1.bf16.msra.mxu0 0
      %1922 = vmatprep.subr.bf16.mxu0 0
      %1923 = vmatpush1.bf16.msra.mxu0 0
      %1924 = vmatprep.subr.bf16.mxu0 0
      %1925 = vmatpush1.bf16.msra.mxu0 0
      %1926 = vmatprep.subr.bf16.mxu0 0
      %1927 = vmatpush1.bf16.msra.mxu0 0
      %1928 = vmatprep.subr.bf16.mxu0 0
      %1929 = vmatpush1.bf16.msra.mxu0 0
      %1930 = vmatprep.subr.bf16.mxu0 0
      %1931 = vmatpush1.bf16.msra.mxu0 0
      %1932 = vmatprep.subr.bf16.mxu0 0
      %1933 = vmatpush1.bf16.msra.mxu0 0
      %1934 = vmatprep.subr.bf16.mxu0 0
      %1935 = vmatpush1.bf16.msra.mxu0 0
      %1936 = vmatprep.subr.bf16.mxu0 0
      %1937 = vmatpush1.bf16.msra.mxu0 0
      %1938 = vmatprep.subr.bf16.mxu0 0
      %1939 = vmatpush1.bf16.msra.mxu0 0
      %1940 = vmatprep.subr.bf16.mxu0 0
      %1941 = vmatpush1.bf16.msra.mxu0 0
      %1942 = vmatprep.subr.bf16.mxu0 0
      %1943 = vmatpush1.bf16.msra.mxu0 0
      %1944 = vmatprep.subr.bf16.mxu0 0
      %1945 = vmatpush1.bf16.msra.mxu0 0
      %1946 = vmatprep.subr.bf16.mxu0 0
      %1947 = vmatpush1.bf16.msra.mxu0 0
      %1948 = vmatprep.subr.bf16.mxu0 0
      %1949 = vmatpush1.bf16.msra.mxu0 0
      %1950 = vmatprep.mubr.bf16.mxu0 0
      %1951 = vmatmul.mubr.bf16.gmra.mrb[0].mxu0 %v1907
      %v1952 = vpop.f32.mrb[0].mxu0
      %v1953 = vadd.f32 0.0, %v1952
      %v1954 = vpop.f32.mrb[0].mxu0
      %v1955 = vpop.f32.mrb[0].mxu0
      %v1956 = vadd.f32 0.0, %v1955
      %v1957 = vpop.f32.mrb[0].mxu0
      %1958 = vmatprep.mubr.bf16.mxu0 0
      %1959 = vmatmul.mubr.bf16.gmra.mrb[0].mxu0 %v1910
      %v1960 = vpop.f32.mrb[0].mxu0
      %v1961 = vadd.f32 0.0, %v1960
      %v1962 = vpop.f32.mrb[0].mxu0
      %v1963 = vpop.f32.mrb[0].mxu0
      %v1964 = vadd.f32 0.0, %v1963
      %v1965 = vpop.f32.mrb[0].mxu0
      %1966 = vmatprep.mubr.bf16.mxu0 0
      %1967 = vmatmul.mubr.bf16.gmra.mrb[0].mxu0 %v1913
      %v1968 = vpop.f32.mrb[0].mxu0
      %v1969 = vadd.f32 0.0, %v1968
      %v1970 = vpop.f32.mrb[0].mxu0
      %v1971 = vpop.f32.mrb[0].mxu0
      %v1972 = vadd.f32 0.0, %v1971
      %v1973 = vpop.f32.mrb[0].mxu0
      %1974 = vmatprep.mubr.bf16.mxu0 0
      %1975 = vmatmul.mubr.bf16.gmra.mrb[0].mxu0 %v1916
      %v1976 = vpop.f32.mrb[0].mxu0
      %v1977 = vadd.f32 0.0, %v1976
      %v1978 = vpop.f32.mrb[0].mxu0
      %v1979 = vpop.f32.mrb[0].mxu0
      %v1980 = vadd.f32 0.0, %v1979
      %v1981 = vpop.f32.mrb[0].mxu0
      %1982 = vdwg.mxu0
      %v1983 = vpack.c.bf16 %v1956, %v1953
      %v1984 = vpack.c.bf16 %v1964, %v1961
      %v1985 = vpack.c.bf16 %v1972, %v1969
      %v1986 = vpack.c.bf16 %v1980, %v1977
      %s1987 = scalar_lea.vmem %s5, 48
      %v1988 = vld [vmem:[%s1987] sm:$0xf]
      %v1989 = vld [vmem:[%s1987 + $0x4] sm:$0xf]
      %v1990 = vld [vmem:[%s1987 + $0x8] sm:$0xf]
      %v1991 = vld [vmem:[%s1987 + $0xc] sm:$0xf]
      %v1996 = vunpack.c.l.b16 %v1988
      %v1997 = vunpack.c.l.b16 %v1989
      %v1998 = vunpack.c.l.b16 %v1990
      %v1999 = vunpack.c.l.b16 %v1991
      %v2000 = vpack.c.b16 %v1997, %v1996
      %v2001 = vpack.c.b16 %v1999, %v1998
      %v2005 = vsel %vm502, %v1983, 0
      %v2008 = vsel %vm502, %v1984, 0
      %v2011 = vsel %vm502, %v1985, 0
      %v2014 = vsel %vm502, %v1986, 0
      %2016 = vmatprep.subr.bf16.mxu0 0
      %2017 = vmatpush1.bf16.msra.mxu0 %v2000
      %2018 = vmatprep.subr.bf16.mxu0 0
      %2019 = vmatpush1.bf16.msra.mxu0 %v2001
      %2020 = vmatprep.subr.bf16.mxu0 0
      %2021 = vmatpush1.bf16.msra.mxu0 0
      %2022 = vmatprep.subr.bf16.mxu0 0
      %2023 = vmatpush1.bf16.msra.mxu0 0
      %2024 = vmatprep.subr.bf16.mxu0 0
      %2025 = vmatpush1.bf16.msra.mxu0 0
      %2026 = vmatprep.subr.bf16.mxu0 0
      %2027 = vmatpush1.bf16.msra.mxu0 0
      %2028 = vmatprep.subr.bf16.mxu0 0
      %2029 = vmatpush1.bf16.msra.mxu0 0
      %2030 = vmatprep.subr.bf16.mxu0 0
      %2031 = vmatpush1.bf16.msra.mxu0 0
      %2032 = vmatprep.subr.bf16.mxu0 0
      %2033 = vmatpush1.bf16.msra.mxu0 0
      %2034 = vmatprep.subr.bf16.mxu0 0
      %2035 = vmatpush1.bf16.msra.mxu0 0
      %2036 = vmatprep.subr.bf16.mxu0 0
      %2037 = vmatpush1.bf16.msra.mxu0 0
      %2038 = vmatprep.subr.bf16.mxu0 0
      %2039 = vmatpush1.bf16.msra.mxu0 0
      %2040 = vmatprep.subr.bf16.mxu0 0
      %2041 = vmatpush1.bf16.msra.mxu0 0
      %2042 = vmatprep.subr.bf16.mxu0 0
      %2043 = vmatpush1.bf16.msra.mxu0 0
      %2044 = vmatprep.subr.bf16.mxu0 0
      %2045 = vmatpush1.bf16.msra.mxu0 0
      %2046 = vmatprep.subr.bf16.mxu0 0
      %2047 = vmatpush1.bf16.msra.mxu0 0
      %2048 = vmatprep.mubr.bf16.mxu0 0
      %2049 = vmatmul.mubr.bf16.gmra.mrb[0].mxu0 %v2005
      %v2050 = vpop.f32.mrb[0].mxu0
      %v2051 = vadd.f32 0.0, %v2050
      %v2052 = vpop.f32.mrb[0].mxu0
      %v2053 = vpop.f32.mrb[0].mxu0
      %v2054 = vadd.f32 0.0, %v2053
      %v2055 = vpop.f32.mrb[0].mxu0
      %2056 = vmatprep.mubr.bf16.mxu0 0
      %2057 = vmatmul.mubr.bf16.gmra.mrb[0].mxu0 %v2008
      %v2058 = vpop.f32.mrb[0].mxu0
      %v2059 = vadd.f32 0.0, %v2058
      %v2060 = vpop.f32.mrb[0].mxu0
      %v2061 = vpop.f32.mrb[0].mxu0
      %v2062 = vadd.f32 0.0, %v2061
      %v2063 = vpop.f32.mrb[0].mxu0
      %2064 = vmatprep.mubr.bf16.mxu0 0
      %2065 = vmatmul.mubr.bf16.gmra.mrb[0].mxu0 %v2011
      %v2066 = vpop.f32.mrb[0].mxu0
      %v2067 = vadd.f32 0.0, %v2066
      %v2068 = vpop.f32.mrb[0].mxu0
      %v2069 = vpop.f32.mrb[0].mxu0
      %v2070 = vadd.f32 0.0, %v2069
      %v2071 = vpop.f32.mrb[0].mxu0
      %2072 = vmatprep.mubr.bf16.mxu0 0
      %2073 = vmatmul.mubr.bf16.gmra.mrb[0].mxu0 %v2014
      %v2074 = vpop.f32.mrb[0].mxu0
      %v2075 = vadd.f32 0.0, %v2074
      %v2076 = vpop.f32.mrb[0].mxu0
      %v2077 = vpop.f32.mrb[0].mxu0
      %v2078 = vadd.f32 0.0, %v2077
      %v2079 = vpop.f32.mrb[0].mxu0
      %2080 = vdwg.mxu0
      %v2081 = vadd.f32 %v1672, %v2051
      %v2082 = vadd.f32 %v1673, %v2054
      %v2083 = vadd.f32 %v1674, %v2059
      %v2084 = vadd.f32 %v1675, %v2062
      %v2085 = vadd.f32 %v1676, %v2067
      %v2086 = vadd.f32 %v1677, %v2070
      %v2087 = vadd.f32 %v1678, %v2075
      %v2088 = vadd.f32 %v1679, %v2078
      %v2089 = vld [vmem:[%s6] sm:$0x1]
      %v2091 = vlaneseq
      %v2092 = vshrl.u32 %v2091, 7
      %v2093 = vsub.s32 0, %v2092
      %v2094 = vrot.slane %v2089, %v2093
      %v2096 = vadd.f32 %v2081, %v2094
      %v2097 = vadd.f32 %v2082, %v2094
      %v2098 = vadd.f32 %v2083, %v2094
      %v2099 = vadd.f32 %v2084, %v2094
      %v2100 = vadd.f32 %v2085, %v2094
      %v2101 = vadd.f32 %v2086, %v2094
      %v2102 = vadd.f32 %v2087, %v2094
      %v2103 = vadd.f32 %v2088, %v2094
      %v2104 = vld [vmem:[%s7] sm:$0x1]
      %v2105 = vld [vmem:[%s8] sm:$0x1]
      %2106 = vadd.xlane.f32.xlu0 %v2096
      %v2107 = vpop.xlane.xlu0 %2106
      %2108 = vadd.xlane.f32.xlu0 %v2097
      %v2109 = vpop.xlane.xlu0 %2108
      %2110 = vadd.xlane.f32.xlu0 %v2098
      %v2111 = vpop.xlane.xlu0 %2110
      %2112 = vadd.xlane.f32.xlu0 %v2099
      %v2113 = vpop.xlane.xlu0 %2112
      %2114 = vadd.xlane.f32.xlu0 %v2100
      %v2115 = vpop.xlane.xlu0 %2114
      %2116 = vadd.xlane.f32.xlu0 %v2101
      %v2117 = vpop.xlane.xlu0 %2116
      %2118 = vadd.xlane.f32.xlu0 %v2102
      %v2119 = vpop.xlane.xlu0 %2118
      %2120 = vadd.xlane.f32.xlu0 %v2103
      %v2121 = vpop.xlane.xlu0 %2120
      %v2122 = vrcp.pop 128.0
      %v2123 = vmul.f32 %v2107, %v2122
      %v2124 = vmul.f32 %v2109, %v2122
      %v2125 = vmul.f32 %v2111, %v2122
      %v2126 = vmul.f32 %v2113, %v2122
      %v2127 = vmul.f32 %v2115, %v2122
      %v2128 = vmul.f32 %v2117, %v2122
      %v2129 = vmul.f32 %v2119, %v2122
      %v2130 = vmul.f32 %v2121, %v2122
      %v2131 = vsub.f32 %v2096, %v2123
      %v2132 = vsub.f32 %v2097, %v2124
      %v2133 = vsub.f32 %v2098, %v2125
      %v2134 = vsub.f32 %v2099, %v2126
      %v2135 = vsub.f32 %v2100, %v2127
      %v2136 = vsub.f32 %v2101, %v2128
      %v2137 = vsub.f32 %v2102, %v2129
      %v2138 = vsub.f32 %v2103, %v2130
      %v2139 = vmul.f32 %v2131, %v2131
      %v2140 = vmul.f32 %v2132, %v2132
      %v2141 = vmul.f32 %v2133, %v2133
      %v2142 = vmul.f32 %v2134, %v2134
      %v2143 = vmul.f32 %v2135, %v2135
      %v2144 = vmul.f32 %v2136, %v2136
      %v2145 = vmul.f32 %v2137, %v2137
      %v2146 = vmul.f32 %v2138, %v2138
      %2147 = vadd.xlane.f32.xlu0 %v2139
      %v2148 = vpop.xlane.xlu0 %2147
      %2149 = vadd.xlane.f32.xlu0 %v2140
      %v2150 = vpop.xlane.xlu0 %2149
      %2151 = vadd.xlane.f32.xlu0 %v2141
      %v2152 = vpop.xlane.xlu0 %2151
      %2153 = vadd.xlane.f32.xlu0 %v2142
      %v2154 = vpop.xlane.xlu0 %2153
      %2155 = vadd.xlane.f32.xlu0 %v2143
      %v2156 = vpop.xlane.xlu0 %2155
      %2157 = vadd.xlane.f32.xlu0 %v2144
      %v2158 = vpop.xlane.xlu0 %2157
      %2159 = vadd.xlane.f32.xlu0 %v2145
      %v2160 = vpop.xlane.xlu0 %2159
      %2161 = vadd.xlane.f32.xlu0 %v2146
      %v2162 = vpop.xlane.xlu0 %2161
      %v2163 = vmul.f32 %v2148, %v2122
      %v2164 = vmul.f32 %v2150, %v2122
      %v2165 = vmul.f32 %v2152, %v2122
      %v2166 = vmul.f32 %v2154, %v2122
      %v2167 = vmul.f32 %v2156, %v2122
      %v2168 = vmul.f32 %v2158, %v2122
      %v2169 = vmul.f32 %v2160, %v2122
      %v2170 = vmul.f32 %v2162, %v2122
      %v2171 = vadd.f32 %v2163, 1e-05
      %v2172 = vadd.f32 %v2164, 1e-05
      %v2173 = vadd.f32 %v2165, 1e-05
      %v2174 = vadd.f32 %v2166, 1e-05
      %v2175 = vadd.f32 %v2167, 1e-05
      %v2176 = vadd.f32 %v2168, 1e-05
      %v2177 = vadd.f32 %v2169, 1e-05
      %v2178 = vadd.f32 %v2170, 1e-05
      %v2179 = vrsqrt.pop %v2171
      %v2180 = vrsqrt.pop %v2172
      %v2181 = vrsqrt.pop %v2173
      %v2182 = vrsqrt.pop %v2174
      %v2183 = vrsqrt.pop %v2175
      %v2184 = vrsqrt.pop %v2176
      %v2185 = vrsqrt.pop %v2177
      %v2186 = vrsqrt.pop %v2178
      %v2187 = vmul.f32 %v2131, %v2179
      %v2188 = vmul.f32 %v2132, %v2180
      %v2189 = vmul.f32 %v2133, %v2181
      %v2190 = vmul.f32 %v2134, %v2182
      %v2191 = vmul.f32 %v2135, %v2183
      %v2192 = vmul.f32 %v2136, %v2184
      %v2193 = vmul.f32 %v2137, %v2185
      %v2194 = vmul.f32 %v2138, %v2186
      %v2196 = vlaneseq
      %v2197 = vshrl.u32 %v2196, 7
      %v2198 = vsub.s32 0, %v2197
      %v2199 = vrot.slane %v2104, %v2198
      %v2201 = vmul.f32 %v2187, %v2199
      %v2202 = vmul.f32 %v2188, %v2199
      %v2203 = vmul.f32 %v2189, %v2199
      %v2204 = vmul.f32 %v2190, %v2199
      %v2205 = vmul.f32 %v2191, %v2199
      %v2206 = vmul.f32 %v2192, %v2199
      %v2207 = vmul.f32 %v2193, %v2199
      %v2208 = vmul.f32 %v2194, %v2199
      %v2210 = vlaneseq
      %v2211 = vshrl.u32 %v2210, 7
      %v2212 = vsub.s32 0, %v2211
      %v2213 = vrot.slane %v2105, %v2212
      %v2215 = vadd.f32 %v2201, %v2213
      %v2216 = vadd.f32 %v2202, %v2213
      %v2217 = vadd.f32 %v2203, %v2213
      %v2218 = vadd.f32 %v2204, %v2213
      %v2219 = vadd.f32 %v2205, %v2213
      %v2220 = vadd.f32 %v2206, %v2213
      %v2221 = vadd.f32 %v2207, %v2213
      %v2222 = vadd.f32 %v2208, %v2213
      %v2223 = vld [vmem:[%s450] sm:$0xff]
      %v2224 = vld [vmem:[%s450 + $0x8] sm:$0xff]
      %v2225 = vld [vmem:[%s450 + $0x10] sm:$0xff]
      %v2226 = vld [vmem:[%s450 + $0x18] sm:$0xff]
      %v2227 = vld [vmem:[%s450 + $0x20] sm:$0xff]
      %v2228 = vld [vmem:[%s450 + $0x28] sm:$0xff]
      %v2229 = vld [vmem:[%s450 + $0x30] sm:$0xff]
      %v2230 = vld [vmem:[%s450 + $0x38] sm:$0xff]
      %v2231 = vadd.f32 %v2223, %v2215
      %v2232 = vadd.f32 %v2224, %v2216
      %v2233 = vadd.f32 %v2225, %v2217
      %v2234 = vadd.f32 %v2226, %v2218
      %v2235 = vadd.f32 %v2227, %v2219
      %v2236 = vadd.f32 %v2228, %v2220
      %v2237 = vadd.f32 %v2229, %v2221
      %v2238 = vadd.f32 %v2230, %v2222
      %2239 = vst [vmem:[%s460] sm:$0xff] %v2231
      %2240 = vst [vmem:[%s460 + $0x8] sm:$0xff] %v2232
      %2241 = vst [vmem:[%s460 + $0x10] sm:$0xff] %v2233
      %2242 = vst [vmem:[%s460 + $0x18] sm:$0xff] %v2234
      %2243 = vst [vmem:[%s460 + $0x20] sm:$0xff] %v2235
      %2244 = vst [vmem:[%s460 + $0x28] sm:$0xff] %v2236
      %2245 = vst [vmem:[%s460 + $0x30] sm:$0xff] %v2237
      %2246 = vst [vmem:[%s460 + $0x38] sm:$0xff] %v2238
      %s2247 = smul.u32 8, %s25
      %p2248 = scmp.lt.s32.totalorder %s24, 1
      %s2249 = scalar_select %p2248, %s24, 1
      %p2250 = scmp.lt.s32.totalorder %s2247, 7
      %s2251 = scalar_select %p2250, %s2247, 7
      %s2252 = smul.addr %s2249, 8
      %s2253 = sadd.s32 %s2251, %s2252
      %s2254 = smul.addr %s2253, 8
      %s2255 = scalar_lea.vmem %s9, %s2254
      // Predicated region
      $region57: #{decoder_layer_forward.10} parent=55 // pred_check
        %p2256 = pneg %p270
      $region58: #{decoder_layer_forward.10} parent=55 // pred_check_branch
        %2258 = sbr.rel (%p2256) target = $region60
      $region59: #{decoder_layer_forward.10} parent=55 // pred_region
        %s2259 = smul.u32 8, %s25
      $region60: #{decoder_layer_forward.10} parent=55 // pred_fallthru
        _
    $region56: #{decoder_layer_forward.10} parent=5 // pred_fallthru
      _
    %p2260 = scmp.le.s32.totalorder 2, %s15
    // Predicated region
    $region61: #{decoder_layer_forward.10} parent=5 // pred_check
      %p2261 = pneg %p2260
    $region62: #{decoder_layer_forward.10} parent=5 // pred_check_branch
      %2263 = sbr.rel (%p2261) target = $region64
    $region63: #{decoder_layer_forward.10} parent=5 // pred_region
      %s2264 = ssub.s32 %s15, 2
      // Predicated region
      $region65: #{decoder_layer_forward.10} parent=63 // pred_check
        %p2265 = pneg %p276
      $region66: #{decoder_layer_forward.10} parent=63 // pred_check_branch
        %2267 = sbr.rel (%p2265) target = $region68
      $region67: #{decoder_layer_forward.10} parent=63 // pred_region
        %s2268 = smul.u32 8, %s27
        %p2269 = scmp.lt.s32.totalorder %s26, 1
        %s2270 = scalar_select %p2269, %s26, 1
        %p2271 = scmp.lt.s32.totalorder %s2268, 7
        %s2272 = scalar_select %p2271, %s2268, 7
        %s2273 = smul.addr %s2270, 8
        %s2274 = sadd.s32 %s2272, %s2273
        %s2275 = smul.addr %s2274, 8
        %s2276 = scalar_lea.vmem %s9, %s2275
      $region68: #{decoder_layer_forward.10} parent=63 // pred_fallthru
        _
    $region64: #{decoder_layer_forward.10} parent=5 // pred_fallthru
      _
  $region6: #{decoder_layer_forward.10} parent=0 // loop_footer
    %s19 = sadd.s32 1, %s15
  $region7: #{decoder_layer_forward.10} parent=0 // loop_footer_branch
    %14 = sbr.rel target = $region3
  $region8: #{decoder_layer_forward.10} parent=0 // loop_exit
    _

</llo_original>
